<compile_context>
chip_gen: v7x
topology: tpu7x:2x2x1
jax: 0.10.0
libtpu: 0.0.40
codegen_flags: <defaults>
</compile_context>

<pallas_src>
import functools
import math

import jax
import jax.numpy as jnp
from jax import lax
from jax.experimental import pallas as pl
from jax.experimental.pallas import tpu as pltpu

# ----------------------------- configuration ---------------------------------
N_HEADS = 1                        # forward requires in_channels == n_heads * 64
DIM_HEAD = 64
INNER_DIM = N_HEADS * 64
IN_CHANNELS = INNER_DIM
CONTEXT_DIM = 1024
FF_INNER = INNER_DIM * 4
NUM_GROUPS = 32
GN_EPS = 1e-6
LN_EPS = 1e-5
MATMUL_DTYPE = jnp.bfloat16        # MXU operand dtype; accumulation is f32

assert N_HEADS == 1, "fused attention kernel below is specialized to a single head"
assert IN_CHANNELS % NUM_GROUPS == 0


# ---------------------------- in-kernel helpers -------------------------------
def _erf(x):
    # Abramowitz & Stegun 7.1.26 rational approximation (|err| < 1.5e-7) so exact
    # (erf-based) torch.nn.functional.gelu semantics are kept with ops guaranteed
    # to lower in Mosaic. Hidden under the FF matmuls' MXU work.
    a1, a2, a3, a4, a5 = 0.254829592, -0.284496736, 1.421413741, -1.453152027, 1.061405429
    p = 0.3275911
    ax = jnp.abs(x)
    t = 1.0 / (1.0 + p * ax)
    poly = t * (a1 + t * (a2 + t * (a3 + t * (a4 + t * a5))))
    y = 1.0 - poly * jnp.exp(-ax * ax)
    return jnp.where(x < 0, -y, y)


def _gelu_exact(x):
    return 0.5 * x * (1.0 + _erf(x * 0.7071067811865476))


def _layernorm(x, g, b, eps=LN_EPS):
    mean = jnp.mean(x, axis=-1, keepdims=True)
    d = x - mean
    var = jnp.mean(d * d, axis=-1, keepdims=True)
    return d * lax.rsqrt(var + eps) * g + b


def _pick_tile(n, target, step=8):
    """Largest divisor of n that is a multiple of `step` and <= target (else n itself)."""
    if n <= target:
        return n
    for cand in range(target - target % step, step - 1, -step):
        if n % cand == 0:
            return cand
    return n   # fallback: full length (see TODO about pad+mask for awkward H*W)


# --------------------------------- kernels ------------------------------------
def _gn_proj_in_kernel(x_ref, p_ref, gnw_ref, gnb_ref, w_ref, b_ref, o_ref, *, eps):
    # Fused: GroupNorm (per-(batch,group) stats) + per-channel affine
    #        + token-major layout change + proj_in matmul.
    x = x_ref[0]                                        # (C, HW) f32
    p = p_ref[...]                                      # (C, C) group-average operator
    # Reduce over HW first, then group-average the tiny (C,1) vectors (identical math,
    # replaces the old f32 (C,C)@(C,HW) matmuls and the (C,HW) temporaries).
    mean_c = jnp.mean(x, axis=-1, keepdims=True)                                   # (C, 1)
    mean_bc = jnp.dot(p, mean_c, preferred_element_type=jnp.float32)               # (C, 1)
    d = x - mean_bc
    var_c = jnp.mean(d * d, axis=-1, keepdims=True)                                # (C, 1)
    var_bc = jnp.dot(p, var_c, preferred_element_type=jnp.float32)                 # (C, 1)
    xn = d * lax.rsqrt(var_bc + eps) * gnw_ref[...] + gnb_ref[...]                 # (C, HW)
    # (HW, C) @ (C, D) without an explicit transpose: contract over C.
    tok = lax.dot_general(xn.astype(MATMUL_DTYPE), w_ref[...],
                          (((0,), (0,)), ((), ())),
                          preferred_element_type=jnp.float32)                      # (HW, D)
    o_ref[0] = tok + b_ref[...]


def _transformer_block_kernel(
        tok_ref, ctx_ref,
        ln1g_ref, ln1b_ref, wq1_ref, wkv1_ref, wo1_ref, bo1_ref,
        ln2g_ref, ln2b_ref, wq2_ref, wkv2_ref, wo2_ref, bo2_ref,
        ln3g_ref, ln3b_ref, ffw1_ref, ffb1_ref, ffw2_ref, ffb2_ref,
        o_ref,
        k1_ref, v1_ref, k2_ref, v2_ref,
        *, scale, ff_inner):
    # Whole BasicTransformerBlock for one (batch, q-tile):
    #   attn1(self) + residual, attn2(cross) + residual, GEGLU FF + residual.
    qi = pl.program_id(1)
    tq = o_ref.shape[1]

    # ---- hoisted per-batch K/V projections (run once per batch, at qi == 0) ----
    @pl.when(qi == 0)
    def _():
        # self-attention context = norm1(all tokens of this batch)
        cx = _layernorm(tok_ref[0], ln1g_ref[...], ln1b_ref[...]).astype(MATMUL_DTYPE)
        k1_ref[...] = jnp.dot(cx, wkv1_ref[0],
                              preferred_element_type=jnp.float32).astype(MATMUL_DTYPE)
        v1_ref[...] = jnp.dot(cx, wkv1_ref[1],
                              preferred_element_type=jnp.float32).astype(MATMUL_DTYPE)
        # cross-attention context (already bf16, pre-cast in the wrapper)
        cc = ctx_ref[0]
        k2_ref[...] = jnp.dot(cc, wkv2_ref[0],
                              preferred_element_type=jnp.float32).astype(MATMUL_DTYPE)
        v2_ref[...] = jnp.dot(cc, wkv2_ref[1],
                              preferred_element_type=jnp.float32).astype(MATMUL_DTYPE)

    def attend(h, lng, lnb, wq, k, v, wo, bo):
        xn = _layernorm(h, lng, lnb)
        # scale folded into q (tq x dh) instead of the (tq, Lk) score matrix
        q = (jnp.dot(xn.astype(MATMUL_DTYPE), wq,
                     preferred_element_type=jnp.float32) * scale).astype(MATMUL_DTYPE)
        s = lax.dot_general(q, k, (((1,), (1,)), ((), ())),
                            preferred_element_type=jnp.float32)           # (tq, Lk)
        m = jnp.max(s, axis=-1, keepdims=True)
        p = jnp.exp(s - m)
        inv = pl.reciprocal(jnp.sum(p, axis=-1, keepdims=True), approx=True)
        attn = jnp.dot(p.astype(MATMUL_DTYPE), v,
                       preferred_element_type=jnp.float32) * inv           # (tq, dh)
        return jnp.dot(attn.astype(MATMUL_DTYPE), wo,
                       preferred_element_type=jnp.float32) + bo + h        # residual

    # residual stream tile sliced from the already-resident per-batch token block
    start = pl.multiple_of(qi * tq, 8) if tq % 8 == 0 else qi * tq
    h = tok_ref[0, pl.ds(start, tq), :]                                    # (tq, D) f32

    h = attend(h, ln1g_ref[...], ln1b_ref[...], wq1_ref[...],
               k1_ref[...], v1_ref[...], wo1_ref[...], bo1_ref[...])
    h = attend(h, ln2g_ref[...], ln2b_ref[...], wq2_ref[...],
               k2_ref[...], v2_ref[...], wo2_ref[...], bo2_ref[...])

    # GEGLU feed-forward + residual
    xn = _layernorm(h, ln3g_ref[...], ln3b_ref[...])
    g = jnp.dot(xn.astype(MATMUL_DTYPE), ffw1_ref[...],
                preferred_element_type=jnp.float32) + ffb1_ref[...]        # (tq, 2*inner)
    gated = g[:, :ff_inner] * _gelu_exact(g[:, ff_inner:])                 # lane-aligned slices
    y = jnp.dot(gated.astype(MATMUL_DTYPE), ffw2_ref[...],
                preferred_element_type=jnp.float32) + ffb2_ref[...]
    o_ref[0] = y + h


def _proj_out_residual_kernel(h_ref, xin_ref, w_ref, b_ref, o_ref):
    # Fused: proj_out matmul + "b (h w) c -> b c h w" layout change + final residual.
    h = h_ref[0]                                        # (tHW, D) f32
    y = lax.dot_general(w_ref[...], h.astype(MATMUL_DTYPE),
                        (((0,), (1,)), ((), ())),
                        preferred_element_type=jnp.float32)                # (C, tHW)
    o_ref[0] = y + b_ref[...] + xin_ref[0]


# ------------------------------ pallas wrappers --------------------------------
def groupnorm_proj_in(x_bchw, gn_w, gn_b, w_pi, b_pi):
    B, C, H, W = x_bchw.shape
    HW = H * W
    Cg = C // NUM_GROUPS
    x = x_bchw.reshape(B, C, HW)
    gid = jnp.arange(C) // Cg
    p_avg = (gid[:, None] == gid[None, :]).astype(jnp.float32) / Cg        # (C, C)
    D = w_pi.shape[1]
    return pl.pallas_call(
        functools.partial(_gn_proj_in_kernel, eps=GN_EPS),
        out_shape=jax.ShapeDtypeStruct((B, HW, D), jnp.float32),
        grid=(B,),
        in_specs=[
            pl.BlockSpec((1, C, HW), lambda b: (b, 0, 0)),
            pl.BlockSpec((C, C), lambda b: (0, 0)),
            pl.BlockSpec((C, 1), lambda b: (0, 0)),
            pl.BlockSpec((C, 1), lambda b: (0, 0)),
            pl.BlockSpec((C, D), lambda b: (0, 0)),
            pl.BlockSpec((1, D), lambda b: (0, 0)),
        ],
        out_specs=pl.BlockSpec((1, HW, D), lambda b: (b, 0, 0)),
        compiler_params=pltpu.CompilerParams(dimension_semantics=("parallel",)),
    )(x, p_avg, gn_w.reshape(C, 1), gn_b.reshape(C, 1), w_pi, b_pi.reshape(1, D))


def transformer_block(tok, ctx_bf16, p, *, q_tile_target=256):
    # q_tile_target=256 is safe for v7x's 64 MiB VMEM; raise to 512-1024 on v5e/v6e.
    B, L, D = tok.shape
    _, Lk, Dk = ctx_bf16.shape
    dh = p["attn1_q_w"].shape[1]
    tq = _pick_tile(L, q_tile_target)
    nq = L // tq
    scale = 1.0 / math.sqrt(dh)

    def rep2(shape):
        return pl.BlockSpec(shape, lambda b, qi: (0, 0))

    def rep3(shape):
        return pl.BlockSpec(shape, lambda b, qi: (0, 0, 0))

    in_specs = [
        # full token block per batch: DMA'd once per batch (block index ignores qi);
        # used both as the self-attention K/V context and (sliced) as the q-tile residual.
        pl.BlockSpec((1, L, D), lambda b, qi: (b, 0, 0)),
        pl.BlockSpec((1, Lk, Dk), lambda b, qi: (b, 0, 0)),     # cross context (bf16)
        rep2((1, D)), rep2((1, D)),                             # ln1
        rep2((D, dh)), rep3((2, D, dh)), rep2((dh, D)), rep2((1, D)),   # attn1
        rep2((1, D)), rep2((1, D)),                             # ln2
        rep2((D, dh)), rep3((2, Dk, dh)), rep2((dh, D)), rep2((1, D)),  # attn2
        rep2((1, D)), rep2((1, D)),                             # ln3
        rep2((D, 2 * FF_INNER)), rep2((1, 2 * FF_INNER)),       # GEGLU proj
        rep2((FF_INNER, D)), rep2((1, D)),                      # FF out proj
    ]
    return pl.pallas_call(
        functools.partial(_transformer_block_kernel, scale=scale, ff_inner=FF_INNER),
        out_shape=jax.ShapeDtypeStruct((B, L, D), jnp.float32),
        grid=(B, nq),
        in_specs=in_specs,
        out_specs=pl.BlockSpec((1, tq, D), lambda b, qi: (b, qi, 0)),
        scratch_shapes=[
            pltpu.VMEM((L, dh), MATMUL_DTYPE),    # self-attn K (per batch)
            pltpu.VMEM((L, dh), MATMUL_DTYPE),    # self-attn V
            pltpu.VMEM((Lk, dh), MATMUL_DTYPE),   # cross-attn K
            pltpu.VMEM((Lk, dh), MATMUL_DTYPE),   # cross-attn V
        ],
        compiler_params=pltpu.CompilerParams(
            # qi carries the hoisted K/V scratch -> "arbitrary"; batch stays "parallel"
            # so v7x's two TensorCores split over batches.
            dimension_semantics=("parallel", "arbitrary")),
    )(tok, ctx_bf16,
      p["ln1_g"].reshape(1, D), p["ln1_b"].reshape(1, D),
      p["attn1_q_w"], p["attn1_kv_w"], p["attn1_o_w"], p["attn1_o_b"].reshape(1, D),
      p["ln2_g"].reshape(1, D), p["ln2_b"].reshape(1, D),
      p["attn2_q_w"], p["attn2_kv_w"], p["attn2_o_w"], p["attn2_o_b"].reshape(1, D),
      p["ln3_g"].reshape(1, D), p["ln3_b"].reshape(1, D),
      p["ff1_w"], p["ff1_b"].reshape(1, 2 * FF_INNER),
      p["ff2_w"], p["ff2_b"].reshape(1, D))


def proj_out_residual(tokens, x_in_bc_hw, w_po, b_po, *, hw_tile_target=512):
    B, HW, D = tokens.shape
    C = w_po.shape[1]
    # lane dim of x_in / output blocks must be a multiple of 128 (or the full HW)
    t = _pick_tile(HW, hw_tile_target, step=128)
    nt = HW // t
    return pl.pallas_call(
        _proj_out_residual_kernel,
        out_shape=jax.ShapeDtypeStruct((B, C, HW), jnp.float32),
        grid=(B, nt),
        in_specs=[
            pl.BlockSpec((1, t, D), lambda b, i: (b, i, 0)),
            pl.BlockSpec((1, C, t), lambda b, i: (b, 0, i)),
            pl.BlockSpec((D, C), lambda b, i: (0, 0)),
            pl.BlockSpec((C, 1), lambda b, i: (0, 0)),
        ],
        out_specs=pl.BlockSpec((1, C, t), lambda b, i: (b, 0, i)),
        compiler_params=pltpu.CompilerParams(
            dimension_semantics=("parallel", "parallel")),
    )(tokens, x_in_bc_hw, w_po, b_po.reshape(C, 1))


# ------------------------------ module forward ---------------------------------
def spatial_transformer_forward(params, x, context):
    B, C, H, W = x.shape
    HW = H * W
    x_in = x.reshape(B, C, HW)

    # GroupNorm(32, C, eps=1e-6) + 'b c h w -> b (h w) c' + proj_in, fused.
    tok = groupnorm_proj_in(x, params["gn_w"], params["gn_b"],
                            params["proj_in_w"], params["proj_in_b"])       # (B, HW, D)

    # Cross-attention context is only ever an MXU operand -> pre-cast to bf16 (halves DMA).
    ctx_bf16 = context.astype(MATMUL_DTYPE)

    # Whole BasicTransformerBlock (attn1 + attn2 + GEGLU FF, all residuals) in one kernel.
    tok = transformer_block(tok, ctx_bf16, params)

    # proj_out (zero-initialised Linear) + 'b (h w) c -> b c h w' + residual, fused.
    out = proj_out_residual(tok, x_in, params["proj_out_w"], params["proj_out_b"])
    return out.reshape(B, C, H, W)


# ------------------------------- parameter init --------------------------------
def init_params(key):
    keys = jax.random.split(key, 10)

    def w(k, shape, std=0.02):
        return (std * jax.random.normal(k, shape, jnp.float32)).astype(MATMUL_DTYPE)

    C, D, dh = IN_CHANNELS, INNER_DIM, DIM_HEAD
    p = {}
    # GroupNorm affine (PyTorch default init)
    p["gn_w"] = jnp.ones((C,), jnp.float32)
    p["gn_b"] = jnp.zeros((C,), jnp.float32)
    # proj_in
    p["proj_in_w"] = w(keys[0], (C, D))
    p["proj_in_b"] = jnp.zeros((D,), jnp.float32)
    # attn1 (self, context_dim = D); to_k/to_v fused into a single (2, D, dh) array
    p["attn1_q_w"] = w(keys[1], (D, dh))
    p["attn1_kv_w"] = w(keys[2], (2, D, dh))
    p["attn1_o_w"] = w(keys[3], (dh, D))
    p["attn1_o_b"] = jnp.zeros((D,), jnp.float32)
    # attn2 (cross, context_dim = 1024)
    p["attn2_q_w"] = w(keys[4], (D, dh))
    p["attn2_kv_w"] = w(keys[5], (2, CONTEXT_DIM, dh))
    p["attn2_o_w"] = w(keys[6], (dh, D))
    p["attn2_o_b"] = jnp.zeros((D,), jnp.float32)
    # layer norms
    for i in (1, 2, 3):
        p[f"ln{i}_g"] = jnp.ones((D,), jnp.float32)
        p[f"ln{i}_b"] = jnp.zeros((D,), jnp.float32)
    # feed-forward (GEGLU proj then Linear)
    p["ff1_w"] = w(keys[7], (D, 2 * FF_INNER))
    p["ff1_b"] = jnp.zeros((2 * FF_INNER,), jnp.float32)
    p["ff2_w"] = w(keys[8], (FF_INNER, D))
    p["ff2_b"] = jnp.zeros((D,), jnp.float32)
    # proj_out = zero_module(nn.Linear(in_channels, inner_dim)) -> all zeros
    p["proj_out_w"] = jnp.zeros((D, C), MATMUL_DTYPE)
    p["proj_out_b"] = jnp.zeros((C,), jnp.float32)
    return p


if __name__ == "__main__":
    key = jax.random.PRNGKey(0)
    kp, kx, kc = jax.random.split(key, 3)
    params = init_params(kp)

    B, H, W = 2, 8, 8
    SEQ = 8
    x = jax.random.normal(kx, (B, IN_CHANNELS, H, W), jnp.float32)
    context = jax.random.normal(kc, (B, SEQ, CONTEXT_DIM), jnp.float32)

    fwd = jax.jit(spatial_transformer_forward)
    out = fwd(params, x, context)
    jax.block_until_ready(out)
    assert out.shape == x.shape and out.dtype == jnp.float32
    # proj_out is zero-initialised (zero_module), so module output must equal its input.
    assert bool(jnp.allclose(out, x)), "zero-init proj_out must make output == input"
    print("KERNEL_OK")
</pallas_src>

<mosaic_0001>
module attributes {stable_mosaic.version = 11 : i64} {
  func.func @_gn_proj_in_kernel(%arg0: i32, %arg1: memref<1x64x64xf32, #tpu.memory_space<vmem>>, %arg2: memref<64x64xf32, #tpu.memory_space<vmem>>, %arg3: memref<64x1xf32, #tpu.memory_space<vmem>>, %arg4: memref<64x1xf32, #tpu.memory_space<vmem>>, %arg5: memref<64x64xbf16, #tpu.memory_space<vmem>>, %arg6: memref<1x64xf32, #tpu.memory_space<vmem>>, %arg7: memref<1x64x64xf32, #tpu.memory_space<vmem>>) attributes {dimension_semantics = [#tpu.dimension_semantics<parallel>], iteration_bounds = array<i64: 2>, scalar_prefetch = 0 : i64, scratch_operands = 0 : i64, tpu.core_type = #tpu.core_type<tc>, window_params = [{transform_indices = @transform_0, window_bounds = array<i64: 1, 64, 64>}, {pipeline_mode = #tpu.pipeline_mode<synchronous>, transform_indices = @transform_1, window_bounds = array<i64: 64, 64>}, {pipeline_mode = #tpu.pipeline_mode<synchronous>, transform_indices = @transform_2, window_bounds = array<i64: 64, 1>}, {pipeline_mode = #tpu.pipeline_mode<synchronous>, transform_indices = @transform_3, window_bounds = array<i64: 64, 1>}, {pipeline_mode = #tpu.pipeline_mode<synchronous>, transform_indices = @transform_4, window_bounds = array<i64: 64, 64>}, {pipeline_mode = #tpu.pipeline_mode<synchronous>, transform_indices = @transform_5, window_bounds = array<i64: 1, 64>}, {transform_indices = @transform_6, window_bounds = array<i64: 1, 64, 64>}]} {
    %c0 = arith.constant 0 : index
    %c0_0 = arith.constant 0 : index
    %c0_1 = arith.constant 0 : index
    %0 = vector.load %arg1[%c0, %c0_0, %c0_1] : memref<1x64x64xf32, #tpu.memory_space<vmem>>, vector<1x64x64xf32>
    %1 = vector.shape_cast %0 : vector<1x64x64xf32> to vector<64x64xf32>
    %c0_2 = arith.constant 0 : index
    %c0_3 = arith.constant 0 : index
    %2 = vector.load %arg2[%c0_2, %c0_3] : memref<64x64xf32, #tpu.memory_space<vmem>>, vector<64x64xf32>
    %cst = arith.constant dense<0.000000e+00> : vector<64xf32>
    %3 = vector.multi_reduction <add>, %1, %cst [1] : vector<64x64xf32> to vector<64xf32>
    %4 = vector.shape_cast %3 : vector<64xf32> to vector<64x1xf32>
    %cst_4 = arith.constant 6.400000e+01 : f32
    %5 = vector.broadcast %cst_4 : f32 to vector<64x1xf32>
    %6 = arith.divf %4, %5 : vector<64x1xf32>
    %cst_5 = arith.constant dense<0.000000e+00> : vector<64x1xf32>
    %7 = tpu.matmul %2, %6, %cst_5 {dimension_numbers = #tpu.dot_dimension_numbers<[1], [0], [0], [1], [0, 0, 1, 1], [], []>} : vector<64x64xf32>, vector<64x1xf32>, vector<64x1xf32> -> vector<64x1xf32>
    %8 = vector.broadcast %7 : vector<64x1xf32> to vector<64x64xf32>
    %9 = arith.subf %1, %8 : vector<64x64xf32>
    %10 = arith.mulf %9, %9 : vector<64x64xf32>
    %cst_6 = arith.constant dense<0.000000e+00> : vector<64xf32>
    %11 = vector.multi_reduction <add>, %10, %cst_6 [1] : vector<64x64xf32> to vector<64xf32>
    %12 = vector.shape_cast %11 : vector<64xf32> to vector<64x1xf32>
    %cst_7 = arith.constant 6.400000e+01 : f32
    %13 = vector.broadcast %cst_7 : f32 to vector<64x1xf32>
    %14 = arith.divf %12, %13 : vector<64x1xf32>
    %cst_8 = arith.constant dense<0.000000e+00> : vector<64x1xf32>
    %15 = tpu.matmul %2, %14, %cst_8 {dimension_numbers = #tpu.dot_dimension_numbers<[1], [0], [0], [1], [0, 0, 1, 1], [], []>} : vector<64x64xf32>, vector<64x1xf32>, vector<64x1xf32> -> vector<64x1xf32>
    %cst_9 = arith.constant 9.99999997E-7 : f32
    %16 = vector.broadcast %cst_9 : f32 to vector<64x1xf32>
    %17 = arith.addf %15, %16 : vector<64x1xf32>
    %18 = math.rsqrt %17 : vector<64x1xf32>
    %19 = vector.broadcast %18 : vector<64x1xf32> to vector<64x64xf32>
    %20 = arith.mulf %9, %19 : vector<64x64xf32>
    %c0_10 = arith.constant 0 : index
    %c0_11 = arith.constant 0 : index
    %21 = vector.load %arg3[%c0_10, %c0_11] : memref<64x1xf32, #tpu.memory_space<vmem>>, vector<64x1xf32>
    %22 = vector.broadcast %21 : vector<64x1xf32> to vector<64x64xf32>
    %23 = arith.mulf %20, %22 : vector<64x64xf32>
    %c0_12 = arith.constant 0 : index
    %c0_13 = arith.constant 0 : index
    %24 = vector.load %arg4[%c0_12, %c0_13] : memref<64x1xf32, #tpu.memory_space<vmem>>, vector<64x1xf32>
    %25 = vector.broadcast %24 : vector<64x1xf32> to vector<64x64xf32>
    %26 = arith.addf %23, %25 : vector<64x64xf32>
    %27 = arith.truncf %26 : vector<64x64xf32> to vector<64x64xbf16>
    %c0_14 = arith.constant 0 : index
    %c0_15 = arith.constant 0 : index
    %28 = vector.load %arg5[%c0_14, %c0_15] : memref<64x64xbf16, #tpu.memory_space<vmem>>, vector<64x64xbf16>
    %cst_16 = arith.constant dense<0.000000e+00> : vector<64x64xf32>
    %29 = tpu.matmul %27, %28, %cst_16 {dimension_numbers = #tpu.dot_dimension_numbers<[0], [0], [1], [1], [0, 1, 1, 1], [], []>} : vector<64x64xbf16>, vector<64x64xbf16>, vector<64x64xf32> -> vector<64x64xf32>
    %c0_17 = arith.constant 0 : index
    %c0_18 = arith.constant 0 : index
    %30 = vector.load %arg6[%c0_17, %c0_18] : memref<1x64xf32, #tpu.memory_space<vmem>>, vector<1x64xf32>
    %31 = vector.broadcast %30 : vector<1x64xf32> to vector<64x64xf32>
    %32 = arith.addf %29, %31 : vector<64x64xf32>
    %c0_19 = arith.constant 0 : index
    %c0_20 = arith.constant 0 : index
    %c0_21 = arith.constant 0 : index
    %33 = vector.load %arg7[%c0_19, %c0_20, %c0_21] : memref<1x64x64xf32, #tpu.memory_space<vmem>>, vector<1x64x64xf32>
    %34 = vector.shape_cast %33 : vector<1x64x64xf32> to vector<64x64xf32>
    %35 = vector.shape_cast %32 : vector<64x64xf32> to vector<1x64x64xf32>
    tpu.vector_store %arg7[%c0_19, %c0_20, %c0_21], %35 {strides = array<i32>} : memref<1x64x64xf32, #tpu.memory_space<vmem>>, vector<1x64x64xf32>,
    return
  }
  func.func @transform_0(%arg0: i32) -> (i32, i32, i32) {
    %c0_i32 = arith.constant 0 : i32
    %c0_i32_0 = arith.constant 0 : i32
    %c0_i32_1 = arith.constant 0 : i32
    return %arg0, %c0_i32, %c0_i32_0 : i32, i32, i32
  }
  func.func @transform_1(%arg0: i32) -> (i32, i32) {
    %c0_i32 = arith.constant 0 : i32
    %c0_i32_0 = arith.constant 0 : i32
    %c0_i32_1 = arith.constant 0 : i32
    return %c0_i32, %c0_i32_0 : i32, i32
  }
  func.func @transform_2(%arg0: i32) -> (i32, i32) {
    %c0_i32 = arith.constant 0 : i32
    %c0_i32_0 = arith.constant 0 : i32
    %c0_i32_1 = arith.constant 0 : i32
    return %c0_i32, %c0_i32_0 : i32, i32
  }
  func.func @transform_3(%arg0: i32) -> (i32, i32) {
    %c0_i32 = arith.constant 0 : i32
    %c0_i32_0 = arith.constant 0 : i32
    %c0_i32_1 = arith.constant 0 : i32
    return %c0_i32, %c0_i32_0 : i32, i32
  }
  func.func @transform_4(%arg0: i32) -> (i32, i32) {
    %c0_i32 = arith.constant 0 : i32
    %c0_i32_0 = arith.constant 0 : i32
    %c0_i32_1 = arith.constant 0 : i32
    return %c0_i32, %c0_i32_0 : i32, i32
  }
  func.func @transform_5(%arg0: i32) -> (i32, i32) {
    %c0_i32 = arith.constant 0 : i32
    %c0_i32_0 = arith.constant 0 : i32
    %c0_i32_1 = arith.constant 0 : i32
    return %c0_i32, %c0_i32_0 : i32, i32
  }
  func.func @transform_6(%arg0: i32) -> (i32, i32, i32) {
    %c0_i32 = arith.constant 0 : i32
    %c0_i32_0 = arith.constant 0 : i32
    %c0_i32_1 = arith.constant 0 : i32
    return %arg0, %c0_i32, %c0_i32_0 : i32, i32, i32
  }
}

module attributes {stable_mosaic.version = 11 : i64} {
  func.func @_proj_out_residual_kernel(%arg0: i32, %arg1: i32, %arg2: memref<1x64x64xf32, #tpu.memory_space<vmem>>, %arg3: memref<1x64x64xf32, #tpu.memory_space<vmem>>, %arg4: memref<64x64xbf16, #tpu.memory_space<vmem>>, %arg5: memref<64x1xf32, #tpu.memory_space<vmem>>, %arg6: memref<1x64x64xf32, #tpu.memory_space<vmem>>) attributes {dimension_semantics = [#tpu.dimension_semantics<parallel>, #tpu.dimension_semantics<parallel>], iteration_bounds = array<i64: 2, 1>, scalar_prefetch = 0 : i64, scratch_operands = 0 : i64, tpu.core_type = #tpu.core_type<tc>, window_params = [{transform_indices = @transform_0, window_bounds = array<i64: 1, 64, 64>}, {transform_indices = @transform_1, window_bounds = array<i64: 1, 64, 64>}, {pipeline_mode = #tpu.pipeline_mode<synchronous>, transform_indices = @transform_2, window_bounds = array<i64: 64, 64>}, {pipeline_mode = #tpu.pipeline_mode<synchronous>, transform_indices = @transform_3, window_bounds = array<i64: 64, 1>}, {transform_indices = @transform_4, window_bounds = array<i64: 1, 64, 64>}]} {
    %c0 = arith.constant 0 : index
    %c0_0 = arith.constant 0 : index
    %c0_1 = arith.constant 0 : index
    %0 = vector.load %arg2[%c0, %c0_0, %c0_1] : memref<1x64x64xf32, #tpu.memory_space<vmem>>, vector<1x64x64xf32>
    %1 = vector.shape_cast %0 : vector<1x64x64xf32> to vector<64x64xf32>
    %c0_2 = arith.constant 0 : index
    %c0_3 = arith.constant 0 : index
    %2 = vector.load %arg4[%c0_2, %c0_3] : memref<64x64xbf16, #tpu.memory_space<vmem>>, vector<64x64xbf16>
    %3 = arith.truncf %1 : vector<64x64xf32> to vector<64x64xbf16>
    %cst = arith.constant dense<0.000000e+00> : vector<64x64xf32>
    %4 = tpu.matmul %2, %3, %cst {dimension_numbers = #tpu.dot_dimension_numbers<[0], [1], [1], [0], [0, 1, 1, 0], [], []>} : vector<64x64xbf16>, vector<64x64xbf16>, vector<64x64xf32> -> vector<64x64xf32>
    %c0_4 = arith.constant 0 : index
    %c0_5 = arith.constant 0 : index
    %5 = vector.load %arg5[%c0_4, %c0_5] : memref<64x1xf32, #tpu.memory_space<vmem>>, vector<64x1xf32>
    %6 = vector.broadcast %5 : vector<64x1xf32> to vector<64x64xf32>
    %7 = arith.addf %4, %6 : vector<64x64xf32>
    %c0_6 = arith.constant 0 : index
    %c0_7 = arith.constant 0 : index
    %c0_8 = arith.constant 0 : index
    %8 = vector.load %arg3[%c0_6, %c0_7, %c0_8] : memref<1x64x64xf32, #tpu.memory_space<vmem>>, vector<1x64x64xf32>
    %9 = vector.shape_cast %8 : vector<1x64x64xf32> to vector<64x64xf32>
    %10 = arith.addf %7, %9 : vector<64x64xf32>
    %c0_9 = arith.constant 0 : index
    %c0_10 = arith.constant 0 : index
    %c0_11 = arith.constant 0 : index
    %11 = vector.load %arg6[%c0_9, %c0_10, %c0_11] : memref<1x64x64xf32, #tpu.memory_space<vmem>>, vector<1x64x64xf32>
    %12 = vector.shape_cast %11 : vector<1x64x64xf32> to vector<64x64xf32>
    %13 = vector.shape_cast %10 : vector<64x64xf32> to vector<1x64x64xf32>
    tpu.vector_store %arg6[%c0_9, %c0_10, %c0_11], %13 {strides = array<i32>} : memref<1x64x64xf32, #tpu.memory_space<vmem>>, vector<1x64x64xf32>,
    return
  }
  func.func @transform_0(%arg0: i32, %arg1: i32) -> (i32, i32, i32) {
    %c0_i32 = arith.constant 0 : i32
    %c0_i32_0 = arith.constant 0 : i32
    return %arg0, %arg1, %c0_i32 : i32, i32, i32
  }
  func.func @transform_1(%arg0: i32, %arg1: i32) -> (i32, i32, i32) {
    %c0_i32 = arith.constant 0 : i32
    %c0_i32_0 = arith.constant 0 : i32
    return %arg0, %c0_i32, %arg1 : i32, i32, i32
  }
  func.func @transform_2(%arg0: i32, %arg1: i32) -> (i32, i32) {
    %c0_i32 = arith.constant 0 : i32
    %c0_i32_0 = arith.constant 0 : i32
    %c0_i32_1 = arith.constant 0 : i32
    return %c0_i32, %c0_i32_0 : i32, i32
  }
  func.func @transform_3(%arg0: i32, %arg1: i32) -> (i32, i32) {
    %c0_i32 = arith.constant 0 : i32
    %c0_i32_0 = arith.constant 0 : i32
    %c0_i32_1 = arith.constant 0 : i32
    return %c0_i32, %c0_i32_0 : i32, i32
  }
  func.func @transform_4(%arg0: i32, %arg1: i32) -> (i32, i32, i32) {
    %c0_i32 = arith.constant 0 : i32
    %c0_i32_0 = arith.constant 0 : i32
    return %arg0, %c0_i32, %arg1 : i32, i32, i32
  }
}

module attributes {stable_mosaic.version = 11 : i64} {
  func.func @_transformer_block_kernel(%arg0: i32, %arg1: i32, %arg2: memref<1x64x64xf32, #tpu.memory_space<vmem>>, %arg3: memref<1x8x1024xbf16, #tpu.memory_space<vmem>>, %arg4: memref<1x64xf32, #tpu.memory_space<vmem>>, %arg5: memref<1x64xf32, #tpu.memory_space<vmem>>, %arg6: memref<64x64xbf16, #tpu.memory_space<vmem>>, %arg7: memref<2x64x64xbf16, #tpu.memory_space<vmem>>, %arg8: memref<64x64xbf16, #tpu.memory_space<vmem>>, %arg9: memref<1x64xf32, #tpu.memory_space<vmem>>, %arg10: memref<1x64xf32, #tpu.memory_space<vmem>>, %arg11: memref<1x64xf32, #tpu.memory_space<vmem>>, %arg12: memref<64x64xbf16, #tpu.memory_space<vmem>>, %arg13: memref<2x1024x64xbf16, #tpu.memory_space<vmem>>, %arg14: memref<64x64xbf16, #tpu.memory_space<vmem>>, %arg15: memref<1x64xf32, #tpu.memory_space<vmem>>, %arg16: memref<1x64xf32, #tpu.memory_space<vmem>>, %arg17: memref<1x64xf32, #tpu.memory_space<vmem>>, %arg18: memref<64x512xbf16, #tpu.memory_space<vmem>>, %arg19: memref<1x512xf32, #tpu.memory_space<vmem>>, %arg20: memref<256x64xbf16, #tpu.memory_space<vmem>>, %arg21: memref<1x64xf32, #tpu.memory_space<vmem>>, %arg22: memref<1x64x64xf32, #tpu.memory_space<vmem>>, %arg23: memref<64x64xbf16, #tpu.memory_space<vmem>>, %arg24: memref<64x64xbf16, #tpu.memory_space<vmem>>, %arg25: memref<8x64xbf16, #tpu.memory_space<vmem>>, %arg26: memref<8x64xbf16, #tpu.memory_space<vmem>>) attributes {dimension_semantics = [#tpu.dimension_semantics<parallel>, #tpu.dimension_semantics<arbitrary>], iteration_bounds = array<i64: 2, 1>, scalar_prefetch = 0 : i64, scratch_operands = 4 : i64, tpu.core_type = #tpu.core_type<tc>, window_params = [{transform_indices = @transform_0, window_bounds = array<i64: 1, 64, 64>}, {transform_indices = @transform_1, window_bounds = array<i64: 1, 8, 1024>}, {pipeline_mode = #tpu.pipeline_mode<synchronous>, transform_indices = @transform_2, window_bounds = array<i64: 1, 64>}, {pipeline_mode = #tpu.pipeline_mode<synchronous>, transform_indices = @transform_3, window_bounds = array<i64: 1, 64>}, {pipeline_mode = #tpu.pipeline_mode<synchronous>, transform_indices = @transform_4, window_bounds = array<i64: 64, 64>}, {pipeline_mode = #tpu.pipeline_mode<synchronous>, transform_indices = @transform_5, window_bounds = array<i64: 2, 64, 64>}, {pipeline_mode = #tpu.pipeline_mode<synchronous>, transform_indices = @transform_6, window_bounds = array<i64: 64, 64>}, {pipeline_mode = #tpu.pipeline_mode<synchronous>, transform_indices = @transform_7, window_bounds = array<i64: 1, 64>}, {pipeline_mode = #tpu.pipeline_mode<synchronous>, transform_indices = @transform_8, window_bounds = array<i64: 1, 64>}, {pipeline_mode = #tpu.pipeline_mode<synchronous>, transform_indices = @transform_9, window_bounds = array<i64: 1, 64>}, {pipeline_mode = #tpu.pipeline_mode<synchronous>, transform_indices = @transform_10, window_bounds = array<i64: 64, 64>}, {pipeline_mode = #tpu.pipeline_mode<synchronous>, transform_indices = @transform_11, window_bounds = array<i64: 2, 1024, 64>}, {pipeline_mode = #tpu.pipeline_mode<synchronous>, transform_indices = @transform_12, window_bounds = array<i64: 64, 64>}, {pipeline_mode = #tpu.pipeline_mode<synchronous>, transform_indices = @transform_13, window_bounds = array<i64: 1, 64>}, {pipeline_mode = #tpu.pipeline_mode<synchronous>, transform_indices = @transform_14, window_bounds = array<i64: 1, 64>}, {pipeline_mode = #tpu.pipeline_mode<synchronous>, transform_indices = @transform_15, window_bounds = array<i64: 1, 64>}, {pipeline_mode = #tpu.pipeline_mode<synchronous>, transform_indices = @transform_16, window_bounds = array<i64: 64, 512>}, {pipeline_mode = #tpu.pipeline_mode<synchronous>, transform_indices = @transform_17, window_bounds = array<i64: 1, 512>}, {pipeline_mode = #tpu.pipeline_mode<synchronous>, transform_indices = @transform_18, window_bounds = array<i64: 256, 64>}, {pipeline_mode = #tpu.pipeline_mode<synchronous>, transform_indices = @transform_19, window_bounds = array<i64: 1, 64>}, {transform_indices = @transform_20, window_bounds = array<i64: 1, 64, 64>}]} {
    %c0_i32 = arith.constant 0 : i32
    %0 = arith.cmpi eq, %arg1, %c0_i32 : i32
    %1 = arith.extui %0 : i1 to i32
    %c0_i32_0 = arith.constant 0 : i32
    %2 = arith.cmpi ne, %1, %c0_i32_0 : i32
    scf.if %2 {
      %c0_90 = arith.constant 0 : index
      %c0_91 = arith.constant 0 : index
      %c0_92 = arith.constant 0 : index
      %189 = vector.load %arg2[%c0_90, %c0_91, %c0_92] : memref<1x64x64xf32, #tpu.memory_space<vmem>>, vector<1x64x64xf32>
      %190 = vector.shape_cast %189 : vector<1x64x64xf32> to vector<64x64xf32>
      %c0_93 = arith.constant 0 : index
      %c0_94 = arith.constant 0 : index
      %191 = vector.load %arg4[%c0_93, %c0_94] : memref<1x64xf32, #tpu.memory_space<vmem>>, vector<1x64xf32>
      %c0_95 = arith.constant 0 : index
      %c0_96 = arith.constant 0 : index
      %192 = vector.load %arg5[%c0_95, %c0_96] : memref<1x64xf32, #tpu.memory_space<vmem>>, vector<1x64xf32>
      %cst_97 = arith.constant dense<0.000000e+00> : vector<64xf32>
      %193 = vector.multi_reduction <add>, %190, %cst_97 [1] : vector<64x64xf32> to vector<64xf32>
      %194 = vector.shape_cast %193 : vector<64xf32> to vector<64x1xf32>
      %cst_98 = arith.constant 6.400000e+01 : f32
      %195 = vector.broadcast %cst_98 : f32 to vector<64x1xf32>
      %196 = arith.divf %194, %195 : vector<64x1xf32>
      %197 = vector.broadcast %196 : vector<64x1xf32> to vector<64x64xf32>
      %198 = arith.subf %190, %197 : vector<64x64xf32>
      %199 = arith.mulf %198, %198 : vector<64x64xf32>
      %cst_99 = arith.constant dense<0.000000e+00> : vector<64xf32>
      %200 = vector.multi_reduction <add>, %199, %cst_99 [1] : vector<64x64xf32> to vector<64xf32>
      %201 = vector.shape_cast %200 : vector<64xf32> to vector<64x1xf32>
      %cst_100 = arith.constant 6.400000e+01 : f32
      %202 = vector.broadcast %cst_100 : f32 to vector<64x1xf32>
      %203 = arith.divf %201, %202 : vector<64x1xf32>
      %cst_101 = arith.constant 9.99999974E-6 : f32
      %204 = vector.broadcast %cst_101 : f32 to vector<64x1xf32>
      %205 = arith.addf %203, %204 : vector<64x1xf32>
      %206 = math.rsqrt %205 : vector<64x1xf32>
      %207 = vector.broadcast %206 : vector<64x1xf32> to vector<64x64xf32>
      %208 = arith.mulf %198, %207 : vector<64x64xf32>
      %209 = vector.broadcast %191 : vector<1x64xf32> to vector<64x64xf32>
      %210 = arith.mulf %208, %209 : vector<64x64xf32>
      %211 = vector.broadcast %192 : vector<1x64xf32> to vector<64x64xf32>
      %212 = arith.addf %210, %211 : vector<64x64xf32>
      %213 = arith.truncf %212 : vector<64x64xf32> to vector<64x64xbf16>
      %c0_102 = arith.constant 0 : index
      %c0_103 = arith.constant 0 : index
      %c0_104 = arith.constant 0 : index
      %214 = vector.load %arg7[%c0_102, %c0_103, %c0_104] : memref<2x64x64xbf16, #tpu.memory_space<vmem>>, vector<1x64x64xbf16>
      %215 = vector.shape_cast %214 : vector<1x64x64xbf16> to vector<64x64xbf16>
      %cst_105 = arith.constant dense<0.000000e+00> : vector<64x64xf32>
      %216 = tpu.matmul %213, %215, %cst_105 {dimension_numbers = #tpu.dot_dimension_numbers<[1], [0], [0], [1], [0, 0, 1, 1], [], []>} : vector<64x64xbf16>, vector<64x64xbf16>, vector<64x64xf32> -> vector<64x64xf32>
      %217 = arith.truncf %216 : vector<64x64xf32> to vector<64x64xbf16>
      %c0_106 = arith.constant 0 : index
      %c0_107 = arith.constant 0 : index
      %218 = vector.load %arg23[%c0_106, %c0_107] : memref<64x64xbf16, #tpu.memory_space<vmem>>, vector<64x64xbf16>
      tpu.vector_store %arg23[%c0_106, %c0_107], %217 {strides = array<i32>} : memref<64x64xbf16, #tpu.memory_space<vmem>>, vector<64x64xbf16>,
      %c1 = arith.constant 1 : index
      %c0_108 = arith.constant 0 : index
      %c0_109 = arith.constant 0 : index
      %219 = vector.load %arg7[%c1, %c0_108, %c0_109] : memref<2x64x64xbf16, #tpu.memory_space<vmem>>, vector<1x64x64xbf16>
      %220 = vector.shape_cast %219 : vector<1x64x64xbf16> to vector<64x64xbf16>
      %cst_110 = arith.constant dense<0.000000e+00> : vector<64x64xf32>
      %221 = tpu.matmul %213, %220, %cst_110 {dimension_numbers = #tpu.dot_dimension_numbers<[1], [0], [0], [1], [0, 0, 1, 1], [], []>} : vector<64x64xbf16>, vector<64x64xbf16>, vector<64x64xf32> -> vector<64x64xf32>
      %222 = arith.truncf %221 : vector<64x64xf32> to vector<64x64xbf16>
      %c0_111 = arith.constant 0 : index
      %c0_112 = arith.constant 0 : index
      %223 = vector.load %arg24[%c0_111, %c0_112] : memref<64x64xbf16, #tpu.memory_space<vmem>>, vector<64x64xbf16>
      tpu.vector_store %arg24[%c0_111, %c0_112], %222 {strides = array<i32>} : memref<64x64xbf16, #tpu.memory_space<vmem>>, vector<64x64xbf16>,
      %c0_113 = arith.constant 0 : index
      %c0_114 = arith.constant 0 : index
      %c0_115 = arith.constant 0 : index
      %224 = vector.load %arg3[%c0_113, %c0_114, %c0_115] : memref<1x8x1024xbf16, #tpu.memory_space<vmem>>, vector<1x8x1024xbf16>
      %225 = vector.shape_cast %224 : vector<1x8x1024xbf16> to vector<8x1024xbf16>
      %c0_116 = arith.constant 0 : index
      %c0_117 = arith.constant 0 : index
      %c0_118 = arith.constant 0 : index
      %226 = vector.load %arg13[%c0_116, %c0_117, %c0_118] : memref<2x1024x64xbf16, #tpu.memory_space<vmem>>, vector<1x1024x64xbf16>
      %227 = vector.shape_cast %226 : vector<1x1024x64xbf16> to vector<1024x64xbf16>
      %cst_119 = arith.constant dense<0.000000e+00> : vector<8x64xf32>
      %228 = tpu.matmul %225, %227, %cst_119 {dimension_numbers = #tpu.dot_dimension_numbers<[1], [0], [0], [1], [0, 0, 1, 1], [], []>} : vector<8x1024xbf16>, vector<1024x64xbf16>, vector<8x64xf32> -> vector<8x64xf32>
      %229 = arith.truncf %228 : vector<8x64xf32> to vector<8x64xbf16>
      %c0_120 = arith.constant 0 : index
      %c0_121 = arith.constant 0 : index
      %230 = vector.load %arg25[%c0_120, %c0_121] : memref<8x64xbf16, #tpu.memory_space<vmem>>, vector<8x64xbf16>
      tpu.vector_store %arg25[%c0_120, %c0_121], %229 {strides = array<i32>} : memref<8x64xbf16, #tpu.memory_space<vmem>>, vector<8x64xbf16>,
      %c1_122 = arith.constant 1 : index
      %c0_123 = arith.constant 0 : index
      %c0_124 = arith.constant 0 : index
      %231 = vector.load %arg13[%c1_122, %c0_123, %c0_124] : memref<2x1024x64xbf16, #tpu.memory_space<vmem>>, vector<1x1024x64xbf16>
      %232 = vector.shape_cast %231 : vector<1x1024x64xbf16> to vector<1024x64xbf16>
      %cst_125 = arith.constant dense<0.000000e+00> : vector<8x64xf32>
      %233 = tpu.matmul %225, %232, %cst_125 {dimension_numbers = #tpu.dot_dimension_numbers<[1], [0], [0], [1], [0, 0, 1, 1], [], []>} : vector<8x1024xbf16>, vector<1024x64xbf16>, vector<8x64xf32> -> vector<8x64xf32>
      %234 = arith.truncf %233 : vector<8x64xf32> to vector<8x64xbf16>
      %c0_126 = arith.constant 0 : index
      %c0_127 = arith.constant 0 : index
      %235 = vector.load %arg26[%c0_126, %c0_127] : memref<8x64xbf16, #tpu.memory_space<vmem>>, vector<8x64xbf16>
      tpu.vector_store %arg26[%c0_126, %c0_127], %234 {strides = array<i32>} : memref<8x64xbf16, #tpu.memory_space<vmem>>, vector<8x64xbf16>,
    } else {
    }
    %c64_i32 = arith.constant 64 : i32
    %3 = arith.muli %arg1, %c64_i32 : i32
    %4 = tpu.assume_multiple %3, 8 : i32
    %c0 = arith.constant 0 : index
    %5 = arith.index_cast %4 : i32 to index
    %c0_1 = arith.constant 0 : index
    %6 = vector.load %arg2[%c0, %5, %c0_1] : memref<1x64x64xf32, #tpu.memory_space<vmem>>, vector<1x64x64xf32>
    %7 = vector.shape_cast %6 : vector<1x64x64xf32> to vector<64x64xf32>
    %c0_2 = arith.constant 0 : index
    %c0_3 = arith.constant 0 : index
    %8 = vector.load %arg4[%c0_2, %c0_3] : memref<1x64xf32, #tpu.memory_space<vmem>>, vector<1x64xf32>
    %c0_4 = arith.constant 0 : index
    %c0_5 = arith.constant 0 : index
    %9 = vector.load %arg5[%c0_4, %c0_5] : memref<1x64xf32, #tpu.memory_space<vmem>>, vector<1x64xf32>
    %c0_6 = arith.constant 0 : index
    %c0_7 = arith.constant 0 : index
    %10 = vector.load %arg6[%c0_6, %c0_7] : memref<64x64xbf16, #tpu.memory_space<vmem>>, vector<64x64xbf16>
    %c0_8 = arith.constant 0 : index
    %c0_9 = arith.constant 0 : index
    %11 = vector.load %arg23[%c0_8, %c0_9] : memref<64x64xbf16, #tpu.memory_space<vmem>>, vector<64x64xbf16>
    %c0_10 = arith.constant 0 : index
    %c0_11 = arith.constant 0 : index
    %12 = vector.load %arg24[%c0_10, %c0_11] : memref<64x64xbf16, #tpu.memory_space<vmem>>, vector<64x64xbf16>
    %c0_12 = arith.constant 0 : index
    %c0_13 = arith.constant 0 : index
    %13 = vector.load %arg8[%c0_12, %c0_13] : memref<64x64xbf16, #tpu.memory_space<vmem>>, vector<64x64xbf16>
    %c0_14 = arith.constant 0 : index
    %c0_15 = arith.constant 0 : index
    %14 = vector.load %arg9[%c0_14, %c0_15] : memref<1x64xf32, #tpu.memory_space<vmem>>, vector<1x64xf32>
    %cst = arith.constant dense<0.000000e+00> : vector<64xf32>
    %15 = vector.multi_reduction <add>, %7, %cst [1] : vector<64x64xf32> to vector<64xf32>
    %16 = vector.shape_cast %15 : vector<64xf32> to vector<64x1xf32>
    %cst_16 = arith.constant 6.400000e+01 : f32
    %17 = vector.broadcast %cst_16 : f32 to vector<64x1xf32>
    %18 = arith.divf %16, %17 : vector<64x1xf32>
    %19 = vector.broadcast %18 : vector<64x1xf32> to vector<64x64xf32>
    %20 = arith.subf %7, %19 : vector<64x64xf32>
    %21 = arith.mulf %20, %20 : vector<64x64xf32>
    %cst_17 = arith.constant dense<0.000000e+00> : vector<64xf32>
    %22 = vector.multi_reduction <add>, %21, %cst_17 [1] : vector<64x64xf32> to vector<64xf32>
    %23 = vector.shape_cast %22 : vector<64xf32> to vector<64x1xf32>
    %cst_18 = arith.constant 6.400000e+01 : f32
    %24 = vector.broadcast %cst_18 : f32 to vector<64x1xf32>
    %25 = arith.divf %23, %24 : vector<64x1xf32>
    %cst_19 = arith.constant 9.99999974E-6 : f32
    %26 = vector.broadcast %cst_19 : f32 to vector<64x1xf32>
    %27 = arith.addf %25, %26 : vector<64x1xf32>
    %28 = math.rsqrt %27 : vector<64x1xf32>
    %29 = vector.broadcast %28 : vector<64x1xf32> to vector<64x64xf32>
    %30 = arith.mulf %20, %29 : vector<64x64xf32>
    %31 = vector.broadcast %8 : vector<1x64xf32> to vector<64x64xf32>
    %32 = arith.mulf %30, %31 : vector<64x64xf32>
    %33 = vector.broadcast %9 : vector<1x64xf32> to vector<64x64xf32>
    %34 = arith.addf %32, %33 : vector<64x64xf32>
    %35 = arith.truncf %34 : vector<64x64xf32> to vector<64x64xbf16>
    %cst_20 = arith.constant dense<0.000000e+00> : vector<64x64xf32>
    %36 = tpu.matmul %35, %10, %cst_20 {dimension_numbers = #tpu.dot_dimension_numbers<[1], [0], [0], [1], [0, 0, 1, 1], [], []>} : vector<64x64xbf16>, vector<64x64xbf16>, vector<64x64xf32> -> vector<64x64xf32>
    %cst_21 = arith.constant 1.250000e-01 : f32
    %37 = vector.broadcast %cst_21 : f32 to vector<64x64xf32>
    %38 = arith.mulf %36, %37 : vector<64x64xf32>
    %39 = arith.truncf %38 : vector<64x64xf32> to vector<64x64xbf16>
    %cst_22 = arith.constant dense<0.000000e+00> : vector<64x64xf32>
    %40 = tpu.matmul %39, %11, %cst_22 {dimension_numbers = #tpu.dot_dimension_numbers<[1], [1], [0], [0], [0, 0, 1, 0], [], []>} : vector<64x64xbf16>, vector<64x64xbf16>, vector<64x64xf32> -> vector<64x64xf32>
    %cst_23 = arith.constant dense<0xFF800000> : vector<64xf32>
    %41 = vector.multi_reduction <maximumf>, %40, %cst_23 [1] : vector<64x64xf32> to vector<64xf32>
    %42 = vector.shape_cast %41 : vector<64xf32> to vector<64x1xf32>
    %43 = vector.broadcast %42 : vector<64x1xf32> to vector<64x64xf32>
    %44 = arith.subf %40, %43 : vector<64x64xf32>
    %45 = math.exp %44 : vector<64x64xf32>
    %cst_24 = arith.constant dense<0.000000e+00> : vector<64xf32>
    %46 = vector.multi_reduction <add>, %45, %cst_24 [1] : vector<64x64xf32> to vector<64xf32>
    %47 = vector.shape_cast %46 : vector<64xf32> to vector<64x1xf32>
    %48 = tpu.reciprocal %47 {approx = true} : vector<64x1xf32> -> vector<64x1xf32>
    %49 = arith.truncf %45 : vector<64x64xf32> to vector<64x64xbf16>
    %cst_25 = arith.constant dense<0.000000e+00> : vector<64x64xf32>
    %50 = tpu.matmul %49, %12, %cst_25 {dimension_numbers = #tpu.dot_dimension_numbers<[1], [0], [0], [1], [0, 0, 1, 1], [], []>} : vector<64x64xbf16>, vector<64x64xbf16>, vector<64x64xf32> -> vector<64x64xf32>
    %51 = vector.broadcast %48 : vector<64x1xf32> to vector<64x64xf32>
    %52 = arith.mulf %50, %51 : vector<64x64xf32>
    %53 = arith.truncf %52 : vector<64x64xf32> to vector<64x64xbf16>
    %cst_26 = arith.constant dense<0.000000e+00> : vector<64x64xf32>
    %54 = tpu.matmul %53, %13, %cst_26 {dimension_numbers = #tpu.dot_dimension_numbers<[1], [0], [0], [1], [0, 0, 1, 1], [], []>} : vector<64x64xbf16>, vector<64x64xbf16>, vector<64x64xf32> -> vector<64x64xf32>
    %55 = vector.broadcast %14 : vector<1x64xf32> to vector<64x64xf32>
    %56 = arith.addf %54, %55 : vector<64x64xf32>
    %57 = arith.addf %56, %7 : vector<64x64xf32>
    %c0_27 = arith.constant 0 : index
    %c0_28 = arith.constant 0 : index
    %58 = vector.load %arg10[%c0_27, %c0_28] : memref<1x64xf32, #tpu.memory_space<vmem>>, vector<1x64xf32>
    %c0_29 = arith.constant 0 : index
    %c0_30 = arith.constant 0 : index
    %59 = vector.load %arg11[%c0_29, %c0_30] : memref<1x64xf32, #tpu.memory_space<vmem>>, vector<1x64xf32>
    %c0_31 = arith.constant 0 : index
    %c0_32 = arith.constant 0 : index
    %60 = vector.load %arg12[%c0_31, %c0_32] : memref<64x64xbf16, #tpu.memory_space<vmem>>, vector<64x64xbf16>
    %c0_33 = arith.constant 0 : index
    %c0_34 = arith.constant 0 : index
    %61 = vector.load %arg25[%c0_33, %c0_34] : memref<8x64xbf16, #tpu.memory_space<vmem>>, vector<8x64xbf16>
    %c0_35 = arith.constant 0 : index
    %c0_36 = arith.constant 0 : index
    %62 = vector.load %arg26[%c0_35, %c0_36] : memref<8x64xbf16, #tpu.memory_space<vmem>>, vector<8x64xbf16>
    %c0_37 = arith.constant 0 : index
    %c0_38 = arith.constant 0 : index
    %63 = vector.load %arg14[%c0_37, %c0_38] : memref<64x64xbf16, #tpu.memory_space<vmem>>, vector<64x64xbf16>
    %c0_39 = arith.constant 0 : index
    %c0_40 = arith.constant 0 : index
    %64 = vector.load %arg15[%c0_39, %c0_40] : memref<1x64xf32, #tpu.memory_space<vmem>>, vector<1x64xf32>
    %cst_41 = arith.constant dense<0.000000e+00> : vector<64xf32>
    %65 = vector.multi_reduction <add>, %57, %cst_41 [1] : vector<64x64xf32> to vector<64xf32>
    %66 = vector.shape_cast %65 : vector<64xf32> to vector<64x1xf32>
    %cst_42 = arith.constant 6.400000e+01 : f32
    %67 = vector.broadcast %cst_42 : f32 to vector<64x1xf32>
    %68 = arith.divf %66, %67 : vector<64x1xf32>
    %69 = vector.broadcast %68 : vector<64x1xf32> to vector<64x64xf32>
    %70 = arith.subf %57, %69 : vector<64x64xf32>
    %71 = arith.mulf %70, %70 : vector<64x64xf32>
    %cst_43 = arith.constant dense<0.000000e+00> : vector<64xf32>
    %72 = vector.multi_reduction <add>, %71, %cst_43 [1] : vector<64x64xf32> to vector<64xf32>
    %73 = vector.shape_cast %72 : vector<64xf32> to vector<64x1xf32>
    %cst_44 = arith.constant 6.400000e+01 : f32
    %74 = vector.broadcast %cst_44 : f32 to vector<64x1xf32>
    %75 = arith.divf %73, %74 : vector<64x1xf32>
    %cst_45 = arith.constant 9.99999974E-6 : f32
    %76 = vector.broadcast %cst_45 : f32 to vector<64x1xf32>
    %77 = arith.addf %75, %76 : vector<64x1xf32>
    %78 = math.rsqrt %77 : vector<64x1xf32>
    %79 = vector.broadcast %78 : vector<64x1xf32> to vector<64x64xf32>
    %80 = arith.mulf %70, %79 : vector<64x64xf32>
    %81 = vector.broadcast %58 : vector<1x64xf32> to vector<64x64xf32>
    %82 = arith.mulf %80, %81 : vector<64x64xf32>
    %83 = vector.broadcast %59 : vector<1x64xf32> to vector<64x64xf32>
    %84 = arith.addf %82, %83 : vector<64x64xf32>
    %85 = arith.truncf %84 : vector<64x64xf32> to vector<64x64xbf16>
    %cst_46 = arith.constant dense<0.000000e+00> : vector<64x64xf32>
    %86 = tpu.matmul %85, %60, %cst_46 {dimension_numbers = #tpu.dot_dimension_numbers<[1], [0], [0], [1], [0, 0, 1, 1], [], []>} : vector<64x64xbf16>, vector<64x64xbf16>, vector<64x64xf32> -> vector<64x64xf32>
    %cst_47 = arith.constant 1.250000e-01 : f32
    %87 = vector.broadcast %cst_47 : f32 to vector<64x64xf32>
    %88 = arith.mulf %86, %87 : vector<64x64xf32>
    %89 = arith.truncf %88 : vector<64x64xf32> to vector<64x64xbf16>
    %cst_48 = arith.constant dense<0.000000e+00> : vector<64x8xf32>
    %90 = tpu.matmul %89, %61, %cst_48 {dimension_numbers = #tpu.dot_dimension_numbers<[1], [1], [0], [0], [0, 0, 1, 0], [], []>} : vector<64x64xbf16>, vector<8x64xbf16>, vector<64x8xf32> -> vector<64x8xf32>
    %cst_49 = arith.constant dense<0xFF800000> : vector<64xf32>
    %91 = vector.multi_reduction <maximumf>, %90, %cst_49 [1] : vector<64x8xf32> to vector<64xf32>
    %92 = vector.shape_cast %91 : vector<64xf32> to vector<64x1xf32>
    %93 = vector.broadcast %92 : vector<64x1xf32> to vector<64x8xf32>
    %94 = arith.subf %90, %93 : vector<64x8xf32>
    %95 = math.exp %94 : vector<64x8xf32>
    %cst_50 = arith.constant dense<0.000000e+00> : vector<64xf32>
    %96 = vector.multi_reduction <add>, %95, %cst_50 [1] : vector<64x8xf32> to vector<64xf32>
    %97 = vector.shape_cast %96 : vector<64xf32> to vector<64x1xf32>
    %98 = tpu.reciprocal %97 {approx = true} : vector<64x1xf32> -> vector<64x1xf32>
    %99 = arith.truncf %95 : vector<64x8xf32> to vector<64x8xbf16>
    %cst_51 = arith.constant dense<0.000000e+00> : vector<64x64xf32>
    %100 = tpu.matmul %99, %62, %cst_51 {dimension_numbers = #tpu.dot_dimension_numbers<[1], [0], [0], [1], [0, 0, 1, 1], [], []>} : vector<64x8xbf16>, vector<8x64xbf16>, vector<64x64xf32> -> vector<64x64xf32>
    %101 = vector.broadcast %98 : vector<64x1xf32> to vector<64x64xf32>
    %102 = arith.mulf %100, %101 : vector<64x64xf32>
    %103 = arith.truncf %102 : vector<64x64xf32> to vector<64x64xbf16>
    %cst_52 = arith.constant dense<0.000000e+00> : vector<64x64xf32>
    %104 = tpu.matmul %103, %63, %cst_52 {dimension_numbers = #tpu.dot_dimension_numbers<[1], [0], [0], [1], [0, 0, 1, 1], [], []>} : vector<64x64xbf16>, vector<64x64xbf16>, vector<64x64xf32> -> vector<64x64xf32>
    %105 = vector.broadcast %64 : vector<1x64xf32> to vector<64x64xf32>
    %106 = arith.addf %104, %105 : vector<64x64xf32>
    %107 = arith.addf %106, %57 : vector<64x64xf32>
    %c0_53 = arith.constant 0 : index
    %c0_54 = arith.constant 0 : index
    %108 = vector.load %arg16[%c0_53, %c0_54] : memref<1x64xf32, #tpu.memory_space<vmem>>, vector<1x64xf32>
    %c0_55 = arith.constant 0 : index
    %c0_56 = arith.constant 0 : index
    %109 = vector.load %arg17[%c0_55, %c0_56] : memref<1x64xf32, #tpu.memory_space<vmem>>, vector<1x64xf32>
    %cst_57 = arith.constant dense<0.000000e+00> : vector<64xf32>
    %110 = vector.multi_reduction <add>, %107, %cst_57 [1] : vector<64x64xf32> to vector<64xf32>
    %111 = vector.shape_cast %110 : vector<64xf32> to vector<64x1xf32>
    %cst_58 = arith.constant 6.400000e+01 : f32
    %112 = vector.broadcast %cst_58 : f32 to vector<64x1xf32>
    %113 = arith.divf %111, %112 : vector<64x1xf32>
    %114 = vector.broadcast %113 : vector<64x1xf32> to vector<64x64xf32>
    %115 = arith.subf %107, %114 : vector<64x64xf32>
    %116 = arith.mulf %115, %115 : vector<64x64xf32>
    %cst_59 = arith.constant dense<0.000000e+00> : vector<64xf32>
    %117 = vector.multi_reduction <add>, %116, %cst_59 [1] : vector<64x64xf32> to vector<64xf32>
    %118 = vector.shape_cast %117 : vector<64xf32> to vector<64x1xf32>
    %cst_60 = arith.constant 6.400000e+01 : f32
    %119 = vector.broadcast %cst_60 : f32 to vector<64x1xf32>
    %120 = arith.divf %118, %119 : vector<64x1xf32>
    %cst_61 = arith.constant 9.99999974E-6 : f32
    %121 = vector.broadcast %cst_61 : f32 to vector<64x1xf32>
    %122 = arith.addf %120, %121 : vector<64x1xf32>
    %123 = math.rsqrt %122 : vector<64x1xf32>
    %124 = vector.broadcast %123 : vector<64x1xf32> to vector<64x64xf32>
    %125 = arith.mulf %115, %124 : vector<64x64xf32>
    %126 = vector.broadcast %108 : vector<1x64xf32> to vector<64x64xf32>
    %127 = arith.mulf %125, %126 : vector<64x64xf32>
    %128 = vector.broadcast %109 : vector<1x64xf32> to vector<64x64xf32>
    %129 = arith.addf %127, %128 : vector<64x64xf32>
    %130 = arith.truncf %129 : vector<64x64xf32> to vector<64x64xbf16>
    %c0_62 = arith.constant 0 : index
    %c0_63 = arith.constant 0 : index
    %131 = vector.load %arg18[%c0_62, %c0_63] : memref<64x512xbf16, #tpu.memory_space<vmem>>, vector<64x512xbf16>
    %cst_64 = arith.constant dense<0.000000e+00> : vector<64x512xf32>
    %132 = tpu.matmul %130, %131, %cst_64 {dimension_numbers = #tpu.dot_dimension_numbers<[1], [0], [0], [1], [0, 0, 1, 1], [], []>} : vector<64x64xbf16>, vector<64x512xbf16>, vector<64x512xf32> -> vector<64x512xf32>
    %c0_65 = arith.constant 0 : index
    %c0_66 = arith.constant 0 : index
    %133 = vector.load %arg19[%c0_65, %c0_66] : memref<1x512xf32, #tpu.memory_space<vmem>>, vector<1x512xf32>
    %134 = vector.broadcast %133 : vector<1x512xf32> to vector<64x512xf32>
    %135 = arith.addf %132, %134 : vector<64x512xf32>
    %136 = vector.extract_strided_slice %135 {offsets = [0, 0], sizes = [64, 256], strides = [1, 1]} : vector<64x512xf32> to vector<64x256xf32>
    %137 = vector.extract_strided_slice %135 {offsets = [0, 256], sizes = [64, 256], strides = [1, 1]} : vector<64x512xf32> to vector<64x256xf32>
    %cst_67 = arith.constant 5.000000e-01 : f32
    %138 = vector.broadcast %cst_67 : f32 to vector<64x256xf32>
    %139 = arith.mulf %138, %137 : vector<64x256xf32>
    %cst_68 = arith.constant 0.707106769 : f32
    %140 = vector.broadcast %cst_68 : f32 to vector<64x256xf32>
    %141 = arith.mulf %137, %140 : vector<64x256xf32>
    %142 = math.absf %141 : vector<64x256xf32>
    %cst_69 = arith.constant 0.327591091 : f32
    %143 = vector.broadcast %cst_69 : f32 to vector<64x256xf32>
    %144 = arith.mulf %143, %142 : vector<64x256xf32>
    %cst_70 = arith.constant 1.000000e+00 : f32
    %145 = vector.broadcast %cst_70 : f32 to vector<64x256xf32>
    %146 = arith.addf %145, %144 : vector<64x256xf32>
    %cst_71 = arith.constant 1.000000e+00 : f32
    %147 = vector.broadcast %cst_71 : f32 to vector<64x256xf32>
    %148 = arith.divf %147, %146 : vector<64x256xf32>
    %cst_72 = arith.constant 1.06140542 : f32
    %149 = vector.broadcast %cst_72 : f32 to vector<64x256xf32>
    %150 = arith.mulf %148, %149 : vector<64x256xf32>
    %cst_73 = arith.constant -1.45315206 : f32
    %151 = vector.broadcast %cst_73 : f32 to vector<64x256xf32>
    %152 = arith.addf %151, %150 : vector<64x256xf32>
    %153 = arith.mulf %148, %152 : vector<64x256xf32>
    %cst_74 = arith.constant 1.42141378 : f32
    %154 = vector.broadcast %cst_74 : f32 to vector<64x256xf32>
    %155 = arith.addf %154, %153 : vector<64x256xf32>
    %156 = arith.mulf %148, %155 : vector<64x256xf32>
    %cst_75 = arith.constant -0.284496725 : f32
    %157 = vector.broadcast %cst_75 : f32 to vector<64x256xf32>
    %158 = arith.addf %157, %156 : vector<64x256xf32>
    %159 = arith.mulf %148, %158 : vector<64x256xf32>
    %cst_76 = arith.constant 0.254829586 : f32
    %160 = vector.broadcast %cst_76 : f32 to vector<64x256xf32>
    %161 = arith.addf %160, %159 : vector<64x256xf32>
    %162 = arith.mulf %148, %161 : vector<64x256xf32>
    %cst_77 = arith.constant 0.000000e+00 : f32
    %163 = vector.broadcast %cst_77 : f32 to vector<64x256xf32>
    %164 = arith.subf %163, %142 : vector<64x256xf32>
    %165 = arith.mulf %164, %142 : vector<64x256xf32>
    %166 = math.exp %165 : vector<64x256xf32>
    %167 = arith.mulf %162, %166 : vector<64x256xf32>
    %cst_78 = arith.constant 1.000000e+00 : f32
    %168 = vector.broadcast %cst_78 : f32 to vector<64x256xf32>
    %169 = arith.subf %168, %167 : vector<64x256xf32>
    %cst_79 = arith.constant 0.000000e+00 : f32
    %170 = vector.broadcast %cst_79 : f32 to vector<64x256xf32>
    %171 = arith.cmpf olt, %141, %170 : vector<64x256xf32>
    %cst_80 = arith.constant 0.000000e+00 : f32
    %172 = vector.broadcast %cst_80 : f32 to vector<64x256xf32>
    %173 = arith.subf %172, %169 : vector<64x256xf32>
    %174 = arith.select %171, %173, %169 : vector<64x256xi1>, vector<64x256xf32>
    %cst_81 = arith.constant 1.000000e+00 : f32
    %175 = vector.broadcast %cst_81 : f32 to vector<64x256xf32>
    %176 = arith.addf %175, %174 : vector<64x256xf32>
    %177 = arith.mulf %139, %176 : vector<64x256xf32>
    %178 = arith.mulf %136, %177 : vector<64x256xf32>
    %179 = arith.truncf %178 : vector<64x256xf32> to vector<64x256xbf16>
    %c0_82 = arith.constant 0 : index
    %c0_83 = arith.constant 0 : index
    %180 = vector.load %arg20[%c0_82, %c0_83] : memref<256x64xbf16, #tpu.memory_space<vmem>>, vector<256x64xbf16>
    %cst_84 = arith.constant dense<0.000000e+00> : vector<64x64xf32>
    %181 = tpu.matmul %179, %180, %cst_84 {dimension_numbers = #tpu.dot_dimension_numbers<[1], [0], [0], [1], [0, 0, 1, 1], [], []>} : vector<64x256xbf16>, vector<256x64xbf16>, vector<64x64xf32> -> vector<64x64xf32>
    %c0_85 = arith.constant 0 : index
    %c0_86 = arith.constant 0 : index
    %182 = vector.load %arg21[%c0_85, %c0_86] : memref<1x64xf32, #tpu.memory_space<vmem>>, vector<1x64xf32>
    %183 = vector.broadcast %182 : vector<1x64xf32> to vector<64x64xf32>
    %184 = arith.addf %181, %183 : vector<64x64xf32>
    %185 = arith.addf %184, %107 : vector<64x64xf32>
    %c0_87 = arith.constant 0 : index
    %c0_88 = arith.constant 0 : index
    %c0_89 = arith.constant 0 : index
    %186 = vector.load %arg22[%c0_87, %c0_88, %c0_89] : memref<1x64x64xf32, #tpu.memory_space<vmem>>, vector<1x64x64xf32>
    %187 = vector.shape_cast %186 : vector<1x64x64xf32> to vector<64x64xf32>
    %188 = vector.shape_cast %185 : vector<64x64xf32> to vector<1x64x64xf32>
    tpu.vector_store %arg22[%c0_87, %c0_88, %c0_89], %188 {strides = array<i32>} : memref<1x64x64xf32, #tpu.memory_space<vmem>>, vector<1x64x64xf32>,
    return
  }
  func.func @transform_0(%arg0: i32, %arg1: i32) -> (i32, i32, i32) {
    %c0_i32 = arith.constant 0 : i32
    %c0_i32_0 = arith.constant 0 : i32
    %c0_i32_1 = arith.constant 0 : i32
    return %arg0, %c0_i32, %c0_i32_0 : i32, i32, i32
  }
  func.func @transform_1(%arg0: i32, %arg1: i32) -> (i32, i32, i32) {
    %c0_i32 = arith.constant 0 : i32
    %c0_i32_0 = arith.constant 0 : i32
    %c0_i32_1 = arith.constant 0 : i32
    return %arg0, %c0_i32, %c0_i32_0 : i32, i32, i32
  }
  func.func @transform_2(%arg0: i32, %arg1: i32) -> (i32, i32) {
    %c0_i32 = arith.constant 0 : i32
    %c0_i32_0 = arith.constant 0 : i32
    %c0_i32_1 = arith.constant 0 : i32
    return %c0_i32, %c0_i32_0 : i32, i32
  }
  func.func @transform_3(%arg0: i32, %arg1: i32) -> (i32, i32) {
    %c0_i32 = arith.constant 0 : i32
    %c0_i32_0 = arith.constant 0 : i32
    %c0_i32_1 = arith.constant 0 : i32
    return %c0_i32, %c0_i32_0 : i32, i32
  }
  func.func @transform_4(%arg0: i32, %arg1: i32) -> (i32, i32) {
    %c0_i32 = arith.constant 0 : i32
    %c0_i32_0 = arith.constant 0 : i32
    %c0_i32_1 = arith.constant 0 : i32
    return %c0_i32, %c0_i32_0 : i32, i32
  }
  func.func @transform_5(%arg0: i32, %arg1: i32) -> (i32, i32, i32) {
    %c0_i32 = arith.constant 0 : i32
    %c0_i32_0 = arith.constant 0 : i32
    %c0_i32_1 = arith.constant 0 : i32
    %c0_i32_2 = arith.constant 0 : i32
    return %c0_i32, %c0_i32_0, %c0_i32_1 : i32, i32, i32
  }
  func.func @transform_6(%arg0: i32, %arg1: i32) -> (i32, i32) {
    %c0_i32 = arith.constant 0 : i32
    %c0_i32_0 = arith.constant 0 : i32
    %c0_i32_1 = arith.constant 0 : i32
    return %c0_i32, %c0_i32_0 : i32, i32
  }
  func.func @transform_7(%arg0: i32, %arg1: i32) -> (i32, i32) {
    %c0_i32 = arith.constant 0 : i32
    %c0_i32_0 = arith.constant 0 : i32
    %c0_i32_1 = arith.constant 0 : i32
    return %c0_i32, %c0_i32_0 : i32, i32
  }
  func.func @transform_8(%arg0: i32, %arg1: i32) -> (i32, i32) {
    %c0_i32 = arith.constant 0 : i32
    %c0_i32_0 = arith.constant 0 : i32
    %c0_i32_1 = arith.constant 0 : i32
    return %c0_i32, %c0_i32_0 : i32, i32
  }
  func.func @transform_9(%arg0: i32, %arg1: i32) -> (i32, i32) {
    %c0_i32 = arith.constant 0 : i32
    %c0_i32_0 = arith.constant 0 : i32
    %c0_i32_1 = arith.constant 0 : i32
    return %c0_i32, %c0_i32_0 : i32, i32
  }
  func.func @transform_10(%arg0: i32, %arg1: i32) -> (i32, i32) {
    %c0_i32 = arith.constant 0 : i32
    %c0_i32_0 = arith.constant 0 : i32
    %c0_i32_1 = arith.constant 0 : i32
    return %c0_i32, %c0_i32_0 : i32, i32
  }
  func.func @transform_11(%arg0: i32, %arg1: i32) -> (i32, i32, i32) {
    %c0_i32 = arith.constant 0 : i32
    %c0_i32_0 = arith.constant 0 : i32
    %c0_i32_1 = arith.constant 0 : i32
    %c0_i32_2 = arith.constant 0 : i32
    return %c0_i32, %c0_i32_0, %c0_i32_1 : i32, i32, i32
  }
  func.func @transform_12(%arg0: i32, %arg1: i32) -> (i32, i32) {
    %c0_i32 = arith.constant 0 : i32
    %c0_i32_0 = arith.constant 0 : i32
    %c0_i32_1 = arith.constant 0 : i32
    return %c0_i32, %c0_i32_0 : i32, i32
  }
  func.func @transform_13(%arg0: i32, %arg1: i32) -> (i32, i32) {
    %c0_i32 = arith.constant 0 : i32
    %c0_i32_0 = arith.constant 0 : i32
    %c0_i32_1 = arith.constant 0 : i32
    return %c0_i32, %c0_i32_0 : i32, i32
  }
  func.func @transform_14(%arg0: i32, %arg1: i32) -> (i32, i32) {
    %c0_i32 = arith.constant 0 : i32
    %c0_i32_0 = arith.constant 0 : i32
    %c0_i32_1 = arith.constant 0 : i32
    return %c0_i32, %c0_i32_0 : i32, i32
  }
  func.func @transform_15(%arg0: i32, %arg1: i32) -> (i32, i32) {
    %c0_i32 = arith.constant 0 : i32
    %c0_i32_0 = arith.constant 0 : i32
    %c0_i32_1 = arith.constant 0 : i32
    return %c0_i32, %c0_i32_0 : i32, i32
  }
  func.func @transform_16(%arg0: i32, %arg1: i32) -> (i32, i32) {
    %c0_i32 = arith.constant 0 : i32
    %c0_i32_0 = arith.constant 0 : i32
    %c0_i32_1 = arith.constant 0 : i32
    return %c0_i32, %c0_i32_0 : i32, i32
  }
  func.func @transform_17(%arg0: i32, %arg1: i32) -> (i32, i32) {
    %c0_i32 = arith.constant 0 : i32
    %c0_i32_0 = arith.constant 0 : i32
    %c0_i32_1 = arith.constant 0 : i32
    return %c0_i32, %c0_i32_0 : i32, i32
  }
  func.func @transform_18(%arg0: i32, %arg1: i32) -> (i32, i32) {
    %c0_i32 = arith.constant 0 : i32
    %c0_i32_0 = arith.constant 0 : i32
    %c0_i32_1 = arith.constant 0 : i32
    return %c0_i32, %c0_i32_0 : i32, i32
  }
  func.func @transform_19(%arg0: i32, %arg1: i32) -> (i32, i32) {
    %c0_i32 = arith.constant 0 : i32
    %c0_i32_0 = arith.constant 0 : i32
    %c0_i32_1 = arith.constant 0 : i32
    return %c0_i32, %c0_i32_0 : i32, i32
  }
  func.func @transform_20(%arg0: i32, %arg1: i32) -> (i32, i32, i32) {
    %c0_i32 = arith.constant 0 : i32
    %c0_i32_0 = arith.constant 0 : i32
    return %arg0, %arg1, %c0_i32 : i32, i32, i32
  }
}

</mosaic_0001>

<llo_original>
// kernel: spatial_transformer_forward.5
$region0: #{spatial_transformer_forward.5}
  #allocation0 [shape = 'u32[]', space=smem, size = 0x4, offset = 0x4, fixed_abs, tag = 'smem constant byte address 0x4 - core index']
  #allocation1 [shape = 'u32[144,128]{1,0:T(1,128)}', space=vmem, size = 0x12000, scoped, tag = 'internal scratch']
  %s0 = inlined_call_operand.vmem [shape: f32[2,64,64], index: 0, kind: input, shape index: {}]
  %s1 = inlined_call_operand.vmem [shape: f32[2,64,64], index: 1, kind: input, shape index: {}]
  %s2 = inlined_call_operand.vmem [shape: bf16[64,64], index: 2, kind: input, shape index: {}]
  %s3 = inlined_call_operand.vmem [shape: f32[64,1], index: 3, kind: input, shape index: {}]
  %s4 = inlined_call_operand.vmem [shape: f32[2,64,64], index: 4, kind: output, shape index: {}]
  %s5 = sld [smem:[#allocation0]]
  $region49: #{spatial_transformer_forward.5} parent=0
    _
  %s7 = ssub.s32 1, %s5
  %s8 = scalar_select 0, %s7, %s5
  loop: start=0, step=1, limit=4
  $region2: #{spatial_transformer_forward.5} parent=0 // loop_pre_header
    _
  $region3: #{spatial_transformer_forward.5} parent=0 // loop_header
    %s10 = sphi 0, %s14
    %p11 = scmp.ge.s32.totalorder %s10, 4
    %s17 = sphi 0, %s29
    %s18 = sphi 0, %s25
    %s19 = sphi 0, %s17
    %s20 = sphi 0, %s18
    %s21 = sphi 0, %s19
    %s22 = sphi 0, %s20
    %s34 = sphi 0, %s36
    %s37 = sphi 0, %s34
    %s38 = sphi 0, %s37
    %s54 = sphi 0, %s38
    %s62 = sphi 0, %s64
    %s65 = sphi 0, %s62
    %s66 = sphi 0, %s65
    %s82 = sphi 0, %s66
    %s86 = sphi 0, %s86
    %s88 = sphi 0, %s86
    %s89 = sphi 0, %s88
    %s103 = sphi 0, %s89
    %s107 = sphi 0, %s107
    %s109 = sphi 0, %s107
    %s110 = sphi 0, %s109
    %s124 = sphi 0, %s110
    %s132 = sphi 0, %s134
    %s135 = sphi 0, %s132
    %s136 = sphi 0, %s135
    %s152 = sphi 0, %s136
  $region4: #{spatial_transformer_forward.5} parent=0 // loop_header_branch
    %13 = sbr.rel (%p11) target = $region8
  $region5: #{spatial_transformer_forward.5} parent=0 // loop_body
    %s15 = ssub.s32 %s10, 1
    %s16 = ssub.s32 %s10, 2
    %s23 = sadd.s32 1, %s18
    %p24 = scmp.ge.s32.totalorder %s23, 1
    %s25 = scalar_select %p24, 0, %s23
    %s26 = sadd.s32 1, %s17
    %s27 = scalar_select %p24, %s26, %s17
    %p28 = scmp.ge.s32.totalorder %s27, 2
    %s29 = scalar_select %p28, 0, %s27
    %s30 = ssub.s32 %s17, %s29
    %s31 = ssub.s32 %s18, %s25
    %s32 = sor.u32 %s30, %s31
    %p33 = scmp.eq.s32.totalorder %s32, 0
    %s35 = sadd.s32 %s34, 1
    %s36 = scalar_select %p33, %s34, %s35
    %p39 = pneg %p33
    %p40 = scmp.eq.s32.totalorder %s10, 1
    %p41 = por %p39, %p40
    %p42 = scmp.ne.s32.totalorder %s34, %s37
    %p43 = scmp.eq.s32.totalorder %s10, 0
    %p44 = por %p42, %p43
    %p45 = scmp.ne.s32.totalorder %s34, %s37
    %p46 = scmp.eq.s32.totalorder %s15, 1
    %p47 = por %p45, %p46
    %p48 = scmp.ne.s32.totalorder %s37, %s38
    %p49 = scmp.eq.s32.totalorder %s15, 0
    %p50 = por %p48, %p49
    %p51 = scmp.ne.s32.totalorder %s37, %s38
    %p52 = scmp.eq.s32.totalorder %s16, 1
    %p53 = por %p51, %p52
    %p55 = scmp.ne.s32.totalorder %s38, %s54
    %p56 = scmp.eq.s32.totalorder %s16, 0
    %p57 = por %p55, %p56
    %s58 = ssub.s32 %s17, %s29
    %s59 = ssub.s32 %s18, %s25
    %s60 = sor.u32 %s58, %s59
    %p61 = scmp.eq.s32.totalorder %s60, 0
    %s63 = sadd.s32 %s62, 1
    %s64 = scalar_select %p61, %s62, %s63
    %p67 = pneg %p61
    %p68 = scmp.eq.s32.totalorder %s10, 1
    %p69 = por %p67, %p68
    %p70 = scmp.ne.s32.totalorder %s62, %s65
    %p71 = scmp.eq.s32.totalorder %s10, 0
    %p72 = por %p70, %p71
    %p73 = scmp.ne.s32.totalorder %s62, %s65
    %p74 = scmp.eq.s32.totalorder %s15, 1
    %p75 = por %p73, %p74
    %p76 = scmp.ne.s32.totalorder %s65, %s66
    %p77 = scmp.eq.s32.totalorder %s15, 0
    %p78 = por %p76, %p77
    %p79 = scmp.ne.s32.totalorder %s65, %s66
    %p80 = scmp.eq.s32.totalorder %s16, 1
    %p81 = por %p79, %p80
    %p83 = scmp.ne.s32.totalorder %s66, %s82
    %p84 = scmp.eq.s32.totalorder %s16, 0
    %p85 = por %p83, %p84
    %s87 = sadd.s32 %s86, 1
    %p90 = scmp.eq.s32.totalorder %s10, 1
    %p91 = scmp.ne.s32.totalorder %s86, %s88
    %p92 = scmp.eq.s32.totalorder %s10, 0
    %p93 = por %p91, %p92
    %p94 = scmp.ne.s32.totalorder %s86, %s88
    %p95 = scmp.eq.s32.totalorder %s15, 1
    %p96 = por %p94, %p95
    %p97 = scmp.ne.s32.totalorder %s88, %s89
    %p98 = scmp.eq.s32.totalorder %s15, 0
    %p99 = por %p97, %p98
    %p100 = scmp.ne.s32.totalorder %s88, %s89
    %p101 = scmp.eq.s32.totalorder %s16, 1
    %p102 = por %p100, %p101
    %p104 = scmp.ne.s32.totalorder %s89, %s103
    %p105 = scmp.eq.s32.totalorder %s16, 0
    %p106 = por %p104, %p105
    %s108 = sadd.s32 %s107, 1
    %p111 = scmp.eq.s32.totalorder %s10, 1
    %p112 = scmp.ne.s32.totalorder %s107, %s109
    %p113 = scmp.eq.s32.totalorder %s10, 0
    %p114 = por %p112, %p113
    %p115 = scmp.ne.s32.totalorder %s107, %s109
    %p116 = scmp.eq.s32.totalorder %s15, 1
    %p117 = por %p115, %p116
    %p118 = scmp.ne.s32.totalorder %s109, %s110
    %p119 = scmp.eq.s32.totalorder %s15, 0
    %p120 = por %p118, %p119
    %p121 = scmp.ne.s32.totalorder %s109, %s110
    %p122 = scmp.eq.s32.totalorder %s16, 1
    %p123 = por %p121, %p122
    %p125 = scmp.ne.s32.totalorder %s110, %s124
    %p126 = scmp.eq.s32.totalorder %s16, 0
    %p127 = por %p125, %p126
    %s128 = ssub.s32 %s17, %s29
    %s129 = ssub.s32 %s18, %s25
    %s130 = sor.u32 %s128, %s129
    %p131 = scmp.eq.s32.totalorder %s130, 0
    %s133 = sadd.s32 %s132, 1
    %s134 = scalar_select %p131, %s132, %s133
    %p137 = pneg %p131
    %p138 = scmp.eq.s32.totalorder %s10, 1
    %p139 = por %p137, %p138
    %p140 = scmp.ne.s32.totalorder %s132, %s135
    %p141 = scmp.eq.s32.totalorder %s10, 0
    %p142 = por %p140, %p141
    %p143 = scmp.ne.s32.totalorder %s132, %s135
    %p144 = scmp.eq.s32.totalorder %s15, 1
    %p145 = por %p143, %p144
    %p146 = scmp.ne.s32.totalorder %s135, %s136
    %p147 = scmp.eq.s32.totalorder %s15, 0
    %p148 = por %p146, %p147
    %p149 = scmp.ne.s32.totalorder %s135, %s136
    %p150 = scmp.eq.s32.totalorder %s16, 1
    %p151 = por %p149, %p150
    %p153 = scmp.ne.s32.totalorder %s136, %s152
    %p154 = scmp.eq.s32.totalorder %s16, 0
    %p155 = por %p153, %p154
    %p156 = scmp.le.s32.totalorder 1, %s10
    %p157 = scmp.lt.s32.totalorder %s10, 3
    %p158 = pnand %p156, %p157
    %p159 = pneg %p158
    // Predicated region
    $region9: #{spatial_transformer_forward.5} parent=5 // pred_check
      _
    $region10: #{spatial_transformer_forward.5} parent=5 // pred_check_branch
      %161 = sbr.rel (%p158) target = $region12
    $region11: #{spatial_transformer_forward.5} parent=5 // pred_region
      %s162 = ssub.s32 %s10, 1
      // Predicated region
      $region13: #{spatial_transformer_forward.5} parent=11 // pred_check
        %p163 = pneg %p99
      $region14: #{spatial_transformer_forward.5} parent=11 // pred_check_branch
        %165 = sbr.rel (%p163) target = $region16
      $region15: #{spatial_transformer_forward.5} parent=11 // pred_region
        _
      $region16: #{spatial_transformer_forward.5} parent=11 // pred_fallthru
        _
      // Predicated region
      $region17: #{spatial_transformer_forward.5} parent=11 // pred_check
        %p166 = pneg %p120
      $region18: #{spatial_transformer_forward.5} parent=11 // pred_check_branch
        %168 = sbr.rel (%p166) target = $region20
      $region19: #{spatial_transformer_forward.5} parent=11 // pred_region
        _
      $region20: #{spatial_transformer_forward.5} parent=11 // pred_fallthru
        _
    $region12: #{spatial_transformer_forward.5} parent=5 // pred_fallthru
      _
    %p169 = scmp.lt.s32.totalorder %s10, 2
    // Predicated region
    $region21: #{spatial_transformer_forward.5} parent=5 // pred_check
      %p170 = pneg %p169
    $region22: #{spatial_transformer_forward.5} parent=5 // pred_check_branch
      %172 = sbr.rel (%p170) target = $region24
    $region23: #{spatial_transformer_forward.5} parent=5 // pred_region
      // Predicated region
      $region25: #{spatial_transformer_forward.5} parent=23 // pred_check
        %p173 = pneg %p44
      $region26: #{spatial_transformer_forward.5} parent=23 // pred_check_branch
        %175 = sbr.rel (%p173) target = $region28
      $region27: #{spatial_transformer_forward.5} parent=23 // pred_region
        %s176 = smul.u32 8, %s18
        %p177 = scmp.lt.s32.totalorder %s17, 1
        %s178 = scalar_select %p177, %s17, 1
        %p179 = scmp.lt.s32.totalorder %s176, 7
        %s180 = scalar_select %p179, %s176, 7
        %s181 = smul.addr %s178, 8
        %s182 = sadd.s32 %s180, %s181
        %s183 = smul.addr %s182, 8
        %s184 = scalar_lea.vmem %s0, %s183
        %s185 = smul.u32 8, %s18
      $region28: #{spatial_transformer_forward.5} parent=23 // pred_fallthru
        _
      // Predicated region
      $region29: #{spatial_transformer_forward.5} parent=23 // pred_check
        %p186 = pneg %p72
      $region30: #{spatial_transformer_forward.5} parent=23 // pred_check_branch
        %188 = sbr.rel (%p186) target = $region32
      $region31: #{spatial_transformer_forward.5} parent=23 // pred_region
        %p189 = scmp.lt.s32.totalorder %s17, 1
        %s190 = scalar_select %p189, %s17, 1
        %p191 = scmp.lt.s32.totalorder %s18, 0
        %s192 = scalar_select %p191, %s18, 0
        %s193 = smul.addr %s190, 8
        %s194 = sadd.s32 %s192, %s193
        %s195 = smul.addr %s194, 8
        %s196 = scalar_lea.vmem %s1, %s195
      $region32: #{spatial_transformer_forward.5} parent=23 // pred_fallthru
        _
    $region24: #{spatial_transformer_forward.5} parent=5 // pred_fallthru
      _
    %p197 = scmp.le.s32.totalorder 1, %s10
    %p198 = scmp.lt.s32.totalorder %s10, 3
    %p199 = pnand %p197, %p198
    %p200 = pneg %p199
    // Predicated region
    $region33: #{spatial_transformer_forward.5} parent=5 // pred_check
      _
    $region34: #{spatial_transformer_forward.5} parent=5 // pred_check_branch
      %202 = sbr.rel (%p199) target = $region36
    $region35: #{spatial_transformer_forward.5} parent=5 // pred_region
      %s203 = ssub.s32 %s10, 1
      %s204 = smul.u32 8, %s20
      %p205 = scmp.lt.s32.totalorder %s19, 1
      %s206 = scalar_select %p205, %s19, 1
      %p207 = scmp.lt.s32.totalorder %s204, 7
      %s208 = scalar_select %p207, %s204, 7
      %s209 = smul.addr %s206, 8
      %s210 = sadd.s32 %s208, %s209
      %s211 = smul.addr %s210, 8
      %s212 = scalar_lea.vmem %s0, %s211
      %p213 = pneg %p50
      %p214 = pneg %p47
      %p215 = scmp.lt.s32.totalorder %s19, 1
      %s216 = scalar_select %p215, %s19, 1
      %p217 = scmp.lt.s32.totalorder %s20, 0
      %s218 = scalar_select %p217, %s20, 0
      %s219 = smul.addr %s216, 8
      %s220 = sadd.s32 %s218, %s219
      %s221 = smul.addr %s220, 8
      %s222 = scalar_lea.vmem %s1, %s221
      %p223 = pneg %p78
      %p224 = pneg %p75
      %p225 = pneg %p99
      %p226 = pneg %p96
      %p227 = pneg %p120
      %p228 = pneg %p117
      %p229 = pneg %p148
      %p230 = pneg %p145
      %p231 = scmp.lt.s32.totalorder %s19, 1
      %s232 = scalar_select %p231, %s19, 1
      %p233 = scmp.lt.s32.totalorder %s20, 0
      %s234 = scalar_select %p233, %s20, 0
      %s235 = smul.addr %s232, 8
      %s236 = sadd.s32 %s234, %s235
      %s237 = smul.addr %s236, 8
      %s238 = scalar_lea.vmem %s4, %s237
      %s239 = smul.u32 8, %s20
      %p240 = scmp.lt.s32.totalorder %s19, 1
      %s241 = scalar_select %p240, %s19, 1
      %p242 = scmp.lt.s32.totalorder %s239, 7
      %s243 = scalar_select %p242, %s239, 7
      %s244 = smul.addr %s241, 8
      %s245 = sadd.s32 %s243, %s244
      %s246 = smul.addr %s245, 8
      %s247 = scalar_lea.vmem %s0, %s246
      %s248 = smul.u32 8, %s20
      %p249 = scmp.lt.s32.totalorder %s19, 1
      %s250 = scalar_select %p249, %s19, 1
      %p251 = scmp.lt.s32.totalorder %s20, 0
      %s252 = scalar_select %p251, %s20, 0
      %s253 = smul.addr %s250, 8
      %s254 = sadd.s32 %s252, %s253
      %s255 = smul.addr %s254, 8
      %s256 = scalar_lea.vmem %s1, %s255
      %p257 = scmp.lt.s32.totalorder %s19, 1
      %s258 = scalar_select %p257, %s19, 1
      %p259 = scmp.lt.s32.totalorder %s20, 0
      %s260 = scalar_select %p259, %s20, 0
      %s261 = smul.addr %s258, 8
      %s262 = sadd.s32 %s260, %s261
      %s263 = smul.addr %s262, 8
      %s264 = scalar_lea.vmem %s4, %s263
      %v266 = vld [vmem:[%s247] sm:$0xff]
      %v267 = vld [vmem:[%s247 + $0x8] sm:$0xff]
      %v268 = vld [vmem:[%s247 + $0x10] sm:$0xff]
      %v269 = vld [vmem:[%s247 + $0x18] sm:$0xff]
      %v270 = vld [vmem:[%s247 + $0x20] sm:$0xff]
      %v271 = vld [vmem:[%s247 + $0x28] sm:$0xff]
      %v272 = vld [vmem:[%s247 + $0x30] sm:$0xff]
      %v273 = vld [vmem:[%s247 + $0x38] sm:$0xff]
      %v274 = vld [vmem:[%s2] sm:$0xf]
      %v275 = vld [vmem:[%s2 + $0x4] sm:$0xf]
      %v276 = vld [vmem:[%s2 + $0x8] sm:$0xf]
      %v277 = vld [vmem:[%s2 + $0xc] sm:$0xf]
      %v278 = vld [vmem:[%s2 + $0x10] sm:$0xf]
      %v279 = vld [vmem:[%s2 + $0x14] sm:$0xf]
      %v280 = vld [vmem:[%s2 + $0x18] sm:$0xf]
      %v281 = vld [vmem:[%s2 + $0x1c] sm:$0xf]
      %v282 = vpack.c.bf16 %v267, %v266
      %v283 = vpack.c.bf16 %v269, %v268
      %v284 = vpack.c.bf16 %v271, %v270
      %v285 = vpack.c.bf16 %v273, %v272
      %v286 = vld [vmem:[%s3] sm:$0xff]
      %v287 = vld [vmem:[%s3 + $0x8] sm:$0xff]
      %v288 = vld [vmem:[%s3 + $0x10] sm:$0xff]
      %v289 = vld [vmem:[%s3 + $0x18] sm:$0xff]
      %v290 = vld [vmem:[%s3 + $0x20] sm:$0xff]
      %v291 = vld [vmem:[%s3 + $0x28] sm:$0xff]
      %v292 = vld [vmem:[%s3 + $0x30] sm:$0xff]
      %v293 = vld [vmem:[%s3 + $0x38] sm:$0xff]
      %295 = vset.pattern.permute.xlu0 0
      %296 = vperm.xlu0 %295, %v286
      %v297 = vpop.permute.xlu0 %296
      %300 = vset.pattern.permute.xlu0 0
      %301 = vperm.xlu0 %300, %v287
      %v302 = vpop.permute.xlu0 %301
      %305 = vset.pattern.permute.xlu0 0
      %306 = vperm.xlu0 %305, %v288
      %v307 = vpop.permute.xlu0 %306
      %310 = vset.pattern.permute.xlu0 0
      %311 = vperm.xlu0 %310, %v289
      %v312 = vpop.permute.xlu0 %311
      %315 = vset.pattern.permute.xlu0 0
      %316 = vperm.xlu0 %315, %v290
      %v317 = vpop.permute.xlu0 %316
      %320 = vset.pattern.permute.xlu0 0
      %321 = vperm.xlu0 %320, %v291
      %v322 = vpop.permute.xlu0 %321
      %325 = vset.pattern.permute.xlu0 0
      %326 = vperm.xlu0 %325, %v292
      %v327 = vpop.permute.xlu0 %326
      %330 = vset.pattern.permute.xlu0 0
      %331 = vperm.xlu0 %330, %v293
      %v332 = vpop.permute.xlu0 %331
      %v342 = vunpack.c.l.b16 %v274
      %v343 = vunpack.c.l.b16 %v275
      %v344 = vunpack.c.l.b16 %v276
      %v345 = vunpack.c.l.b16 %v277
      %v346 = vunpack.c.l.b16 %v278
      %v347 = vunpack.c.l.b16 %v279
      %v348 = vunpack.c.l.b16 %v280
      %v349 = vunpack.c.l.b16 %v281
      %v350 = vpack.c.b16 %v343, %v342
      %v351 = vpack.c.b16 %v345, %v344
      %v352 = vpack.c.b16 %v347, %v346
      %v353 = vpack.c.b16 %v349, %v348
      %358 = vxpose.xlu0.c.b16.start [1/8] %v350, 128
      %359 = vxpose.xlu0.c.b16.cont [2/8] %v351, 128
      %360 = vxpose.xlu0.c.b16.cont [3/8] %v352, 128
      %361 = vxpose.xlu0.c.b16.cont [4/8] %v353, 128
      %362 = vxpose.xlu0.c.b16.cont [5/8] 0, 128
      %363 = vxpose.xlu0.c.b16.cont [6/8] 0, 128
      %364 = vxpose.xlu0.c.b16.cont [7/8] 0, 128
      %365 = vxpose.xlu0.c.b16.end [8/8] 0, 128
      %v366 = vpop.trf.xlu0
      %v367 = vpop.trf.xlu0
      %v368 = vpop.trf.xlu0
      %v369 = vpop.trf.xlu0
      %v370 = vpop.trf.xlu0
      %v371 = vpop.trf.xlu0
      %v372 = vpop.trf.xlu0
      %v373 = vpop.trf.xlu0
      %vm374 = vcmask 523264
      %v376 = vsel %vm374, %v366, 0
      %v379 = vsel %vm374, %v367, 0
      %v382 = vsel %vm374, %v368, 0
      %v385 = vsel %vm374, %v369, 0
      %v388 = vsel %vm374, %v282, 0
      %v391 = vsel %vm374, %v283, 0
      %v394 = vsel %vm374, %v284, 0
      %v397 = vsel %vm374, %v285, 0
      %399 = vmatprep.subr.bf16.mxu0 0
      %400 = vmatpush1.bf16.xpose.msra.mxu0 %v388
      %401 = vmatprep.subr.bf16.mxu0 0
      %402 = vmatpush1.bf16.xpose.msra.mxu0 %v391
      %403 = vmatprep.subr.bf16.mxu0 0
      %404 = vmatpush1.bf16.xpose.msra.mxu0 %v394
      %405 = vmatprep.subr.bf16.mxu0 0
      %406 = vmatpush1.bf16.xpose.msra.mxu0 %v397
      %407 = vmatprep.subr.bf16.mxu0 0
      %408 = vmatpush1.bf16.xpose.msra.mxu0 0
      %409 = vmatprep.subr.bf16.mxu0 0
      %410 = vmatpush1.bf16.xpose.msra.mxu0 0
      %411 = vmatprep.subr.bf16.mxu0 0
      %412 = vmatpush1.bf16.xpose.msra.mxu0 0
      %413 = vmatprep.subr.bf16.mxu0 0
      %414 = vmatpush1.bf16.xpose.msra.mxu0 0
      %415 = vmatprep.subr.bf16.mxu0 0
      %416 = vmatpush1.bf16.xpose.msra.mxu0 0
      %417 = vmatprep.subr.bf16.mxu0 0
      %418 = vmatpush1.bf16.xpose.msra.mxu0 0
      %419 = vmatprep.subr.bf16.mxu0 0
      %420 = vmatpush1.bf16.xpose.msra.mxu0 0
      %421 = vmatprep.subr.bf16.mxu0 0
      %422 = vmatpush1.bf16.xpose.msra.mxu0 0
      %423 = vmatprep.subr.bf16.mxu0 0
      %424 = vmatpush1.bf16.xpose.msra.mxu0 0
      %425 = vmatprep.subr.bf16.mxu0 0
      %426 = vmatpush1.bf16.xpose.msra.mxu0 0
      %427 = vmatprep.subr.bf16.mxu0 0
      %428 = vmatpush1.bf16.xpose.msra.mxu0 0
      %429 = vmatprep.subr.bf16.mxu0 0
      %430 = vmatpush1.bf16.xpose.msra.mxu0 0
      %431 = vmatprep.mubr.bf16.mxu0 0
      %432 = vmatmul.mubr.bf16.gmra.mrb[0].mxu0 %v376
      %v433 = vpop.f32.mrb[0].mxu0
      %v434 = vadd.f32 %v297, %v433
      %v435 = vpop.f32.mrb[0].mxu0
      %v436 = vpop.f32.mrb[0].mxu0
      %v437 = vadd.f32 %v302, %v436
      %v438 = vpop.f32.mrb[0].mxu0
      %439 = vmatprep.mubr.bf16.mxu0 0
      %440 = vmatmul.mubr.bf16.gmra.mrb[0].mxu0 %v379
      %v441 = vpop.f32.mrb[0].mxu0
      %v442 = vadd.f32 %v307, %v441
      %v443 = vpop.f32.mrb[0].mxu0
      %v444 = vpop.f32.mrb[0].mxu0
      %v445 = vadd.f32 %v312, %v444
      %v446 = vpop.f32.mrb[0].mxu0
      %447 = vmatprep.mubr.bf16.mxu0 0
      %448 = vmatmul.mubr.bf16.gmra.mrb[0].mxu0 %v382
      %v449 = vpop.f32.mrb[0].mxu0
      %v450 = vadd.f32 %v317, %v449
      %v451 = vpop.f32.mrb[0].mxu0
      %v452 = vpop.f32.mrb[0].mxu0
      %v453 = vadd.f32 %v322, %v452
      %v454 = vpop.f32.mrb[0].mxu0
      %455 = vmatprep.mubr.bf16.mxu0 0
      %456 = vmatmul.mubr.bf16.gmra.mrb[0].mxu0 %v385
      %v457 = vpop.f32.mrb[0].mxu0
      %v458 = vadd.f32 %v327, %v457
      %v459 = vpop.f32.mrb[0].mxu0
      %v460 = vpop.f32.mrb[0].mxu0
      %v461 = vadd.f32 %v332, %v460
      %v462 = vpop.f32.mrb[0].mxu0
      %463 = vdwg.mxu0
      %v464 = vld [vmem:[%s256] sm:$0xff]
      %v465 = vld [vmem:[%s256 + $0x8] sm:$0xff]
      %v466 = vld [vmem:[%s256 + $0x10] sm:$0xff]
      %v467 = vld [vmem:[%s256 + $0x18] sm:$0xff]
      %v468 = vld [vmem:[%s256 + $0x20] sm:$0xff]
      %v469 = vld [vmem:[%s256 + $0x28] sm:$0xff]
      %v470 = vld [vmem:[%s256 + $0x30] sm:$0xff]
      %v471 = vld [vmem:[%s256 + $0x38] sm:$0xff]
      %v472 = vadd.f32 %v434, %v464
      %v473 = vadd.f32 %v437, %v465
      %v474 = vadd.f32 %v442, %v466
      %v475 = vadd.f32 %v445, %v467
      %v476 = vadd.f32 %v450, %v468
      %v477 = vadd.f32 %v453, %v469
      %v478 = vadd.f32 %v458, %v470
      %v479 = vadd.f32 %v461, %v471
      %480 = vst.msk [vmem:[%s264] sm:$0xff] %vm374, %v472
      %481 = vst.msk [vmem:[%s264 + $0x8] sm:$0xff] %vm374, %v473
      %482 = vst.msk [vmem:[%s264 + $0x10] sm:$0xff] %vm374, %v474
      %483 = vst.msk [vmem:[%s264 + $0x18] sm:$0xff] %vm374, %v475
      %484 = vst.msk [vmem:[%s264 + $0x20] sm:$0xff] %vm374, %v476
      %485 = vst.msk [vmem:[%s264 + $0x28] sm:$0xff] %vm374, %v477
      %486 = vst.msk [vmem:[%s264 + $0x30] sm:$0xff] %vm374, %v478
      %487 = vst.msk [vmem:[%s264 + $0x38] sm:$0xff] %vm374, %v479
      %p488 = scmp.lt.s32.totalorder %s19, 1
      %s489 = scalar_select %p488, %s19, 1
      %p490 = scmp.lt.s32.totalorder %s20, 0
      %s491 = scalar_select %p490, %s20, 0
      %s492 = smul.addr %s489, 8
      %s493 = sadd.s32 %s491, %s492
      %s494 = smul.addr %s493, 8
      %s495 = scalar_lea.vmem %s4, %s494
      // Predicated region
      $region37: #{spatial_transformer_forward.5} parent=35 // pred_check
        %p496 = pneg %p145
      $region38: #{spatial_transformer_forward.5} parent=35 // pred_check_branch
        %498 = sbr.rel (%p496) target = $region40
      $region39: #{spatial_transformer_forward.5} parent=35 // pred_region
        _
      $region40: #{spatial_transformer_forward.5} parent=35 // pred_fallthru
        _
    $region36: #{spatial_transformer_forward.5} parent=5 // pred_fallthru
      _
    %p499 = scmp.le.s32.totalorder 2, %s10
    // Predicated region
    $region41: #{spatial_transformer_forward.5} parent=5 // pred_check
      %p500 = pneg %p499
    $region42: #{spatial_transformer_forward.5} parent=5 // pred_check_branch
      %502 = sbr.rel (%p500) target = $region44
    $region43: #{spatial_transformer_forward.5} parent=5 // pred_region
      %s503 = ssub.s32 %s10, 2
      // Predicated region
      $region45: #{spatial_transformer_forward.5} parent=43 // pred_check
        %p504 = pneg %p151
      $region46: #{spatial_transformer_forward.5} parent=43 // pred_check_branch
        %506 = sbr.rel (%p504) target = $region48
      $region47: #{spatial_transformer_forward.5} parent=43 // pred_region
        %p507 = scmp.lt.s32.totalorder %s21, 1
        %s508 = scalar_select %p507, %s21, 1
        %p509 = scmp.lt.s32.totalorder %s22, 0
        %s510 = scalar_select %p509, %s22, 0
        %s511 = smul.addr %s508, 8
        %s512 = sadd.s32 %s510, %s511
        %s513 = smul.addr %s512, 8
        %s514 = scalar_lea.vmem %s4, %s513
      $region48: #{spatial_transformer_forward.5} parent=43 // pred_fallthru
        _
    $region44: #{spatial_transformer_forward.5} parent=5 // pred_fallthru
      _
  $region6: #{spatial_transformer_forward.5} parent=0 // loop_footer
    %s14 = sadd.s32 1, %s10
  $region7: #{spatial_transformer_forward.5} parent=0 // loop_footer_branch
    %9 = sbr.rel target = $region3
  $region8: #{spatial_transformer_forward.5} parent=0 // loop_exit
    _

// kernel: spatial_transformer_forward.3
$region0: #{spatial_transformer_forward.3}
  #allocation0 [shape = 'u32[]', space=smem, size = 0x4, offset = 0x4, fixed_abs, tag = 'smem constant byte address 0x4 - core index']
  #allocation1 [shape = 'u32[144,128]{1,0:T(1,128)}', space=vmem, size = 0x12000, scoped, tag = 'internal scratch']
  %s0 = inlined_call_operand.vmem [shape: f32[2,64,64], index: 0, kind: input, shape index: {}]
  %s1 = inlined_call_operand.vmem [shape: f32[64,64], index: 1, kind: input, shape index: {}]
  %s2 = inlined_call_operand.vmem [shape: f32[64,1], index: 2, kind: input, shape index: {}]
  %s3 = inlined_call_operand.vmem [shape: f32[64,1], index: 3, kind: input, shape index: {}]
  %s4 = inlined_call_operand.vmem [shape: bf16[64,64], index: 4, kind: input, shape index: {}]
  %s5 = inlined_call_operand.vmem [shape: f32[1,64], index: 5, kind: input, shape index: {}]
  %s6 = inlined_call_operand.vmem [shape: f32[2,64,64], index: 6, kind: output, shape index: {}]
  %s7 = sld [smem:[#allocation0]]
  $region57: #{spatial_transformer_forward.3} parent=0
    _
  %s9 = ssub.s32 1, %s7
  %s10 = scalar_select 0, %s9, %s7
  loop: start=0, step=1, limit=4
  $region2: #{spatial_transformer_forward.3} parent=0 // loop_pre_header
    _
  $region3: #{spatial_transformer_forward.3} parent=0 // loop_header
    %s12 = sphi 0, %s16
    %p13 = scmp.ge.s32.totalorder %s12, 4
    %s22 = sphi 0, %s24
    %s25 = sphi 0, %s22
    %s26 = sphi 0, %s25
    %s42 = sphi 0, %s26
    %s46 = sphi 0, %s46
    %s48 = sphi 0, %s46
    %s49 = sphi 0, %s48
    %s63 = sphi 0, %s49
    %s67 = sphi 0, %s67
    %s69 = sphi 0, %s67
    %s70 = sphi 0, %s69
    %s84 = sphi 0, %s70
    %s88 = sphi 0, %s88
    %s90 = sphi 0, %s88
    %s91 = sphi 0, %s90
    %s105 = sphi 0, %s91
    %s109 = sphi 0, %s109
    %s111 = sphi 0, %s109
    %s112 = sphi 0, %s111
    %s126 = sphi 0, %s112
    %s130 = sphi 0, %s130
    %s132 = sphi 0, %s130
    %s133 = sphi 0, %s132
    %s147 = sphi 0, %s133
    %s153 = sphi 0, %s155
    %s156 = sphi 0, %s153
    %s157 = sphi 0, %s156
    %s173 = sphi 0, %s157
  $region4: #{spatial_transformer_forward.3} parent=0 // loop_header_branch
    %15 = sbr.rel (%p13) target = $region8
  $region5: #{spatial_transformer_forward.3} parent=0 // loop_body
    %s17 = ssub.s32 %s12, 1
    %s18 = ssub.s32 %s12, 2
    %s19 = sadd.s32 %s12, 1
    %s20 = ssub.s32 %s12, %s19
    %p21 = scmp.eq.s32.totalorder %s20, 0
    %s23 = sadd.s32 %s22, 1
    %s24 = scalar_select %p21, %s22, %s23
    %p27 = pneg %p21
    %p28 = scmp.eq.s32.totalorder %s12, 1
    %p29 = por %p27, %p28
    %p30 = scmp.ne.s32.totalorder %s22, %s25
    %p31 = scmp.eq.s32.totalorder %s12, 0
    %p32 = por %p30, %p31
    %p33 = scmp.ne.s32.totalorder %s22, %s25
    %p34 = scmp.eq.s32.totalorder %s17, 1
    %p35 = por %p33, %p34
    %p36 = scmp.ne.s32.totalorder %s25, %s26
    %p37 = scmp.eq.s32.totalorder %s17, 0
    %p38 = por %p36, %p37
    %p39 = scmp.ne.s32.totalorder %s25, %s26
    %p40 = scmp.eq.s32.totalorder %s18, 1
    %p41 = por %p39, %p40
    %p43 = scmp.ne.s32.totalorder %s26, %s42
    %p44 = scmp.eq.s32.totalorder %s18, 0
    %p45 = por %p43, %p44
    %s47 = sadd.s32 %s46, 1
    %p50 = scmp.eq.s32.totalorder %s12, 1
    %p51 = scmp.ne.s32.totalorder %s46, %s48
    %p52 = scmp.eq.s32.totalorder %s12, 0
    %p53 = por %p51, %p52
    %p54 = scmp.ne.s32.totalorder %s46, %s48
    %p55 = scmp.eq.s32.totalorder %s17, 1
    %p56 = por %p54, %p55
    %p57 = scmp.ne.s32.totalorder %s48, %s49
    %p58 = scmp.eq.s32.totalorder %s17, 0
    %p59 = por %p57, %p58
    %p60 = scmp.ne.s32.totalorder %s48, %s49
    %p61 = scmp.eq.s32.totalorder %s18, 1
    %p62 = por %p60, %p61
    %p64 = scmp.ne.s32.totalorder %s49, %s63
    %p65 = scmp.eq.s32.totalorder %s18, 0
    %p66 = por %p64, %p65
    %s68 = sadd.s32 %s67, 1
    %p71 = scmp.eq.s32.totalorder %s12, 1
    %p72 = scmp.ne.s32.totalorder %s67, %s69
    %p73 = scmp.eq.s32.totalorder %s12, 0
    %p74 = por %p72, %p73
    %p75 = scmp.ne.s32.totalorder %s67, %s69
    %p76 = scmp.eq.s32.totalorder %s17, 1
    %p77 = por %p75, %p76
    %p78 = scmp.ne.s32.totalorder %s69, %s70
    %p79 = scmp.eq.s32.totalorder %s17, 0
    %p80 = por %p78, %p79
    %p81 = scmp.ne.s32.totalorder %s69, %s70
    %p82 = scmp.eq.s32.totalorder %s18, 1
    %p83 = por %p81, %p82
    %p85 = scmp.ne.s32.totalorder %s70, %s84
    %p86 = scmp.eq.s32.totalorder %s18, 0
    %p87 = por %p85, %p86
    %s89 = sadd.s32 %s88, 1
    %p92 = scmp.eq.s32.totalorder %s12, 1
    %p93 = scmp.ne.s32.totalorder %s88, %s90
    %p94 = scmp.eq.s32.totalorder %s12, 0
    %p95 = por %p93, %p94
    %p96 = scmp.ne.s32.totalorder %s88, %s90
    %p97 = scmp.eq.s32.totalorder %s17, 1
    %p98 = por %p96, %p97
    %p99 = scmp.ne.s32.totalorder %s90, %s91
    %p100 = scmp.eq.s32.totalorder %s17, 0
    %p101 = por %p99, %p100
    %p102 = scmp.ne.s32.totalorder %s90, %s91
    %p103 = scmp.eq.s32.totalorder %s18, 1
    %p104 = por %p102, %p103
    %p106 = scmp.ne.s32.totalorder %s91, %s105
    %p107 = scmp.eq.s32.totalorder %s18, 0
    %p108 = por %p106, %p107
    %s110 = sadd.s32 %s109, 1
    %p113 = scmp.eq.s32.totalorder %s12, 1
    %p114 = scmp.ne.s32.totalorder %s109, %s111
    %p115 = scmp.eq.s32.totalorder %s12, 0
    %p116 = por %p114, %p115
    %p117 = scmp.ne.s32.totalorder %s109, %s111
    %p118 = scmp.eq.s32.totalorder %s17, 1
    %p119 = por %p117, %p118
    %p120 = scmp.ne.s32.totalorder %s111, %s112
    %p121 = scmp.eq.s32.totalorder %s17, 0
    %p122 = por %p120, %p121
    %p123 = scmp.ne.s32.totalorder %s111, %s112
    %p124 = scmp.eq.s32.totalorder %s18, 1
    %p125 = por %p123, %p124
    %p127 = scmp.ne.s32.totalorder %s112, %s126
    %p128 = scmp.eq.s32.totalorder %s18, 0
    %p129 = por %p127, %p128
    %s131 = sadd.s32 %s130, 1
    %p134 = scmp.eq.s32.totalorder %s12, 1
    %p135 = scmp.ne.s32.totalorder %s130, %s132
    %p136 = scmp.eq.s32.totalorder %s12, 0
    %p137 = por %p135, %p136
    %p138 = scmp.ne.s32.totalorder %s130, %s132
    %p139 = scmp.eq.s32.totalorder %s17, 1
    %p140 = por %p138, %p139
    %p141 = scmp.ne.s32.totalorder %s132, %s133
    %p142 = scmp.eq.s32.totalorder %s17, 0
    %p143 = por %p141, %p142
    %p144 = scmp.ne.s32.totalorder %s132, %s133
    %p145 = scmp.eq.s32.totalorder %s18, 1
    %p146 = por %p144, %p145
    %p148 = scmp.ne.s32.totalorder %s133, %s147
    %p149 = scmp.eq.s32.totalorder %s18, 0
    %p150 = por %p148, %p149
    %s151 = ssub.s32 %s12, %s19
    %p152 = scmp.eq.s32.totalorder %s151, 0
    %s154 = sadd.s32 %s153, 1
    %s155 = scalar_select %p152, %s153, %s154
    %p158 = pneg %p152
    %p159 = scmp.eq.s32.totalorder %s12, 1
    %p160 = por %p158, %p159
    %p161 = scmp.ne.s32.totalorder %s153, %s156
    %p162 = scmp.eq.s32.totalorder %s12, 0
    %p163 = por %p161, %p162
    %p164 = scmp.ne.s32.totalorder %s153, %s156
    %p165 = scmp.eq.s32.totalorder %s17, 1
    %p166 = por %p164, %p165
    %p167 = scmp.ne.s32.totalorder %s156, %s157
    %p168 = scmp.eq.s32.totalorder %s17, 0
    %p169 = por %p167, %p168
    %p170 = scmp.ne.s32.totalorder %s156, %s157
    %p171 = scmp.eq.s32.totalorder %s18, 1
    %p172 = por %p170, %p171
    %p174 = scmp.ne.s32.totalorder %s157, %s173
    %p175 = scmp.eq.s32.totalorder %s18, 0
    %p176 = por %p174, %p175
    %p177 = scmp.le.s32.totalorder 1, %s12
    %p178 = scmp.lt.s32.totalorder %s12, 3
    %p179 = pnand %p177, %p178
    %p180 = pneg %p179
    // Predicated region
    $region9: #{spatial_transformer_forward.3} parent=5 // pred_check
      _
    $region10: #{spatial_transformer_forward.3} parent=5 // pred_check_branch
      %182 = sbr.rel (%p179) target = $region12
    $region11: #{spatial_transformer_forward.3} parent=5 // pred_region
      %s183 = ssub.s32 %s12, 1
      // Predicated region
      $region13: #{spatial_transformer_forward.3} parent=11 // pred_check
        %p184 = pneg %p59
      $region14: #{spatial_transformer_forward.3} parent=11 // pred_check_branch
        %186 = sbr.rel (%p184) target = $region16
      $region15: #{spatial_transformer_forward.3} parent=11 // pred_region
        _
      $region16: #{spatial_transformer_forward.3} parent=11 // pred_fallthru
        _
      // Predicated region
      $region17: #{spatial_transformer_forward.3} parent=11 // pred_check
        %p187 = pneg %p80
      $region18: #{spatial_transformer_forward.3} parent=11 // pred_check_branch
        %189 = sbr.rel (%p187) target = $region20
      $region19: #{spatial_transformer_forward.3} parent=11 // pred_region
        _
      $region20: #{spatial_transformer_forward.3} parent=11 // pred_fallthru
        _
      // Predicated region
      $region21: #{spatial_transformer_forward.3} parent=11 // pred_check
        %p190 = pneg %p101
      $region22: #{spatial_transformer_forward.3} parent=11 // pred_check_branch
        %192 = sbr.rel (%p190) target = $region24
      $region23: #{spatial_transformer_forward.3} parent=11 // pred_region
        _
      $region24: #{spatial_transformer_forward.3} parent=11 // pred_fallthru
        _
      // Predicated region
      $region25: #{spatial_transformer_forward.3} parent=11 // pred_check
        %p193 = pneg %p122
      $region26: #{spatial_transformer_forward.3} parent=11 // pred_check_branch
        %195 = sbr.rel (%p193) target = $region28
      $region27: #{spatial_transformer_forward.3} parent=11 // pred_region
        _
      $region28: #{spatial_transformer_forward.3} parent=11 // pred_fallthru
        _
      // Predicated region
      $region29: #{spatial_transformer_forward.3} parent=11 // pred_check
        %p196 = pneg %p143
      $region30: #{spatial_transformer_forward.3} parent=11 // pred_check_branch
        %198 = sbr.rel (%p196) target = $region32
      $region31: #{spatial_transformer_forward.3} parent=11 // pred_region
        _
      $region32: #{spatial_transformer_forward.3} parent=11 // pred_fallthru
        _
    $region12: #{spatial_transformer_forward.3} parent=5 // pred_fallthru
      _
    %p199 = scmp.lt.s32.totalorder %s12, 2
    // Predicated region
    $region33: #{spatial_transformer_forward.3} parent=5 // pred_check
      %p200 = pneg %p199
    $region34: #{spatial_transformer_forward.3} parent=5 // pred_check_branch
      %202 = sbr.rel (%p200) target = $region36
    $region35: #{spatial_transformer_forward.3} parent=5 // pred_region
      // Predicated region
      $region37: #{spatial_transformer_forward.3} parent=35 // pred_check
        %p203 = pneg %p32
      $region38: #{spatial_transformer_forward.3} parent=35 // pred_check_branch
        %205 = sbr.rel (%p203) target = $region40
      $region39: #{spatial_transformer_forward.3} parent=35 // pred_region
        %p206 = scmp.lt.s32.totalorder %s12, 1
        %s207 = scalar_select %p206, %s12, 1
        %s208 = smul.addr %s207, 8
        %s209 = smul.addr %s208, 8
        %s210 = scalar_lea.vmem %s0, %s209
      $region40: #{spatial_transformer_forward.3} parent=35 // pred_fallthru
        _
    $region36: #{spatial_transformer_forward.3} parent=5 // pred_fallthru
      _
    %p211 = scmp.le.s32.totalorder 1, %s12
    %p212 = scmp.lt.s32.totalorder %s12, 3
    %p213 = pnand %p211, %p212
    %p214 = pneg %p213
    // Predicated region
    $region41: #{spatial_transformer_forward.3} parent=5 // pred_check
      _
    $region42: #{spatial_transformer_forward.3} parent=5 // pred_check_branch
      %216 = sbr.rel (%p213) target = $region44
    $region43: #{spatial_transformer_forward.3} parent=5 // pred_region
      %s217 = ssub.s32 %s12, 1
      %p218 = scmp.lt.s32.totalorder %s17, 1
      %s219 = scalar_select %p218, %s17, 1
      %s220 = smul.addr %s219, 8
      %s221 = smul.addr %s220, 8
      %s222 = scalar_lea.vmem %s0, %s221
      %p223 = pneg %p38
      %p224 = pneg %p35
      %p225 = pneg %p59
      %p226 = pneg %p56
      %p227 = pneg %p80
      %p228 = pneg %p77
      %p229 = pneg %p101
      %p230 = pneg %p98
      %p231 = pneg %p122
      %p232 = pneg %p119
      %p233 = pneg %p143
      %p234 = pneg %p140
      %p235 = pneg %p169
      %p236 = pneg %p166
      %p237 = scmp.lt.s32.totalorder %s17, 1
      %s238 = scalar_select %p237, %s17, 1
      %s239 = smul.addr %s238, 8
      %s240 = smul.addr %s239, 8
      %s241 = scalar_lea.vmem %s6, %s240
      %p242 = scmp.lt.s32.totalorder %s17, 1
      %s243 = scalar_select %p242, %s17, 1
      %s244 = smul.addr %s243, 8
      %s245 = smul.addr %s244, 8
      %s246 = scalar_lea.vmem %s0, %s245
      %p247 = scmp.lt.s32.totalorder %s17, 1
      %s248 = scalar_select %p247, %s17, 1
      %s249 = smul.addr %s248, 8
      %s250 = smul.addr %s249, 8
      %s251 = scalar_lea.vmem %s6, %s250
      %v253 = vld [vmem:[%s246] sm:$0xff]
      %v254 = vld [vmem:[%s246 + $0x8] sm:$0xff]
      %v255 = vld [vmem:[%s246 + $0x10] sm:$0xff]
      %v256 = vld [vmem:[%s246 + $0x18] sm:$0xff]
      %v257 = vld [vmem:[%s246 + $0x20] sm:$0xff]
      %v258 = vld [vmem:[%s246 + $0x28] sm:$0xff]
      %v259 = vld [vmem:[%s246 + $0x30] sm:$0xff]
      %v260 = vld [vmem:[%s246 + $0x38] sm:$0xff]
      %v261 = vld [vmem:[%s1] sm:$0xff]
      %v262 = vld [vmem:[%s1 + $0x8] sm:$0xff]
      %v263 = vld [vmem:[%s1 + $0x10] sm:$0xff]
      %v264 = vld [vmem:[%s1 + $0x18] sm:$0xff]
      %v265 = vld [vmem:[%s1 + $0x20] sm:$0xff]
      %v266 = vld [vmem:[%s1 + $0x28] sm:$0xff]
      %v267 = vld [vmem:[%s1 + $0x30] sm:$0xff]
      %v268 = vld [vmem:[%s1 + $0x38] sm:$0xff]
      %vm269 = vcmask 523264
      %v270 = vsel %vm269, %v253, 0.0
      %271 = vadd.xlane.f32.xlu0 %v270
      %v272 = vpop.xlane.xlu0 %271
      %v273 = vsel %vm269, %v254, 0.0
      %274 = vadd.xlane.f32.xlu0 %v273
      %v275 = vpop.xlane.xlu0 %274
      %v276 = vsel %vm269, %v255, 0.0
      %277 = vadd.xlane.f32.xlu0 %v276
      %v278 = vpop.xlane.xlu0 %277
      %v279 = vsel %vm269, %v256, 0.0
      %280 = vadd.xlane.f32.xlu0 %v279
      %v281 = vpop.xlane.xlu0 %280
      %v282 = vsel %vm269, %v257, 0.0
      %283 = vadd.xlane.f32.xlu0 %v282
      %v284 = vpop.xlane.xlu0 %283
      %v285 = vsel %vm269, %v258, 0.0
      %286 = vadd.xlane.f32.xlu0 %v285
      %v287 = vpop.xlane.xlu0 %286
      %v288 = vsel %vm269, %v259, 0.0
      %289 = vadd.xlane.f32.xlu0 %v288
      %v290 = vpop.xlane.xlu0 %289
      %v291 = vsel %vm269, %v260, 0.0
      %292 = vadd.xlane.f32.xlu0 %v291
      %v293 = vpop.xlane.xlu0 %292
      %v294 = vrcp.pop 64.0
      %v295 = vmul.f32 %v272, %v294
      %v296 = vmul.f32 %v275, %v294
      %v297 = vmul.f32 %v278, %v294
      %v298 = vmul.f32 %v281, %v294
      %v299 = vmul.f32 %v284, %v294
      %v300 = vmul.f32 %v287, %v294
      %v301 = vmul.f32 %v290, %v294
      %v302 = vmul.f32 %v293, %v294
      %v304 = vsel %vm269, %v261, 0
      %v307 = vsel %vm269, %v262, 0
      %v310 = vsel %vm269, %v263, 0
      %v313 = vsel %vm269, %v264, 0
      %v316 = vsel %vm269, %v265, 0
      %v319 = vsel %vm269, %v266, 0
      %v322 = vsel %vm269, %v267, 0
      %v325 = vsel %vm269, %v268, 0
      %327 = vmatprep.subr.mxu0 0.0
      %328 = vmatpush1.msra.mxu0 %v295
      %329 = vmatprep.subr.mxu0 0.0
      %330 = vmatpush1.msra.mxu0 %v296
      %331 = vmatprep.subr.mxu0 0.0
      %332 = vmatpush1.msra.mxu0 %v297
      %333 = vmatprep.subr.mxu0 0.0
      %334 = vmatpush1.msra.mxu0 %v298
      %335 = vmatprep.subr.mxu0 0.0
      %336 = vmatpush1.msra.mxu0 %v299
      %337 = vmatprep.subr.mxu0 0.0
      %338 = vmatpush1.msra.mxu0 %v300
      %339 = vmatprep.subr.mxu0 0.0
      %340 = vmatpush1.msra.mxu0 %v301
      %341 = vmatprep.subr.mxu0 0.0
      %342 = vmatpush1.msra.mxu0 %v302
      %343 = vmatprep.subr.mxu0 0.0
      %344 = vmatpush1.msra.mxu0 0.0
      %345 = vmatprep.subr.mxu0 0.0
      %346 = vmatpush1.msra.mxu0 0.0
      %347 = vmatprep.subr.mxu0 0.0
      %348 = vmatpush1.msra.mxu0 0.0
      %349 = vmatprep.subr.mxu0 0.0
      %350 = vmatpush1.msra.mxu0 0.0
      %351 = vmatprep.subr.mxu0 0.0
      %352 = vmatpush1.msra.mxu0 0.0
      %353 = vmatprep.subr.mxu0 0.0
      %354 = vmatpush1.msra.mxu0 0.0
      %355 = vmatprep.subr.mxu0 0.0
      %356 = vmatpush1.msra.mxu0 0.0
      %357 = vmatprep.subr.mxu0 0.0
      %358 = vmatpush1.msra.mxu0 0.0
      %359 = vmatprep.subr.mxu0 0.0
      %360 = vmatpush1.msra.mxu0 0.0
      %361 = vmatprep.subr.mxu0 0.0
      %362 = vmatpush1.msra.mxu0 0.0
      %363 = vmatprep.subr.mxu0 0.0
      %364 = vmatpush1.msra.mxu0 0.0
      %365 = vmatprep.subr.mxu0 0.0
      %366 = vmatpush1.msra.mxu0 0.0
      %367 = vmatprep.subr.mxu0 0.0
      %368 = vmatpush1.msra.mxu0 0.0
      %369 = vmatprep.subr.mxu0 0.0
      %370 = vmatpush1.msra.mxu0 0.0
      %371 = vmatprep.subr.mxu0 0.0
      %372 = vmatpush1.msra.mxu0 0.0
      %373 = vmatprep.subr.mxu0 0.0
      %374 = vmatpush1.msra.mxu0 0.0
      %375 = vmatprep.subr.mxu0 0.0
      %376 = vmatpush1.msra.mxu0 0.0
      %377 = vmatprep.subr.mxu0 0.0
      %378 = vmatpush1.msra.mxu0 0.0
      %379 = vmatprep.subr.mxu0 0.0
      %380 = vmatpush1.msra.mxu0 0.0
      %381 = vmatprep.subr.mxu0 0.0
      %382 = vmatpush1.msra.mxu0 0.0
      %383 = vmatprep.subr.mxu0 0.0
      %384 = vmatpush1.msra.mxu0 0.0
      %385 = vmatprep.subr.mxu0 0.0
      %386 = vmatpush1.msra.mxu0 0.0
      %387 = vmatprep.subr.mxu0 0.0
      %388 = vmatpush1.msra.mxu0 0.0
      %389 = vmatprep.subr.mxu0 0.0
      %390 = vmatpush1.msra.mxu0 0.0
      %391 = vmatprep.mubr.f32.mxu0 0.0
      %392 = vmatmul.mubr.f32.gmra.mrb[0].mxu0 %v304
      %v393 = vpop.f32.mrb[0].mxu0
      %v394 = vadd.f32 0.0, %v393
      %v395 = vpop.f32.mrb[0].mxu0
      %396 = vmatprep.mubr.f32.mxu0 0.0
      %397 = vmatmul.mubr.f32.gmra.mrb[0].mxu0 %v307
      %v398 = vpop.f32.mrb[0].mxu0
      %v399 = vadd.f32 0.0, %v398
      %v400 = vpop.f32.mrb[0].mxu0
      %401 = vmatprep.mubr.f32.mxu0 0.0
      %402 = vmatmul.mubr.f32.gmra.mrb[0].mxu0 %v310
      %v403 = vpop.f32.mrb[0].mxu0
      %v404 = vadd.f32 0.0, %v403
      %v405 = vpop.f32.mrb[0].mxu0
      %406 = vmatprep.mubr.f32.mxu0 0.0
      %407 = vmatmul.mubr.f32.gmra.mrb[0].mxu0 %v313
      %v408 = vpop.f32.mrb[0].mxu0
      %v409 = vadd.f32 0.0, %v408
      %v410 = vpop.f32.mrb[0].mxu0
      %411 = vmatprep.mubr.f32.mxu0 0.0
      %412 = vmatmul.mubr.f32.gmra.mrb[0].mxu0 %v316
      %v413 = vpop.f32.mrb[0].mxu0
      %v414 = vadd.f32 0.0, %v413
      %v415 = vpop.f32.mrb[0].mxu0
      %416 = vmatprep.mubr.f32.mxu0 0.0
      %417 = vmatmul.mubr.f32.gmra.mrb[0].mxu0 %v319
      %v418 = vpop.f32.mrb[0].mxu0
      %v419 = vadd.f32 0.0, %v418
      %v420 = vpop.f32.mrb[0].mxu0
      %421 = vmatprep.mubr.f32.mxu0 0.0
      %422 = vmatmul.mubr.f32.gmra.mrb[0].mxu0 %v322
      %v423 = vpop.f32.mrb[0].mxu0
      %v424 = vadd.f32 0.0, %v423
      %v425 = vpop.f32.mrb[0].mxu0
      %426 = vmatprep.mubr.f32.mxu0 0.0
      %427 = vmatmul.mubr.f32.gmra.mrb[0].mxu0 %v325
      %v428 = vpop.f32.mrb[0].mxu0
      %v429 = vadd.f32 0.0, %v428
      %v430 = vpop.f32.mrb[0].mxu0
      %431 = vdwg.mxu0
      %433 = vset.pattern.permute.xlu0 0
      %434 = vperm.xlu0 %433, %v394
      %v435 = vpop.permute.xlu0 %434
      %438 = vset.pattern.permute.xlu0 0
      %439 = vperm.xlu0 %438, %v399
      %v440 = vpop.permute.xlu0 %439
      %443 = vset.pattern.permute.xlu0 0
      %444 = vperm.xlu0 %443, %v404
      %v445 = vpop.permute.xlu0 %444
      %448 = vset.pattern.permute.xlu0 0
      %449 = vperm.xlu0 %448, %v409
      %v450 = vpop.permute.xlu0 %449
      %453 = vset.pattern.permute.xlu0 0
      %454 = vperm.xlu0 %453, %v414
      %v455 = vpop.permute.xlu0 %454
      %458 = vset.pattern.permute.xlu0 0
      %459 = vperm.xlu0 %458, %v419
      %v460 = vpop.permute.xlu0 %459
      %463 = vset.pattern.permute.xlu0 0
      %464 = vperm.xlu0 %463, %v424
      %v465 = vpop.permute.xlu0 %464
      %468 = vset.pattern.permute.xlu0 0
      %469 = vperm.xlu0 %468, %v429
      %v470 = vpop.permute.xlu0 %469
      %v472 = vsub.f32 %v253, %v435
      %v473 = vsub.f32 %v254, %v440
      %v474 = vsub.f32 %v255, %v445
      %v475 = vsub.f32 %v256, %v450
      %v476 = vsub.f32 %v257, %v455
      %v477 = vsub.f32 %v258, %v460
      %v478 = vsub.f32 %v259, %v465
      %v479 = vsub.f32 %v260, %v470
      %v480 = vmul.f32 %v472, %v472
      %v481 = vmul.f32 %v473, %v473
      %v482 = vmul.f32 %v474, %v474
      %v483 = vmul.f32 %v475, %v475
      %v484 = vmul.f32 %v476, %v476
      %v485 = vmul.f32 %v477, %v477
      %v486 = vmul.f32 %v478, %v478
      %v487 = vmul.f32 %v479, %v479
      %v488 = vsel %vm269, %v480, 0.0
      %489 = vadd.xlane.f32.xlu0 %v488
      %v490 = vpop.xlane.xlu0 %489
      %v491 = vsel %vm269, %v481, 0.0
      %492 = vadd.xlane.f32.xlu0 %v491
      %v493 = vpop.xlane.xlu0 %492
      %v494 = vsel %vm269, %v482, 0.0
      %495 = vadd.xlane.f32.xlu0 %v494
      %v496 = vpop.xlane.xlu0 %495
      %v497 = vsel %vm269, %v483, 0.0
      %498 = vadd.xlane.f32.xlu0 %v497
      %v499 = vpop.xlane.xlu0 %498
      %v500 = vsel %vm269, %v484, 0.0
      %501 = vadd.xlane.f32.xlu0 %v500
      %v502 = vpop.xlane.xlu0 %501
      %v503 = vsel %vm269, %v485, 0.0
      %504 = vadd.xlane.f32.xlu0 %v503
      %v505 = vpop.xlane.xlu0 %504
      %v506 = vsel %vm269, %v486, 0.0
      %507 = vadd.xlane.f32.xlu0 %v506
      %v508 = vpop.xlane.xlu0 %507
      %v509 = vsel %vm269, %v487, 0.0
      %510 = vadd.xlane.f32.xlu0 %v509
      %v511 = vpop.xlane.xlu0 %510
      %v512 = vmul.f32 %v490, %v294
      %v513 = vmul.f32 %v493, %v294
      %v514 = vmul.f32 %v496, %v294
      %v515 = vmul.f32 %v499, %v294
      %v516 = vmul.f32 %v502, %v294
      %v517 = vmul.f32 %v505, %v294
      %v518 = vmul.f32 %v508, %v294
      %v519 = vmul.f32 %v511, %v294
      %520 = vmatprep.subr.mxu0 0.0
      %521 = vmatpush1.msra.mxu0 %v512
      %522 = vmatprep.subr.mxu0 0.0
      %523 = vmatpush1.msra.mxu0 %v513
      %524 = vmatprep.subr.mxu0 0.0
      %525 = vmatpush1.msra.mxu0 %v514
      %526 = vmatprep.subr.mxu0 0.0
      %527 = vmatpush1.msra.mxu0 %v515
      %528 = vmatprep.subr.mxu0 0.0
      %529 = vmatpush1.msra.mxu0 %v516
      %530 = vmatprep.subr.mxu0 0.0
      %531 = vmatpush1.msra.mxu0 %v517
      %532 = vmatprep.subr.mxu0 0.0
      %533 = vmatpush1.msra.mxu0 %v518
      %534 = vmatprep.subr.mxu0 0.0
      %535 = vmatpush1.msra.mxu0 %v519
      %536 = vmatprep.subr.mxu0 0.0
      %537 = vmatpush1.msra.mxu0 0.0
      %538 = vmatprep.subr.mxu0 0.0
      %539 = vmatpush1.msra.mxu0 0.0
      %540 = vmatprep.subr.mxu0 0.0
      %541 = vmatpush1.msra.mxu0 0.0
      %542 = vmatprep.subr.mxu0 0.0
      %543 = vmatpush1.msra.mxu0 0.0
      %544 = vmatprep.subr.mxu0 0.0
      %545 = vmatpush1.msra.mxu0 0.0
      %546 = vmatprep.subr.mxu0 0.0
      %547 = vmatpush1.msra.mxu0 0.0
      %548 = vmatprep.subr.mxu0 0.0
      %549 = vmatpush1.msra.mxu0 0.0
      %550 = vmatprep.subr.mxu0 0.0
      %551 = vmatpush1.msra.mxu0 0.0
      %552 = vmatprep.subr.mxu0 0.0
      %553 = vmatpush1.msra.mxu0 0.0
      %554 = vmatprep.subr.mxu0 0.0
      %555 = vmatpush1.msra.mxu0 0.0
      %556 = vmatprep.subr.mxu0 0.0
      %557 = vmatpush1.msra.mxu0 0.0
      %558 = vmatprep.subr.mxu0 0.0
      %559 = vmatpush1.msra.mxu0 0.0
      %560 = vmatprep.subr.mxu0 0.0
      %561 = vmatpush1.msra.mxu0 0.0
      %562 = vmatprep.subr.mxu0 0.0
      %563 = vmatpush1.msra.mxu0 0.0
      %564 = vmatprep.subr.mxu0 0.0
      %565 = vmatpush1.msra.mxu0 0.0
      %566 = vmatprep.subr.mxu0 0.0
      %567 = vmatpush1.msra.mxu0 0.0
      %568 = vmatprep.subr.mxu0 0.0
      %569 = vmatpush1.msra.mxu0 0.0
      %570 = vmatprep.subr.mxu0 0.0
      %571 = vmatpush1.msra.mxu0 0.0
      %572 = vmatprep.subr.mxu0 0.0
      %573 = vmatpush1.msra.mxu0 0.0
      %574 = vmatprep.subr.mxu0 0.0
      %575 = vmatpush1.msra.mxu0 0.0
      %576 = vmatprep.subr.mxu0 0.0
      %577 = vmatpush1.msra.mxu0 0.0
      %578 = vmatprep.subr.mxu0 0.0
      %579 = vmatpush1.msra.mxu0 0.0
      %580 = vmatprep.subr.mxu0 0.0
      %581 = vmatpush1.msra.mxu0 0.0
      %582 = vmatprep.subr.mxu0 0.0
      %583 = vmatpush1.msra.mxu0 0.0
      %584 = vmatprep.mubr.f32.mxu0 0.0
      %585 = vmatmul.mubr.f32.gmra.mrb[0].mxu0 %v304
      %v586 = vpop.f32.mrb[0].mxu0
      %v587 = vadd.f32 1e-06, %v586
      %v588 = vpop.f32.mrb[0].mxu0
      %589 = vmatprep.mubr.f32.mxu0 0.0
      %590 = vmatmul.mubr.f32.gmra.mrb[0].mxu0 %v307
      %v591 = vpop.f32.mrb[0].mxu0
      %v592 = vadd.f32 1e-06, %v591
      %v593 = vpop.f32.mrb[0].mxu0
      %594 = vmatprep.mubr.f32.mxu0 0.0
      %595 = vmatmul.mubr.f32.gmra.mrb[0].mxu0 %v310
      %v596 = vpop.f32.mrb[0].mxu0
      %v597 = vadd.f32 1e-06, %v596
      %v598 = vpop.f32.mrb[0].mxu0
      %599 = vmatprep.mubr.f32.mxu0 0.0
      %600 = vmatmul.mubr.f32.gmra.mrb[0].mxu0 %v313
      %v601 = vpop.f32.mrb[0].mxu0
      %v602 = vadd.f32 1e-06, %v601
      %v603 = vpop.f32.mrb[0].mxu0
      %604 = vmatprep.mubr.f32.mxu0 0.0
      %605 = vmatmul.mubr.f32.gmra.mrb[0].mxu0 %v316
      %v606 = vpop.f32.mrb[0].mxu0
      %v607 = vadd.f32 1e-06, %v606
      %v608 = vpop.f32.mrb[0].mxu0
      %609 = vmatprep.mubr.f32.mxu0 0.0
      %610 = vmatmul.mubr.f32.gmra.mrb[0].mxu0 %v319
      %v611 = vpop.f32.mrb[0].mxu0
      %v612 = vadd.f32 1e-06, %v611
      %v613 = vpop.f32.mrb[0].mxu0
      %614 = vmatprep.mubr.f32.mxu0 0.0
      %615 = vmatmul.mubr.f32.gmra.mrb[0].mxu0 %v322
      %v616 = vpop.f32.mrb[0].mxu0
      %v617 = vadd.f32 1e-06, %v616
      %v618 = vpop.f32.mrb[0].mxu0
      %619 = vmatprep.mubr.f32.mxu0 0.0
      %620 = vmatmul.mubr.f32.gmra.mrb[0].mxu0 %v325
      %v621 = vpop.f32.mrb[0].mxu0
      %v622 = vadd.f32 1e-06, %v621
      %v623 = vpop.f32.mrb[0].mxu0
      %624 = vdwg.mxu0
      %v625 = vrsqrt.pop %v587
      %v626 = vrsqrt.pop %v592
      %v627 = vrsqrt.pop %v597
      %v628 = vrsqrt.pop %v602
      %v629 = vrsqrt.pop %v607
      %v630 = vrsqrt.pop %v612
      %v631 = vrsqrt.pop %v617
      %v632 = vrsqrt.pop %v622
      %634 = vset.pattern.permute.xlu0 0
      %635 = vperm.xlu0 %634, %v625
      %v636 = vpop.permute.xlu0 %635
      %639 = vset.pattern.permute.xlu0 0
      %640 = vperm.xlu0 %639, %v626
      %v641 = vpop.permute.xlu0 %640
      %644 = vset.pattern.permute.xlu0 0
      %645 = vperm.xlu0 %644, %v627
      %v646 = vpop.permute.xlu0 %645
      %649 = vset.pattern.permute.xlu0 0
      %650 = vperm.xlu0 %649, %v628
      %v651 = vpop.permute.xlu0 %650
      %654 = vset.pattern.permute.xlu0 0
      %655 = vperm.xlu0 %654, %v629
      %v656 = vpop.permute.xlu0 %655
      %659 = vset.pattern.permute.xlu0 0
      %660 = vperm.xlu0 %659, %v630
      %v661 = vpop.permute.xlu0 %660
      %664 = vset.pattern.permute.xlu0 0
      %665 = vperm.xlu0 %664, %v631
      %v666 = vpop.permute.xlu0 %665
      %669 = vset.pattern.permute.xlu0 0
      %670 = vperm.xlu0 %669, %v632
      %v671 = vpop.permute.xlu0 %670
      %v673 = vmul.f32 %v472, %v636
      %v674 = vmul.f32 %v473, %v641
      %v675 = vmul.f32 %v474, %v646
      %v676 = vmul.f32 %v475, %v651
      %v677 = vmul.f32 %v476, %v656
      %v678 = vmul.f32 %v477, %v661
      %v679 = vmul.f32 %v478, %v666
      %v680 = vmul.f32 %v479, %v671
      %v681 = vld [vmem:[%s2] sm:$0xff]
      %v682 = vld [vmem:[%s2 + $0x8] sm:$0xff]
      %v683 = vld [vmem:[%s2 + $0x10] sm:$0xff]
      %v684 = vld [vmem:[%s2 + $0x18] sm:$0xff]
      %v685 = vld [vmem:[%s2 + $0x20] sm:$0xff]
      %v686 = vld [vmem:[%s2 + $0x28] sm:$0xff]
      %v687 = vld [vmem:[%s2 + $0x30] sm:$0xff]
      %v688 = vld [vmem:[%s2 + $0x38] sm:$0xff]
      %690 = vset.pattern.permute.xlu0 0
      %691 = vperm.xlu0 %690, %v681
      %v692 = vpop.permute.xlu0 %691
      %695 = vset.pattern.permute.xlu0 0
      %696 = vperm.xlu0 %695, %v682
      %v697 = vpop.permute.xlu0 %696
      %700 = vset.pattern.permute.xlu0 0
      %701 = vperm.xlu0 %700, %v683
      %v702 = vpop.permute.xlu0 %701
      %705 = vset.pattern.permute.xlu0 0
      %706 = vperm.xlu0 %705, %v684
      %v707 = vpop.permute.xlu0 %706
      %710 = vset.pattern.permute.xlu0 0
      %711 = vperm.xlu0 %710, %v685
      %v712 = vpop.permute.xlu0 %711
      %715 = vset.pattern.permute.xlu0 0
      %716 = vperm.xlu0 %715, %v686
      %v717 = vpop.permute.xlu0 %716
      %720 = vset.pattern.permute.xlu0 0
      %721 = vperm.xlu0 %720, %v687
      %v722 = vpop.permute.xlu0 %721
      %725 = vset.pattern.permute.xlu0 0
      %726 = vperm.xlu0 %725, %v688
      %v727 = vpop.permute.xlu0 %726
      %v729 = vmul.f32 %v673, %v692
      %v730 = vmul.f32 %v674, %v697
      %v731 = vmul.f32 %v675, %v702
      %v732 = vmul.f32 %v676, %v707
      %v733 = vmul.f32 %v677, %v712
      %v734 = vmul.f32 %v678, %v717
      %v735 = vmul.f32 %v679, %v722
      %v736 = vmul.f32 %v680, %v727
      %v737 = vld [vmem:[%s3] sm:$0xff]
      %v738 = vld [vmem:[%s3 + $0x8] sm:$0xff]
      %v739 = vld [vmem:[%s3 + $0x10] sm:$0xff]
      %v740 = vld [vmem:[%s3 + $0x18] sm:$0xff]
      %v741 = vld [vmem:[%s3 + $0x20] sm:$0xff]
      %v742 = vld [vmem:[%s3 + $0x28] sm:$0xff]
      %v743 = vld [vmem:[%s3 + $0x30] sm:$0xff]
      %v744 = vld [vmem:[%s3 + $0x38] sm:$0xff]
      %746 = vset.pattern.permute.xlu0 0
      %747 = vperm.xlu0 %746, %v737
      %v748 = vpop.permute.xlu0 %747
      %751 = vset.pattern.permute.xlu0 0
      %752 = vperm.xlu0 %751, %v738
      %v753 = vpop.permute.xlu0 %752
      %756 = vset.pattern.permute.xlu0 0
      %757 = vperm.xlu0 %756, %v739
      %v758 = vpop.permute.xlu0 %757
      %761 = vset.pattern.permute.xlu0 0
      %762 = vperm.xlu0 %761, %v740
      %v763 = vpop.permute.xlu0 %762
      %766 = vset.pattern.permute.xlu0 0
      %767 = vperm.xlu0 %766, %v741
      %v768 = vpop.permute.xlu0 %767
      %771 = vset.pattern.permute.xlu0 0
      %772 = vperm.xlu0 %771, %v742
      %v773 = vpop.permute.xlu0 %772
      %776 = vset.pattern.permute.xlu0 0
      %777 = vperm.xlu0 %776, %v743
      %v778 = vpop.permute.xlu0 %777
      %781 = vset.pattern.permute.xlu0 0
      %782 = vperm.xlu0 %781, %v744
      %v783 = vpop.permute.xlu0 %782
      %v785 = vadd.f32 %v729, %v748
      %v786 = vadd.f32 %v730, %v753
      %v787 = vadd.f32 %v731, %v758
      %v788 = vadd.f32 %v732, %v763
      %v789 = vadd.f32 %v733, %v768
      %v790 = vadd.f32 %v734, %v773
      %v791 = vadd.f32 %v735, %v778
      %v792 = vadd.f32 %v736, %v783
      %v793 = vpack.c.bf16 %v786, %v785
      %v794 = vpack.c.bf16 %v788, %v787
      %v795 = vpack.c.bf16 %v790, %v789
      %v796 = vpack.c.bf16 %v792, %v791
      %v797 = vld [vmem:[%s4] sm:$0xf]
      %v798 = vld [vmem:[%s4 + $0x4] sm:$0xf]
      %v799 = vld [vmem:[%s4 + $0x8] sm:$0xf]
      %v800 = vld [vmem:[%s4 + $0xc] sm:$0xf]
      %v801 = vld [vmem:[%s4 + $0x10] sm:$0xf]
      %v802 = vld [vmem:[%s4 + $0x14] sm:$0xf]
      %v803 = vld [vmem:[%s4 + $0x18] sm:$0xf]
      %v804 = vld [vmem:[%s4 + $0x1c] sm:$0xf]
      %v805 = vld [vmem:[%s5] sm:$0x1]
      %v807 = vlaneseq
      %v808 = vshrl.u32 %v807, 7
      %v809 = vsub.s32 0, %v808
      %v810 = vrot.slane %v805, %v809
      %812 = vxpose.xlu0.c.b16.start [1/8] %v793, 128
      %813 = vxpose.xlu0.c.b16.cont [2/8] %v794, 128
      %814 = vxpose.xlu0.c.b16.cont [3/8] %v795, 128
      %815 = vxpose.xlu0.c.b16.cont [4/8] %v796, 128
      %816 = vxpose.xlu0.c.b16.cont [5/8] 0, 128
      %817 = vxpose.xlu0.c.b16.cont [6/8] 0, 128
      %818 = vxpose.xlu0.c.b16.cont [7/8] 0, 128
      %819 = vxpose.xlu0.c.b16.end [8/8] 0, 128
      %v820 = vpop.trf.xlu0
      %v821 = vpop.trf.xlu0
      %v822 = vpop.trf.xlu0
      %v823 = vpop.trf.xlu0
      %v824 = vpop.trf.xlu0
      %v825 = vpop.trf.xlu0
      %v826 = vpop.trf.xlu0
      %v827 = vpop.trf.xlu0
      %v836 = vunpack.c.l.b16 %v797
      %v837 = vunpack.c.l.b16 %v798
      %v838 = vunpack.c.l.b16 %v799
      %v839 = vunpack.c.l.b16 %v800
      %v840 = vunpack.c.l.b16 %v801
      %v841 = vunpack.c.l.b16 %v802
      %v842 = vunpack.c.l.b16 %v803
      %v843 = vunpack.c.l.b16 %v804
      %v844 = vpack.c.b16 %v837, %v836
      %v845 = vpack.c.b16 %v839, %v838
      %v846 = vpack.c.b16 %v841, %v840
      %v847 = vpack.c.b16 %v843, %v842
      %v853 = vsel %vm269, %v820, 0
      %v856 = vsel %vm269, %v821, 0
      %v859 = vsel %vm269, %v822, 0
      %v862 = vsel %vm269, %v823, 0
      %864 = vmatprep.subr.bf16.mxu0 0
      %865 = vmatpush1.bf16.msra.mxu0 %v844
      %866 = vmatprep.subr.bf16.mxu0 0
      %867 = vmatpush1.bf16.msra.mxu0 %v845
      %868 = vmatprep.subr.bf16.mxu0 0
      %869 = vmatpush1.bf16.msra.mxu0 %v846
      %870 = vmatprep.subr.bf16.mxu0 0
      %871 = vmatpush1.bf16.msra.mxu0 %v847
      %872 = vmatprep.subr.bf16.mxu0 0
      %873 = vmatpush1.bf16.msra.mxu0 0
      %874 = vmatprep.subr.bf16.mxu0 0
      %875 = vmatpush1.bf16.msra.mxu0 0
      %876 = vmatprep.subr.bf16.mxu0 0
      %877 = vmatpush1.bf16.msra.mxu0 0
      %878 = vmatprep.subr.bf16.mxu0 0
      %879 = vmatpush1.bf16.msra.mxu0 0
      %880 = vmatprep.subr.bf16.mxu0 0
      %881 = vmatpush1.bf16.msra.mxu0 0
      %882 = vmatprep.subr.bf16.mxu0 0
      %883 = vmatpush1.bf16.msra.mxu0 0
      %884 = vmatprep.subr.bf16.mxu0 0
      %885 = vmatpush1.bf16.msra.mxu0 0
      %886 = vmatprep.subr.bf16.mxu0 0
      %887 = vmatpush1.bf16.msra.mxu0 0
      %888 = vmatprep.subr.bf16.mxu0 0
      %889 = vmatpush1.bf16.msra.mxu0 0
      %890 = vmatprep.subr.bf16.mxu0 0
      %891 = vmatpush1.bf16.msra.mxu0 0
      %892 = vmatprep.subr.bf16.mxu0 0
      %893 = vmatpush1.bf16.msra.mxu0 0
      %894 = vmatprep.subr.bf16.mxu0 0
      %895 = vmatpush1.bf16.msra.mxu0 0
      %896 = vmatprep.mubr.bf16.mxu0 0
      %897 = vmatmul.mubr.bf16.gmra.mrb[0].mxu0 %v853
      %v898 = vpop.f32.mrb[0].mxu0
      %v899 = vadd.f32 %v810, %v898
      %v900 = vpop.f32.mrb[0].mxu0
      %v901 = vpop.f32.mrb[0].mxu0
      %v902 = vadd.f32 %v810, %v901
      %v903 = vpop.f32.mrb[0].mxu0
      %904 = vmatprep.mubr.bf16.mxu0 0
      %905 = vmatmul.mubr.bf16.gmra.mrb[0].mxu0 %v856
      %v906 = vpop.f32.mrb[0].mxu0
      %v907 = vadd.f32 %v810, %v906
      %v908 = vpop.f32.mrb[0].mxu0
      %v909 = vpop.f32.mrb[0].mxu0
      %v910 = vadd.f32 %v810, %v909
      %v911 = vpop.f32.mrb[0].mxu0
      %912 = vmatprep.mubr.bf16.mxu0 0
      %913 = vmatmul.mubr.bf16.gmra.mrb[0].mxu0 %v859
      %v914 = vpop.f32.mrb[0].mxu0
      %v915 = vadd.f32 %v810, %v914
      %v916 = vpop.f32.mrb[0].mxu0
      %v917 = vpop.f32.mrb[0].mxu0
      %v918 = vadd.f32 %v810, %v917
      %v919 = vpop.f32.mrb[0].mxu0
      %920 = vmatprep.mubr.bf16.mxu0 0
      %921 = vmatmul.mubr.bf16.gmra.mrb[0].mxu0 %v862
      %v922 = vpop.f32.mrb[0].mxu0
      %v923 = vadd.f32 %v810, %v922
      %v924 = vpop.f32.mrb[0].mxu0
      %v925 = vpop.f32.mrb[0].mxu0
      %v926 = vadd.f32 %v810, %v925
      %v927 = vpop.f32.mrb[0].mxu0
      %928 = vdwg.mxu0
      %929 = vst.msk [vmem:[%s251] sm:$0xff] %vm269, %v899
      %930 = vst.msk [vmem:[%s251 + $0x8] sm:$0xff] %vm269, %v902
      %931 = vst.msk [vmem:[%s251 + $0x10] sm:$0xff] %vm269, %v907
      %932 = vst.msk [vmem:[%s251 + $0x18] sm:$0xff] %vm269, %v910
      %933 = vst.msk [vmem:[%s251 + $0x20] sm:$0xff] %vm269, %v915
      %934 = vst.msk [vmem:[%s251 + $0x28] sm:$0xff] %vm269, %v918
      %935 = vst.msk [vmem:[%s251 + $0x30] sm:$0xff] %vm269, %v923
      %936 = vst.msk [vmem:[%s251 + $0x38] sm:$0xff] %vm269, %v926
      %p937 = scmp.lt.s32.totalorder %s17, 1
      %s938 = scalar_select %p937, %s17, 1
      %s939 = smul.addr %s938, 8
      %s940 = smul.addr %s939, 8
      %s941 = scalar_lea.vmem %s6, %s940
      // Predicated region
      $region45: #{spatial_transformer_forward.3} parent=43 // pred_check
        %p942 = pneg %p166
      $region46: #{spatial_transformer_forward.3} parent=43 // pred_check_branch
        %944 = sbr.rel (%p942) target = $region48
      $region47: #{spatial_transformer_forward.3} parent=43 // pred_region
        _
      $region48: #{spatial_transformer_forward.3} parent=43 // pred_fallthru
        _
    $region44: #{spatial_transformer_forward.3} parent=5 // pred_fallthru
      _
    %p945 = scmp.le.s32.totalorder 2, %s12
    // Predicated region
    $region49: #{spatial_transformer_forward.3} parent=5 // pred_check
      %p946 = pneg %p945
    $region50: #{spatial_transformer_forward.3} parent=5 // pred_check_branch
      %948 = sbr.rel (%p946) target = $region52
    $region51: #{spatial_transformer_forward.3} parent=5 // pred_region
      %s949 = ssub.s32 %s12, 2
      // Predicated region
      $region53: #{spatial_transformer_forward.3} parent=51 // pred_check
        %p950 = pneg %p172
      $region54: #{spatial_transformer_forward.3} parent=51 // pred_check_branch
        %952 = sbr.rel (%p950) target = $region56
      $region55: #{spatial_transformer_forward.3} parent=51 // pred_region
        %p953 = scmp.lt.s32.totalorder %s18, 1
        %s954 = scalar_select %p953, %s18, 1
        %s955 = smul.addr %s954, 8
        %s956 = smul.addr %s955, 8
        %s957 = scalar_lea.vmem %s6, %s956
      $region56: #{spatial_transformer_forward.3} parent=51 // pred_fallthru
        _
    $region52: #{spatial_transformer_forward.3} parent=5 // pred_fallthru
      _
  $region6: #{spatial_transformer_forward.3} parent=0 // loop_footer
    %s16 = sadd.s32 1, %s12
  $region7: #{spatial_transformer_forward.3} parent=0 // loop_footer_branch
    %11 = sbr.rel target = $region3
  $region8: #{spatial_transformer_forward.3} parent=0 // loop_exit
    _

// kernel: spatial_transformer_forward.4
$region0: #{spatial_transformer_forward.4}
  #allocation0 [shape = 'u32[]', space=smem, size = 0x4, offset = 0x4, fixed_abs, tag = 'smem constant byte address 0x4 - core index']
  #allocation1 [shape = 'u32[144,128]{1,0:T(1,128)}', space=vmem, size = 0x12000, scoped, tag = 'internal scratch']
  #allocation2 [shape = 'bf16[64,64]{1,0:T(16,128)(2,1)}', space=vmem, size = 0x4000, scoped, tag = 'scratch operand']
  #allocation3 [shape = 'bf16[64,64]{1,0:T(16,128)(2,1)}', space=vmem, size = 0x4000, scoped, tag = 'scratch operand']
  #allocation4 [shape = 'bf16[8,64]{1,0:T(8,128)(2,1)}', space=vmem, size = 0x800, scoped, tag = 'scratch operand']
  #allocation5 [shape = 'bf16[8,64]{1,0:T(8,128)(2,1)}', space=vmem, size = 0x800, scoped, tag = 'scratch operand']
  %s0 = inlined_call_operand.vmem [shape: f32[2,64,64], index: 0, kind: input, shape index: {}]
  %s1 = inlined_call_operand.vmem [shape: bf16[2,8,1024], index: 1, kind: input, shape index: {}]
  %s2 = inlined_call_operand.vmem [shape: f32[1,64], index: 2, kind: input, shape index: {}]
  %s3 = inlined_call_operand.vmem [shape: f32[1,64], index: 3, kind: input, shape index: {}]
  %s4 = inlined_call_operand.vmem [shape: bf16[64,64], index: 4, kind: input, shape index: {}]
  %s5 = inlined_call_operand.vmem [shape: bf16[2,64,64], index: 5, kind: input, shape index: {}]
  %s6 = inlined_call_operand.vmem [shape: bf16[64,64], index: 6, kind: input, shape index: {}]
  %s7 = inlined_call_operand.vmem [shape: f32[1,64], index: 7, kind: input, shape index: {}]
  %s8 = inlined_call_operand.vmem [shape: f32[1,64], index: 8, kind: input, shape index: {}]
  %s9 = inlined_call_operand.vmem [shape: f32[1,64], index: 9, kind: input, shape index: {}]
  %s10 = inlined_call_operand.vmem [shape: bf16[64,64], index: 10, kind: input, shape index: {}]
  %s11 = inlined_call_operand.vmem [shape: bf16[2,1024,64], index: 11, kind: input, shape index: {}]
  %s12 = inlined_call_operand.vmem [shape: bf16[64,64], index: 12, kind: input, shape index: {}]
  %s13 = inlined_call_operand.vmem [shape: f32[1,64], index: 13, kind: input, shape index: {}]
  %s14 = inlined_call_operand.vmem [shape: f32[1,64], index: 14, kind: input, shape index: {}]
  %s15 = inlined_call_operand.vmem [shape: f32[1,64], index: 15, kind: input, shape index: {}]
  %s16 = inlined_call_operand.vmem [shape: bf16[64,512], index: 16, kind: input, shape index: {}]
  %s17 = inlined_call_operand.vmem [shape: f32[1,512], index: 17, kind: input, shape index: {}]
  %s18 = inlined_call_operand.vmem [shape: bf16[256,64], index: 18, kind: input, shape index: {}]
  %s19 = inlined_call_operand.vmem [shape: f32[1,64], index: 19, kind: input, shape index: {}]
  %s20 = inlined_call_operand.vmem [shape: f32[2,64,64], index: 20, kind: output, shape index: {}]
  %s21 = sld [smem:[#allocation0]]
  $region117: #{spatial_transformer_forward.4} parent=0
    _
  %s23 = ssub.s32 1, %s21
  %s24 = scalar_select 0, %s23, %s21
  loop: start=0, step=1, limit=4
  $region2: #{spatial_transformer_forward.4} parent=0 // loop_pre_header
    _
  $region3: #{spatial_transformer_forward.4} parent=0 // loop_header
    %s26 = sphi 0, %s30
    %p27 = scmp.ge.s32.totalorder %s26, 4
    %s33 = sphi 0, %s45
    %s34 = sphi 0, %s41
    %s35 = sphi 0, %s33
    %s36 = sphi 0, %s34
    %s37 = sphi 0, %s35
    %s38 = sphi 0, %s36
    %s48 = sphi 0, %s50
    %s51 = sphi 0, %s48
    %s52 = sphi 0, %s51
    %s68 = sphi 0, %s52
    %s74 = sphi 0, %s76
    %s77 = sphi 0, %s74
    %s78 = sphi 0, %s77
    %s94 = sphi 0, %s78
    %s98 = sphi 0, %s98
    %s100 = sphi 0, %s98
    %s101 = sphi 0, %s100
    %s115 = sphi 0, %s101
    %s119 = sphi 0, %s119
    %s121 = sphi 0, %s119
    %s122 = sphi 0, %s121
    %s136 = sphi 0, %s122
    %s140 = sphi 0, %s140
    %s142 = sphi 0, %s140
    %s143 = sphi 0, %s142
    %s157 = sphi 0, %s143
    %s161 = sphi 0, %s161
    %s163 = sphi 0, %s161
    %s164 = sphi 0, %s163
    %s178 = sphi 0, %s164
    %s182 = sphi 0, %s182
    %s184 = sphi 0, %s182
    %s185 = sphi 0, %s184
    %s199 = sphi 0, %s185
    %s203 = sphi 0, %s203
    %s205 = sphi 0, %s203
    %s206 = sphi 0, %s205
    %s220 = sphi 0, %s206
    %s224 = sphi 0, %s224
    %s226 = sphi 0, %s224
    %s227 = sphi 0, %s226
    %s241 = sphi 0, %s227
    %s245 = sphi 0, %s245
    %s247 = sphi 0, %s245
    %s248 = sphi 0, %s247
    %s262 = sphi 0, %s248
    %s266 = sphi 0, %s266
    %s268 = sphi 0, %s266
    %s269 = sphi 0, %s268
    %s283 = sphi 0, %s269
    %s287 = sphi 0, %s287
    %s289 = sphi 0, %s287
    %s290 = sphi 0, %s289
    %s304 = sphi 0, %s290
    %s308 = sphi 0, %s308
    %s310 = sphi 0, %s308
    %s311 = sphi 0, %s310
    %s325 = sphi 0, %s311
    %s329 = sphi 0, %s329
    %s331 = sphi 0, %s329
    %s332 = sphi 0, %s331
    %s346 = sphi 0, %s332
    %s350 = sphi 0, %s350
    %s352 = sphi 0, %s350
    %s353 = sphi 0, %s352
    %s367 = sphi 0, %s353
    %s371 = sphi 0, %s371
    %s373 = sphi 0, %s371
    %s374 = sphi 0, %s373
    %s388 = sphi 0, %s374
    %s392 = sphi 0, %s392
    %s394 = sphi 0, %s392
    %s395 = sphi 0, %s394
    %s409 = sphi 0, %s395
    %s413 = sphi 0, %s413
    %s415 = sphi 0, %s413
    %s416 = sphi 0, %s415
    %s430 = sphi 0, %s416
    %s434 = sphi 0, %s434
    %s436 = sphi 0, %s434
    %s437 = sphi 0, %s436
    %s451 = sphi 0, %s437
    %s455 = sphi 0, %s455
    %s457 = sphi 0, %s455
    %s458 = sphi 0, %s457
    %s472 = sphi 0, %s458
    %s480 = sphi 0, %s482
    %s483 = sphi 0, %s480
    %s484 = sphi 0, %s483
    %s500 = sphi 0, %s484
  $region4: #{spatial_transformer_forward.4} parent=0 // loop_header_branch
    %29 = sbr.rel (%p27) target = $region8
  $region5: #{spatial_transformer_forward.4} parent=0 // loop_body
    %s31 = ssub.s32 %s26, 1
    %s32 = ssub.s32 %s26, 2
    %s39 = sadd.s32 1, %s34
    %p40 = scmp.ge.s32.totalorder %s39, 1
    %s41 = scalar_select %p40, 0, %s39
    %s42 = sadd.s32 1, %s33
    %s43 = scalar_select %p40, %s42, %s33
    %p44 = scmp.ge.s32.totalorder %s43, 2
    %s45 = scalar_select %p44, 0, %s43
    %s46 = ssub.s32 %s33, %s45
    %p47 = scmp.eq.s32.totalorder %s46, 0
    %s49 = sadd.s32 %s48, 1
    %s50 = scalar_select %p47, %s48, %s49
    %p53 = pneg %p47
    %p54 = scmp.eq.s32.totalorder %s26, 1
    %p55 = por %p53, %p54
    %p56 = scmp.ne.s32.totalorder %s48, %s51
    %p57 = scmp.eq.s32.totalorder %s26, 0
    %p58 = por %p56, %p57
    %p59 = scmp.ne.s32.totalorder %s48, %s51
    %p60 = scmp.eq.s32.totalorder %s31, 1
    %p61 = por %p59, %p60
    %p62 = scmp.ne.s32.totalorder %s51, %s52
    %p63 = scmp.eq.s32.totalorder %s31, 0
    %p64 = por %p62, %p63
    %p65 = scmp.ne.s32.totalorder %s51, %s52
    %p66 = scmp.eq.s32.totalorder %s32, 1
    %p67 = por %p65, %p66
    %p69 = scmp.ne.s32.totalorder %s52, %s68
    %p70 = scmp.eq.s32.totalorder %s32, 0
    %p71 = por %p69, %p70
    %s72 = ssub.s32 %s33, %s45
    %p73 = scmp.eq.s32.totalorder %s72, 0
    %s75 = sadd.s32 %s74, 1
    %s76 = scalar_select %p73, %s74, %s75
    %p79 = pneg %p73
    %p80 = scmp.eq.s32.totalorder %s26, 1
    %p81 = por %p79, %p80
    %p82 = scmp.ne.s32.totalorder %s74, %s77
    %p83 = scmp.eq.s32.totalorder %s26, 0
    %p84 = por %p82, %p83
    %p85 = scmp.ne.s32.totalorder %s74, %s77
    %p86 = scmp.eq.s32.totalorder %s31, 1
    %p87 = por %p85, %p86
    %p88 = scmp.ne.s32.totalorder %s77, %s78
    %p89 = scmp.eq.s32.totalorder %s31, 0
    %p90 = por %p88, %p89
    %p91 = scmp.ne.s32.totalorder %s77, %s78
    %p92 = scmp.eq.s32.totalorder %s32, 1
    %p93 = por %p91, %p92
    %p95 = scmp.ne.s32.totalorder %s78, %s94
    %p96 = scmp.eq.s32.totalorder %s32, 0
    %p97 = por %p95, %p96
    %s99 = sadd.s32 %s98, 1
    %p102 = scmp.eq.s32.totalorder %s26, 1
    %p103 = scmp.ne.s32.totalorder %s98, %s100
    %p104 = scmp.eq.s32.totalorder %s26, 0
    %p105 = por %p103, %p104
    %p106 = scmp.ne.s32.totalorder %s98, %s100
    %p107 = scmp.eq.s32.totalorder %s31, 1
    %p108 = por %p106, %p107
    %p109 = scmp.ne.s32.totalorder %s100, %s101
    %p110 = scmp.eq.s32.totalorder %s31, 0
    %p111 = por %p109, %p110
    %p112 = scmp.ne.s32.totalorder %s100, %s101
    %p113 = scmp.eq.s32.totalorder %s32, 1
    %p114 = por %p112, %p113
    %p116 = scmp.ne.s32.totalorder %s101, %s115
    %p117 = scmp.eq.s32.totalorder %s32, 0
    %p118 = por %p116, %p117
    %s120 = sadd.s32 %s119, 1
    %p123 = scmp.eq.s32.totalorder %s26, 1
    %p124 = scmp.ne.s32.totalorder %s119, %s121
    %p125 = scmp.eq.s32.totalorder %s26, 0
    %p126 = por %p124, %p125
    %p127 = scmp.ne.s32.totalorder %s119, %s121
    %p128 = scmp.eq.s32.totalorder %s31, 1
    %p129 = por %p127, %p128
    %p130 = scmp.ne.s32.totalorder %s121, %s122
    %p131 = scmp.eq.s32.totalorder %s31, 0
    %p132 = por %p130, %p131
    %p133 = scmp.ne.s32.totalorder %s121, %s122
    %p134 = scmp.eq.s32.totalorder %s32, 1
    %p135 = por %p133, %p134
    %p137 = scmp.ne.s32.totalorder %s122, %s136
    %p138 = scmp.eq.s32.totalorder %s32, 0
    %p139 = por %p137, %p138
    %s141 = sadd.s32 %s140, 1
    %p144 = scmp.eq.s32.totalorder %s26, 1
    %p145 = scmp.ne.s32.totalorder %s140, %s142
    %p146 = scmp.eq.s32.totalorder %s26, 0
    %p147 = por %p145, %p146
    %p148 = scmp.ne.s32.totalorder %s140, %s142
    %p149 = scmp.eq.s32.totalorder %s31, 1
    %p150 = por %p148, %p149
    %p151 = scmp.ne.s32.totalorder %s142, %s143
    %p152 = scmp.eq.s32.totalorder %s31, 0
    %p153 = por %p151, %p152
    %p154 = scmp.ne.s32.totalorder %s142, %s143
    %p155 = scmp.eq.s32.totalorder %s32, 1
    %p156 = por %p154, %p155
    %p158 = scmp.ne.s32.totalorder %s143, %s157
    %p159 = scmp.eq.s32.totalorder %s32, 0
    %p160 = por %p158, %p159
    %s162 = sadd.s32 %s161, 1
    %p165 = scmp.eq.s32.totalorder %s26, 1
    %p166 = scmp.ne.s32.totalorder %s161, %s163
    %p167 = scmp.eq.s32.totalorder %s26, 0
    %p168 = por %p166, %p167
    %p169 = scmp.ne.s32.totalorder %s161, %s163
    %p170 = scmp.eq.s32.totalorder %s31, 1
    %p171 = por %p169, %p170
    %p172 = scmp.ne.s32.totalorder %s163, %s164
    %p173 = scmp.eq.s32.totalorder %s31, 0
    %p174 = por %p172, %p173
    %p175 = scmp.ne.s32.totalorder %s163, %s164
    %p176 = scmp.eq.s32.totalorder %s32, 1
    %p177 = por %p175, %p176
    %p179 = scmp.ne.s32.totalorder %s164, %s178
    %p180 = scmp.eq.s32.totalorder %s32, 0
    %p181 = por %p179, %p180
    %s183 = sadd.s32 %s182, 1
    %p186 = scmp.eq.s32.totalorder %s26, 1
    %p187 = scmp.ne.s32.totalorder %s182, %s184
    %p188 = scmp.eq.s32.totalorder %s26, 0
    %p189 = por %p187, %p188
    %p190 = scmp.ne.s32.totalorder %s182, %s184
    %p191 = scmp.eq.s32.totalorder %s31, 1
    %p192 = por %p190, %p191
    %p193 = scmp.ne.s32.totalorder %s184, %s185
    %p194 = scmp.eq.s32.totalorder %s31, 0
    %p195 = por %p193, %p194
    %p196 = scmp.ne.s32.totalorder %s184, %s185
    %p197 = scmp.eq.s32.totalorder %s32, 1
    %p198 = por %p196, %p197
    %p200 = scmp.ne.s32.totalorder %s185, %s199
    %p201 = scmp.eq.s32.totalorder %s32, 0
    %p202 = por %p200, %p201
    %s204 = sadd.s32 %s203, 1
    %p207 = scmp.eq.s32.totalorder %s26, 1
    %p208 = scmp.ne.s32.totalorder %s203, %s205
    %p209 = scmp.eq.s32.totalorder %s26, 0
    %p210 = por %p208, %p209
    %p211 = scmp.ne.s32.totalorder %s203, %s205
    %p212 = scmp.eq.s32.totalorder %s31, 1
    %p213 = por %p211, %p212
    %p214 = scmp.ne.s32.totalorder %s205, %s206
    %p215 = scmp.eq.s32.totalorder %s31, 0
    %p216 = por %p214, %p215
    %p217 = scmp.ne.s32.totalorder %s205, %s206
    %p218 = scmp.eq.s32.totalorder %s32, 1
    %p219 = por %p217, %p218
    %p221 = scmp.ne.s32.totalorder %s206, %s220
    %p222 = scmp.eq.s32.totalorder %s32, 0
    %p223 = por %p221, %p222
    %s225 = sadd.s32 %s224, 1
    %p228 = scmp.eq.s32.totalorder %s26, 1
    %p229 = scmp.ne.s32.totalorder %s224, %s226
    %p230 = scmp.eq.s32.totalorder %s26, 0
    %p231 = por %p229, %p230
    %p232 = scmp.ne.s32.totalorder %s224, %s226
    %p233 = scmp.eq.s32.totalorder %s31, 1
    %p234 = por %p232, %p233
    %p235 = scmp.ne.s32.totalorder %s226, %s227
    %p236 = scmp.eq.s32.totalorder %s31, 0
    %p237 = por %p235, %p236
    %p238 = scmp.ne.s32.totalorder %s226, %s227
    %p239 = scmp.eq.s32.totalorder %s32, 1
    %p240 = por %p238, %p239
    %p242 = scmp.ne.s32.totalorder %s227, %s241
    %p243 = scmp.eq.s32.totalorder %s32, 0
    %p244 = por %p242, %p243
    %s246 = sadd.s32 %s245, 1
    %p249 = scmp.eq.s32.totalorder %s26, 1
    %p250 = scmp.ne.s32.totalorder %s245, %s247
    %p251 = scmp.eq.s32.totalorder %s26, 0
    %p252 = por %p250, %p251
    %p253 = scmp.ne.s32.totalorder %s245, %s247
    %p254 = scmp.eq.s32.totalorder %s31, 1
    %p255 = por %p253, %p254
    %p256 = scmp.ne.s32.totalorder %s247, %s248
    %p257 = scmp.eq.s32.totalorder %s31, 0
    %p258 = por %p256, %p257
    %p259 = scmp.ne.s32.totalorder %s247, %s248
    %p260 = scmp.eq.s32.totalorder %s32, 1
    %p261 = por %p259, %p260
    %p263 = scmp.ne.s32.totalorder %s248, %s262
    %p264 = scmp.eq.s32.totalorder %s32, 0
    %p265 = por %p263, %p264
    %s267 = sadd.s32 %s266, 1
    %p270 = scmp.eq.s32.totalorder %s26, 1
    %p271 = scmp.ne.s32.totalorder %s266, %s268
    %p272 = scmp.eq.s32.totalorder %s26, 0
    %p273 = por %p271, %p272
    %p274 = scmp.ne.s32.totalorder %s266, %s268
    %p275 = scmp.eq.s32.totalorder %s31, 1
    %p276 = por %p274, %p275
    %p277 = scmp.ne.s32.totalorder %s268, %s269
    %p278 = scmp.eq.s32.totalorder %s31, 0
    %p279 = por %p277, %p278
    %p280 = scmp.ne.s32.totalorder %s268, %s269
    %p281 = scmp.eq.s32.totalorder %s32, 1
    %p282 = por %p280, %p281
    %p284 = scmp.ne.s32.totalorder %s269, %s283
    %p285 = scmp.eq.s32.totalorder %s32, 0
    %p286 = por %p284, %p285
    %s288 = sadd.s32 %s287, 1
    %p291 = scmp.eq.s32.totalorder %s26, 1
    %p292 = scmp.ne.s32.totalorder %s287, %s289
    %p293 = scmp.eq.s32.totalorder %s26, 0
    %p294 = por %p292, %p293
    %p295 = scmp.ne.s32.totalorder %s287, %s289
    %p296 = scmp.eq.s32.totalorder %s31, 1
    %p297 = por %p295, %p296
    %p298 = scmp.ne.s32.totalorder %s289, %s290
    %p299 = scmp.eq.s32.totalorder %s31, 0
    %p300 = por %p298, %p299
    %p301 = scmp.ne.s32.totalorder %s289, %s290
    %p302 = scmp.eq.s32.totalorder %s32, 1
    %p303 = por %p301, %p302
    %p305 = scmp.ne.s32.totalorder %s290, %s304
    %p306 = scmp.eq.s32.totalorder %s32, 0
    %p307 = por %p305, %p306
    %s309 = sadd.s32 %s308, 1
    %p312 = scmp.eq.s32.totalorder %s26, 1
    %p313 = scmp.ne.s32.totalorder %s308, %s310
    %p314 = scmp.eq.s32.totalorder %s26, 0
    %p315 = por %p313, %p314
    %p316 = scmp.ne.s32.totalorder %s308, %s310
    %p317 = scmp.eq.s32.totalorder %s31, 1
    %p318 = por %p316, %p317
    %p319 = scmp.ne.s32.totalorder %s310, %s311
    %p320 = scmp.eq.s32.totalorder %s31, 0
    %p321 = por %p319, %p320
    %p322 = scmp.ne.s32.totalorder %s310, %s311
    %p323 = scmp.eq.s32.totalorder %s32, 1
    %p324 = por %p322, %p323
    %p326 = scmp.ne.s32.totalorder %s311, %s325
    %p327 = scmp.eq.s32.totalorder %s32, 0
    %p328 = por %p326, %p327
    %s330 = sadd.s32 %s329, 1
    %p333 = scmp.eq.s32.totalorder %s26, 1
    %p334 = scmp.ne.s32.totalorder %s329, %s331
    %p335 = scmp.eq.s32.totalorder %s26, 0
    %p336 = por %p334, %p335
    %p337 = scmp.ne.s32.totalorder %s329, %s331
    %p338 = scmp.eq.s32.totalorder %s31, 1
    %p339 = por %p337, %p338
    %p340 = scmp.ne.s32.totalorder %s331, %s332
    %p341 = scmp.eq.s32.totalorder %s31, 0
    %p342 = por %p340, %p341
    %p343 = scmp.ne.s32.totalorder %s331, %s332
    %p344 = scmp.eq.s32.totalorder %s32, 1
    %p345 = por %p343, %p344
    %p347 = scmp.ne.s32.totalorder %s332, %s346
    %p348 = scmp.eq.s32.totalorder %s32, 0
    %p349 = por %p347, %p348
    %s351 = sadd.s32 %s350, 1
    %p354 = scmp.eq.s32.totalorder %s26, 1
    %p355 = scmp.ne.s32.totalorder %s350, %s352
    %p356 = scmp.eq.s32.totalorder %s26, 0
    %p357 = por %p355, %p356
    %p358 = scmp.ne.s32.totalorder %s350, %s352
    %p359 = scmp.eq.s32.totalorder %s31, 1
    %p360 = por %p358, %p359
    %p361 = scmp.ne.s32.totalorder %s352, %s353
    %p362 = scmp.eq.s32.totalorder %s31, 0
    %p363 = por %p361, %p362
    %p364 = scmp.ne.s32.totalorder %s352, %s353
    %p365 = scmp.eq.s32.totalorder %s32, 1
    %p366 = por %p364, %p365
    %p368 = scmp.ne.s32.totalorder %s353, %s367
    %p369 = scmp.eq.s32.totalorder %s32, 0
    %p370 = por %p368, %p369
    %s372 = sadd.s32 %s371, 1
    %p375 = scmp.eq.s32.totalorder %s26, 1
    %p376 = scmp.ne.s32.totalorder %s371, %s373
    %p377 = scmp.eq.s32.totalorder %s26, 0
    %p378 = por %p376, %p377
    %p379 = scmp.ne.s32.totalorder %s371, %s373
    %p380 = scmp.eq.s32.totalorder %s31, 1
    %p381 = por %p379, %p380
    %p382 = scmp.ne.s32.totalorder %s373, %s374
    %p383 = scmp.eq.s32.totalorder %s31, 0
    %p384 = por %p382, %p383
    %p385 = scmp.ne.s32.totalorder %s373, %s374
    %p386 = scmp.eq.s32.totalorder %s32, 1
    %p387 = por %p385, %p386
    %p389 = scmp.ne.s32.totalorder %s374, %s388
    %p390 = scmp.eq.s32.totalorder %s32, 0
    %p391 = por %p389, %p390
    %s393 = sadd.s32 %s392, 1
    %p396 = scmp.eq.s32.totalorder %s26, 1
    %p397 = scmp.ne.s32.totalorder %s392, %s394
    %p398 = scmp.eq.s32.totalorder %s26, 0
    %p399 = por %p397, %p398
    %p400 = scmp.ne.s32.totalorder %s392, %s394
    %p401 = scmp.eq.s32.totalorder %s31, 1
    %p402 = por %p400, %p401
    %p403 = scmp.ne.s32.totalorder %s394, %s395
    %p404 = scmp.eq.s32.totalorder %s31, 0
    %p405 = por %p403, %p404
    %p406 = scmp.ne.s32.totalorder %s394, %s395
    %p407 = scmp.eq.s32.totalorder %s32, 1
    %p408 = por %p406, %p407
    %p410 = scmp.ne.s32.totalorder %s395, %s409
    %p411 = scmp.eq.s32.totalorder %s32, 0
    %p412 = por %p410, %p411
    %s414 = sadd.s32 %s413, 1
    %p417 = scmp.eq.s32.totalorder %s26, 1
    %p418 = scmp.ne.s32.totalorder %s413, %s415
    %p419 = scmp.eq.s32.totalorder %s26, 0
    %p420 = por %p418, %p419
    %p421 = scmp.ne.s32.totalorder %s413, %s415
    %p422 = scmp.eq.s32.totalorder %s31, 1
    %p423 = por %p421, %p422
    %p424 = scmp.ne.s32.totalorder %s415, %s416
    %p425 = scmp.eq.s32.totalorder %s31, 0
    %p426 = por %p424, %p425
    %p427 = scmp.ne.s32.totalorder %s415, %s416
    %p428 = scmp.eq.s32.totalorder %s32, 1
    %p429 = por %p427, %p428
    %p431 = scmp.ne.s32.totalorder %s416, %s430
    %p432 = scmp.eq.s32.totalorder %s32, 0
    %p433 = por %p431, %p432
    %s435 = sadd.s32 %s434, 1
    %p438 = scmp.eq.s32.totalorder %s26, 1
    %p439 = scmp.ne.s32.totalorder %s434, %s436
    %p440 = scmp.eq.s32.totalorder %s26, 0
    %p441 = por %p439, %p440
    %p442 = scmp.ne.s32.totalorder %s434, %s436
    %p443 = scmp.eq.s32.totalorder %s31, 1
    %p444 = por %p442, %p443
    %p445 = scmp.ne.s32.totalorder %s436, %s437
    %p446 = scmp.eq.s32.totalorder %s31, 0
    %p447 = por %p445, %p446
    %p448 = scmp.ne.s32.totalorder %s436, %s437
    %p449 = scmp.eq.s32.totalorder %s32, 1
    %p450 = por %p448, %p449
    %p452 = scmp.ne.s32.totalorder %s437, %s451
    %p453 = scmp.eq.s32.totalorder %s32, 0
    %p454 = por %p452, %p453
    %s456 = sadd.s32 %s455, 1
    %p459 = scmp.eq.s32.totalorder %s26, 1
    %p460 = scmp.ne.s32.totalorder %s455, %s457
    %p461 = scmp.eq.s32.totalorder %s26, 0
    %p462 = por %p460, %p461
    %p463 = scmp.ne.s32.totalorder %s455, %s457
    %p464 = scmp.eq.s32.totalorder %s31, 1
    %p465 = por %p463, %p464
    %p466 = scmp.ne.s32.totalorder %s457, %s458
    %p467 = scmp.eq.s32.totalorder %s31, 0
    %p468 = por %p466, %p467
    %p469 = scmp.ne.s32.totalorder %s457, %s458
    %p470 = scmp.eq.s32.totalorder %s32, 1
    %p471 = por %p469, %p470
    %p473 = scmp.ne.s32.totalorder %s458, %s472
    %p474 = scmp.eq.s32.totalorder %s32, 0
    %p475 = por %p473, %p474
    %s476 = ssub.s32 %s33, %s45
    %s477 = ssub.s32 %s34, %s41
    %s478 = sor.u32 %s476, %s477
    %p479 = scmp.eq.s32.totalorder %s478, 0
    %s481 = sadd.s32 %s480, 1
    %s482 = scalar_select %p479, %s480, %s481
    %p485 = pneg %p479
    %p486 = scmp.eq.s32.totalorder %s26, 1
    %p487 = por %p485, %p486
    %p488 = scmp.ne.s32.totalorder %s480, %s483
    %p489 = scmp.eq.s32.totalorder %s26, 0
    %p490 = por %p488, %p489
    %p491 = scmp.ne.s32.totalorder %s480, %s483
    %p492 = scmp.eq.s32.totalorder %s31, 1
    %p493 = por %p491, %p492
    %p494 = scmp.ne.s32.totalorder %s483, %s484
    %p495 = scmp.eq.s32.totalorder %s31, 0
    %p496 = por %p494, %p495
    %p497 = scmp.ne.s32.totalorder %s483, %s484
    %p498 = scmp.eq.s32.totalorder %s32, 1
    %p499 = por %p497, %p498
    %p501 = scmp.ne.s32.totalorder %s484, %s500
    %p502 = scmp.eq.s32.totalorder %s32, 0
    %p503 = por %p501, %p502
    %p504 = scmp.le.s32.totalorder 1, %s26
    %p505 = scmp.lt.s32.totalorder %s26, 3
    %p506 = pnand %p504, %p505
    %p507 = pneg %p506
    // Predicated region
    $region9: #{spatial_transformer_forward.4} parent=5 // pred_check
      _
    $region10: #{spatial_transformer_forward.4} parent=5 // pred_check_branch
      %509 = sbr.rel (%p506) target = $region12
    $region11: #{spatial_transformer_forward.4} parent=5 // pred_region
      %s510 = ssub.s32 %s26, 1
      // Predicated region
      $region13: #{spatial_transformer_forward.4} parent=11 // pred_check
        %p511 = pneg %p111
      $region14: #{spatial_transformer_forward.4} parent=11 // pred_check_branch
        %513 = sbr.rel (%p511) target = $region16
      $region15: #{spatial_transformer_forward.4} parent=11 // pred_region
        _
      $region16: #{spatial_transformer_forward.4} parent=11 // pred_fallthru
        _
      // Predicated region
      $region17: #{spatial_transformer_forward.4} parent=11 // pred_check
        %p514 = pneg %p132
      $region18: #{spatial_transformer_forward.4} parent=11 // pred_check_branch
        %516 = sbr.rel (%p514) target = $region20
      $region19: #{spatial_transformer_forward.4} parent=11 // pred_region
        _
      $region20: #{spatial_transformer_forward.4} parent=11 // pred_fallthru
        _
      // Predicated region
      $region21: #{spatial_transformer_forward.4} parent=11 // pred_check
        %p517 = pneg %p153
      $region22: #{spatial_transformer_forward.4} parent=11 // pred_check_branch
        %519 = sbr.rel (%p517) target = $region24
      $region23: #{spatial_transformer_forward.4} parent=11 // pred_region
        _
      $region24: #{spatial_transformer_forward.4} parent=11 // pred_fallthru
        _
      // Predicated region
      $region25: #{spatial_transformer_forward.4} parent=11 // pred_check
        %p520 = pneg %p174
      $region26: #{spatial_transformer_forward.4} parent=11 // pred_check_branch
        %522 = sbr.rel (%p520) target = $region28
      $region27: #{spatial_transformer_forward.4} parent=11 // pred_region
        _
      $region28: #{spatial_transformer_forward.4} parent=11 // pred_fallthru
        _
      // Predicated region
      $region29: #{spatial_transformer_forward.4} parent=11 // pred_check
        %p523 = pneg %p195
      $region30: #{spatial_transformer_forward.4} parent=11 // pred_check_branch
        %525 = sbr.rel (%p523) target = $region32
      $region31: #{spatial_transformer_forward.4} parent=11 // pred_region
        _
      $region32: #{spatial_transformer_forward.4} parent=11 // pred_fallthru
        _
      // Predicated region
      $region33: #{spatial_transformer_forward.4} parent=11 // pred_check
        %p526 = pneg %p216
      $region34: #{spatial_transformer_forward.4} parent=11 // pred_check_branch
        %528 = sbr.rel (%p526) target = $region36
      $region35: #{spatial_transformer_forward.4} parent=11 // pred_region
        _
      $region36: #{spatial_transformer_forward.4} parent=11 // pred_fallthru
        _
      // Predicated region
      $region37: #{spatial_transformer_forward.4} parent=11 // pred_check
        %p529 = pneg %p237
      $region38: #{spatial_transformer_forward.4} parent=11 // pred_check_branch
        %531 = sbr.rel (%p529) target = $region40
      $region39: #{spatial_transformer_forward.4} parent=11 // pred_region
        _
      $region40: #{spatial_transformer_forward.4} parent=11 // pred_fallthru
        _
      // Predicated region
      $region41: #{spatial_transformer_forward.4} parent=11 // pred_check
        %p532 = pneg %p258
      $region42: #{spatial_transformer_forward.4} parent=11 // pred_check_branch
        %534 = sbr.rel (%p532) target = $region44
      $region43: #{spatial_transformer_forward.4} parent=11 // pred_region
        _
      $region44: #{spatial_transformer_forward.4} parent=11 // pred_fallthru
        _
      // Predicated region
      $region45: #{spatial_transformer_forward.4} parent=11 // pred_check
        %p535 = pneg %p279
      $region46: #{spatial_transformer_forward.4} parent=11 // pred_check_branch
        %537 = sbr.rel (%p535) target = $region48
      $region47: #{spatial_transformer_forward.4} parent=11 // pred_region
        _
      $region48: #{spatial_transformer_forward.4} parent=11 // pred_fallthru
        _
      // Predicated region
      $region49: #{spatial_transformer_forward.4} parent=11 // pred_check
        %p538 = pneg %p300
      $region50: #{spatial_transformer_forward.4} parent=11 // pred_check_branch
        %540 = sbr.rel (%p538) target = $region52
      $region51: #{spatial_transformer_forward.4} parent=11 // pred_region
        _
      $region52: #{spatial_transformer_forward.4} parent=11 // pred_fallthru
        _
      // Predicated region
      $region53: #{spatial_transformer_forward.4} parent=11 // pred_check
        %p541 = pneg %p321
      $region54: #{spatial_transformer_forward.4} parent=11 // pred_check_branch
        %543 = sbr.rel (%p541) target = $region56
      $region55: #{spatial_transformer_forward.4} parent=11 // pred_region
        _
      $region56: #{spatial_transformer_forward.4} parent=11 // pred_fallthru
        _
      // Predicated region
      $region57: #{spatial_transformer_forward.4} parent=11 // pred_check
        %p544 = pneg %p342
      $region58: #{spatial_transformer_forward.4} parent=11 // pred_check_branch
        %546 = sbr.rel (%p544) target = $region60
      $region59: #{spatial_transformer_forward.4} parent=11 // pred_region
        _
      $region60: #{spatial_transformer_forward.4} parent=11 // pred_fallthru
        _
      // Predicated region
      $region61: #{spatial_transformer_forward.4} parent=11 // pred_check
        %p547 = pneg %p363
      $region62: #{spatial_transformer_forward.4} parent=11 // pred_check_branch
        %549 = sbr.rel (%p547) target = $region64
      $region63: #{spatial_transformer_forward.4} parent=11 // pred_region
        _
      $region64: #{spatial_transformer_forward.4} parent=11 // pred_fallthru
        _
      // Predicated region
      $region65: #{spatial_transformer_forward.4} parent=11 // pred_check
        %p550 = pneg %p384
      $region66: #{spatial_transformer_forward.4} parent=11 // pred_check_branch
        %552 = sbr.rel (%p550) target = $region68
      $region67: #{spatial_transformer_forward.4} parent=11 // pred_region
        _
      $region68: #{spatial_transformer_forward.4} parent=11 // pred_fallthru
        _
      // Predicated region
      $region69: #{spatial_transformer_forward.4} parent=11 // pred_check
        %p553 = pneg %p405
      $region70: #{spatial_transformer_forward.4} parent=11 // pred_check_branch
        %555 = sbr.rel (%p553) target = $region72
      $region71: #{spatial_transformer_forward.4} parent=11 // pred_region
        _
      $region72: #{spatial_transformer_forward.4} parent=11 // pred_fallthru
        _
      // Predicated region
      $region73: #{spatial_transformer_forward.4} parent=11 // pred_check
        %p556 = pneg %p426
      $region74: #{spatial_transformer_forward.4} parent=11 // pred_check_branch
        %558 = sbr.rel (%p556) target = $region76
      $region75: #{spatial_transformer_forward.4} parent=11 // pred_region
        _
      $region76: #{spatial_transformer_forward.4} parent=11 // pred_fallthru
        _
      // Predicated region
      $region77: #{spatial_transformer_forward.4} parent=11 // pred_check
        %p559 = pneg %p447
      $region78: #{spatial_transformer_forward.4} parent=11 // pred_check_branch
        %561 = sbr.rel (%p559) target = $region80
      $region79: #{spatial_transformer_forward.4} parent=11 // pred_region
        _
      $region80: #{spatial_transformer_forward.4} parent=11 // pred_fallthru
        _
      // Predicated region
      $region81: #{spatial_transformer_forward.4} parent=11 // pred_check
        %p562 = pneg %p468
      $region82: #{spatial_transformer_forward.4} parent=11 // pred_check_branch
        %564 = sbr.rel (%p562) target = $region84
      $region83: #{spatial_transformer_forward.4} parent=11 // pred_region
        _
      $region84: #{spatial_transformer_forward.4} parent=11 // pred_fallthru
        _
    $region12: #{spatial_transformer_forward.4} parent=5 // pred_fallthru
      _
    %p565 = scmp.lt.s32.totalorder %s26, 2
    // Predicated region
    $region85: #{spatial_transformer_forward.4} parent=5 // pred_check
      %p566 = pneg %p565
    $region86: #{spatial_transformer_forward.4} parent=5 // pred_check_branch
      %568 = sbr.rel (%p566) target = $region88
    $region87: #{spatial_transformer_forward.4} parent=5 // pred_region
      // Predicated region
      $region89: #{spatial_transformer_forward.4} parent=87 // pred_check
        %p569 = pneg %p58
      $region90: #{spatial_transformer_forward.4} parent=87 // pred_check_branch
        %571 = sbr.rel (%p569) target = $region92
      $region91: #{spatial_transformer_forward.4} parent=87 // pred_region
        %p572 = scmp.lt.s32.totalorder %s33, 1
        %s573 = scalar_select %p572, %s33, 1
        %s574 = smul.addr %s573, 8
        %s575 = smul.addr %s574, 8
        %s576 = scalar_lea.vmem %s0, %s575
      $region92: #{spatial_transformer_forward.4} parent=87 // pred_fallthru
        _
      // Predicated region
      $region93: #{spatial_transformer_forward.4} parent=87 // pred_check
        %p577 = pneg %p84
      $region94: #{spatial_transformer_forward.4} parent=87 // pred_check_branch
        %579 = sbr.rel (%p577) target = $region96
      $region95: #{spatial_transformer_forward.4} parent=87 // pred_region
        %p580 = scmp.lt.s32.totalorder %s33, 1
        %s581 = scalar_select %p580, %s33, 1
        %s582 = smul.addr %s581, 8
        %s583 = smul.addr %s582, 4
        %s584 = scalar_lea.vmem %s1, %s583
      $region96: #{spatial_transformer_forward.4} parent=87 // pred_fallthru
        _
    $region88: #{spatial_transformer_forward.4} parent=5 // pred_fallthru
      _
    %p585 = scmp.le.s32.totalorder 1, %s26
    %p586 = scmp.lt.s32.totalorder %s26, 3
    %p587 = pnand %p585, %p586
    %p588 = pneg %p587
    // Predicated region
    $region97: #{spatial_transformer_forward.4} parent=5 // pred_check
      _
    $region98: #{spatial_transformer_forward.4} parent=5 // pred_check_branch
      %590 = sbr.rel (%p587) target = $region100
    $region99: #{spatial_transformer_forward.4} parent=5 // pred_region
      %s591 = ssub.s32 %s26, 1
      %p592 = scmp.lt.s32.totalorder %s35, 1
      %s593 = scalar_select %p592, %s35, 1
      %s594 = smul.addr %s593, 8
      %s595 = smul.addr %s594, 8
      %s596 = scalar_lea.vmem %s0, %s595
      %p597 = pneg %p64
      %p598 = pneg %p61
      %p599 = scmp.lt.s32.totalorder %s35, 1
      %s600 = scalar_select %p599, %s35, 1
      %s601 = smul.addr %s600, 8
      %s602 = smul.addr %s601, 4
      %s603 = scalar_lea.vmem %s1, %s602
      %p604 = pneg %p90
      %p605 = pneg %p87
      %p606 = pneg %p111
      %p607 = pneg %p108
      %p608 = pneg %p132
      %p609 = pneg %p129
      %p610 = pneg %p153
      %p611 = pneg %p150
      %p612 = pneg %p174
      %p613 = pneg %p171
      %p614 = pneg %p195
      %p615 = pneg %p192
      %p616 = pneg %p216
      %p617 = pneg %p213
      %p618 = pneg %p237
      %p619 = pneg %p234
      %p620 = pneg %p258
      %p621 = pneg %p255
      %p622 = pneg %p279
      %p623 = pneg %p276
      %p624 = pneg %p300
      %p625 = pneg %p297
      %p626 = pneg %p321
      %p627 = pneg %p318
      %p628 = pneg %p342
      %p629 = pneg %p339
      %p630 = pneg %p363
      %p631 = pneg %p360
      %p632 = pneg %p384
      %p633 = pneg %p381
      %p634 = pneg %p405
      %p635 = pneg %p402
      %p636 = pneg %p426
      %p637 = pneg %p423
      %p638 = pneg %p447
      %p639 = pneg %p444
      %p640 = pneg %p468
      %p641 = pneg %p465
      %p642 = pneg %p496
      %p643 = pneg %p493
      %s644 = smul.u32 8, %s36
      %p645 = scmp.lt.s32.totalorder %s35, 1
      %s646 = scalar_select %p645, %s35, 1
      %p647 = scmp.lt.s32.totalorder %s644, 7
      %s648 = scalar_select %p647, %s644, 7
      %s649 = smul.addr %s646, 8
      %s650 = sadd.s32 %s648, %s649
      %s651 = smul.addr %s650, 8
      %s652 = scalar_lea.vmem %s20, %s651
      %p653 = scmp.lt.s32.totalorder %s35, 1
      %s654 = scalar_select %p653, %s35, 1
      %s655 = smul.addr %s654, 8
      %s656 = smul.addr %s655, 8
      %s657 = scalar_lea.vmem %s0, %s656
      %p658 = scmp.lt.s32.totalorder %s35, 1
      %s659 = scalar_select %p658, %s35, 1
      %s660 = smul.addr %s659, 8
      %s661 = smul.addr %s660, 4
      %s662 = scalar_lea.vmem %s1, %s661
      %s663 = smul.u32 8, %s36
      %p664 = scmp.lt.s32.totalorder %s35, 1
      %s665 = scalar_select %p664, %s35, 1
      %p666 = scmp.lt.s32.totalorder %s663, 7
      %s667 = scalar_select %p666, %s663, 7
      %s668 = smul.addr %s665, 8
      %s669 = sadd.s32 %s667, %s668
      %s670 = smul.addr %s669, 8
      %s671 = scalar_lea.vmem %s20, %s670
      %s672 = smul.u32 8, %s36
      %p674 = scmp.eq.s32.totalorder %s36, 0
      // Predicated region
      $region101: #{spatial_transformer_forward.4} parent=99 // pred_check
        %p675 = pneg %p674
      $region102: #{spatial_transformer_forward.4} parent=99 // pred_check_branch
        %677 = sbr.rel (%p675) target = $region104
      $region103: #{spatial_transformer_forward.4} parent=99 // pred_region
        %v678 = vld [vmem:[%s657] sm:$0xff]
        %v679 = vld [vmem:[%s657 + $0x8] sm:$0xff]
        %v680 = vld [vmem:[%s657 + $0x10] sm:$0xff]
        %v681 = vld [vmem:[%s657 + $0x18] sm:$0xff]
        %v682 = vld [vmem:[%s657 + $0x20] sm:$0xff]
        %v683 = vld [vmem:[%s657 + $0x28] sm:$0xff]
        %v684 = vld [vmem:[%s657 + $0x30] sm:$0xff]
        %v685 = vld [vmem:[%s657 + $0x38] sm:$0xff]
        %v686 = vld [vmem:[%s2] sm:$0x1]
        %v687 = vld [vmem:[%s3] sm:$0x1]
        %vm688 = vcmask 523264
        %v689 = vsel %vm688, %v678, 0.0
        %690 = vadd.xlane.f32.xlu0 %v689
        %v691 = vpop.xlane.xlu0 %690
        %v692 = vsel %vm688, %v679, 0.0
        %693 = vadd.xlane.f32.xlu0 %v692
        %v694 = vpop.xlane.xlu0 %693
        %v695 = vsel %vm688, %v680, 0.0
        %696 = vadd.xlane.f32.xlu0 %v695
        %v697 = vpop.xlane.xlu0 %696
        %v698 = vsel %vm688, %v681, 0.0
        %699 = vadd.xlane.f32.xlu0 %v698
        %v700 = vpop.xlane.xlu0 %699
        %v701 = vsel %vm688, %v682, 0.0
        %702 = vadd.xlane.f32.xlu0 %v701
        %v703 = vpop.xlane.xlu0 %702
        %v704 = vsel %vm688, %v683, 0.0
        %705 = vadd.xlane.f32.xlu0 %v704
        %v706 = vpop.xlane.xlu0 %705
        %v707 = vsel %vm688, %v684, 0.0
        %708 = vadd.xlane.f32.xlu0 %v707
        %v709 = vpop.xlane.xlu0 %708
        %v710 = vsel %vm688, %v685, 0.0
        %711 = vadd.xlane.f32.xlu0 %v710
        %v712 = vpop.xlane.xlu0 %711
        %v713 = vrcp.pop 64.0
        %v714 = vmul.f32 %v691, %v713
        %v715 = vmul.f32 %v694, %v713
        %v716 = vmul.f32 %v697, %v713
        %v717 = vmul.f32 %v700, %v713
        %v718 = vmul.f32 %v703, %v713
        %v719 = vmul.f32 %v706, %v713
        %v720 = vmul.f32 %v709, %v713
        %v721 = vmul.f32 %v712, %v713
        %v722 = vsub.f32 %v678, %v714
        %v723 = vsub.f32 %v679, %v715
        %v724 = vsub.f32 %v680, %v716
        %v725 = vsub.f32 %v681, %v717
        %v726 = vsub.f32 %v682, %v718
        %v727 = vsub.f32 %v683, %v719
        %v728 = vsub.f32 %v684, %v720
        %v729 = vsub.f32 %v685, %v721
        %v730 = vmul.f32 %v722, %v722
        %v731 = vmul.f32 %v723, %v723
        %v732 = vmul.f32 %v724, %v724
        %v733 = vmul.f32 %v725, %v725
        %v734 = vmul.f32 %v726, %v726
        %v735 = vmul.f32 %v727, %v727
        %v736 = vmul.f32 %v728, %v728
        %v737 = vmul.f32 %v729, %v729
        %v738 = vsel %vm688, %v730, 0.0
        %739 = vadd.xlane.f32.xlu0 %v738
        %v740 = vpop.xlane.xlu0 %739
        %v741 = vsel %vm688, %v731, 0.0
        %742 = vadd.xlane.f32.xlu0 %v741
        %v743 = vpop.xlane.xlu0 %742
        %v744 = vsel %vm688, %v732, 0.0
        %745 = vadd.xlane.f32.xlu0 %v744
        %v746 = vpop.xlane.xlu0 %745
        %v747 = vsel %vm688, %v733, 0.0
        %748 = vadd.xlane.f32.xlu0 %v747
        %v749 = vpop.xlane.xlu0 %748
        %v750 = vsel %vm688, %v734, 0.0
        %751 = vadd.xlane.f32.xlu0 %v750
        %v752 = vpop.xlane.xlu0 %751
        %v753 = vsel %vm688, %v735, 0.0
        %754 = vadd.xlane.f32.xlu0 %v753
        %v755 = vpop.xlane.xlu0 %754
        %v756 = vsel %vm688, %v736, 0.0
        %757 = vadd.xlane.f32.xlu0 %v756
        %v758 = vpop.xlane.xlu0 %757
        %v759 = vsel %vm688, %v737, 0.0
        %760 = vadd.xlane.f32.xlu0 %v759
        %v761 = vpop.xlane.xlu0 %760
        %v762 = vmul.f32 %v740, %v713
        %v763 = vmul.f32 %v743, %v713
        %v764 = vmul.f32 %v746, %v713
        %v765 = vmul.f32 %v749, %v713
        %v766 = vmul.f32 %v752, %v713
        %v767 = vmul.f32 %v755, %v713
        %v768 = vmul.f32 %v758, %v713
        %v769 = vmul.f32 %v761, %v713
        %v770 = vadd.f32 %v762, 1e-05
        %v771 = vadd.f32 %v763, 1e-05
        %v772 = vadd.f32 %v764, 1e-05
        %v773 = vadd.f32 %v765, 1e-05
        %v774 = vadd.f32 %v766, 1e-05
        %v775 = vadd.f32 %v767, 1e-05
        %v776 = vadd.f32 %v768, 1e-05
        %v777 = vadd.f32 %v769, 1e-05
        %v778 = vrsqrt.pop %v770
        %v779 = vrsqrt.pop %v771
        %v780 = vrsqrt.pop %v772
        %v781 = vrsqrt.pop %v773
        %v782 = vrsqrt.pop %v774
        %v783 = vrsqrt.pop %v775
        %v784 = vrsqrt.pop %v776
        %v785 = vrsqrt.pop %v777
        %v786 = vmul.f32 %v722, %v778
        %v787 = vmul.f32 %v723, %v779
        %v788 = vmul.f32 %v724, %v780
        %v789 = vmul.f32 %v725, %v781
        %v790 = vmul.f32 %v726, %v782
        %v791 = vmul.f32 %v727, %v783
        %v792 = vmul.f32 %v728, %v784
        %v793 = vmul.f32 %v729, %v785
        %v795 = vlaneseq
        %v796 = vshrl.u32 %v795, 7
        %v797 = vsub.s32 0, %v796
        %v798 = vrot.slane %v686, %v797
        %v800 = vmul.f32 %v786, %v798
        %v801 = vmul.f32 %v787, %v798
        %v802 = vmul.f32 %v788, %v798
        %v803 = vmul.f32 %v789, %v798
        %v804 = vmul.f32 %v790, %v798
        %v805 = vmul.f32 %v791, %v798
        %v806 = vmul.f32 %v792, %v798
        %v807 = vmul.f32 %v793, %v798
        %v809 = vlaneseq
        %v810 = vshrl.u32 %v809, 7
        %v811 = vsub.s32 0, %v810
        %v812 = vrot.slane %v687, %v811
        %v814 = vadd.f32 %v800, %v812
        %v815 = vadd.f32 %v801, %v812
        %v816 = vadd.f32 %v802, %v812
        %v817 = vadd.f32 %v803, %v812
        %v818 = vadd.f32 %v804, %v812
        %v819 = vadd.f32 %v805, %v812
        %v820 = vadd.f32 %v806, %v812
        %v821 = vadd.f32 %v807, %v812
        %v822 = vpack.c.bf16 %v815, %v814
        %v823 = vpack.c.bf16 %v817, %v816
        %v824 = vpack.c.bf16 %v819, %v818
        %v825 = vpack.c.bf16 %v821, %v820
        %v826 = vld [vmem:[%s5] sm:$0xf]
        %v827 = vld [vmem:[%s5 + $0x4] sm:$0xf]
        %v828 = vld [vmem:[%s5 + $0x8] sm:$0xf]
        %v829 = vld [vmem:[%s5 + $0xc] sm:$0xf]
        %v830 = vld [vmem:[%s5 + $0x10] sm:$0xf]
        %v831 = vld [vmem:[%s5 + $0x14] sm:$0xf]
        %v832 = vld [vmem:[%s5 + $0x18] sm:$0xf]
        %v833 = vld [vmem:[%s5 + $0x1c] sm:$0xf]
        %v842 = vunpack.c.l.b16 %v826
        %v843 = vunpack.c.l.b16 %v827
        %v844 = vunpack.c.l.b16 %v828
        %v845 = vunpack.c.l.b16 %v829
        %v846 = vunpack.c.l.b16 %v830
        %v847 = vunpack.c.l.b16 %v831
        %v848 = vunpack.c.l.b16 %v832
        %v849 = vunpack.c.l.b16 %v833
        %v850 = vpack.c.b16 %v843, %v842
        %v851 = vpack.c.b16 %v845, %v844
        %v852 = vpack.c.b16 %v847, %v846
        %v853 = vpack.c.b16 %v849, %v848
        %v859 = vsel %vm688, %v822, 0
        %v862 = vsel %vm688, %v823, 0
        %v865 = vsel %vm688, %v824, 0
        %v868 = vsel %vm688, %v825, 0
        %870 = vmatprep.subr.bf16.mxu0 0
        %871 = vmatpush1.bf16.msra.mxu0 %v850
        %872 = vmatprep.subr.bf16.mxu0 0
        %873 = vmatpush1.bf16.msra.mxu0 %v851
        %874 = vmatprep.subr.bf16.mxu0 0
        %875 = vmatpush1.bf16.msra.mxu0 %v852
        %876 = vmatprep.subr.bf16.mxu0 0
        %877 = vmatpush1.bf16.msra.mxu0 %v853
        %878 = vmatprep.subr.bf16.mxu0 0
        %879 = vmatpush1.bf16.msra.mxu0 0
        %880 = vmatprep.subr.bf16.mxu0 0
        %881 = vmatpush1.bf16.msra.mxu0 0
        %882 = vmatprep.subr.bf16.mxu0 0
        %883 = vmatpush1.bf16.msra.mxu0 0
        %884 = vmatprep.subr.bf16.mxu0 0
        %885 = vmatpush1.bf16.msra.mxu0 0
        %886 = vmatprep.subr.bf16.mxu0 0
        %887 = vmatpush1.bf16.msra.mxu0 0
        %888 = vmatprep.subr.bf16.mxu0 0
        %889 = vmatpush1.bf16.msra.mxu0 0
        %890 = vmatprep.subr.bf16.mxu0 0
        %891 = vmatpush1.bf16.msra.mxu0 0
        %892 = vmatprep.subr.bf16.mxu0 0
        %893 = vmatpush1.bf16.msra.mxu0 0
        %894 = vmatprep.subr.bf16.mxu0 0
        %895 = vmatpush1.bf16.msra.mxu0 0
        %896 = vmatprep.subr.bf16.mxu0 0
        %897 = vmatpush1.bf16.msra.mxu0 0
        %898 = vmatprep.subr.bf16.mxu0 0
        %899 = vmatpush1.bf16.msra.mxu0 0
        %900 = vmatprep.subr.bf16.mxu0 0
        %901 = vmatpush1.bf16.msra.mxu0 0
        %902 = vmatprep.mubr.bf16.mxu0 0
        %903 = vmatmul.mubr.bf16.gmra.mrb[0].mxu0 %v859
        %v904 = vpop.f32.mrb[0].mxu0
        %v905 = vadd.f32 0.0, %v904
        %v906 = vpop.f32.mrb[0].mxu0
        %v907 = vpop.f32.mrb[0].mxu0
        %v908 = vadd.f32 0.0, %v907
        %v909 = vpop.f32.mrb[0].mxu0
        %910 = vmatprep.mubr.bf16.mxu0 0
        %911 = vmatmul.mubr.bf16.gmra.mrb[0].mxu0 %v862
        %v912 = vpop.f32.mrb[0].mxu0
        %v913 = vadd.f32 0.0, %v912
        %v914 = vpop.f32.mrb[0].mxu0
        %v915 = vpop.f32.mrb[0].mxu0
        %v916 = vadd.f32 0.0, %v915
        %v917 = vpop.f32.mrb[0].mxu0
        %918 = vmatprep.mubr.bf16.mxu0 0
        %919 = vmatmul.mubr.bf16.gmra.mrb[0].mxu0 %v865
        %v920 = vpop.f32.mrb[0].mxu0
        %v921 = vadd.f32 0.0, %v920
        %v922 = vpop.f32.mrb[0].mxu0
        %v923 = vpop.f32.mrb[0].mxu0
        %v924 = vadd.f32 0.0, %v923
        %v925 = vpop.f32.mrb[0].mxu0
        %926 = vmatprep.mubr.bf16.mxu0 0
        %927 = vmatmul.mubr.bf16.gmra.mrb[0].mxu0 %v868
        %v928 = vpop.f32.mrb[0].mxu0
        %v929 = vadd.f32 0.0, %v928
        %v930 = vpop.f32.mrb[0].mxu0
        %v931 = vpop.f32.mrb[0].mxu0
        %v932 = vadd.f32 0.0, %v931
        %v933 = vpop.f32.mrb[0].mxu0
        %934 = vdwg.mxu0
        %v935 = vpack.c.bf16 %v908, %v905
        %v936 = vpack.c.bf16 %v916, %v913
        %v937 = vpack.c.bf16 %v924, %v921
        %v938 = vpack.c.bf16 %v932, %v929
        %939 = vst.msk [vmem:[#allocation2] sm:$0xff] %vm688, %v935
        %940 = vst.msk [vmem:[#allocation2 + $0x8] sm:$0xff] %vm688, %v936
        %941 = vst.msk [vmem:[#allocation2 + $0x10] sm:$0xff] %vm688, %v937
        %942 = vst.msk [vmem:[#allocation2 + $0x18] sm:$0xff] %vm688, %v938
        %s943 = scalar_lea.vmem %s5, 32
        %v944 = vld [vmem:[%s943] sm:$0xf]
        %v945 = vld [vmem:[%s943 + $0x4] sm:$0xf]
        %v946 = vld [vmem:[%s943 + $0x8] sm:$0xf]
        %v947 = vld [vmem:[%s943 + $0xc] sm:$0xf]
        %v948 = vld [vmem:[%s943 + $0x10] sm:$0xf]
        %v949 = vld [vmem:[%s943 + $0x14] sm:$0xf]
        %v950 = vld [vmem:[%s943 + $0x18] sm:$0xf]
        %v951 = vld [vmem:[%s943 + $0x1c] sm:$0xf]
        %v960 = vunpack.c.l.b16 %v944
        %v961 = vunpack.c.l.b16 %v945
        %v962 = vunpack.c.l.b16 %v946
        %v963 = vunpack.c.l.b16 %v947
        %v964 = vunpack.c.l.b16 %v948
        %v965 = vunpack.c.l.b16 %v949
        %v966 = vunpack.c.l.b16 %v950
        %v967 = vunpack.c.l.b16 %v951
        %v968 = vpack.c.b16 %v961, %v960
        %v969 = vpack.c.b16 %v963, %v962
        %v970 = vpack.c.b16 %v965, %v964
        %v971 = vpack.c.b16 %v967, %v966
        %976 = vmatprep.subr.bf16.mxu0 0
        %977 = vmatpush1.bf16.msra.mxu0 %v968
        %978 = vmatprep.subr.bf16.mxu0 0
        %979 = vmatpush1.bf16.msra.mxu0 %v969
        %980 = vmatprep.subr.bf16.mxu0 0
        %981 = vmatpush1.bf16.msra.mxu0 %v970
        %982 = vmatprep.subr.bf16.mxu0 0
        %983 = vmatpush1.bf16.msra.mxu0 %v971
        %984 = vmatprep.subr.bf16.mxu0 0
        %985 = vmatpush1.bf16.msra.mxu0 0
        %986 = vmatprep.subr.bf16.mxu0 0
        %987 = vmatpush1.bf16.msra.mxu0 0
        %988 = vmatprep.subr.bf16.mxu0 0
        %989 = vmatpush1.bf16.msra.mxu0 0
        %990 = vmatprep.subr.bf16.mxu0 0
        %991 = vmatpush1.bf16.msra.mxu0 0
        %992 = vmatprep.subr.bf16.mxu0 0
        %993 = vmatpush1.bf16.msra.mxu0 0
        %994 = vmatprep.subr.bf16.mxu0 0
        %995 = vmatpush1.bf16.msra.mxu0 0
        %996 = vmatprep.subr.bf16.mxu0 0
        %997 = vmatpush1.bf16.msra.mxu0 0
        %998 = vmatprep.subr.bf16.mxu0 0
        %999 = vmatpush1.bf16.msra.mxu0 0
        %1000 = vmatprep.subr.bf16.mxu0 0
        %1001 = vmatpush1.bf16.msra.mxu0 0
        %1002 = vmatprep.subr.bf16.mxu0 0
        %1003 = vmatpush1.bf16.msra.mxu0 0
        %1004 = vmatprep.subr.bf16.mxu0 0
        %1005 = vmatpush1.bf16.msra.mxu0 0
        %1006 = vmatprep.subr.bf16.mxu0 0
        %1007 = vmatpush1.bf16.msra.mxu0 0
        %1008 = vmatprep.mubr.bf16.mxu0 0
        %1009 = vmatmul.mubr.bf16.gmra.mrb[0].mxu0 %v859
        %v1010 = vpop.f32.mrb[0].mxu0
        %v1011 = vadd.f32 0.0, %v1010
        %v1012 = vpop.f32.mrb[0].mxu0
        %v1013 = vpop.f32.mrb[0].mxu0
        %v1014 = vadd.f32 0.0, %v1013
        %v1015 = vpop.f32.mrb[0].mxu0
        %1016 = vmatprep.mubr.bf16.mxu0 0
        %1017 = vmatmul.mubr.bf16.gmra.mrb[0].mxu0 %v862
        %v1018 = vpop.f32.mrb[0].mxu0
        %v1019 = vadd.f32 0.0, %v1018
        %v1020 = vpop.f32.mrb[0].mxu0
        %v1021 = vpop.f32.mrb[0].mxu0
        %v1022 = vadd.f32 0.0, %v1021
        %v1023 = vpop.f32.mrb[0].mxu0
        %1024 = vmatprep.mubr.bf16.mxu0 0
        %1025 = vmatmul.mubr.bf16.gmra.mrb[0].mxu0 %v865
        %v1026 = vpop.f32.mrb[0].mxu0
        %v1027 = vadd.f32 0.0, %v1026
        %v1028 = vpop.f32.mrb[0].mxu0
        %v1029 = vpop.f32.mrb[0].mxu0
        %v1030 = vadd.f32 0.0, %v1029
        %v1031 = vpop.f32.mrb[0].mxu0
        %1032 = vmatprep.mubr.bf16.mxu0 0
        %1033 = vmatmul.mubr.bf16.gmra.mrb[0].mxu0 %v868
        %v1034 = vpop.f32.mrb[0].mxu0
        %v1035 = vadd.f32 0.0, %v1034
        %v1036 = vpop.f32.mrb[0].mxu0
        %v1037 = vpop.f32.mrb[0].mxu0
        %v1038 = vadd.f32 0.0, %v1037
        %v1039 = vpop.f32.mrb[0].mxu0
        %1040 = vdwg.mxu0
        %v1041 = vpack.c.bf16 %v1014, %v1011
        %v1042 = vpack.c.bf16 %v1022, %v1019
        %v1043 = vpack.c.bf16 %v1030, %v1027
        %v1044 = vpack.c.bf16 %v1038, %v1035
        %1045 = vst.msk [vmem:[#allocation3] sm:$0xff] %vm688, %v1041
        %1046 = vst.msk [vmem:[#allocation3 + $0x8] sm:$0xff] %vm688, %v1042
        %1047 = vst.msk [vmem:[#allocation3 + $0x10] sm:$0xff] %vm688, %v1043
        %1048 = vst.msk [vmem:[#allocation3 + $0x18] sm:$0xff] %vm688, %v1044
        %v1049 = vld [vmem:[%s662] sm:$0xff]
        %v1050 = vld [vmem:[%s662 + $0x8] sm:$0xff]
        %v1051 = vld [vmem:[%s662 + $0x10] sm:$0xff]
        %v1052 = vld [vmem:[%s662 + $0x18] sm:$0xff]
        %v1053 = vld [vmem:[%s11] sm:$0xf]
        %v1054 = vld [vmem:[%s11 + $0x4] sm:$0xf]
        %v1055 = vld [vmem:[%s11 + $0x8] sm:$0xf]
        %v1056 = vld [vmem:[%s11 + $0xc] sm:$0xf]
        %v1057 = vld [vmem:[%s11 + $0x10] sm:$0xf]
        %v1058 = vld [vmem:[%s11 + $0x14] sm:$0xf]
        %v1059 = vld [vmem:[%s11 + $0x18] sm:$0xf]
        %v1060 = vld [vmem:[%s11 + $0x1c] sm:$0xf]
        %v1061 = vld [vmem:[%s11 + $0x20] sm:$0xf]
        %v1062 = vld [vmem:[%s11 + $0x24] sm:$0xf]
        %v1063 = vld [vmem:[%s11 + $0x28] sm:$0xf]
        %v1064 = vld [vmem:[%s11 + $0x2c] sm:$0xf]
        %v1065 = vld [vmem:[%s11 + $0x30] sm:$0xf]
        %v1066 = vld [vmem:[%s11 + $0x34] sm:$0xf]
        %v1067 = vld [vmem:[%s11 + $0x38] sm:$0xf]
        %v1068 = vld [vmem:[%s11 + $0x3c] sm:$0xf]
        %v1069 = vld [vmem:[%s11 + $0x40] sm:$0xf]
        %v1070 = vld [vmem:[%s11 + $0x44] sm:$0xf]
        %v1071 = vld [vmem:[%s11 + $0x48] sm:$0xf]
        %v1072 = vld [vmem:[%s11 + $0x4c] sm:$0xf]
        %v1073 = vld [vmem:[%s11 + $0x50] sm:$0xf]
        %v1074 = vld [vmem:[%s11 + $0x54] sm:$0xf]
        %v1075 = vld [vmem:[%s11 + $0x58] sm:$0xf]
        %v1076 = vld [vmem:[%s11 + $0x5c] sm:$0xf]
        %v1077 = vld [vmem:[%s11 + $0x60] sm:$0xf]
        %v1078 = vld [vmem:[%s11 + $0x64] sm:$0xf]
        %v1079 = vld [vmem:[%s11 + $0x68] sm:$0xf]
        %v1080 = vld [vmem:[%s11 + $0x6c] sm:$0xf]
        %v1081 = vld [vmem:[%s11 + $0x70] sm:$0xf]
        %v1082 = vld [vmem:[%s11 + $0x74] sm:$0xf]
        %v1083 = vld [vmem:[%s11 + $0x78] sm:$0xf]
        %v1084 = vld [vmem:[%s11 + $0x7c] sm:$0xf]
        %v1085 = vld [vmem:[%s11 + $0x80] sm:$0xf]
        %v1086 = vld [vmem:[%s11 + $0x84] sm:$0xf]
        %v1087 = vld [vmem:[%s11 + $0x88] sm:$0xf]
        %v1088 = vld [vmem:[%s11 + $0x8c] sm:$0xf]
        %v1089 = vld [vmem:[%s11 + $0x90] sm:$0xf]
        %v1090 = vld [vmem:[%s11 + $0x94] sm:$0xf]
        %v1091 = vld [vmem:[%s11 + $0x98] sm:$0xf]
        %v1092 = vld [vmem:[%s11 + $0x9c] sm:$0xf]
        %v1093 = vld [vmem:[%s11 + $0xa0] sm:$0xf]
        %v1094 = vld [vmem:[%s11 + $0xa4] sm:$0xf]
        %v1095 = vld [vmem:[%s11 + $0xa8] sm:$0xf]
        %v1096 = vld [vmem:[%s11 + $0xac] sm:$0xf]
        %v1097 = vld [vmem:[%s11 + $0xb0] sm:$0xf]
        %v1098 = vld [vmem:[%s11 + $0xb4] sm:$0xf]
        %v1099 = vld [vmem:[%s11 + $0xb8] sm:$0xf]
        %v1100 = vld [vmem:[%s11 + $0xbc] sm:$0xf]
        %v1101 = vld [vmem:[%s11 + $0xc0] sm:$0xf]
        %v1102 = vld [vmem:[%s11 + $0xc4] sm:$0xf]
        %v1103 = vld [vmem:[%s11 + $0xc8] sm:$0xf]
        %v1104 = vld [vmem:[%s11 + $0xcc] sm:$0xf]
        %v1105 = vld [vmem:[%s11 + $0xd0] sm:$0xf]
        %v1106 = vld [vmem:[%s11 + $0xd4] sm:$0xf]
        %v1107 = vld [vmem:[%s11 + $0xd8] sm:$0xf]
        %v1108 = vld [vmem:[%s11 + $0xdc] sm:$0xf]
        %v1109 = vld [vmem:[%s11 + $0xe0] sm:$0xf]
        %v1110 = vld [vmem:[%s11 + $0xe4] sm:$0xf]
        %v1111 = vld [vmem:[%s11 + $0xe8] sm:$0xf]
        %v1112 = vld [vmem:[%s11 + $0xec] sm:$0xf]
        %v1113 = vld [vmem:[%s11 + $0xf0] sm:$0xf]
        %v1114 = vld [vmem:[%s11 + $0xf4] sm:$0xf]
        %v1115 = vld [vmem:[%s11 + $0xf8] sm:$0xf]
        %v1116 = vld [vmem:[%s11 + $0xfc] sm:$0xf]
        %v1117 = vld [vmem:[%s11 + $0x100] sm:$0xf]
        %v1118 = vld [vmem:[%s11 + $0x104] sm:$0xf]
        %v1119 = vld [vmem:[%s11 + $0x108] sm:$0xf]
        %v1120 = vld [vmem:[%s11 + $0x10c] sm:$0xf]
        %v1121 = vld [vmem:[%s11 + $0x110] sm:$0xf]
        %v1122 = vld [vmem:[%s11 + $0x114] sm:$0xf]
        %v1123 = vld [vmem:[%s11 + $0x118] sm:$0xf]
        %v1124 = vld [vmem:[%s11 + $0x11c] sm:$0xf]
        %v1125 = vld [vmem:[%s11 + $0x120] sm:$0xf]
        %v1126 = vld [vmem:[%s11 + $0x124] sm:$0xf]
        %v1127 = vld [vmem:[%s11 + $0x128] sm:$0xf]
        %v1128 = vld [vmem:[%s11 + $0x12c] sm:$0xf]
        %v1129 = vld [vmem:[%s11 + $0x130] sm:$0xf]
        %v1130 = vld [vmem:[%s11 + $0x134] sm:$0xf]
        %v1131 = vld [vmem:[%s11 + $0x138] sm:$0xf]
        %v1132 = vld [vmem:[%s11 + $0x13c] sm:$0xf]
        %v1133 = vld [vmem:[%s11 + $0x140] sm:$0xf]
        %v1134 = vld [vmem:[%s11 + $0x144] sm:$0xf]
        %v1135 = vld [vmem:[%s11 + $0x148] sm:$0xf]
        %v1136 = vld [vmem:[%s11 + $0x14c] sm:$0xf]
        %v1137 = vld [vmem:[%s11 + $0x150] sm:$0xf]
        %v1138 = vld [vmem:[%s11 + $0x154] sm:$0xf]
        %v1139 = vld [vmem:[%s11 + $0x158] sm:$0xf]
        %v1140 = vld [vmem:[%s11 + $0x15c] sm:$0xf]
        %v1141 = vld [vmem:[%s11 + $0x160] sm:$0xf]
        %v1142 = vld [vmem:[%s11 + $0x164] sm:$0xf]
        %v1143 = vld [vmem:[%s11 + $0x168] sm:$0xf]
        %v1144 = vld [vmem:[%s11 + $0x16c] sm:$0xf]
        %v1145 = vld [vmem:[%s11 + $0x170] sm:$0xf]
        %v1146 = vld [vmem:[%s11 + $0x174] sm:$0xf]
        %v1147 = vld [vmem:[%s11 + $0x178] sm:$0xf]
        %v1148 = vld [vmem:[%s11 + $0x17c] sm:$0xf]
        %v1149 = vld [vmem:[%s11 + $0x180] sm:$0xf]
        %v1150 = vld [vmem:[%s11 + $0x184] sm:$0xf]
        %v1151 = vld [vmem:[%s11 + $0x188] sm:$0xf]
        %v1152 = vld [vmem:[%s11 + $0x18c] sm:$0xf]
        %v1153 = vld [vmem:[%s11 + $0x190] sm:$0xf]
        %v1154 = vld [vmem:[%s11 + $0x194] sm:$0xf]
        %v1155 = vld [vmem:[%s11 + $0x198] sm:$0xf]
        %v1156 = vld [vmem:[%s11 + $0x19c] sm:$0xf]
        %v1157 = vld [vmem:[%s11 + $0x1a0] sm:$0xf]
        %v1158 = vld [vmem:[%s11 + $0x1a4] sm:$0xf]
        %v1159 = vld [vmem:[%s11 + $0x1a8] sm:$0xf]
        %v1160 = vld [vmem:[%s11 + $0x1ac] sm:$0xf]
        %v1161 = vld [vmem:[%s11 + $0x1b0] sm:$0xf]
        %v1162 = vld [vmem:[%s11 + $0x1b4] sm:$0xf]
        %v1163 = vld [vmem:[%s11 + $0x1b8] sm:$0xf]
        %v1164 = vld [vmem:[%s11 + $0x1bc] sm:$0xf]
        %v1165 = vld [vmem:[%s11 + $0x1c0] sm:$0xf]
        %v1166 = vld [vmem:[%s11 + $0x1c4] sm:$0xf]
        %v1167 = vld [vmem:[%s11 + $0x1c8] sm:$0xf]
        %v1168 = vld [vmem:[%s11 + $0x1cc] sm:$0xf]
        %v1169 = vld [vmem:[%s11 + $0x1d0] sm:$0xf]
        %v1170 = vld [vmem:[%s11 + $0x1d4] sm:$0xf]
        %v1171 = vld [vmem:[%s11 + $0x1d8] sm:$0xf]
        %v1172 = vld [vmem:[%s11 + $0x1dc] sm:$0xf]
        %v1173 = vld [vmem:[%s11 + $0x1e0] sm:$0xf]
        %v1174 = vld [vmem:[%s11 + $0x1e4] sm:$0xf]
        %v1175 = vld [vmem:[%s11 + $0x1e8] sm:$0xf]
        %v1176 = vld [vmem:[%s11 + $0x1ec] sm:$0xf]
        %v1177 = vld [vmem:[%s11 + $0x1f0] sm:$0xf]
        %v1178 = vld [vmem:[%s11 + $0x1f4] sm:$0xf]
        %v1179 = vld [vmem:[%s11 + $0x1f8] sm:$0xf]
        %v1180 = vld [vmem:[%s11 + $0x1fc] sm:$0xf]
        %v1185 = vunpack.c.l.b16 %v1049
        %v1186 = vunpack.c.h.b16 %v1049
        %v1187 = vunpack.c.l.b16 %v1050
        %v1188 = vunpack.c.h.b16 %v1050
        %v1189 = vunpack.c.l.b16 %v1051
        %v1190 = vunpack.c.h.b16 %v1051
        %v1191 = vunpack.c.l.b16 %v1052
        %v1192 = vunpack.c.h.b16 %v1052
        %v1193 = vpack.c.b16 %v1185, %v1185
        %v1194 = vpack.c.b16 %v1186, %v1186
        %v1195 = vpack.c.b16 %v1187, %v1187
        %v1196 = vpack.c.b16 %v1188, %v1188
        %v1197 = vpack.c.b16 %v1189, %v1189
        %v1198 = vpack.c.b16 %v1190, %v1190
        %v1199 = vpack.c.b16 %v1191, %v1191
        %v1200 = vpack.c.b16 %v1192, %v1192
        %v1337 = vunpack.c.l.b16 %v1053
        %v1338 = vunpack.c.l.b16 %v1054
        %v1339 = vunpack.c.l.b16 %v1055
        %v1340 = vunpack.c.l.b16 %v1056
        %v1341 = vunpack.c.l.b16 %v1057
        %v1342 = vunpack.c.l.b16 %v1058
        %v1343 = vunpack.c.l.b16 %v1059
        %v1344 = vunpack.c.l.b16 %v1060
        %v1345 = vunpack.c.l.b16 %v1061
        %v1346 = vunpack.c.l.b16 %v1062
        %v1347 = vunpack.c.l.b16 %v1063
        %v1348 = vunpack.c.l.b16 %v1064
        %v1349 = vunpack.c.l.b16 %v1065
        %v1350 = vunpack.c.l.b16 %v1066
        %v1351 = vunpack.c.l.b16 %v1067
        %v1352 = vunpack.c.l.b16 %v1068
        %v1353 = vunpack.c.l.b16 %v1069
        %v1354 = vunpack.c.l.b16 %v1070
        %v1355 = vunpack.c.l.b16 %v1071
        %v1356 = vunpack.c.l.b16 %v1072
        %v1357 = vunpack.c.l.b16 %v1073
        %v1358 = vunpack.c.l.b16 %v1074
        %v1359 = vunpack.c.l.b16 %v1075
        %v1360 = vunpack.c.l.b16 %v1076
        %v1361 = vunpack.c.l.b16 %v1077
        %v1362 = vunpack.c.l.b16 %v1078
        %v1363 = vunpack.c.l.b16 %v1079
        %v1364 = vunpack.c.l.b16 %v1080
        %v1365 = vunpack.c.l.b16 %v1081
        %v1366 = vunpack.c.l.b16 %v1082
        %v1367 = vunpack.c.l.b16 %v1083
        %v1368 = vunpack.c.l.b16 %v1084
        %v1369 = vunpack.c.l.b16 %v1085
        %v1370 = vunpack.c.l.b16 %v1086
        %v1371 = vunpack.c.l.b16 %v1087
        %v1372 = vunpack.c.l.b16 %v1088
        %v1373 = vunpack.c.l.b16 %v1089
        %v1374 = vunpack.c.l.b16 %v1090
        %v1375 = vunpack.c.l.b16 %v1091
        %v1376 = vunpack.c.l.b16 %v1092
        %v1377 = vunpack.c.l.b16 %v1093
        %v1378 = vunpack.c.l.b16 %v1094
        %v1379 = vunpack.c.l.b16 %v1095
        %v1380 = vunpack.c.l.b16 %v1096
        %v1381 = vunpack.c.l.b16 %v1097
        %v1382 = vunpack.c.l.b16 %v1098
        %v1383 = vunpack.c.l.b16 %v1099
        %v1384 = vunpack.c.l.b16 %v1100
        %v1385 = vunpack.c.l.b16 %v1101
        %v1386 = vunpack.c.l.b16 %v1102
        %v1387 = vunpack.c.l.b16 %v1103
        %v1388 = vunpack.c.l.b16 %v1104
        %v1389 = vunpack.c.l.b16 %v1105
        %v1390 = vunpack.c.l.b16 %v1106
        %v1391 = vunpack.c.l.b16 %v1107
        %v1392 = vunpack.c.l.b16 %v1108
        %v1393 = vunpack.c.l.b16 %v1109
        %v1394 = vunpack.c.l.b16 %v1110
        %v1395 = vunpack.c.l.b16 %v1111
        %v1396 = vunpack.c.l.b16 %v1112
        %v1397 = vunpack.c.l.b16 %v1113
        %v1398 = vunpack.c.l.b16 %v1114
        %v1399 = vunpack.c.l.b16 %v1115
        %v1400 = vunpack.c.l.b16 %v1116
        %v1401 = vunpack.c.l.b16 %v1117
        %v1402 = vunpack.c.l.b16 %v1118
        %v1403 = vunpack.c.l.b16 %v1119
        %v1404 = vunpack.c.l.b16 %v1120
        %v1405 = vunpack.c.l.b16 %v1121
        %v1406 = vunpack.c.l.b16 %v1122
        %v1407 = vunpack.c.l.b16 %v1123
        %v1408 = vunpack.c.l.b16 %v1124
        %v1409 = vunpack.c.l.b16 %v1125
        %v1410 = vunpack.c.l.b16 %v1126
        %v1411 = vunpack.c.l.b16 %v1127
        %v1412 = vunpack.c.l.b16 %v1128
        %v1413 = vunpack.c.l.b16 %v1129
        %v1414 = vunpack.c.l.b16 %v1130
        %v1415 = vunpack.c.l.b16 %v1131
        %v1416 = vunpack.c.l.b16 %v1132
        %v1417 = vunpack.c.l.b16 %v1133
        %v1418 = vunpack.c.l.b16 %v1134
        %v1419 = vunpack.c.l.b16 %v1135
        %v1420 = vunpack.c.l.b16 %v1136
        %v1421 = vunpack.c.l.b16 %v1137
        %v1422 = vunpack.c.l.b16 %v1138
        %v1423 = vunpack.c.l.b16 %v1139
        %v1424 = vunpack.c.l.b16 %v1140
        %v1425 = vunpack.c.l.b16 %v1141
        %v1426 = vunpack.c.l.b16 %v1142
        %v1427 = vunpack.c.l.b16 %v1143
        %v1428 = vunpack.c.l.b16 %v1144
        %v1429 = vunpack.c.l.b16 %v1145
        %v1430 = vunpack.c.l.b16 %v1146
        %v1431 = vunpack.c.l.b16 %v1147
        %v1432 = vunpack.c.l.b16 %v1148
        %v1433 = vunpack.c.l.b16 %v1149
        %v1434 = vunpack.c.l.b16 %v1150
        %v1435 = vunpack.c.l.b16 %v1151
        %v1436 = vunpack.c.l.b16 %v1152
        %v1437 = vunpack.c.l.b16 %v1153
        %v1438 = vunpack.c.l.b16 %v1154
        %v1439 = vunpack.c.l.b16 %v1155
        %v1440 = vunpack.c.l.b16 %v1156
        %v1441 = vunpack.c.l.b16 %v1157
        %v1442 = vunpack.c.l.b16 %v1158
        %v1443 = vunpack.c.l.b16 %v1159
        %v1444 = vunpack.c.l.b16 %v1160
        %v1445 = vunpack.c.l.b16 %v1161
        %v1446 = vunpack.c.l.b16 %v1162
        %v1447 = vunpack.c.l.b16 %v1163
        %v1448 = vunpack.c.l.b16 %v1164
        %v1449 = vunpack.c.l.b16 %v1165
        %v1450 = vunpack.c.l.b16 %v1166
        %v1451 = vunpack.c.l.b16 %v1167
        %v1452 = vunpack.c.l.b16 %v1168
        %v1453 = vunpack.c.l.b16 %v1169
        %v1454 = vunpack.c.l.b16 %v1170
        %v1455 = vunpack.c.l.b16 %v1171
        %v1456 = vunpack.c.l.b16 %v1172
        %v1457 = vunpack.c.l.b16 %v1173
        %v1458 = vunpack.c.l.b16 %v1174
        %v1459 = vunpack.c.l.b16 %v1175
        %v1460 = vunpack.c.l.b16 %v1176
        %v1461 = vunpack.c.l.b16 %v1177
        %v1462 = vunpack.c.l.b16 %v1178
        %v1463 = vunpack.c.l.b16 %v1179
        %v1464 = vunpack.c.l.b16 %v1180
        %v1465 = vpack.c.b16 %v1338, %v1337
        %v1466 = vpack.c.b16 %v1340, %v1339
        %v1467 = vpack.c.b16 %v1342, %v1341
        %v1468 = vpack.c.b16 %v1344, %v1343
        %v1469 = vpack.c.b16 %v1346, %v1345
        %v1470 = vpack.c.b16 %v1348, %v1347
        %v1471 = vpack.c.b16 %v1350, %v1349
        %v1472 = vpack.c.b16 %v1352, %v1351
        %v1473 = vpack.c.b16 %v1354, %v1353
        %v1474 = vpack.c.b16 %v1356, %v1355
        %v1475 = vpack.c.b16 %v1358, %v1357
        %v1476 = vpack.c.b16 %v1360, %v1359
        %v1477 = vpack.c.b16 %v1362, %v1361
        %v1478 = vpack.c.b16 %v1364, %v1363
        %v1479 = vpack.c.b16 %v1366, %v1365
        %v1480 = vpack.c.b16 %v1368, %v1367
        %v1481 = vpack.c.b16 %v1370, %v1369
        %v1482 = vpack.c.b16 %v1372, %v1371
        %v1483 = vpack.c.b16 %v1374, %v1373
        %v1484 = vpack.c.b16 %v1376, %v1375
        %v1485 = vpack.c.b16 %v1378, %v1377
        %v1486 = vpack.c.b16 %v1380, %v1379
        %v1487 = vpack.c.b16 %v1382, %v1381
        %v1488 = vpack.c.b16 %v1384, %v1383
        %v1489 = vpack.c.b16 %v1386, %v1385
        %v1490 = vpack.c.b16 %v1388, %v1387
        %v1491 = vpack.c.b16 %v1390, %v1389
        %v1492 = vpack.c.b16 %v1392, %v1391
        %v1493 = vpack.c.b16 %v1394, %v1393
        %v1494 = vpack.c.b16 %v1396, %v1395
        %v1495 = vpack.c.b16 %v1398, %v1397
        %v1496 = vpack.c.b16 %v1400, %v1399
        %v1497 = vpack.c.b16 %v1402, %v1401
        %v1498 = vpack.c.b16 %v1404, %v1403
        %v1499 = vpack.c.b16 %v1406, %v1405
        %v1500 = vpack.c.b16 %v1408, %v1407
        %v1501 = vpack.c.b16 %v1410, %v1409
        %v1502 = vpack.c.b16 %v1412, %v1411
        %v1503 = vpack.c.b16 %v1414, %v1413
        %v1504 = vpack.c.b16 %v1416, %v1415
        %v1505 = vpack.c.b16 %v1418, %v1417
        %v1506 = vpack.c.b16 %v1420, %v1419
        %v1507 = vpack.c.b16 %v1422, %v1421
        %v1508 = vpack.c.b16 %v1424, %v1423
        %v1509 = vpack.c.b16 %v1426, %v1425
        %v1510 = vpack.c.b16 %v1428, %v1427
        %v1511 = vpack.c.b16 %v1430, %v1429
        %v1512 = vpack.c.b16 %v1432, %v1431
        %v1513 = vpack.c.b16 %v1434, %v1433
        %v1514 = vpack.c.b16 %v1436, %v1435
        %v1515 = vpack.c.b16 %v1438, %v1437
        %v1516 = vpack.c.b16 %v1440, %v1439
        %v1517 = vpack.c.b16 %v1442, %v1441
        %v1518 = vpack.c.b16 %v1444, %v1443
        %v1519 = vpack.c.b16 %v1446, %v1445
        %v1520 = vpack.c.b16 %v1448, %v1447
        %v1521 = vpack.c.b16 %v1450, %v1449
        %v1522 = vpack.c.b16 %v1452, %v1451
        %v1523 = vpack.c.b16 %v1454, %v1453
        %v1524 = vpack.c.b16 %v1456, %v1455
        %v1525 = vpack.c.b16 %v1458, %v1457
        %v1526 = vpack.c.b16 %v1460, %v1459
        %v1527 = vpack.c.b16 %v1462, %v1461
        %v1528 = vpack.c.b16 %v1464, %v1463
        %1593 = vmatprep.subr.bf16.mxu0 0
        %1594 = vmatpush1.bf16.msra.mxu0 %v1465
        %1595 = vmatprep.subr.bf16.mxu0 0
        %1596 = vmatpush1.bf16.msra.mxu0 %v1466
        %1597 = vmatprep.subr.bf16.mxu0 0
        %1598 = vmatpush1.bf16.msra.mxu0 %v1467
        %1599 = vmatprep.subr.bf16.mxu0 0
        %1600 = vmatpush1.bf16.msra.mxu0 %v1468
        %1601 = vmatprep.subr.bf16.mxu0 0
        %1602 = vmatpush1.bf16.msra.mxu0 %v1469
        %1603 = vmatprep.subr.bf16.mxu0 0
        %1604 = vmatpush1.bf16.msra.mxu0 %v1470
        %1605 = vmatprep.subr.bf16.mxu0 0
        %1606 = vmatpush1.bf16.msra.mxu0 %v1471
        %1607 = vmatprep.subr.bf16.mxu0 0
        %1608 = vmatpush1.bf16.msra.mxu0 %v1472
        %1609 = vmatprep.subr.bf16.mxu0 0
        %1610 = vmatpush1.bf16.msra.mxu0 %v1473
        %1611 = vmatprep.subr.bf16.mxu0 0
        %1612 = vmatpush1.bf16.msra.mxu0 %v1474
        %1613 = vmatprep.subr.bf16.mxu0 0
        %1614 = vmatpush1.bf16.msra.mxu0 %v1475
        %1615 = vmatprep.subr.bf16.mxu0 0
        %1616 = vmatpush1.bf16.msra.mxu0 %v1476
        %1617 = vmatprep.subr.bf16.mxu0 0
        %1618 = vmatpush1.bf16.msra.mxu0 %v1477
        %1619 = vmatprep.subr.bf16.mxu0 0
        %1620 = vmatpush1.bf16.msra.mxu0 %v1478
        %1621 = vmatprep.subr.bf16.mxu0 0
        %1622 = vmatpush1.bf16.msra.mxu0 %v1479
        %1623 = vmatprep.subr.bf16.mxu0 0
        %1624 = vmatpush1.bf16.msra.mxu0 %v1480
        %1625 = vmatprep.mubr.bf16.mxu0 %v1194
        %1626 = vmatmul.mubr.bf16.gmra.mrb[0].mxu0 %v1193
        %v1627 = vpop.f32.mrb[0].mxu0
        %v1628 = vadd.f32 0.0, %v1627
        %v1629 = vpop.f32.mrb[0].mxu0
        %v1630 = vpop.f32.mrb[0].mxu0
        %v1631 = vpop.f32.mrb[0].mxu0
        %1632 = vdwg.mxu0
        %1633 = vmatprep.subr.bf16.mxu0 0
        %1634 = vmatpush1.bf16.msra.mxu0 %v1481
        %1635 = vmatprep.subr.bf16.mxu0 0
        %1636 = vmatpush1.bf16.msra.mxu0 %v1482
        %1637 = vmatprep.subr.bf16.mxu0 0
        %1638 = vmatpush1.bf16.msra.mxu0 %v1483
        %1639 = vmatprep.subr.bf16.mxu0 0
        %1640 = vmatpush1.bf16.msra.mxu0 %v1484
        %1641 = vmatprep.subr.bf16.mxu0 0
        %1642 = vmatpush1.bf16.msra.mxu0 %v1485
        %1643 = vmatprep.subr.bf16.mxu0 0
        %1644 = vmatpush1.bf16.msra.mxu0 %v1486
        %1645 = vmatprep.subr.bf16.mxu0 0
        %1646 = vmatpush1.bf16.msra.mxu0 %v1487
        %1647 = vmatprep.subr.bf16.mxu0 0
        %1648 = vmatpush1.bf16.msra.mxu0 %v1488
        %1649 = vmatprep.subr.bf16.mxu0 0
        %1650 = vmatpush1.bf16.msra.mxu0 %v1489
        %1651 = vmatprep.subr.bf16.mxu0 0
        %1652 = vmatpush1.bf16.msra.mxu0 %v1490
        %1653 = vmatprep.subr.bf16.mxu0 0
        %1654 = vmatpush1.bf16.msra.mxu0 %v1491
        %1655 = vmatprep.subr.bf16.mxu0 0
        %1656 = vmatpush1.bf16.msra.mxu0 %v1492
        %1657 = vmatprep.subr.bf16.mxu0 0
        %1658 = vmatpush1.bf16.msra.mxu0 %v1493
        %1659 = vmatprep.subr.bf16.mxu0 0
        %1660 = vmatpush1.bf16.msra.mxu0 %v1494
        %1661 = vmatprep.subr.bf16.mxu0 0
        %1662 = vmatpush1.bf16.msra.mxu0 %v1495
        %1663 = vmatprep.subr.bf16.mxu0 0
        %1664 = vmatpush1.bf16.msra.mxu0 %v1496
        %1665 = vmatprep.mubr.bf16.mxu0 %v1196
        %1666 = vmatmul.mubr.bf16.gmra.mrb[0].mxu0 %v1195
        %v1667 = vpop.f32.mrb[0].mxu0
        %v1668 = vadd.f32 %v1628, %v1667
        %v1669 = vpop.f32.mrb[0].mxu0
        %v1670 = vpop.f32.mrb[0].mxu0
        %v1671 = vpop.f32.mrb[0].mxu0
        %1672 = vdwg.mxu0
        %1673 = vmatprep.subr.bf16.mxu0 0
        %1674 = vmatpush1.bf16.msra.mxu0 %v1497
        %1675 = vmatprep.subr.bf16.mxu0 0
        %1676 = vmatpush1.bf16.msra.mxu0 %v1498
        %1677 = vmatprep.subr.bf16.mxu0 0
        %1678 = vmatpush1.bf16.msra.mxu0 %v1499
        %1679 = vmatprep.subr.bf16.mxu0 0
        %1680 = vmatpush1.bf16.msra.mxu0 %v1500
        %1681 = vmatprep.subr.bf16.mxu0 0
        %1682 = vmatpush1.bf16.msra.mxu0 %v1501
        %1683 = vmatprep.subr.bf16.mxu0 0
        %1684 = vmatpush1.bf16.msra.mxu0 %v1502
        %1685 = vmatprep.subr.bf16.mxu0 0
        %1686 = vmatpush1.bf16.msra.mxu0 %v1503
        %1687 = vmatprep.subr.bf16.mxu0 0
        %1688 = vmatpush1.bf16.msra.mxu0 %v1504
        %1689 = vmatprep.subr.bf16.mxu0 0
        %1690 = vmatpush1.bf16.msra.mxu0 %v1505
        %1691 = vmatprep.subr.bf16.mxu0 0
        %1692 = vmatpush1.bf16.msra.mxu0 %v1506
        %1693 = vmatprep.subr.bf16.mxu0 0
        %1694 = vmatpush1.bf16.msra.mxu0 %v1507
        %1695 = vmatprep.subr.bf16.mxu0 0
        %1696 = vmatpush1.bf16.msra.mxu0 %v1508
        %1697 = vmatprep.subr.bf16.mxu0 0
        %1698 = vmatpush1.bf16.msra.mxu0 %v1509
        %1699 = vmatprep.subr.bf16.mxu0 0
        %1700 = vmatpush1.bf16.msra.mxu0 %v1510
        %1701 = vmatprep.subr.bf16.mxu0 0
        %1702 = vmatpush1.bf16.msra.mxu0 %v1511
        %1703 = vmatprep.subr.bf16.mxu0 0
        %1704 = vmatpush1.bf16.msra.mxu0 %v1512
        %1705 = vmatprep.mubr.bf16.mxu0 %v1198
        %1706 = vmatmul.mubr.bf16.gmra.mrb[0].mxu0 %v1197
        %v1707 = vpop.f32.mrb[0].mxu0
        %v1708 = vadd.f32 %v1668, %v1707
        %v1709 = vpop.f32.mrb[0].mxu0
        %v1710 = vpop.f32.mrb[0].mxu0
        %v1711 = vpop.f32.mrb[0].mxu0
        %1712 = vdwg.mxu0
        %1713 = vmatprep.subr.bf16.mxu0 0
        %1714 = vmatpush1.bf16.msra.mxu0 %v1513
        %1715 = vmatprep.subr.bf16.mxu0 0
        %1716 = vmatpush1.bf16.msra.mxu0 %v1514
        %1717 = vmatprep.subr.bf16.mxu0 0
        %1718 = vmatpush1.bf16.msra.mxu0 %v1515
        %1719 = vmatprep.subr.bf16.mxu0 0
        %1720 = vmatpush1.bf16.msra.mxu0 %v1516
        %1721 = vmatprep.subr.bf16.mxu0 0
        %1722 = vmatpush1.bf16.msra.mxu0 %v1517
        %1723 = vmatprep.subr.bf16.mxu0 0
        %1724 = vmatpush1.bf16.msra.mxu0 %v1518
        %1725 = vmatprep.subr.bf16.mxu0 0
        %1726 = vmatpush1.bf16.msra.mxu0 %v1519
        %1727 = vmatprep.subr.bf16.mxu0 0
        %1728 = vmatpush1.bf16.msra.mxu0 %v1520
        %1729 = vmatprep.subr.bf16.mxu0 0
        %1730 = vmatpush1.bf16.msra.mxu0 %v1521
        %1731 = vmatprep.subr.bf16.mxu0 0
        %1732 = vmatpush1.bf16.msra.mxu0 %v1522
        %1733 = vmatprep.subr.bf16.mxu0 0
        %1734 = vmatpush1.bf16.msra.mxu0 %v1523
        %1735 = vmatprep.subr.bf16.mxu0 0
        %1736 = vmatpush1.bf16.msra.mxu0 %v1524
        %1737 = vmatprep.subr.bf16.mxu0 0
        %1738 = vmatpush1.bf16.msra.mxu0 %v1525
        %1739 = vmatprep.subr.bf16.mxu0 0
        %1740 = vmatpush1.bf16.msra.mxu0 %v1526
        %1741 = vmatprep.subr.bf16.mxu0 0
        %1742 = vmatpush1.bf16.msra.mxu0 %v1527
        %1743 = vmatprep.subr.bf16.mxu0 0
        %1744 = vmatpush1.bf16.msra.mxu0 %v1528
        %1745 = vmatprep.mubr.bf16.mxu0 %v1200
        %1746 = vmatmul.mubr.bf16.gmra.mrb[0].mxu0 %v1199
        %v1747 = vpop.f32.mrb[0].mxu0
        %v1748 = vadd.f32 %v1708, %v1747
        %v1749 = vpop.f32.mrb[0].mxu0
        %v1750 = vpop.f32.mrb[0].mxu0
        %v1751 = vpop.f32.mrb[0].mxu0
        %1752 = vdwg.mxu0
        %v1753 = vpack.c.bf16 %v1748, %v1748
        %vm1754 = vcmask 519168
        %1755 = vst.msk [vmem:[#allocation4] sm:$0xf] %vm1754, %v1753
        %s1756 = scalar_lea.vmem %s11, 512
        %v1757 = vld [vmem:[%s1756] sm:$0xf]
        %v1758 = vld [vmem:[%s1756 + $0x4] sm:$0xf]
        %v1759 = vld [vmem:[%s1756 + $0x8] sm:$0xf]
        %v1760 = vld [vmem:[%s1756 + $0xc] sm:$0xf]
        %v1761 = vld [vmem:[%s1756 + $0x10] sm:$0xf]
        %v1762 = vld [vmem:[%s1756 + $0x14] sm:$0xf]
        %v1763 = vld [vmem:[%s1756 + $0x18] sm:$0xf]
        %v1764 = vld [vmem:[%s1756 + $0x1c] sm:$0xf]
        %v1765 = vld [vmem:[%s1756 + $0x20] sm:$0xf]
        %v1766 = vld [vmem:[%s1756 + $0x24] sm:$0xf]
        %v1767 = vld [vmem:[%s1756 + $0x28] sm:$0xf]
        %v1768 = vld [vmem:[%s1756 + $0x2c] sm:$0xf]
        %v1769 = vld [vmem:[%s1756 + $0x30] sm:$0xf]
        %v1770 = vld [vmem:[%s1756 + $0x34] sm:$0xf]
        %v1771 = vld [vmem:[%s1756 + $0x38] sm:$0xf]
        %v1772 = vld [vmem:[%s1756 + $0x3c] sm:$0xf]
        %v1773 = vld [vmem:[%s1756 + $0x40] sm:$0xf]
        %v1774 = vld [vmem:[%s1756 + $0x44] sm:$0xf]
        %v1775 = vld [vmem:[%s1756 + $0x48] sm:$0xf]
        %v1776 = vld [vmem:[%s1756 + $0x4c] sm:$0xf]
        %v1777 = vld [vmem:[%s1756 + $0x50] sm:$0xf]
        %v1778 = vld [vmem:[%s1756 + $0x54] sm:$0xf]
        %v1779 = vld [vmem:[%s1756 + $0x58] sm:$0xf]
        %v1780 = vld [vmem:[%s1756 + $0x5c] sm:$0xf]
        %v1781 = vld [vmem:[%s1756 + $0x60] sm:$0xf]
        %v1782 = vld [vmem:[%s1756 + $0x64] sm:$0xf]
        %v1783 = vld [vmem:[%s1756 + $0x68] sm:$0xf]
        %v1784 = vld [vmem:[%s1756 + $0x6c] sm:$0xf]
        %v1785 = vld [vmem:[%s1756 + $0x70] sm:$0xf]
        %v1786 = vld [vmem:[%s1756 + $0x74] sm:$0xf]
        %v1787 = vld [vmem:[%s1756 + $0x78] sm:$0xf]
        %v1788 = vld [vmem:[%s1756 + $0x7c] sm:$0xf]
        %v1789 = vld [vmem:[%s1756 + $0x80] sm:$0xf]
        %v1790 = vld [vmem:[%s1756 + $0x84] sm:$0xf]
        %v1791 = vld [vmem:[%s1756 + $0x88] sm:$0xf]
        %v1792 = vld [vmem:[%s1756 + $0x8c] sm:$0xf]
        %v1793 = vld [vmem:[%s1756 + $0x90] sm:$0xf]
        %v1794 = vld [vmem:[%s1756 + $0x94] sm:$0xf]
        %v1795 = vld [vmem:[%s1756 + $0x98] sm:$0xf]
        %v1796 = vld [vmem:[%s1756 + $0x9c] sm:$0xf]
        %v1797 = vld [vmem:[%s1756 + $0xa0] sm:$0xf]
        %v1798 = vld [vmem:[%s1756 + $0xa4] sm:$0xf]
        %v1799 = vld [vmem:[%s1756 + $0xa8] sm:$0xf]
        %v1800 = vld [vmem:[%s1756 + $0xac] sm:$0xf]
        %v1801 = vld [vmem:[%s1756 + $0xb0] sm:$0xf]
        %v1802 = vld [vmem:[%s1756 + $0xb4] sm:$0xf]
        %v1803 = vld [vmem:[%s1756 + $0xb8] sm:$0xf]
        %v1804 = vld [vmem:[%s1756 + $0xbc] sm:$0xf]
        %v1805 = vld [vmem:[%s1756 + $0xc0] sm:$0xf]
        %v1806 = vld [vmem:[%s1756 + $0xc4] sm:$0xf]
        %v1807 = vld [vmem:[%s1756 + $0xc8] sm:$0xf]
        %v1808 = vld [vmem:[%s1756 + $0xcc] sm:$0xf]
        %v1809 = vld [vmem:[%s1756 + $0xd0] sm:$0xf]
        %v1810 = vld [vmem:[%s1756 + $0xd4] sm:$0xf]
        %v1811 = vld [vmem:[%s1756 + $0xd8] sm:$0xf]
        %v1812 = vld [vmem:[%s1756 + $0xdc] sm:$0xf]
        %v1813 = vld [vmem:[%s1756 + $0xe0] sm:$0xf]
        %v1814 = vld [vmem:[%s1756 + $0xe4] sm:$0xf]
        %v1815 = vld [vmem:[%s1756 + $0xe8] sm:$0xf]
        %v1816 = vld [vmem:[%s1756 + $0xec] sm:$0xf]
        %v1817 = vld [vmem:[%s1756 + $0xf0] sm:$0xf]
        %v1818 = vld [vmem:[%s1756 + $0xf4] sm:$0xf]
        %v1819 = vld [vmem:[%s1756 + $0xf8] sm:$0xf]
        %v1820 = vld [vmem:[%s1756 + $0xfc] sm:$0xf]
        %v1821 = vld [vmem:[%s1756 + $0x100] sm:$0xf]
        %v1822 = vld [vmem:[%s1756 + $0x104] sm:$0xf]
        %v1823 = vld [vmem:[%s1756 + $0x108] sm:$0xf]
        %v1824 = vld [vmem:[%s1756 + $0x10c] sm:$0xf]
        %v1825 = vld [vmem:[%s1756 + $0x110] sm:$0xf]
        %v1826 = vld [vmem:[%s1756 + $0x114] sm:$0xf]
        %v1827 = vld [vmem:[%s1756 + $0x118] sm:$0xf]
        %v1828 = vld [vmem:[%s1756 + $0x11c] sm:$0xf]
        %v1829 = vld [vmem:[%s1756 + $0x120] sm:$0xf]
        %v1830 = vld [vmem:[%s1756 + $0x124] sm:$0xf]
        %v1831 = vld [vmem:[%s1756 + $0x128] sm:$0xf]
        %v1832 = vld [vmem:[%s1756 + $0x12c] sm:$0xf]
        %v1833 = vld [vmem:[%s1756 + $0x130] sm:$0xf]
        %v1834 = vld [vmem:[%s1756 + $0x134] sm:$0xf]
        %v1835 = vld [vmem:[%s1756 + $0x138] sm:$0xf]
        %v1836 = vld [vmem:[%s1756 + $0x13c] sm:$0xf]
        %v1837 = vld [vmem:[%s1756 + $0x140] sm:$0xf]
        %v1838 = vld [vmem:[%s1756 + $0x144] sm:$0xf]
        %v1839 = vld [vmem:[%s1756 + $0x148] sm:$0xf]
        %v1840 = vld [vmem:[%s1756 + $0x14c] sm:$0xf]
        %v1841 = vld [vmem:[%s1756 + $0x150] sm:$0xf]
        %v1842 = vld [vmem:[%s1756 + $0x154] sm:$0xf]
        %v1843 = vld [vmem:[%s1756 + $0x158] sm:$0xf]
        %v1844 = vld [vmem:[%s1756 + $0x15c] sm:$0xf]
        %v1845 = vld [vmem:[%s1756 + $0x160] sm:$0xf]
        %v1846 = vld [vmem:[%s1756 + $0x164] sm:$0xf]
        %v1847 = vld [vmem:[%s1756 + $0x168] sm:$0xf]
        %v1848 = vld [vmem:[%s1756 + $0x16c] sm:$0xf]
        %v1849 = vld [vmem:[%s1756 + $0x170] sm:$0xf]
        %v1850 = vld [vmem:[%s1756 + $0x174] sm:$0xf]
        %v1851 = vld [vmem:[%s1756 + $0x178] sm:$0xf]
        %v1852 = vld [vmem:[%s1756 + $0x17c] sm:$0xf]
        %v1853 = vld [vmem:[%s1756 + $0x180] sm:$0xf]
        %v1854 = vld [vmem:[%s1756 + $0x184] sm:$0xf]
        %v1855 = vld [vmem:[%s1756 + $0x188] sm:$0xf]
        %v1856 = vld [vmem:[%s1756 + $0x18c] sm:$0xf]
        %v1857 = vld [vmem:[%s1756 + $0x190] sm:$0xf]
        %v1858 = vld [vmem:[%s1756 + $0x194] sm:$0xf]
        %v1859 = vld [vmem:[%s1756 + $0x198] sm:$0xf]
        %v1860 = vld [vmem:[%s1756 + $0x19c] sm:$0xf]
        %v1861 = vld [vmem:[%s1756 + $0x1a0] sm:$0xf]
        %v1862 = vld [vmem:[%s1756 + $0x1a4] sm:$0xf]
        %v1863 = vld [vmem:[%s1756 + $0x1a8] sm:$0xf]
        %v1864 = vld [vmem:[%s1756 + $0x1ac] sm:$0xf]
        %v1865 = vld [vmem:[%s1756 + $0x1b0] sm:$0xf]
        %v1866 = vld [vmem:[%s1756 + $0x1b4] sm:$0xf]
        %v1867 = vld [vmem:[%s1756 + $0x1b8] sm:$0xf]
        %v1868 = vld [vmem:[%s1756 + $0x1bc] sm:$0xf]
        %v1869 = vld [vmem:[%s1756 + $0x1c0] sm:$0xf]
        %v1870 = vld [vmem:[%s1756 + $0x1c4] sm:$0xf]
        %v1871 = vld [vmem:[%s1756 + $0x1c8] sm:$0xf]
        %v1872 = vld [vmem:[%s1756 + $0x1cc] sm:$0xf]
        %v1873 = vld [vmem:[%s1756 + $0x1d0] sm:$0xf]
        %v1874 = vld [vmem:[%s1756 + $0x1d4] sm:$0xf]
        %v1875 = vld [vmem:[%s1756 + $0x1d8] sm:$0xf]
        %v1876 = vld [vmem:[%s1756 + $0x1dc] sm:$0xf]
        %v1877 = vld [vmem:[%s1756 + $0x1e0] sm:$0xf]
        %v1878 = vld [vmem:[%s1756 + $0x1e4] sm:$0xf]
        %v1879 = vld [vmem:[%s1756 + $0x1e8] sm:$0xf]
        %v1880 = vld [vmem:[%s1756 + $0x1ec] sm:$0xf]
        %v1881 = vld [vmem:[%s1756 + $0x1f0] sm:$0xf]
        %v1882 = vld [vmem:[%s1756 + $0x1f4] sm:$0xf]
        %v1883 = vld [vmem:[%s1756 + $0x1f8] sm:$0xf]
        %v1884 = vld [vmem:[%s1756 + $0x1fc] sm:$0xf]
        %v2013 = vunpack.c.l.b16 %v1757
        %v2014 = vunpack.c.l.b16 %v1758
        %v2015 = vunpack.c.l.b16 %v1759
        %v2016 = vunpack.c.l.b16 %v1760
        %v2017 = vunpack.c.l.b16 %v1761
        %v2018 = vunpack.c.l.b16 %v1762
        %v2019 = vunpack.c.l.b16 %v1763
        %v2020 = vunpack.c.l.b16 %v1764
        %v2021 = vunpack.c.l.b16 %v1765
        %v2022 = vunpack.c.l.b16 %v1766
        %v2023 = vunpack.c.l.b16 %v1767
        %v2024 = vunpack.c.l.b16 %v1768
        %v2025 = vunpack.c.l.b16 %v1769
        %v2026 = vunpack.c.l.b16 %v1770
        %v2027 = vunpack.c.l.b16 %v1771
        %v2028 = vunpack.c.l.b16 %v1772
        %v2029 = vunpack.c.l.b16 %v1773
        %v2030 = vunpack.c.l.b16 %v1774
        %v2031 = vunpack.c.l.b16 %v1775
        %v2032 = vunpack.c.l.b16 %v1776
        %v2033 = vunpack.c.l.b16 %v1777
        %v2034 = vunpack.c.l.b16 %v1778
        %v2035 = vunpack.c.l.b16 %v1779
        %v2036 = vunpack.c.l.b16 %v1780
        %v2037 = vunpack.c.l.b16 %v1781
        %v2038 = vunpack.c.l.b16 %v1782
        %v2039 = vunpack.c.l.b16 %v1783
        %v2040 = vunpack.c.l.b16 %v1784
        %v2041 = vunpack.c.l.b16 %v1785
        %v2042 = vunpack.c.l.b16 %v1786
        %v2043 = vunpack.c.l.b16 %v1787
        %v2044 = vunpack.c.l.b16 %v1788
        %v2045 = vunpack.c.l.b16 %v1789
        %v2046 = vunpack.c.l.b16 %v1790
        %v2047 = vunpack.c.l.b16 %v1791
        %v2048 = vunpack.c.l.b16 %v1792
        %v2049 = vunpack.c.l.b16 %v1793
        %v2050 = vunpack.c.l.b16 %v1794
        %v2051 = vunpack.c.l.b16 %v1795
        %v2052 = vunpack.c.l.b16 %v1796
        %v2053 = vunpack.c.l.b16 %v1797
        %v2054 = vunpack.c.l.b16 %v1798
        %v2055 = vunpack.c.l.b16 %v1799
        %v2056 = vunpack.c.l.b16 %v1800
        %v2057 = vunpack.c.l.b16 %v1801
        %v2058 = vunpack.c.l.b16 %v1802
        %v2059 = vunpack.c.l.b16 %v1803
        %v2060 = vunpack.c.l.b16 %v1804
        %v2061 = vunpack.c.l.b16 %v1805
        %v2062 = vunpack.c.l.b16 %v1806
        %v2063 = vunpack.c.l.b16 %v1807
        %v2064 = vunpack.c.l.b16 %v1808
        %v2065 = vunpack.c.l.b16 %v1809
        %v2066 = vunpack.c.l.b16 %v1810
        %v2067 = vunpack.c.l.b16 %v1811
        %v2068 = vunpack.c.l.b16 %v1812
        %v2069 = vunpack.c.l.b16 %v1813
        %v2070 = vunpack.c.l.b16 %v1814
        %v2071 = vunpack.c.l.b16 %v1815
        %v2072 = vunpack.c.l.b16 %v1816
        %v2073 = vunpack.c.l.b16 %v1817
        %v2074 = vunpack.c.l.b16 %v1818
        %v2075 = vunpack.c.l.b16 %v1819
        %v2076 = vunpack.c.l.b16 %v1820
        %v2077 = vunpack.c.l.b16 %v1821
        %v2078 = vunpack.c.l.b16 %v1822
        %v2079 = vunpack.c.l.b16 %v1823
        %v2080 = vunpack.c.l.b16 %v1824
        %v2081 = vunpack.c.l.b16 %v1825
        %v2082 = vunpack.c.l.b16 %v1826
        %v2083 = vunpack.c.l.b16 %v1827
        %v2084 = vunpack.c.l.b16 %v1828
        %v2085 = vunpack.c.l.b16 %v1829
        %v2086 = vunpack.c.l.b16 %v1830
        %v2087 = vunpack.c.l.b16 %v1831
        %v2088 = vunpack.c.l.b16 %v1832
        %v2089 = vunpack.c.l.b16 %v1833
        %v2090 = vunpack.c.l.b16 %v1834
        %v2091 = vunpack.c.l.b16 %v1835
        %v2092 = vunpack.c.l.b16 %v1836
        %v2093 = vunpack.c.l.b16 %v1837
        %v2094 = vunpack.c.l.b16 %v1838
        %v2095 = vunpack.c.l.b16 %v1839
        %v2096 = vunpack.c.l.b16 %v1840
        %v2097 = vunpack.c.l.b16 %v1841
        %v2098 = vunpack.c.l.b16 %v1842
        %v2099 = vunpack.c.l.b16 %v1843
        %v2100 = vunpack.c.l.b16 %v1844
        %v2101 = vunpack.c.l.b16 %v1845
        %v2102 = vunpack.c.l.b16 %v1846
        %v2103 = vunpack.c.l.b16 %v1847
        %v2104 = vunpack.c.l.b16 %v1848
        %v2105 = vunpack.c.l.b16 %v1849
        %v2106 = vunpack.c.l.b16 %v1850
        %v2107 = vunpack.c.l.b16 %v1851
        %v2108 = vunpack.c.l.b16 %v1852
        %v2109 = vunpack.c.l.b16 %v1853
        %v2110 = vunpack.c.l.b16 %v1854
        %v2111 = vunpack.c.l.b16 %v1855
        %v2112 = vunpack.c.l.b16 %v1856
        %v2113 = vunpack.c.l.b16 %v1857
        %v2114 = vunpack.c.l.b16 %v1858
        %v2115 = vunpack.c.l.b16 %v1859
        %v2116 = vunpack.c.l.b16 %v1860
        %v2117 = vunpack.c.l.b16 %v1861
        %v2118 = vunpack.c.l.b16 %v1862
        %v2119 = vunpack.c.l.b16 %v1863
        %v2120 = vunpack.c.l.b16 %v1864
        %v2121 = vunpack.c.l.b16 %v1865
        %v2122 = vunpack.c.l.b16 %v1866
        %v2123 = vunpack.c.l.b16 %v1867
        %v2124 = vunpack.c.l.b16 %v1868
        %v2125 = vunpack.c.l.b16 %v1869
        %v2126 = vunpack.c.l.b16 %v1870
        %v2127 = vunpack.c.l.b16 %v1871
        %v2128 = vunpack.c.l.b16 %v1872
        %v2129 = vunpack.c.l.b16 %v1873
        %v2130 = vunpack.c.l.b16 %v1874
        %v2131 = vunpack.c.l.b16 %v1875
        %v2132 = vunpack.c.l.b16 %v1876
        %v2133 = vunpack.c.l.b16 %v1877
        %v2134 = vunpack.c.l.b16 %v1878
        %v2135 = vunpack.c.l.b16 %v1879
        %v2136 = vunpack.c.l.b16 %v1880
        %v2137 = vunpack.c.l.b16 %v1881
        %v2138 = vunpack.c.l.b16 %v1882
        %v2139 = vunpack.c.l.b16 %v1883
        %v2140 = vunpack.c.l.b16 %v1884
        %v2141 = vpack.c.b16 %v2014, %v2013
        %v2142 = vpack.c.b16 %v2016, %v2015
        %v2143 = vpack.c.b16 %v2018, %v2017
        %v2144 = vpack.c.b16 %v2020, %v2019
        %v2145 = vpack.c.b16 %v2022, %v2021
        %v2146 = vpack.c.b16 %v2024, %v2023
        %v2147 = vpack.c.b16 %v2026, %v2025
        %v2148 = vpack.c.b16 %v2028, %v2027
        %v2149 = vpack.c.b16 %v2030, %v2029
        %v2150 = vpack.c.b16 %v2032, %v2031
        %v2151 = vpack.c.b16 %v2034, %v2033
        %v2152 = vpack.c.b16 %v2036, %v2035
        %v2153 = vpack.c.b16 %v2038, %v2037
        %v2154 = vpack.c.b16 %v2040, %v2039
        %v2155 = vpack.c.b16 %v2042, %v2041
        %v2156 = vpack.c.b16 %v2044, %v2043
        %v2157 = vpack.c.b16 %v2046, %v2045
        %v2158 = vpack.c.b16 %v2048, %v2047
        %v2159 = vpack.c.b16 %v2050, %v2049
        %v2160 = vpack.c.b16 %v2052, %v2051
        %v2161 = vpack.c.b16 %v2054, %v2053
        %v2162 = vpack.c.b16 %v2056, %v2055
        %v2163 = vpack.c.b16 %v2058, %v2057
        %v2164 = vpack.c.b16 %v2060, %v2059
        %v2165 = vpack.c.b16 %v2062, %v2061
        %v2166 = vpack.c.b16 %v2064, %v2063
        %v2167 = vpack.c.b16 %v2066, %v2065
        %v2168 = vpack.c.b16 %v2068, %v2067
        %v2169 = vpack.c.b16 %v2070, %v2069
        %v2170 = vpack.c.b16 %v2072, %v2071
        %v2171 = vpack.c.b16 %v2074, %v2073
        %v2172 = vpack.c.b16 %v2076, %v2075
        %v2173 = vpack.c.b16 %v2078, %v2077
        %v2174 = vpack.c.b16 %v2080, %v2079
        %v2175 = vpack.c.b16 %v2082, %v2081
        %v2176 = vpack.c.b16 %v2084, %v2083
        %v2177 = vpack.c.b16 %v2086, %v2085
        %v2178 = vpack.c.b16 %v2088, %v2087
        %v2179 = vpack.c.b16 %v2090, %v2089
        %v2180 = vpack.c.b16 %v2092, %v2091
        %v2181 = vpack.c.b16 %v2094, %v2093
        %v2182 = vpack.c.b16 %v2096, %v2095
        %v2183 = vpack.c.b16 %v2098, %v2097
        %v2184 = vpack.c.b16 %v2100, %v2099
        %v2185 = vpack.c.b16 %v2102, %v2101
        %v2186 = vpack.c.b16 %v2104, %v2103
        %v2187 = vpack.c.b16 %v2106, %v2105
        %v2188 = vpack.c.b16 %v2108, %v2107
        %v2189 = vpack.c.b16 %v2110, %v2109
        %v2190 = vpack.c.b16 %v2112, %v2111
        %v2191 = vpack.c.b16 %v2114, %v2113
        %v2192 = vpack.c.b16 %v2116, %v2115
        %v2193 = vpack.c.b16 %v2118, %v2117
        %v2194 = vpack.c.b16 %v2120, %v2119
        %v2195 = vpack.c.b16 %v2122, %v2121
        %v2196 = vpack.c.b16 %v2124, %v2123
        %v2197 = vpack.c.b16 %v2126, %v2125
        %v2198 = vpack.c.b16 %v2128, %v2127
        %v2199 = vpack.c.b16 %v2130, %v2129
        %v2200 = vpack.c.b16 %v2132, %v2131
        %v2201 = vpack.c.b16 %v2134, %v2133
        %v2202 = vpack.c.b16 %v2136, %v2135
        %v2203 = vpack.c.b16 %v2138, %v2137
        %v2204 = vpack.c.b16 %v2140, %v2139
        %2269 = vmatprep.subr.bf16.mxu0 0
        %2270 = vmatpush1.bf16.msra.mxu0 %v2141
        %2271 = vmatprep.subr.bf16.mxu0 0
        %2272 = vmatpush1.bf16.msra.mxu0 %v2142
        %2273 = vmatprep.subr.bf16.mxu0 0
        %2274 = vmatpush1.bf16.msra.mxu0 %v2143
        %2275 = vmatprep.subr.bf16.mxu0 0
        %2276 = vmatpush1.bf16.msra.mxu0 %v2144
        %2277 = vmatprep.subr.bf16.mxu0 0
        %2278 = vmatpush1.bf16.msra.mxu0 %v2145
        %2279 = vmatprep.subr.bf16.mxu0 0
        %2280 = vmatpush1.bf16.msra.mxu0 %v2146
        %2281 = vmatprep.subr.bf16.mxu0 0
        %2282 = vmatpush1.bf16.msra.mxu0 %v2147
        %2283 = vmatprep.subr.bf16.mxu0 0
        %2284 = vmatpush1.bf16.msra.mxu0 %v2148
        %2285 = vmatprep.subr.bf16.mxu0 0
        %2286 = vmatpush1.bf16.msra.mxu0 %v2149
        %2287 = vmatprep.subr.bf16.mxu0 0
        %2288 = vmatpush1.bf16.msra.mxu0 %v2150
        %2289 = vmatprep.subr.bf16.mxu0 0
        %2290 = vmatpush1.bf16.msra.mxu0 %v2151
        %2291 = vmatprep.subr.bf16.mxu0 0
        %2292 = vmatpush1.bf16.msra.mxu0 %v2152
        %2293 = vmatprep.subr.bf16.mxu0 0
        %2294 = vmatpush1.bf16.msra.mxu0 %v2153
        %2295 = vmatprep.subr.bf16.mxu0 0
        %2296 = vmatpush1.bf16.msra.mxu0 %v2154
        %2297 = vmatprep.subr.bf16.mxu0 0
        %2298 = vmatpush1.bf16.msra.mxu0 %v2155
        %2299 = vmatprep.subr.bf16.mxu0 0
        %2300 = vmatpush1.bf16.msra.mxu0 %v2156
        %2301 = vmatprep.mubr.bf16.mxu0 %v1194
        %2302 = vmatmul.mubr.bf16.gmra.mrb[0].mxu0 %v1193
        %v2303 = vpop.f32.mrb[0].mxu0
        %v2304 = vadd.f32 0.0, %v2303
        %v2305 = vpop.f32.mrb[0].mxu0
        %v2306 = vpop.f32.mrb[0].mxu0
        %v2307 = vpop.f32.mrb[0].mxu0
        %2308 = vdwg.mxu0
        %2309 = vmatprep.subr.bf16.mxu0 0
        %2310 = vmatpush1.bf16.msra.mxu0 %v2157
        %2311 = vmatprep.subr.bf16.mxu0 0
        %2312 = vmatpush1.bf16.msra.mxu0 %v2158
        %2313 = vmatprep.subr.bf16.mxu0 0
        %2314 = vmatpush1.bf16.msra.mxu0 %v2159
        %2315 = vmatprep.subr.bf16.mxu0 0
        %2316 = vmatpush1.bf16.msra.mxu0 %v2160
        %2317 = vmatprep.subr.bf16.mxu0 0
        %2318 = vmatpush1.bf16.msra.mxu0 %v2161
        %2319 = vmatprep.subr.bf16.mxu0 0
        %2320 = vmatpush1.bf16.msra.mxu0 %v2162
        %2321 = vmatprep.subr.bf16.mxu0 0
        %2322 = vmatpush1.bf16.msra.mxu0 %v2163
        %2323 = vmatprep.subr.bf16.mxu0 0
        %2324 = vmatpush1.bf16.msra.mxu0 %v2164
        %2325 = vmatprep.subr.bf16.mxu0 0
        %2326 = vmatpush1.bf16.msra.mxu0 %v2165
        %2327 = vmatprep.subr.bf16.mxu0 0
        %2328 = vmatpush1.bf16.msra.mxu0 %v2166
        %2329 = vmatprep.subr.bf16.mxu0 0
        %2330 = vmatpush1.bf16.msra.mxu0 %v2167
        %2331 = vmatprep.subr.bf16.mxu0 0
        %2332 = vmatpush1.bf16.msra.mxu0 %v2168
        %2333 = vmatprep.subr.bf16.mxu0 0
        %2334 = vmatpush1.bf16.msra.mxu0 %v2169
        %2335 = vmatprep.subr.bf16.mxu0 0
        %2336 = vmatpush1.bf16.msra.mxu0 %v2170
        %2337 = vmatprep.subr.bf16.mxu0 0
        %2338 = vmatpush1.bf16.msra.mxu0 %v2171
        %2339 = vmatprep.subr.bf16.mxu0 0
        %2340 = vmatpush1.bf16.msra.mxu0 %v2172
        %2341 = vmatprep.mubr.bf16.mxu0 %v1196
        %2342 = vmatmul.mubr.bf16.gmra.mrb[0].mxu0 %v1195
        %v2343 = vpop.f32.mrb[0].mxu0
        %v2344 = vadd.f32 %v2304, %v2343
        %v2345 = vpop.f32.mrb[0].mxu0
        %v2346 = vpop.f32.mrb[0].mxu0
        %v2347 = vpop.f32.mrb[0].mxu0
        %2348 = vdwg.mxu0
        %2349 = vmatprep.subr.bf16.mxu0 0
        %2350 = vmatpush1.bf16.msra.mxu0 %v2173
        %2351 = vmatprep.subr.bf16.mxu0 0
        %2352 = vmatpush1.bf16.msra.mxu0 %v2174
        %2353 = vmatprep.subr.bf16.mxu0 0
        %2354 = vmatpush1.bf16.msra.mxu0 %v2175
        %2355 = vmatprep.subr.bf16.mxu0 0
        %2356 = vmatpush1.bf16.msra.mxu0 %v2176
        %2357 = vmatprep.subr.bf16.mxu0 0
        %2358 = vmatpush1.bf16.msra.mxu0 %v2177
        %2359 = vmatprep.subr.bf16.mxu0 0
        %2360 = vmatpush1.bf16.msra.mxu0 %v2178
        %2361 = vmatprep.subr.bf16.mxu0 0
        %2362 = vmatpush1.bf16.msra.mxu0 %v2179
        %2363 = vmatprep.subr.bf16.mxu0 0
        %2364 = vmatpush1.bf16.msra.mxu0 %v2180
        %2365 = vmatprep.subr.bf16.mxu0 0
        %2366 = vmatpush1.bf16.msra.mxu0 %v2181
        %2367 = vmatprep.subr.bf16.mxu0 0
        %2368 = vmatpush1.bf16.msra.mxu0 %v2182
        %2369 = vmatprep.subr.bf16.mxu0 0
        %2370 = vmatpush1.bf16.msra.mxu0 %v2183
        %2371 = vmatprep.subr.bf16.mxu0 0
        %2372 = vmatpush1.bf16.msra.mxu0 %v2184
        %2373 = vmatprep.subr.bf16.mxu0 0
        %2374 = vmatpush1.bf16.msra.mxu0 %v2185
        %2375 = vmatprep.subr.bf16.mxu0 0
        %2376 = vmatpush1.bf16.msra.mxu0 %v2186
        %2377 = vmatprep.subr.bf16.mxu0 0
        %2378 = vmatpush1.bf16.msra.mxu0 %v2187
        %2379 = vmatprep.subr.bf16.mxu0 0
        %2380 = vmatpush1.bf16.msra.mxu0 %v2188
        %2381 = vmatprep.mubr.bf16.mxu0 %v1198
        %2382 = vmatmul.mubr.bf16.gmra.mrb[0].mxu0 %v1197
        %v2383 = vpop.f32.mrb[0].mxu0
        %v2384 = vadd.f32 %v2344, %v2383
        %v2385 = vpop.f32.mrb[0].mxu0
        %v2386 = vpop.f32.mrb[0].mxu0
        %v2387 = vpop.f32.mrb[0].mxu0
        %2388 = vdwg.mxu0
        %2389 = vmatprep.subr.bf16.mxu0 0
        %2390 = vmatpush1.bf16.msra.mxu0 %v2189
        %2391 = vmatprep.subr.bf16.mxu0 0
        %2392 = vmatpush1.bf16.msra.mxu0 %v2190
        %2393 = vmatprep.subr.bf16.mxu0 0
        %2394 = vmatpush1.bf16.msra.mxu0 %v2191
        %2395 = vmatprep.subr.bf16.mxu0 0
        %2396 = vmatpush1.bf16.msra.mxu0 %v2192
        %2397 = vmatprep.subr.bf16.mxu0 0
        %2398 = vmatpush1.bf16.msra.mxu0 %v2193
        %2399 = vmatprep.subr.bf16.mxu0 0
        %2400 = vmatpush1.bf16.msra.mxu0 %v2194
        %2401 = vmatprep.subr.bf16.mxu0 0
        %2402 = vmatpush1.bf16.msra.mxu0 %v2195
        %2403 = vmatprep.subr.bf16.mxu0 0
        %2404 = vmatpush1.bf16.msra.mxu0 %v2196
        %2405 = vmatprep.subr.bf16.mxu0 0
        %2406 = vmatpush1.bf16.msra.mxu0 %v2197
        %2407 = vmatprep.subr.bf16.mxu0 0
        %2408 = vmatpush1.bf16.msra.mxu0 %v2198
        %2409 = vmatprep.subr.bf16.mxu0 0
        %2410 = vmatpush1.bf16.msra.mxu0 %v2199
        %2411 = vmatprep.subr.bf16.mxu0 0
        %2412 = vmatpush1.bf16.msra.mxu0 %v2200
        %2413 = vmatprep.subr.bf16.mxu0 0
        %2414 = vmatpush1.bf16.msra.mxu0 %v2201
        %2415 = vmatprep.subr.bf16.mxu0 0
        %2416 = vmatpush1.bf16.msra.mxu0 %v2202
        %2417 = vmatprep.subr.bf16.mxu0 0
        %2418 = vmatpush1.bf16.msra.mxu0 %v2203
        %2419 = vmatprep.subr.bf16.mxu0 0
        %2420 = vmatpush1.bf16.msra.mxu0 %v2204
        %2421 = vmatprep.mubr.bf16.mxu0 %v1200
        %2422 = vmatmul.mubr.bf16.gmra.mrb[0].mxu0 %v1199
        %v2423 = vpop.f32.mrb[0].mxu0
        %v2424 = vadd.f32 %v2384, %v2423
        %v2425 = vpop.f32.mrb[0].mxu0
        %v2426 = vpop.f32.mrb[0].mxu0
        %v2427 = vpop.f32.mrb[0].mxu0
        %2428 = vdwg.mxu0
        %v2429 = vpack.c.bf16 %v2424, %v2424
        %2430 = vst.msk [vmem:[#allocation5] sm:$0xf] %vm1754, %v2429
      $region104: #{spatial_transformer_forward.4} parent=99 // pred_fallthru
        _
      %s2431 = smul.u32 %s36, 64
      %s2432 = scalar_lea.vmem %s657, %s2431
      %v2433 = vld [vmem:[%s2432] sm:$0xff]
      %v2434 = vld [vmem:[%s2432 + $0x8] sm:$0xff]
      %v2435 = vld [vmem:[%s2432 + $0x10] sm:$0xff]
      %v2436 = vld [vmem:[%s2432 + $0x18] sm:$0xff]
      %v2437 = vld [vmem:[%s2432 + $0x20] sm:$0xff]
      %v2438 = vld [vmem:[%s2432 + $0x28] sm:$0xff]
      %v2439 = vld [vmem:[%s2432 + $0x30] sm:$0xff]
      %v2440 = vld [vmem:[%s2432 + $0x38] sm:$0xff]
      %v2441 = vld [vmem:[%s2] sm:$0x1]
      %v2442 = vld [vmem:[%s3] sm:$0x1]
      %v2443 = vld [vmem:[%s4] sm:$0xf]
      %v2444 = vld [vmem:[%s4 + $0x4] sm:$0xf]
      %v2445 = vld [vmem:[%s4 + $0x8] sm:$0xf]
      %v2446 = vld [vmem:[%s4 + $0xc] sm:$0xf]
      %v2447 = vld [vmem:[%s4 + $0x10] sm:$0xf]
      %v2448 = vld [vmem:[%s4 + $0x14] sm:$0xf]
      %v2449 = vld [vmem:[%s4 + $0x18] sm:$0xf]
      %v2450 = vld [vmem:[%s4 + $0x1c] sm:$0xf]
      %v2451 = vld [vmem:[#allocation2] sm:$0xff]
      %v2452 = vld [vmem:[#allocation2 + $0x8] sm:$0xff]
      %v2453 = vld [vmem:[#allocation2 + $0x10] sm:$0xff]
      %v2454 = vld [vmem:[#allocation2 + $0x18] sm:$0xff]
      %v2455 = vld [vmem:[#allocation3] sm:$0xff]
      %v2456 = vld [vmem:[#allocation3 + $0x8] sm:$0xff]
      %v2457 = vld [vmem:[#allocation3 + $0x10] sm:$0xff]
      %v2458 = vld [vmem:[#allocation3 + $0x18] sm:$0xff]
      %v2459 = vld [vmem:[%s6] sm:$0xf]
      %v2460 = vld [vmem:[%s6 + $0x4] sm:$0xf]
      %v2461 = vld [vmem:[%s6 + $0x8] sm:$0xf]
      %v2462 = vld [vmem:[%s6 + $0xc] sm:$0xf]
      %v2463 = vld [vmem:[%s6 + $0x10] sm:$0xf]
      %v2464 = vld [vmem:[%s6 + $0x14] sm:$0xf]
      %v2465 = vld [vmem:[%s6 + $0x18] sm:$0xf]
      %v2466 = vld [vmem:[%s6 + $0x1c] sm:$0xf]
      %v2467 = vld [vmem:[%s7] sm:$0x1]
      %vm2468 = vcmask 523264
      %v2469 = vsel %vm2468, %v2433, 0.0
      %2470 = vadd.xlane.f32.xlu0 %v2469
      %v2471 = vpop.xlane.xlu0 %2470
      %v2472 = vsel %vm2468, %v2434, 0.0
      %2473 = vadd.xlane.f32.xlu0 %v2472
      %v2474 = vpop.xlane.xlu0 %2473
      %v2475 = vsel %vm2468, %v2435, 0.0
      %2476 = vadd.xlane.f32.xlu0 %v2475
      %v2477 = vpop.xlane.xlu0 %2476
      %v2478 = vsel %vm2468, %v2436, 0.0
      %2479 = vadd.xlane.f32.xlu0 %v2478
      %v2480 = vpop.xlane.xlu0 %2479
      %v2481 = vsel %vm2468, %v2437, 0.0
      %2482 = vadd.xlane.f32.xlu0 %v2481
      %v2483 = vpop.xlane.xlu0 %2482
      %v2484 = vsel %vm2468, %v2438, 0.0
      %2485 = vadd.xlane.f32.xlu0 %v2484
      %v2486 = vpop.xlane.xlu0 %2485
      %v2487 = vsel %vm2468, %v2439, 0.0
      %2488 = vadd.xlane.f32.xlu0 %v2487
      %v2489 = vpop.xlane.xlu0 %2488
      %v2490 = vsel %vm2468, %v2440, 0.0
      %2491 = vadd.xlane.f32.xlu0 %v2490
      %v2492 = vpop.xlane.xlu0 %2491
      %v2493 = vrcp.pop 64.0
      %v2494 = vmul.f32 %v2471, %v2493
      %v2495 = vmul.f32 %v2474, %v2493
      %v2496 = vmul.f32 %v2477, %v2493
      %v2497 = vmul.f32 %v2480, %v2493
      %v2498 = vmul.f32 %v2483, %v2493
      %v2499 = vmul.f32 %v2486, %v2493
      %v2500 = vmul.f32 %v2489, %v2493
      %v2501 = vmul.f32 %v2492, %v2493
      %v2502 = vsub.f32 %v2433, %v2494
      %v2503 = vsub.f32 %v2434, %v2495
      %v2504 = vsub.f32 %v2435, %v2496
      %v2505 = vsub.f32 %v2436, %v2497
      %v2506 = vsub.f32 %v2437, %v2498
      %v2507 = vsub.f32 %v2438, %v2499
      %v2508 = vsub.f32 %v2439, %v2500
      %v2509 = vsub.f32 %v2440, %v2501
      %v2510 = vmul.f32 %v2502, %v2502
      %v2511 = vmul.f32 %v2503, %v2503
      %v2512 = vmul.f32 %v2504, %v2504
      %v2513 = vmul.f32 %v2505, %v2505
      %v2514 = vmul.f32 %v2506, %v2506
      %v2515 = vmul.f32 %v2507, %v2507
      %v2516 = vmul.f32 %v2508, %v2508
      %v2517 = vmul.f32 %v2509, %v2509
      %v2518 = vsel %vm2468, %v2510, 0.0
      %2519 = vadd.xlane.f32.xlu0 %v2518
      %v2520 = vpop.xlane.xlu0 %2519
      %v2521 = vsel %vm2468, %v2511, 0.0
      %2522 = vadd.xlane.f32.xlu0 %v2521
      %v2523 = vpop.xlane.xlu0 %2522
      %v2524 = vsel %vm2468, %v2512, 0.0
      %2525 = vadd.xlane.f32.xlu0 %v2524
      %v2526 = vpop.xlane.xlu0 %2525
      %v2527 = vsel %vm2468, %v2513, 0.0
      %2528 = vadd.xlane.f32.xlu0 %v2527
      %v2529 = vpop.xlane.xlu0 %2528
      %v2530 = vsel %vm2468, %v2514, 0.0
      %2531 = vadd.xlane.f32.xlu0 %v2530
      %v2532 = vpop.xlane.xlu0 %2531
      %v2533 = vsel %vm2468, %v2515, 0.0
      %2534 = vadd.xlane.f32.xlu0 %v2533
      %v2535 = vpop.xlane.xlu0 %2534
      %v2536 = vsel %vm2468, %v2516, 0.0
      %2537 = vadd.xlane.f32.xlu0 %v2536
      %v2538 = vpop.xlane.xlu0 %2537
      %v2539 = vsel %vm2468, %v2517, 0.0
      %2540 = vadd.xlane.f32.xlu0 %v2539
      %v2541 = vpop.xlane.xlu0 %2540
      %v2542 = vmul.f32 %v2520, %v2493
      %v2543 = vmul.f32 %v2523, %v2493
      %v2544 = vmul.f32 %v2526, %v2493
      %v2545 = vmul.f32 %v2529, %v2493
      %v2546 = vmul.f32 %v2532, %v2493
      %v2547 = vmul.f32 %v2535, %v2493
      %v2548 = vmul.f32 %v2538, %v2493
      %v2549 = vmul.f32 %v2541, %v2493
      %v2550 = vadd.f32 %v2542, 1e-05
      %v2551 = vadd.f32 %v2543, 1e-05
      %v2552 = vadd.f32 %v2544, 1e-05
      %v2553 = vadd.f32 %v2545, 1e-05
      %v2554 = vadd.f32 %v2546, 1e-05
      %v2555 = vadd.f32 %v2547, 1e-05
      %v2556 = vadd.f32 %v2548, 1e-05
      %v2557 = vadd.f32 %v2549, 1e-05
      %v2558 = vrsqrt.pop %v2550
      %v2559 = vrsqrt.pop %v2551
      %v2560 = vrsqrt.pop %v2552
      %v2561 = vrsqrt.pop %v2553
      %v2562 = vrsqrt.pop %v2554
      %v2563 = vrsqrt.pop %v2555
      %v2564 = vrsqrt.pop %v2556
      %v2565 = vrsqrt.pop %v2557
      %v2566 = vmul.f32 %v2502, %v2558
      %v2567 = vmul.f32 %v2503, %v2559
      %v2568 = vmul.f32 %v2504, %v2560
      %v2569 = vmul.f32 %v2505, %v2561
      %v2570 = vmul.f32 %v2506, %v2562
      %v2571 = vmul.f32 %v2507, %v2563
      %v2572 = vmul.f32 %v2508, %v2564
      %v2573 = vmul.f32 %v2509, %v2565
      %v2575 = vlaneseq
      %v2576 = vshrl.u32 %v2575, 7
      %v2577 = vsub.s32 0, %v2576
      %v2578 = vrot.slane %v2441, %v2577
      %v2580 = vmul.f32 %v2566, %v2578
      %v2581 = vmul.f32 %v2567, %v2578
      %v2582 = vmul.f32 %v2568, %v2578
      %v2583 = vmul.f32 %v2569, %v2578
      %v2584 = vmul.f32 %v2570, %v2578
      %v2585 = vmul.f32 %v2571, %v2578
      %v2586 = vmul.f32 %v2572, %v2578
      %v2587 = vmul.f32 %v2573, %v2578
      %v2589 = vlaneseq
      %v2590 = vshrl.u32 %v2589, 7
      %v2591 = vsub.s32 0, %v2590
      %v2592 = vrot.slane %v2442, %v2591
      %v2594 = vadd.f32 %v2580, %v2592
      %v2595 = vadd.f32 %v2581, %v2592
      %v2596 = vadd.f32 %v2582, %v2592
      %v2597 = vadd.f32 %v2583, %v2592
      %v2598 = vadd.f32 %v2584, %v2592
      %v2599 = vadd.f32 %v2585, %v2592
      %v2600 = vadd.f32 %v2586, %v2592
      %v2601 = vadd.f32 %v2587, %v2592
      %v2602 = vpack.c.bf16 %v2595, %v2594
      %v2603 = vpack.c.bf16 %v2597, %v2596
      %v2604 = vpack.c.bf16 %v2599, %v2598
      %v2605 = vpack.c.bf16 %v2601, %v2600
      %v2614 = vunpack.c.l.b16 %v2443
      %v2615 = vunpack.c.l.b16 %v2444
      %v2616 = vunpack.c.l.b16 %v2445
      %v2617 = vunpack.c.l.b16 %v2446
      %v2618 = vunpack.c.l.b16 %v2447
      %v2619 = vunpack.c.l.b16 %v2448
      %v2620 = vunpack.c.l.b16 %v2449
      %v2621 = vunpack.c.l.b16 %v2450
      %v2622 = vpack.c.b16 %v2615, %v2614
      %v2623 = vpack.c.b16 %v2617, %v2616
      %v2624 = vpack.c.b16 %v2619, %v2618
      %v2625 = vpack.c.b16 %v2621, %v2620
      %v2631 = vsel %vm2468, %v2602, 0
      %v2634 = vsel %vm2468, %v2603, 0
      %v2637 = vsel %vm2468, %v2604, 0
      %v2640 = vsel %vm2468, %v2605, 0
      %2642 = vmatprep.subr.bf16.mxu0 0
      %2643 = vmatpush1.bf16.msra.mxu0 %v2622
      %2644 = vmatprep.subr.bf16.mxu0 0
      %2645 = vmatpush1.bf16.msra.mxu0 %v2623
      %2646 = vmatprep.subr.bf16.mxu0 0
      %2647 = vmatpush1.bf16.msra.mxu0 %v2624
      %2648 = vmatprep.subr.bf16.mxu0 0
      %2649 = vmatpush1.bf16.msra.mxu0 %v2625
      %2650 = vmatprep.subr.bf16.mxu0 0
      %2651 = vmatpush1.bf16.msra.mxu0 0
      %2652 = vmatprep.subr.bf16.mxu0 0
      %2653 = vmatpush1.bf16.msra.mxu0 0
      %2654 = vmatprep.subr.bf16.mxu0 0
      %2655 = vmatpush1.bf16.msra.mxu0 0
      %2656 = vmatprep.subr.bf16.mxu0 0
      %2657 = vmatpush1.bf16.msra.mxu0 0
      %2658 = vmatprep.subr.bf16.mxu0 0
      %2659 = vmatpush1.bf16.msra.mxu0 0
      %2660 = vmatprep.subr.bf16.mxu0 0
      %2661 = vmatpush1.bf16.msra.mxu0 0
      %2662 = vmatprep.subr.bf16.mxu0 0
      %2663 = vmatpush1.bf16.msra.mxu0 0
      %2664 = vmatprep.subr.bf16.mxu0 0
      %2665 = vmatpush1.bf16.msra.mxu0 0
      %2666 = vmatprep.subr.bf16.mxu0 0
      %2667 = vmatpush1.bf16.msra.mxu0 0
      %2668 = vmatprep.subr.bf16.mxu0 0
      %2669 = vmatpush1.bf16.msra.mxu0 0
      %2670 = vmatprep.subr.bf16.mxu0 0
      %2671 = vmatpush1.bf16.msra.mxu0 0
      %2672 = vmatprep.subr.bf16.mxu0 0
      %2673 = vmatpush1.bf16.msra.mxu0 0
      %2674 = vmatprep.mubr.bf16.mxu0 0
      %2675 = vmatmul.mubr.bf16.gmra.mrb[0].mxu0 %v2631
      %v2676 = vpop.f32.mrb[0].mxu0
      %v2677 = vadd.f32 0.0, %v2676
      %v2678 = vpop.f32.mrb[0].mxu0
      %v2679 = vpop.f32.mrb[0].mxu0
      %v2680 = vadd.f32 0.0, %v2679
      %v2681 = vpop.f32.mrb[0].mxu0
      %2682 = vmatprep.mubr.bf16.mxu0 0
      %2683 = vmatmul.mubr.bf16.gmra.mrb[0].mxu0 %v2634
      %v2684 = vpop.f32.mrb[0].mxu0
      %v2685 = vadd.f32 0.0, %v2684
      %v2686 = vpop.f32.mrb[0].mxu0
      %v2687 = vpop.f32.mrb[0].mxu0
      %v2688 = vadd.f32 0.0, %v2687
      %v2689 = vpop.f32.mrb[0].mxu0
      %2690 = vmatprep.mubr.bf16.mxu0 0
      %2691 = vmatmul.mubr.bf16.gmra.mrb[0].mxu0 %v2637
      %v2692 = vpop.f32.mrb[0].mxu0
      %v2693 = vadd.f32 0.0, %v2692
      %v2694 = vpop.f32.mrb[0].mxu0
      %v2695 = vpop.f32.mrb[0].mxu0
      %v2696 = vadd.f32 0.0, %v2695
      %v2697 = vpop.f32.mrb[0].mxu0
      %2698 = vmatprep.mubr.bf16.mxu0 0
      %2699 = vmatmul.mubr.bf16.gmra.mrb[0].mxu0 %v2640
      %v2700 = vpop.f32.mrb[0].mxu0
      %v2701 = vadd.f32 0.0, %v2700
      %v2702 = vpop.f32.mrb[0].mxu0
      %v2703 = vpop.f32.mrb[0].mxu0
      %v2704 = vadd.f32 0.0, %v2703
      %v2705 = vpop.f32.mrb[0].mxu0
      %2706 = vdwg.mxu0
      %v2707 = vmul.f32 %v2677, 0.125
      %v2708 = vmul.f32 %v2680, 0.125
      %v2709 = vmul.f32 %v2685, 0.125
      %v2710 = vmul.f32 %v2688, 0.125
      %v2711 = vmul.f32 %v2693, 0.125
      %v2712 = vmul.f32 %v2696, 0.125
      %v2713 = vmul.f32 %v2701, 0.125
      %v2714 = vmul.f32 %v2704, 0.125
      %v2715 = vpack.c.bf16 %v2708, %v2707
      %v2716 = vpack.c.bf16 %v2710, %v2709
      %v2717 = vpack.c.bf16 %v2712, %v2711
      %v2718 = vpack.c.bf16 %v2714, %v2713
      %v2720 = vsel %vm2468, %v2715, 0
      %v2723 = vsel %vm2468, %v2716, 0
      %v2726 = vsel %vm2468, %v2717, 0
      %v2729 = vsel %vm2468, %v2718, 0
      %v2732 = vsel %vm2468, %v2451, 0
      %v2735 = vsel %vm2468, %v2452, 0
      %v2738 = vsel %vm2468, %v2453, 0
      %v2741 = vsel %vm2468, %v2454, 0
      %2743 = vmatprep.subr.bf16.mxu0 0
      %2744 = vmatpush1.bf16.xpose.msra.mxu0 %v2732
      %2745 = vmatprep.subr.bf16.mxu0 0
      %2746 = vmatpush1.bf16.xpose.msra.mxu0 %v2735
      %2747 = vmatprep.subr.bf16.mxu0 0
      %2748 = vmatpush1.bf16.xpose.msra.mxu0 %v2738
      %2749 = vmatprep.subr.bf16.mxu0 0
      %2750 = vmatpush1.bf16.xpose.msra.mxu0 %v2741
      %2751 = vmatprep.subr.bf16.mxu0 0
      %2752 = vmatpush1.bf16.xpose.msra.mxu0 0
      %2753 = vmatprep.subr.bf16.mxu0 0
      %2754 = vmatpush1.bf16.xpose.msra.mxu0 0
      %2755 = vmatprep.subr.bf16.mxu0 0
      %2756 = vmatpush1.bf16.xpose.msra.mxu0 0
      %2757 = vmatprep.subr.bf16.mxu0 0
      %2758 = vmatpush1.bf16.xpose.msra.mxu0 0
      %2759 = vmatprep.subr.bf16.mxu0 0
      %2760 = vmatpush1.bf16.xpose.msra.mxu0 0
      %2761 = vmatprep.subr.bf16.mxu0 0
      %2762 = vmatpush1.bf16.xpose.msra.mxu0 0
      %2763 = vmatprep.subr.bf16.mxu0 0
      %2764 = vmatpush1.bf16.xpose.msra.mxu0 0
      %2765 = vmatprep.subr.bf16.mxu0 0
      %2766 = vmatpush1.bf16.xpose.msra.mxu0 0
      %2767 = vmatprep.subr.bf16.mxu0 0
      %2768 = vmatpush1.bf16.xpose.msra.mxu0 0
      %2769 = vmatprep.subr.bf16.mxu0 0
      %2770 = vmatpush1.bf16.xpose.msra.mxu0 0
      %2771 = vmatprep.subr.bf16.mxu0 0
      %2772 = vmatpush1.bf16.xpose.msra.mxu0 0
      %2773 = vmatprep.subr.bf16.mxu0 0
      %2774 = vmatpush1.bf16.xpose.msra.mxu0 0
      %2775 = vmatprep.mubr.bf16.mxu0 0
      %2776 = vmatmul.mubr.bf16.gmra.mrb[0].mxu0 %v2720
      %v2777 = vpop.f32.mrb[0].mxu0
      %v2778 = vadd.f32 0.0, %v2777
      %v2779 = vpop.f32.mrb[0].mxu0
      %v2780 = vpop.f32.mrb[0].mxu0
      %v2781 = vadd.f32 0.0, %v2780
      %v2782 = vpop.f32.mrb[0].mxu0
      %2783 = vmatprep.mubr.bf16.mxu0 0
      %2784 = vmatmul.mubr.bf16.gmra.mrb[0].mxu0 %v2723
      %v2785 = vpop.f32.mrb[0].mxu0
      %v2786 = vadd.f32 0.0, %v2785
      %v2787 = vpop.f32.mrb[0].mxu0
      %v2788 = vpop.f32.mrb[0].mxu0
      %v2789 = vadd.f32 0.0, %v2788
      %v2790 = vpop.f32.mrb[0].mxu0
      %2791 = vmatprep.mubr.bf16.mxu0 0
      %2792 = vmatmul.mubr.bf16.gmra.mrb[0].mxu0 %v2726
      %v2793 = vpop.f32.mrb[0].mxu0
      %v2794 = vadd.f32 0.0, %v2793
      %v2795 = vpop.f32.mrb[0].mxu0
      %v2796 = vpop.f32.mrb[0].mxu0
      %v2797 = vadd.f32 0.0, %v2796
      %v2798 = vpop.f32.mrb[0].mxu0
      %2799 = vmatprep.mubr.bf16.mxu0 0
      %2800 = vmatmul.mubr.bf16.gmra.mrb[0].mxu0 %v2729
      %v2801 = vpop.f32.mrb[0].mxu0
      %v2802 = vadd.f32 0.0, %v2801
      %v2803 = vpop.f32.mrb[0].mxu0
      %v2804 = vpop.f32.mrb[0].mxu0
      %v2805 = vadd.f32 0.0, %v2804
      %v2806 = vpop.f32.mrb[0].mxu0
      %2807 = vdwg.mxu0
      %v2808 = vsel %vm2468, %v2778, -inf
      %2809 = vmax.xlane.f32.xlu0 %v2808
      %v2810 = vpop.xlane.xlu0 %2809
      %v2811 = vsel %vm2468, %v2781, -inf
      %2812 = vmax.xlane.f32.xlu0 %v2811
      %v2813 = vpop.xlane.xlu0 %2812
      %v2814 = vsel %vm2468, %v2786, -inf
      %2815 = vmax.xlane.f32.xlu0 %v2814
      %v2816 = vpop.xlane.xlu0 %2815
      %v2817 = vsel %vm2468, %v2789, -inf
      %2818 = vmax.xlane.f32.xlu0 %v2817
      %v2819 = vpop.xlane.xlu0 %2818
      %v2820 = vsel %vm2468, %v2794, -inf
      %2821 = vmax.xlane.f32.xlu0 %v2820
      %v2822 = vpop.xlane.xlu0 %2821
      %v2823 = vsel %vm2468, %v2797, -inf
      %2824 = vmax.xlane.f32.xlu0 %v2823
      %v2825 = vpop.xlane.xlu0 %2824
      %v2826 = vsel %vm2468, %v2802, -inf
      %2827 = vmax.xlane.f32.xlu0 %v2826
      %v2828 = vpop.xlane.xlu0 %2827
      %v2829 = vsel %vm2468, %v2805, -inf
      %2830 = vmax.xlane.f32.xlu0 %v2829
      %v2831 = vpop.xlane.xlu0 %2830
      %v2832 = vsub.f32 %v2778, %v2810
      %v2833 = vsub.f32 %v2781, %v2813
      %v2834 = vsub.f32 %v2786, %v2816
      %v2835 = vsub.f32 %v2789, %v2819
      %v2836 = vsub.f32 %v2794, %v2822
      %v2837 = vsub.f32 %v2797, %v2825
      %v2838 = vsub.f32 %v2802, %v2828
      %v2839 = vsub.f32 %v2805, %v2831
      %v2840 = vmul.f32 %v2832, 1.442695
      %v2841 = vpow.pop %v2840
      %v2842 = vmul.f32 %v2833, 1.442695
      %v2843 = vpow.pop %v2842
      %v2844 = vmul.f32 %v2834, 1.442695
      %v2845 = vpow.pop %v2844
      %v2846 = vmul.f32 %v2835, 1.442695
      %v2847 = vpow.pop %v2846
      %v2848 = vmul.f32 %v2836, 1.442695
      %v2849 = vpow.pop %v2848
      %v2850 = vmul.f32 %v2837, 1.442695
      %v2851 = vpow.pop %v2850
      %v2852 = vmul.f32 %v2838, 1.442695
      %v2853 = vpow.pop %v2852
      %v2854 = vmul.f32 %v2839, 1.442695
      %v2855 = vpow.pop %v2854
      %v2856 = vsel %vm2468, %v2841, 0.0
      %2857 = vadd.xlane.f32.xlu0 %v2856
      %v2858 = vpop.xlane.xlu0 %2857
      %v2859 = vsel %vm2468, %v2843, 0.0
      %2860 = vadd.xlane.f32.xlu0 %v2859
      %v2861 = vpop.xlane.xlu0 %2860
      %v2862 = vsel %vm2468, %v2845, 0.0
      %2863 = vadd.xlane.f32.xlu0 %v2862
      %v2864 = vpop.xlane.xlu0 %2863
      %v2865 = vsel %vm2468, %v2847, 0.0
      %2866 = vadd.xlane.f32.xlu0 %v2865
      %v2867 = vpop.xlane.xlu0 %2866
      %v2868 = vsel %vm2468, %v2849, 0.0
      %2869 = vadd.xlane.f32.xlu0 %v2868
      %v2870 = vpop.xlane.xlu0 %2869
      %v2871 = vsel %vm2468, %v2851, 0.0
      %2872 = vadd.xlane.f32.xlu0 %v2871
      %v2873 = vpop.xlane.xlu0 %2872
      %v2874 = vsel %vm2468, %v2853, 0.0
      %2875 = vadd.xlane.f32.xlu0 %v2874
      %v2876 = vpop.xlane.xlu0 %2875
      %v2877 = vsel %vm2468, %v2855, 0.0
      %2878 = vadd.xlane.f32.xlu0 %v2877
      %v2879 = vpop.xlane.xlu0 %2878
      %v2880 = vrcp.pop %v2858
      %v2881 = vrcp.pop %v2861
      %v2882 = vrcp.pop %v2864
      %v2883 = vrcp.pop %v2867
      %v2884 = vrcp.pop %v2870
      %v2885 = vrcp.pop %v2873
      %v2886 = vrcp.pop %v2876
      %v2887 = vrcp.pop %v2879
      %v2888 = vpack.c.bf16 %v2843, %v2841
      %v2889 = vpack.c.bf16 %v2847, %v2845
      %v2890 = vpack.c.bf16 %v2851, %v2849
      %v2891 = vpack.c.bf16 %v2855, %v2853
      %v2893 = vsel %vm2468, %v2888, 0
      %v2896 = vsel %vm2468, %v2889, 0
      %v2899 = vsel %vm2468, %v2890, 0
      %v2902 = vsel %vm2468, %v2891, 0
      %2904 = vmatprep.subr.bf16.mxu0 0
      %2905 = vmatpush1.bf16.msra.mxu0 %v2455
      %2906 = vmatprep.subr.bf16.mxu0 0
      %2907 = vmatpush1.bf16.msra.mxu0 %v2456
      %2908 = vmatprep.subr.bf16.mxu0 0
      %2909 = vmatpush1.bf16.msra.mxu0 %v2457
      %2910 = vmatprep.subr.bf16.mxu0 0
      %2911 = vmatpush1.bf16.msra.mxu0 %v2458
      %2912 = vmatprep.subr.bf16.mxu0 0
      %2913 = vmatpush1.bf16.msra.mxu0 0
      %2914 = vmatprep.subr.bf16.mxu0 0
      %2915 = vmatpush1.bf16.msra.mxu0 0
      %2916 = vmatprep.subr.bf16.mxu0 0
      %2917 = vmatpush1.bf16.msra.mxu0 0
      %2918 = vmatprep.subr.bf16.mxu0 0
      %2919 = vmatpush1.bf16.msra.mxu0 0
      %2920 = vmatprep.subr.bf16.mxu0 0
      %2921 = vmatpush1.bf16.msra.mxu0 0
      %2922 = vmatprep.subr.bf16.mxu0 0
      %2923 = vmatpush1.bf16.msra.mxu0 0
      %2924 = vmatprep.subr.bf16.mxu0 0
      %2925 = vmatpush1.bf16.msra.mxu0 0
      %2926 = vmatprep.subr.bf16.mxu0 0
      %2927 = vmatpush1.bf16.msra.mxu0 0
      %2928 = vmatprep.subr.bf16.mxu0 0
      %2929 = vmatpush1.bf16.msra.mxu0 0
      %2930 = vmatprep.subr.bf16.mxu0 0
      %2931 = vmatpush1.bf16.msra.mxu0 0
      %2932 = vmatprep.subr.bf16.mxu0 0
      %2933 = vmatpush1.bf16.msra.mxu0 0
      %2934 = vmatprep.subr.bf16.mxu0 0
      %2935 = vmatpush1.bf16.msra.mxu0 0
      %2936 = vmatprep.mubr.bf16.mxu0 0
      %2937 = vmatmul.mubr.bf16.gmra.mrb[0].mxu0 %v2893
      %v2938 = vpop.f32.mrb[0].mxu0
      %v2939 = vadd.f32 0.0, %v2938
      %v2940 = vpop.f32.mrb[0].mxu0
      %v2941 = vpop.f32.mrb[0].mxu0
      %v2942 = vadd.f32 0.0, %v2941
      %v2943 = vpop.f32.mrb[0].mxu0
      %2944 = vmatprep.mubr.bf16.mxu0 0
      %2945 = vmatmul.mubr.bf16.gmra.mrb[0].mxu0 %v2896
      %v2946 = vpop.f32.mrb[0].mxu0
      %v2947 = vadd.f32 0.0, %v2946
      %v2948 = vpop.f32.mrb[0].mxu0
      %v2949 = vpop.f32.mrb[0].mxu0
      %v2950 = vadd.f32 0.0, %v2949
      %v2951 = vpop.f32.mrb[0].mxu0
      %2952 = vmatprep.mubr.bf16.mxu0 0
      %2953 = vmatmul.mubr.bf16.gmra.mrb[0].mxu0 %v2899
      %v2954 = vpop.f32.mrb[0].mxu0
      %v2955 = vadd.f32 0.0, %v2954
      %v2956 = vpop.f32.mrb[0].mxu0
      %v2957 = vpop.f32.mrb[0].mxu0
      %v2958 = vadd.f32 0.0, %v2957
      %v2959 = vpop.f32.mrb[0].mxu0
      %2960 = vmatprep.mubr.bf16.mxu0 0
      %2961 = vmatmul.mubr.bf16.gmra.mrb[0].mxu0 %v2902
      %v2962 = vpop.f32.mrb[0].mxu0
      %v2963 = vadd.f32 0.0, %v2962
      %v2964 = vpop.f32.mrb[0].mxu0
      %v2965 = vpop.f32.mrb[0].mxu0
      %v2966 = vadd.f32 0.0, %v2965
      %v2967 = vpop.f32.mrb[0].mxu0
      %2968 = vdwg.mxu0
      %v2969 = vmul.f32 %v2939, %v2880
      %v2970 = vmul.f32 %v2942, %v2881
      %v2971 = vmul.f32 %v2947, %v2882
      %v2972 = vmul.f32 %v2950, %v2883
      %v2973 = vmul.f32 %v2955, %v2884
      %v2974 = vmul.f32 %v2958, %v2885
      %v2975 = vmul.f32 %v2963, %v2886
      %v2976 = vmul.f32 %v2966, %v2887
      %v2977 = vpack.c.bf16 %v2970, %v2969
      %v2978 = vpack.c.bf16 %v2972, %v2971
      %v2979 = vpack.c.bf16 %v2974, %v2973
      %v2980 = vpack.c.bf16 %v2976, %v2975
      %v2982 = vlaneseq
      %v2983 = vshrl.u32 %v2982, 7
      %v2984 = vsub.s32 0, %v2983
      %v2985 = vrot.slane %v2467, %v2984
      %v2995 = vunpack.c.l.b16 %v2459
      %v2996 = vunpack.c.l.b16 %v2460
      %v2997 = vunpack.c.l.b16 %v2461
      %v2998 = vunpack.c.l.b16 %v2462
      %v2999 = vunpack.c.l.b16 %v2463
      %v3000 = vunpack.c.l.b16 %v2464
      %v3001 = vunpack.c.l.b16 %v2465
      %v3002 = vunpack.c.l.b16 %v2466
      %v3003 = vpack.c.b16 %v2996, %v2995
      %v3004 = vpack.c.b16 %v2998, %v2997
      %v3005 = vpack.c.b16 %v3000, %v2999
      %v3006 = vpack.c.b16 %v3002, %v3001
      %v3012 = vsel %vm2468, %v2977, 0
      %v3015 = vsel %vm2468, %v2978, 0
      %v3018 = vsel %vm2468, %v2979, 0
      %v3021 = vsel %vm2468, %v2980, 0
      %3023 = vmatprep.subr.bf16.mxu0 0
      %3024 = vmatpush1.bf16.msra.mxu0 %v3003
      %3025 = vmatprep.subr.bf16.mxu0 0
      %3026 = vmatpush1.bf16.msra.mxu0 %v3004
      %3027 = vmatprep.subr.bf16.mxu0 0
      %3028 = vmatpush1.bf16.msra.mxu0 %v3005
      %3029 = vmatprep.subr.bf16.mxu0 0
      %3030 = vmatpush1.bf16.msra.mxu0 %v3006
      %3031 = vmatprep.subr.bf16.mxu0 0
      %3032 = vmatpush1.bf16.msra.mxu0 0
      %3033 = vmatprep.subr.bf16.mxu0 0
      %3034 = vmatpush1.bf16.msra.mxu0 0
      %3035 = vmatprep.subr.bf16.mxu0 0
      %3036 = vmatpush1.bf16.msra.mxu0 0
      %3037 = vmatprep.subr.bf16.mxu0 0
      %3038 = vmatpush1.bf16.msra.mxu0 0
      %3039 = vmatprep.subr.bf16.mxu0 0
      %3040 = vmatpush1.bf16.msra.mxu0 0
      %3041 = vmatprep.subr.bf16.mxu0 0
      %3042 = vmatpush1.bf16.msra.mxu0 0
      %3043 = vmatprep.subr.bf16.mxu0 0
      %3044 = vmatpush1.bf16.msra.mxu0 0
      %3045 = vmatprep.subr.bf16.mxu0 0
      %3046 = vmatpush1.bf16.msra.mxu0 0
      %3047 = vmatprep.subr.bf16.mxu0 0
      %3048 = vmatpush1.bf16.msra.mxu0 0
      %3049 = vmatprep.subr.bf16.mxu0 0
      %3050 = vmatpush1.bf16.msra.mxu0 0
      %3051 = vmatprep.subr.bf16.mxu0 0
      %3052 = vmatpush1.bf16.msra.mxu0 0
      %3053 = vmatprep.subr.bf16.mxu0 0
      %3054 = vmatpush1.bf16.msra.mxu0 0
      %3055 = vmatprep.mubr.bf16.mxu0 0
      %3056 = vmatmul.mubr.bf16.gmra.mrb[0].mxu0 %v3012
      %v3057 = vpop.f32.mrb[0].mxu0
      %v3058 = vadd.f32 %v2985, %v3057
      %v3059 = vpop.f32.mrb[0].mxu0
      %v3060 = vpop.f32.mrb[0].mxu0
      %v3061 = vadd.f32 %v2985, %v3060
      %v3062 = vpop.f32.mrb[0].mxu0
      %3063 = vmatprep.mubr.bf16.mxu0 0
      %3064 = vmatmul.mubr.bf16.gmra.mrb[0].mxu0 %v3015
      %v3065 = vpop.f32.mrb[0].mxu0
      %v3066 = vadd.f32 %v2985, %v3065
      %v3067 = vpop.f32.mrb[0].mxu0
      %v3068 = vpop.f32.mrb[0].mxu0
      %v3069 = vadd.f32 %v2985, %v3068
      %v3070 = vpop.f32.mrb[0].mxu0
      %3071 = vmatprep.mubr.bf16.mxu0 0
      %3072 = vmatmul.mubr.bf16.gmra.mrb[0].mxu0 %v3018
      %v3073 = vpop.f32.mrb[0].mxu0
      %v3074 = vadd.f32 %v2985, %v3073
      %v3075 = vpop.f32.mrb[0].mxu0
      %v3076 = vpop.f32.mrb[0].mxu0
      %v3077 = vadd.f32 %v2985, %v3076
      %v3078 = vpop.f32.mrb[0].mxu0
      %3079 = vmatprep.mubr.bf16.mxu0 0
      %3080 = vmatmul.mubr.bf16.gmra.mrb[0].mxu0 %v3021
      %v3081 = vpop.f32.mrb[0].mxu0
      %v3082 = vadd.f32 %v2985, %v3081
      %v3083 = vpop.f32.mrb[0].mxu0
      %v3084 = vpop.f32.mrb[0].mxu0
      %v3085 = vadd.f32 %v2985, %v3084
      %v3086 = vpop.f32.mrb[0].mxu0
      %3087 = vdwg.mxu0
      %v3088 = vadd.f32 %v3058, %v2433
      %v3089 = vadd.f32 %v3061, %v2434
      %v3090 = vadd.f32 %v3066, %v2435
      %v3091 = vadd.f32 %v3069, %v2436
      %v3092 = vadd.f32 %v3074, %v2437
      %v3093 = vadd.f32 %v3077, %v2438
      %v3094 = vadd.f32 %v3082, %v2439
      %v3095 = vadd.f32 %v3085, %v2440
      %v3096 = vld [vmem:[%s8] sm:$0x1]
      %v3097 = vld [vmem:[%s9] sm:$0x1]
      %v3098 = vld [vmem:[%s10] sm:$0xf]
      %v3099 = vld [vmem:[%s10 + $0x4] sm:$0xf]
      %v3100 = vld [vmem:[%s10 + $0x8] sm:$0xf]
      %v3101 = vld [vmem:[%s10 + $0xc] sm:$0xf]
      %v3102 = vld [vmem:[%s10 + $0x10] sm:$0xf]
      %v3103 = vld [vmem:[%s10 + $0x14] sm:$0xf]
      %v3104 = vld [vmem:[%s10 + $0x18] sm:$0xf]
      %v3105 = vld [vmem:[%s10 + $0x1c] sm:$0xf]
      %v3106 = vld [vmem:[#allocation4] sm:$0xf]
      %v3107 = vld [vmem:[#allocation5] sm:$0xf]
      %v3108 = vld [vmem:[%s12] sm:$0xf]
      %v3109 = vld [vmem:[%s12 + $0x4] sm:$0xf]
      %v3110 = vld [vmem:[%s12 + $0x8] sm:$0xf]
      %v3111 = vld [vmem:[%s12 + $0xc] sm:$0xf]
      %v3112 = vld [vmem:[%s12 + $0x10] sm:$0xf]
      %v3113 = vld [vmem:[%s12 + $0x14] sm:$0xf]
      %v3114 = vld [vmem:[%s12 + $0x18] sm:$0xf]
      %v3115 = vld [vmem:[%s12 + $0x1c] sm:$0xf]
      %v3116 = vld [vmem:[%s13] sm:$0x1]
      %v3117 = vsel %vm2468, %v3088, 0.0
      %3118 = vadd.xlane.f32.xlu0 %v3117
      %v3119 = vpop.xlane.xlu0 %3118
      %v3120 = vsel %vm2468, %v3089, 0.0
      %3121 = vadd.xlane.f32.xlu0 %v3120
      %v3122 = vpop.xlane.xlu0 %3121
      %v3123 = vsel %vm2468, %v3090, 0.0
      %3124 = vadd.xlane.f32.xlu0 %v3123
      %v3125 = vpop.xlane.xlu0 %3124
      %v3126 = vsel %vm2468, %v3091, 0.0
      %3127 = vadd.xlane.f32.xlu0 %v3126
      %v3128 = vpop.xlane.xlu0 %3127
      %v3129 = vsel %vm2468, %v3092, 0.0
      %3130 = vadd.xlane.f32.xlu0 %v3129
      %v3131 = vpop.xlane.xlu0 %3130
      %v3132 = vsel %vm2468, %v3093, 0.0
      %3133 = vadd.xlane.f32.xlu0 %v3132
      %v3134 = vpop.xlane.xlu0 %3133
      %v3135 = vsel %vm2468, %v3094, 0.0
      %3136 = vadd.xlane.f32.xlu0 %v3135
      %v3137 = vpop.xlane.xlu0 %3136
      %v3138 = vsel %vm2468, %v3095, 0.0
      %3139 = vadd.xlane.f32.xlu0 %v3138
      %v3140 = vpop.xlane.xlu0 %3139
      %v3141 = vmul.f32 %v3119, %v2493
      %v3142 = vmul.f32 %v3122, %v2493
      %v3143 = vmul.f32 %v3125, %v2493
      %v3144 = vmul.f32 %v3128, %v2493
      %v3145 = vmul.f32 %v3131, %v2493
      %v3146 = vmul.f32 %v3134, %v2493
      %v3147 = vmul.f32 %v3137, %v2493
      %v3148 = vmul.f32 %v3140, %v2493
      %v3149 = vsub.f32 %v3088, %v3141
      %v3150 = vsub.f32 %v3089, %v3142
      %v3151 = vsub.f32 %v3090, %v3143
      %v3152 = vsub.f32 %v3091, %v3144
      %v3153 = vsub.f32 %v3092, %v3145
      %v3154 = vsub.f32 %v3093, %v3146
      %v3155 = vsub.f32 %v3094, %v3147
      %v3156 = vsub.f32 %v3095, %v3148
      %v3157 = vmul.f32 %v3149, %v3149
      %v3158 = vmul.f32 %v3150, %v3150
      %v3159 = vmul.f32 %v3151, %v3151
      %v3160 = vmul.f32 %v3152, %v3152
      %v3161 = vmul.f32 %v3153, %v3153
      %v3162 = vmul.f32 %v3154, %v3154
      %v3163 = vmul.f32 %v3155, %v3155
      %v3164 = vmul.f32 %v3156, %v3156
      %v3165 = vsel %vm2468, %v3157, 0.0
      %3166 = vadd.xlane.f32.xlu0 %v3165
      %v3167 = vpop.xlane.xlu0 %3166
      %v3168 = vsel %vm2468, %v3158, 0.0
      %3169 = vadd.xlane.f32.xlu0 %v3168
      %v3170 = vpop.xlane.xlu0 %3169
      %v3171 = vsel %vm2468, %v3159, 0.0
      %3172 = vadd.xlane.f32.xlu0 %v3171
      %v3173 = vpop.xlane.xlu0 %3172
      %v3174 = vsel %vm2468, %v3160, 0.0
      %3175 = vadd.xlane.f32.xlu0 %v3174
      %v3176 = vpop.xlane.xlu0 %3175
      %v3177 = vsel %vm2468, %v3161, 0.0
      %3178 = vadd.xlane.f32.xlu0 %v3177
      %v3179 = vpop.xlane.xlu0 %3178
      %v3180 = vsel %vm2468, %v3162, 0.0
      %3181 = vadd.xlane.f32.xlu0 %v3180
      %v3182 = vpop.xlane.xlu0 %3181
      %v3183 = vsel %vm2468, %v3163, 0.0
      %3184 = vadd.xlane.f32.xlu0 %v3183
      %v3185 = vpop.xlane.xlu0 %3184
      %v3186 = vsel %vm2468, %v3164, 0.0
      %3187 = vadd.xlane.f32.xlu0 %v3186
      %v3188 = vpop.xlane.xlu0 %3187
      %v3189 = vmul.f32 %v3167, %v2493
      %v3190 = vmul.f32 %v3170, %v2493
      %v3191 = vmul.f32 %v3173, %v2493
      %v3192 = vmul.f32 %v3176, %v2493
      %v3193 = vmul.f32 %v3179, %v2493
      %v3194 = vmul.f32 %v3182, %v2493
      %v3195 = vmul.f32 %v3185, %v2493
      %v3196 = vmul.f32 %v3188, %v2493
      %v3197 = vadd.f32 %v3189, 1e-05
      %v3198 = vadd.f32 %v3190, 1e-05
      %v3199 = vadd.f32 %v3191, 1e-05
      %v3200 = vadd.f32 %v3192, 1e-05
      %v3201 = vadd.f32 %v3193, 1e-05
      %v3202 = vadd.f32 %v3194, 1e-05
      %v3203 = vadd.f32 %v3195, 1e-05
      %v3204 = vadd.f32 %v3196, 1e-05
      %v3205 = vrsqrt.pop %v3197
      %v3206 = vrsqrt.pop %v3198
      %v3207 = vrsqrt.pop %v3199
      %v3208 = vrsqrt.pop %v3200
      %v3209 = vrsqrt.pop %v3201
      %v3210 = vrsqrt.pop %v3202
      %v3211 = vrsqrt.pop %v3203
      %v3212 = vrsqrt.pop %v3204
      %v3213 = vmul.f32 %v3149, %v3205
      %v3214 = vmul.f32 %v3150, %v3206
      %v3215 = vmul.f32 %v3151, %v3207
      %v3216 = vmul.f32 %v3152, %v3208
      %v3217 = vmul.f32 %v3153, %v3209
      %v3218 = vmul.f32 %v3154, %v3210
      %v3219 = vmul.f32 %v3155, %v3211
      %v3220 = vmul.f32 %v3156, %v3212
      %v3222 = vlaneseq
      %v3223 = vshrl.u32 %v3222, 7
      %v3224 = vsub.s32 0, %v3223
      %v3225 = vrot.slane %v3096, %v3224
      %v3227 = vmul.f32 %v3213, %v3225
      %v3228 = vmul.f32 %v3214, %v3225
      %v3229 = vmul.f32 %v3215, %v3225
      %v3230 = vmul.f32 %v3216, %v3225
      %v3231 = vmul.f32 %v3217, %v3225
      %v3232 = vmul.f32 %v3218, %v3225
      %v3233 = vmul.f32 %v3219, %v3225
      %v3234 = vmul.f32 %v3220, %v3225
      %v3236 = vlaneseq
      %v3237 = vshrl.u32 %v3236, 7
      %v3238 = vsub.s32 0, %v3237
      %v3239 = vrot.slane %v3097, %v3238
      %v3241 = vadd.f32 %v3227, %v3239
      %v3242 = vadd.f32 %v3228, %v3239
      %v3243 = vadd.f32 %v3229, %v3239
      %v3244 = vadd.f32 %v3230, %v3239
      %v3245 = vadd.f32 %v3231, %v3239
      %v3246 = vadd.f32 %v3232, %v3239
      %v3247 = vadd.f32 %v3233, %v3239
      %v3248 = vadd.f32 %v3234, %v3239
      %v3249 = vpack.c.bf16 %v3242, %v3241
      %v3250 = vpack.c.bf16 %v3244, %v3243
      %v3251 = vpack.c.bf16 %v3246, %v3245
      %v3252 = vpack.c.bf16 %v3248, %v3247
      %v3261 = vunpack.c.l.b16 %v3098
      %v3262 = vunpack.c.l.b16 %v3099
      %v3263 = vunpack.c.l.b16 %v3100
      %v3264 = vunpack.c.l.b16 %v3101
      %v3265 = vunpack.c.l.b16 %v3102
      %v3266 = vunpack.c.l.b16 %v3103
      %v3267 = vunpack.c.l.b16 %v3104
      %v3268 = vunpack.c.l.b16 %v3105
      %v3269 = vpack.c.b16 %v3262, %v3261
      %v3270 = vpack.c.b16 %v3264, %v3263
      %v3271 = vpack.c.b16 %v3266, %v3265
      %v3272 = vpack.c.b16 %v3268, %v3267
      %v3278 = vsel %vm2468, %v3249, 0
      %v3281 = vsel %vm2468, %v3250, 0
      %v3284 = vsel %vm2468, %v3251, 0
      %v3287 = vsel %vm2468, %v3252, 0
      %3289 = vmatprep.subr.bf16.mxu0 0
      %3290 = vmatpush1.bf16.msra.mxu0 %v3269
      %3291 = vmatprep.subr.bf16.mxu0 0
      %3292 = vmatpush1.bf16.msra.mxu0 %v3270
      %3293 = vmatprep.subr.bf16.mxu0 0
      %3294 = vmatpush1.bf16.msra.mxu0 %v3271
      %3295 = vmatprep.subr.bf16.mxu0 0
      %3296 = vmatpush1.bf16.msra.mxu0 %v3272
      %3297 = vmatprep.subr.bf16.mxu0 0
      %3298 = vmatpush1.bf16.msra.mxu0 0
      %3299 = vmatprep.subr.bf16.mxu0 0
      %3300 = vmatpush1.bf16.msra.mxu0 0
      %3301 = vmatprep.subr.bf16.mxu0 0
      %3302 = vmatpush1.bf16.msra.mxu0 0
      %3303 = vmatprep.subr.bf16.mxu0 0
      %3304 = vmatpush1.bf16.msra.mxu0 0
      %3305 = vmatprep.subr.bf16.mxu0 0
      %3306 = vmatpush1.bf16.msra.mxu0 0
      %3307 = vmatprep.subr.bf16.mxu0 0
      %3308 = vmatpush1.bf16.msra.mxu0 0
      %3309 = vmatprep.subr.bf16.mxu0 0
      %3310 = vmatpush1.bf16.msra.mxu0 0
      %3311 = vmatprep.subr.bf16.mxu0 0
      %3312 = vmatpush1.bf16.msra.mxu0 0
      %3313 = vmatprep.subr.bf16.mxu0 0
      %3314 = vmatpush1.bf16.msra.mxu0 0
      %3315 = vmatprep.subr.bf16.mxu0 0
      %3316 = vmatpush1.bf16.msra.mxu0 0
      %3317 = vmatprep.subr.bf16.mxu0 0
      %3318 = vmatpush1.bf16.msra.mxu0 0
      %3319 = vmatprep.subr.bf16.mxu0 0
      %3320 = vmatpush1.bf16.msra.mxu0 0
      %3321 = vmatprep.mubr.bf16.mxu0 0
      %3322 = vmatmul.mubr.bf16.gmra.mrb[0].mxu0 %v3278
      %v3323 = vpop.f32.mrb[0].mxu0
      %v3324 = vadd.f32 0.0, %v3323
      %v3325 = vpop.f32.mrb[0].mxu0
      %v3326 = vpop.f32.mrb[0].mxu0
      %v3327 = vadd.f32 0.0, %v3326
      %v3328 = vpop.f32.mrb[0].mxu0
      %3329 = vmatprep.mubr.bf16.mxu0 0
      %3330 = vmatmul.mubr.bf16.gmra.mrb[0].mxu0 %v3281
      %v3331 = vpop.f32.mrb[0].mxu0
      %v3332 = vadd.f32 0.0, %v3331
      %v3333 = vpop.f32.mrb[0].mxu0
      %v3334 = vpop.f32.mrb[0].mxu0
      %v3335 = vadd.f32 0.0, %v3334
      %v3336 = vpop.f32.mrb[0].mxu0
      %3337 = vmatprep.mubr.bf16.mxu0 0
      %3338 = vmatmul.mubr.bf16.gmra.mrb[0].mxu0 %v3284
      %v3339 = vpop.f32.mrb[0].mxu0
      %v3340 = vadd.f32 0.0, %v3339
      %v3341 = vpop.f32.mrb[0].mxu0
      %v3342 = vpop.f32.mrb[0].mxu0
      %v3343 = vadd.f32 0.0, %v3342
      %v3344 = vpop.f32.mrb[0].mxu0
      %3345 = vmatprep.mubr.bf16.mxu0 0
      %3346 = vmatmul.mubr.bf16.gmra.mrb[0].mxu0 %v3287
      %v3347 = vpop.f32.mrb[0].mxu0
      %v3348 = vadd.f32 0.0, %v3347
      %v3349 = vpop.f32.mrb[0].mxu0
      %v3350 = vpop.f32.mrb[0].mxu0
      %v3351 = vadd.f32 0.0, %v3350
      %v3352 = vpop.f32.mrb[0].mxu0
      %3353 = vdwg.mxu0
      %v3354 = vmul.f32 %v3324, 0.125
      %v3355 = vmul.f32 %v3327, 0.125
      %v3356 = vmul.f32 %v3332, 0.125
      %v3357 = vmul.f32 %v3335, 0.125
      %v3358 = vmul.f32 %v3340, 0.125
      %v3359 = vmul.f32 %v3343, 0.125
      %v3360 = vmul.f32 %v3348, 0.125
      %v3361 = vmul.f32 %v3351, 0.125
      %v3362 = vpack.c.bf16 %v3355, %v3354
      %v3363 = vpack.c.bf16 %v3357, %v3356
      %v3364 = vpack.c.bf16 %v3359, %v3358
      %v3365 = vpack.c.bf16 %v3361, %v3360
      %v3367 = vsel %vm2468, %v3362, 0
      %v3370 = vsel %vm2468, %v3363, 0
      %v3373 = vsel %vm2468, %v3364, 0
      %v3376 = vsel %vm2468, %v3365, 0
      %v3379 = vsel %vm2468, %v3106, 0
      %3381 = vmatprep.subr.bf16.mxu0 0
      %3382 = vmatpush1.bf16.xpose.msra.mxu0 %v3379
      %3383 = vmatprep.subr.bf16.mxu0 0
      %3384 = vmatpush1.bf16.xpose.msra.mxu0 0
      %3385 = vmatprep.subr.bf16.mxu0 0
      %3386 = vmatpush1.bf16.xpose.msra.mxu0 0
      %3387 = vmatprep.subr.bf16.mxu0 0
      %3388 = vmatpush1.bf16.xpose.msra.mxu0 0
      %3389 = vmatprep.subr.bf16.mxu0 0
      %3390 = vmatpush1.bf16.xpose.msra.mxu0 0
      %3391 = vmatprep.subr.bf16.mxu0 0
      %3392 = vmatpush1.bf16.xpose.msra.mxu0 0
      %3393 = vmatprep.subr.bf16.mxu0 0
      %3394 = vmatpush1.bf16.xpose.msra.mxu0 0
      %3395 = vmatprep.subr.bf16.mxu0 0
      %3396 = vmatpush1.bf16.xpose.msra.mxu0 0
      %3397 = vmatprep.subr.bf16.mxu0 0
      %3398 = vmatpush1.bf16.xpose.msra.mxu0 0
      %3399 = vmatprep.subr.bf16.mxu0 0
      %3400 = vmatpush1.bf16.xpose.msra.mxu0 0
      %3401 = vmatprep.subr.bf16.mxu0 0
      %3402 = vmatpush1.bf16.xpose.msra.mxu0 0
      %3403 = vmatprep.subr.bf16.mxu0 0
      %3404 = vmatpush1.bf16.xpose.msra.mxu0 0
      %3405 = vmatprep.subr.bf16.mxu0 0
      %3406 = vmatpush1.bf16.xpose.msra.mxu0 0
      %3407 = vmatprep.subr.bf16.mxu0 0
      %3408 = vmatpush1.bf16.xpose.msra.mxu0 0
      %3409 = vmatprep.subr.bf16.mxu0 0
      %3410 = vmatpush1.bf16.xpose.msra.mxu0 0
      %3411 = vmatprep.subr.bf16.mxu0 0
      %3412 = vmatpush1.bf16.xpose.msra.mxu0 0
      %3413 = vmatprep.mubr.bf16.mxu0 0
      %3414 = vmatmul.mubr.bf16.gmra.mrb[0].mxu0 %v3367
      %v3415 = vpop.f32.mrb[0].mxu0
      %v3416 = vadd.f32 0.0, %v3415
      %v3417 = vpop.f32.mrb[0].mxu0
      %v3418 = vpop.f32.mrb[0].mxu0
      %v3419 = vadd.f32 0.0, %v3418
      %v3420 = vpop.f32.mrb[0].mxu0
      %3421 = vmatprep.mubr.bf16.mxu0 0
      %3422 = vmatmul.mubr.bf16.gmra.mrb[0].mxu0 %v3370
      %v3423 = vpop.f32.mrb[0].mxu0
      %v3424 = vadd.f32 0.0, %v3423
      %v3425 = vpop.f32.mrb[0].mxu0
      %v3426 = vpop.f32.mrb[0].mxu0
      %v3427 = vadd.f32 0.0, %v3426
      %v3428 = vpop.f32.mrb[0].mxu0
      %3429 = vmatprep.mubr.bf16.mxu0 0
      %3430 = vmatmul.mubr.bf16.gmra.mrb[0].mxu0 %v3373
      %v3431 = vpop.f32.mrb[0].mxu0
      %v3432 = vadd.f32 0.0, %v3431
      %v3433 = vpop.f32.mrb[0].mxu0
      %v3434 = vpop.f32.mrb[0].mxu0
      %v3435 = vadd.f32 0.0, %v3434
      %v3436 = vpop.f32.mrb[0].mxu0
      %3437 = vmatprep.mubr.bf16.mxu0 0
      %3438 = vmatmul.mubr.bf16.gmra.mrb[0].mxu0 %v3376
      %v3439 = vpop.f32.mrb[0].mxu0
      %v3440 = vadd.f32 0.0, %v3439
      %v3441 = vpop.f32.mrb[0].mxu0
      %v3442 = vpop.f32.mrb[0].mxu0
      %v3443 = vadd.f32 0.0, %v3442
      %v3444 = vpop.f32.mrb[0].mxu0
      %3445 = vdwg.mxu0
      %vm3446 = vcmask 64512
      %v3447 = vsel %vm3446, %v3416, -inf
      %3448 = vmax.xlane.f32.xlu0 %v3447
      %v3449 = vpop.xlane.xlu0 %3448
      %v3450 = vsel %vm3446, %v3419, -inf
      %3451 = vmax.xlane.f32.xlu0 %v3450
      %v3452 = vpop.xlane.xlu0 %3451
      %v3453 = vsel %vm3446, %v3424, -inf
      %3454 = vmax.xlane.f32.xlu0 %v3453
      %v3455 = vpop.xlane.xlu0 %3454
      %v3456 = vsel %vm3446, %v3427, -inf
      %3457 = vmax.xlane.f32.xlu0 %v3456
      %v3458 = vpop.xlane.xlu0 %3457
      %v3459 = vsel %vm3446, %v3432, -inf
      %3460 = vmax.xlane.f32.xlu0 %v3459
      %v3461 = vpop.xlane.xlu0 %3460
      %v3462 = vsel %vm3446, %v3435, -inf
      %3463 = vmax.xlane.f32.xlu0 %v3462
      %v3464 = vpop.xlane.xlu0 %3463
      %v3465 = vsel %vm3446, %v3440, -inf
      %3466 = vmax.xlane.f32.xlu0 %v3465
      %v3467 = vpop.xlane.xlu0 %3466
      %v3468 = vsel %vm3446, %v3443, -inf
      %3469 = vmax.xlane.f32.xlu0 %v3468
      %v3470 = vpop.xlane.xlu0 %3469
      %v3471 = vsub.f32 %v3416, %v3449
      %v3472 = vsub.f32 %v3419, %v3452
      %v3473 = vsub.f32 %v3424, %v3455
      %v3474 = vsub.f32 %v3427, %v3458
      %v3475 = vsub.f32 %v3432, %v3461
      %v3476 = vsub.f32 %v3435, %v3464
      %v3477 = vsub.f32 %v3440, %v3467
      %v3478 = vsub.f32 %v3443, %v3470
      %v3479 = vmul.f32 %v3471, 1.442695
      %v3480 = vpow.pop %v3479
      %v3481 = vmul.f32 %v3472, 1.442695
      %v3482 = vpow.pop %v3481
      %v3483 = vmul.f32 %v3473, 1.442695
      %v3484 = vpow.pop %v3483
      %v3485 = vmul.f32 %v3474, 1.442695
      %v3486 = vpow.pop %v3485
      %v3487 = vmul.f32 %v3475, 1.442695
      %v3488 = vpow.pop %v3487
      %v3489 = vmul.f32 %v3476, 1.442695
      %v3490 = vpow.pop %v3489
      %v3491 = vmul.f32 %v3477, 1.442695
      %v3492 = vpow.pop %v3491
      %v3493 = vmul.f32 %v3478, 1.442695
      %v3494 = vpow.pop %v3493
      %v3495 = vsel %vm3446, %v3480, 0.0
      %3496 = vadd.xlane.f32.xlu0 %v3495
      %v3497 = vpop.xlane.xlu0 %3496
      %v3498 = vsel %vm3446, %v3482, 0.0
      %3499 = vadd.xlane.f32.xlu0 %v3498
      %v3500 = vpop.xlane.xlu0 %3499
      %v3501 = vsel %vm3446, %v3484, 0.0
      %3502 = vadd.xlane.f32.xlu0 %v3501
      %v3503 = vpop.xlane.xlu0 %3502
      %v3504 = vsel %vm3446, %v3486, 0.0
      %3505 = vadd.xlane.f32.xlu0 %v3504
      %v3506 = vpop.xlane.xlu0 %3505
      %v3507 = vsel %vm3446, %v3488, 0.0
      %3508 = vadd.xlane.f32.xlu0 %v3507
      %v3509 = vpop.xlane.xlu0 %3508
      %v3510 = vsel %vm3446, %v3490, 0.0
      %3511 = vadd.xlane.f32.xlu0 %v3510
      %v3512 = vpop.xlane.xlu0 %3511
      %v3513 = vsel %vm3446, %v3492, 0.0
      %3514 = vadd.xlane.f32.xlu0 %v3513
      %v3515 = vpop.xlane.xlu0 %3514
      %v3516 = vsel %vm3446, %v3494, 0.0
      %3517 = vadd.xlane.f32.xlu0 %v3516
      %v3518 = vpop.xlane.xlu0 %3517
      %v3519 = vrcp.pop %v3497
      %v3520 = vrcp.pop %v3500
      %v3521 = vrcp.pop %v3503
      %v3522 = vrcp.pop %v3506
      %v3523 = vrcp.pop %v3509
      %v3524 = vrcp.pop %v3512
      %v3525 = vrcp.pop %v3515
      %v3526 = vrcp.pop %v3518
      %v3527 = vpack.c.bf16 %v3482, %v3480
      %v3528 = vpack.c.bf16 %v3486, %v3484
      %v3529 = vpack.c.bf16 %v3490, %v3488
      %v3530 = vpack.c.bf16 %v3494, %v3492
      %v3532 = vsel %vm3446, %v3527, 0
      %v3535 = vsel %vm3446, %v3528, 0
      %v3538 = vsel %vm3446, %v3529, 0
      %v3541 = vsel %vm3446, %v3530, 0
      %vm3543 = vcmask 1043456
      %v3545 = vsel %vm3543, %v3107, 0
      %3547 = vmatprep.subr.bf16.mxu0 0
      %3548 = vmatpush1.bf16.msra.mxu0 %v3545
      %3549 = vmatprep.subr.bf16.mxu0 0
      %3550 = vmatpush1.bf16.msra.mxu0 0
      %3551 = vmatprep.subr.bf16.mxu0 0
      %3552 = vmatpush1.bf16.msra.mxu0 0
      %3553 = vmatprep.subr.bf16.mxu0 0
      %3554 = vmatpush1.bf16.msra.mxu0 0
      %3555 = vmatprep.subr.bf16.mxu0 0
      %3556 = vmatpush1.bf16.msra.mxu0 0
      %3557 = vmatprep.subr.bf16.mxu0 0
      %3558 = vmatpush1.bf16.msra.mxu0 0
      %3559 = vmatprep.subr.bf16.mxu0 0
      %3560 = vmatpush1.bf16.msra.mxu0 0
      %3561 = vmatprep.subr.bf16.mxu0 0
      %3562 = vmatpush1.bf16.msra.mxu0 0
      %3563 = vmatprep.subr.bf16.mxu0 0
      %3564 = vmatpush1.bf16.msra.mxu0 0
      %3565 = vmatprep.subr.bf16.mxu0 0
      %3566 = vmatpush1.bf16.msra.mxu0 0
      %3567 = vmatprep.subr.bf16.mxu0 0
      %3568 = vmatpush1.bf16.msra.mxu0 0
      %3569 = vmatprep.subr.bf16.mxu0 0
      %3570 = vmatpush1.bf16.msra.mxu0 0
      %3571 = vmatprep.subr.bf16.mxu0 0
      %3572 = vmatpush1.bf16.msra.mxu0 0
      %3573 = vmatprep.subr.bf16.mxu0 0
      %3574 = vmatpush1.bf16.msra.mxu0 0
      %3575 = vmatprep.subr.bf16.mxu0 0
      %3576 = vmatpush1.bf16.msra.mxu0 0
      %3577 = vmatprep.subr.bf16.mxu0 0
      %3578 = vmatpush1.bf16.msra.mxu0 0
      %3579 = vmatprep.mubr.bf16.mxu0 0
      %3580 = vmatmul.mubr.bf16.gmra.mrb[0].mxu0 %v3532
      %v3581 = vpop.f32.mrb[0].mxu0
      %v3582 = vadd.f32 0.0, %v3581
      %v3583 = vpop.f32.mrb[0].mxu0
      %v3584 = vpop.f32.mrb[0].mxu0
      %v3585 = vadd.f32 0.0, %v3584
      %v3586 = vpop.f32.mrb[0].mxu0
      %3587 = vmatprep.mubr.bf16.mxu0 0
      %3588 = vmatmul.mubr.bf16.gmra.mrb[0].mxu0 %v3535
      %v3589 = vpop.f32.mrb[0].mxu0
      %v3590 = vadd.f32 0.0, %v3589
      %v3591 = vpop.f32.mrb[0].mxu0
      %v3592 = vpop.f32.mrb[0].mxu0
      %v3593 = vadd.f32 0.0, %v3592
      %v3594 = vpop.f32.mrb[0].mxu0
      %3595 = vmatprep.mubr.bf16.mxu0 0
      %3596 = vmatmul.mubr.bf16.gmra.mrb[0].mxu0 %v3538
      %v3597 = vpop.f32.mrb[0].mxu0
      %v3598 = vadd.f32 0.0, %v3597
      %v3599 = vpop.f32.mrb[0].mxu0
      %v3600 = vpop.f32.mrb[0].mxu0
      %v3601 = vadd.f32 0.0, %v3600
      %v3602 = vpop.f32.mrb[0].mxu0
      %3603 = vmatprep.mubr.bf16.mxu0 0
      %3604 = vmatmul.mubr.bf16.gmra.mrb[0].mxu0 %v3541
      %v3605 = vpop.f32.mrb[0].mxu0
      %v3606 = vadd.f32 0.0, %v3605
      %v3607 = vpop.f32.mrb[0].mxu0
      %v3608 = vpop.f32.mrb[0].mxu0
      %v3609 = vadd.f32 0.0, %v3608
      %v3610 = vpop.f32.mrb[0].mxu0
      %3611 = vdwg.mxu0
      %v3612 = vmul.f32 %v3582, %v3519
      %v3613 = vmul.f32 %v3585, %v3520
      %v3614 = vmul.f32 %v3590, %v3521
      %v3615 = vmul.f32 %v3593, %v3522
      %v3616 = vmul.f32 %v3598, %v3523
      %v3617 = vmul.f32 %v3601, %v3524
      %v3618 = vmul.f32 %v3606, %v3525
      %v3619 = vmul.f32 %v3609, %v3526
      %v3620 = vpack.c.bf16 %v3613, %v3612
      %v3621 = vpack.c.bf16 %v3615, %v3614
      %v3622 = vpack.c.bf16 %v3617, %v3616
      %v3623 = vpack.c.bf16 %v3619, %v3618
      %v3625 = vlaneseq
      %v3626 = vshrl.u32 %v3625, 7
      %v3627 = vsub.s32 0, %v3626
      %v3628 = vrot.slane %v3116, %v3627
      %v3638 = vunpack.c.l.b16 %v3108
      %v3639 = vunpack.c.l.b16 %v3109
      %v3640 = vunpack.c.l.b16 %v3110
      %v3641 = vunpack.c.l.b16 %v3111
      %v3642 = vunpack.c.l.b16 %v3112
      %v3643 = vunpack.c.l.b16 %v3113
      %v3644 = vunpack.c.l.b16 %v3114
      %v3645 = vunpack.c.l.b16 %v3115
      %v3646 = vpack.c.b16 %v3639, %v3638
      %v3647 = vpack.c.b16 %v3641, %v3640
      %v3648 = vpack.c.b16 %v3643, %v3642
      %v3649 = vpack.c.b16 %v3645, %v3644
      %v3655 = vsel %vm2468, %v3620, 0
      %v3658 = vsel %vm2468, %v3621, 0
      %v3661 = vsel %vm2468, %v3622, 0
      %v3664 = vsel %vm2468, %v3623, 0
      %3666 = vmatprep.subr.bf16.mxu0 0
      %3667 = vmatpush1.bf16.msra.mxu0 %v3646
      %3668 = vmatprep.subr.bf16.mxu0 0
      %3669 = vmatpush1.bf16.msra.mxu0 %v3647
      %3670 = vmatprep.subr.bf16.mxu0 0
      %3671 = vmatpush1.bf16.msra.mxu0 %v3648
      %3672 = vmatprep.subr.bf16.mxu0 0
      %3673 = vmatpush1.bf16.msra.mxu0 %v3649
      %3674 = vmatprep.subr.bf16.mxu0 0
      %3675 = vmatpush1.bf16.msra.mxu0 0
      %3676 = vmatprep.subr.bf16.mxu0 0
      %3677 = vmatpush1.bf16.msra.mxu0 0
      %3678 = vmatprep.subr.bf16.mxu0 0
      %3679 = vmatpush1.bf16.msra.mxu0 0
      %3680 = vmatprep.subr.bf16.mxu0 0
      %3681 = vmatpush1.bf16.msra.mxu0 0
      %3682 = vmatprep.subr.bf16.mxu0 0
      %3683 = vmatpush1.bf16.msra.mxu0 0
      %3684 = vmatprep.subr.bf16.mxu0 0
      %3685 = vmatpush1.bf16.msra.mxu0 0
      %3686 = vmatprep.subr.bf16.mxu0 0
      %3687 = vmatpush1.bf16.msra.mxu0 0
      %3688 = vmatprep.subr.bf16.mxu0 0
      %3689 = vmatpush1.bf16.msra.mxu0 0
      %3690 = vmatprep.subr.bf16.mxu0 0
      %3691 = vmatpush1.bf16.msra.mxu0 0
      %3692 = vmatprep.subr.bf16.mxu0 0
      %3693 = vmatpush1.bf16.msra.mxu0 0
      %3694 = vmatprep.subr.bf16.mxu0 0
      %3695 = vmatpush1.bf16.msra.mxu0 0
      %3696 = vmatprep.subr.bf16.mxu0 0
      %3697 = vmatpush1.bf16.msra.mxu0 0
      %3698 = vmatprep.mubr.bf16.mxu0 0
      %3699 = vmatmul.mubr.bf16.gmra.mrb[0].mxu0 %v3655
      %v3700 = vpop.f32.mrb[0].mxu0
      %v3701 = vadd.f32 %v3628, %v3700
      %v3702 = vpop.f32.mrb[0].mxu0
      %v3703 = vpop.f32.mrb[0].mxu0
      %v3704 = vadd.f32 %v3628, %v3703
      %v3705 = vpop.f32.mrb[0].mxu0
      %3706 = vmatprep.mubr.bf16.mxu0 0
      %3707 = vmatmul.mubr.bf16.gmra.mrb[0].mxu0 %v3658
      %v3708 = vpop.f32.mrb[0].mxu0
      %v3709 = vadd.f32 %v3628, %v3708
      %v3710 = vpop.f32.mrb[0].mxu0
      %v3711 = vpop.f32.mrb[0].mxu0
      %v3712 = vadd.f32 %v3628, %v3711
      %v3713 = vpop.f32.mrb[0].mxu0
      %3714 = vmatprep.mubr.bf16.mxu0 0
      %3715 = vmatmul.mubr.bf16.gmra.mrb[0].mxu0 %v3661
      %v3716 = vpop.f32.mrb[0].mxu0
      %v3717 = vadd.f32 %v3628, %v3716
      %v3718 = vpop.f32.mrb[0].mxu0
      %v3719 = vpop.f32.mrb[0].mxu0
      %v3720 = vadd.f32 %v3628, %v3719
      %v3721 = vpop.f32.mrb[0].mxu0
      %3722 = vmatprep.mubr.bf16.mxu0 0
      %3723 = vmatmul.mubr.bf16.gmra.mrb[0].mxu0 %v3664
      %v3724 = vpop.f32.mrb[0].mxu0
      %v3725 = vadd.f32 %v3628, %v3724
      %v3726 = vpop.f32.mrb[0].mxu0
      %v3727 = vpop.f32.mrb[0].mxu0
      %v3728 = vadd.f32 %v3628, %v3727
      %v3729 = vpop.f32.mrb[0].mxu0
      %3730 = vdwg.mxu0
      %v3731 = vadd.f32 %v3701, %v3088
      %v3732 = vadd.f32 %v3704, %v3089
      %v3733 = vadd.f32 %v3709, %v3090
      %v3734 = vadd.f32 %v3712, %v3091
      %v3735 = vadd.f32 %v3717, %v3092
      %v3736 = vadd.f32 %v3720, %v3093
      %v3737 = vadd.f32 %v3725, %v3094
      %v3738 = vadd.f32 %v3728, %v3095
      %v3739 = vld [vmem:[%s14] sm:$0x1]
      %v3740 = vld [vmem:[%s15] sm:$0x1]
      %v3741 = vsel %vm2468, %v3731, 0.0
      %3742 = vadd.xlane.f32.xlu0 %v3741
      %v3743 = vpop.xlane.xlu0 %3742
      %v3744 = vsel %vm2468, %v3732, 0.0
      %3745 = vadd.xlane.f32.xlu0 %v3744
      %v3746 = vpop.xlane.xlu0 %3745
      %v3747 = vsel %vm2468, %v3733, 0.0
      %3748 = vadd.xlane.f32.xlu0 %v3747
      %v3749 = vpop.xlane.xlu0 %3748
      %v3750 = vsel %vm2468, %v3734, 0.0
      %3751 = vadd.xlane.f32.xlu0 %v3750
      %v3752 = vpop.xlane.xlu0 %3751
      %v3753 = vsel %vm2468, %v3735, 0.0
      %3754 = vadd.xlane.f32.xlu0 %v3753
      %v3755 = vpop.xlane.xlu0 %3754
      %v3756 = vsel %vm2468, %v3736, 0.0
      %3757 = vadd.xlane.f32.xlu0 %v3756
      %v3758 = vpop.xlane.xlu0 %3757
      %v3759 = vsel %vm2468, %v3737, 0.0
      %3760 = vadd.xlane.f32.xlu0 %v3759
      %v3761 = vpop.xlane.xlu0 %3760
      %v3762 = vsel %vm2468, %v3738, 0.0
      %3763 = vadd.xlane.f32.xlu0 %v3762
      %v3764 = vpop.xlane.xlu0 %3763
      %v3765 = vmul.f32 %v3743, %v2493
      %v3766 = vmul.f32 %v3746, %v2493
      %v3767 = vmul.f32 %v3749, %v2493
      %v3768 = vmul.f32 %v3752, %v2493
      %v3769 = vmul.f32 %v3755, %v2493
      %v3770 = vmul.f32 %v3758, %v2493
      %v3771 = vmul.f32 %v3761, %v2493
      %v3772 = vmul.f32 %v3764, %v2493
      %v3773 = vsub.f32 %v3731, %v3765
      %v3774 = vsub.f32 %v3732, %v3766
      %v3775 = vsub.f32 %v3733, %v3767
      %v3776 = vsub.f32 %v3734, %v3768
      %v3777 = vsub.f32 %v3735, %v3769
      %v3778 = vsub.f32 %v3736, %v3770
      %v3779 = vsub.f32 %v3737, %v3771
      %v3780 = vsub.f32 %v3738, %v3772
      %v3781 = vmul.f32 %v3773, %v3773
      %v3782 = vmul.f32 %v3774, %v3774
      %v3783 = vmul.f32 %v3775, %v3775
      %v3784 = vmul.f32 %v3776, %v3776
      %v3785 = vmul.f32 %v3777, %v3777
      %v3786 = vmul.f32 %v3778, %v3778
      %v3787 = vmul.f32 %v3779, %v3779
      %v3788 = vmul.f32 %v3780, %v3780
      %v3789 = vsel %vm2468, %v3781, 0.0
      %3790 = vadd.xlane.f32.xlu0 %v3789
      %v3791 = vpop.xlane.xlu0 %3790
      %v3792 = vsel %vm2468, %v3782, 0.0
      %3793 = vadd.xlane.f32.xlu0 %v3792
      %v3794 = vpop.xlane.xlu0 %3793
      %v3795 = vsel %vm2468, %v3783, 0.0
      %3796 = vadd.xlane.f32.xlu0 %v3795
      %v3797 = vpop.xlane.xlu0 %3796
      %v3798 = vsel %vm2468, %v3784, 0.0
      %3799 = vadd.xlane.f32.xlu0 %v3798
      %v3800 = vpop.xlane.xlu0 %3799
      %v3801 = vsel %vm2468, %v3785, 0.0
      %3802 = vadd.xlane.f32.xlu0 %v3801
      %v3803 = vpop.xlane.xlu0 %3802
      %v3804 = vsel %vm2468, %v3786, 0.0
      %3805 = vadd.xlane.f32.xlu0 %v3804
      %v3806 = vpop.xlane.xlu0 %3805
      %v3807 = vsel %vm2468, %v3787, 0.0
      %3808 = vadd.xlane.f32.xlu0 %v3807
      %v3809 = vpop.xlane.xlu0 %3808
      %v3810 = vsel %vm2468, %v3788, 0.0
      %3811 = vadd.xlane.f32.xlu0 %v3810
      %v3812 = vpop.xlane.xlu0 %3811
      %v3813 = vmul.f32 %v3791, %v2493
      %v3814 = vmul.f32 %v3794, %v2493
      %v3815 = vmul.f32 %v3797, %v2493
      %v3816 = vmul.f32 %v3800, %v2493
      %v3817 = vmul.f32 %v3803, %v2493
      %v3818 = vmul.f32 %v3806, %v2493
      %v3819 = vmul.f32 %v3809, %v2493
      %v3820 = vmul.f32 %v3812, %v2493
      %v3821 = vadd.f32 %v3813, 1e-05
      %v3822 = vadd.f32 %v3814, 1e-05
      %v3823 = vadd.f32 %v3815, 1e-05
      %v3824 = vadd.f32 %v3816, 1e-05
      %v3825 = vadd.f32 %v3817, 1e-05
      %v3826 = vadd.f32 %v3818, 1e-05
      %v3827 = vadd.f32 %v3819, 1e-05
      %v3828 = vadd.f32 %v3820, 1e-05
      %v3829 = vrsqrt.pop %v3821
      %v3830 = vrsqrt.pop %v3822
      %v3831 = vrsqrt.pop %v3823
      %v3832 = vrsqrt.pop %v3824
      %v3833 = vrsqrt.pop %v3825
      %v3834 = vrsqrt.pop %v3826
      %v3835 = vrsqrt.pop %v3827
      %v3836 = vrsqrt.pop %v3828
      %v3837 = vmul.f32 %v3773, %v3829
      %v3838 = vmul.f32 %v3774, %v3830
      %v3839 = vmul.f32 %v3775, %v3831
      %v3840 = vmul.f32 %v3776, %v3832
      %v3841 = vmul.f32 %v3777, %v3833
      %v3842 = vmul.f32 %v3778, %v3834
      %v3843 = vmul.f32 %v3779, %v3835
      %v3844 = vmul.f32 %v3780, %v3836
      %v3846 = vlaneseq
      %v3847 = vshrl.u32 %v3846, 7
      %v3848 = vsub.s32 0, %v3847
      %v3849 = vrot.slane %v3739, %v3848
      %v3851 = vmul.f32 %v3837, %v3849
      %v3852 = vmul.f32 %v3838, %v3849
      %v3853 = vmul.f32 %v3839, %v3849
      %v3854 = vmul.f32 %v3840, %v3849
      %v3855 = vmul.f32 %v3841, %v3849
      %v3856 = vmul.f32 %v3842, %v3849
      %v3857 = vmul.f32 %v3843, %v3849
      %v3858 = vmul.f32 %v3844, %v3849
      %v3860 = vlaneseq
      %v3861 = vshrl.u32 %v3860, 7
      %v3862 = vsub.s32 0, %v3861
      %v3863 = vrot.slane %v3740, %v3862
      %v3865 = vadd.f32 %v3851, %v3863
      %v3866 = vadd.f32 %v3852, %v3863
      %v3867 = vadd.f32 %v3853, %v3863
      %v3868 = vadd.f32 %v3854, %v3863
      %v3869 = vadd.f32 %v3855, %v3863
      %v3870 = vadd.f32 %v3856, %v3863
      %v3871 = vadd.f32 %v3857, %v3863
      %v3872 = vadd.f32 %v3858, %v3863
      %v3873 = vpack.c.bf16 %v3866, %v3865
      %v3874 = vpack.c.bf16 %v3868, %v3867
      %v3875 = vpack.c.bf16 %v3870, %v3869
      %v3876 = vpack.c.bf16 %v3872, %v3871
      %v3877 = vld [vmem:[%s16] sm:$0xff]
      %v3878 = vld [vmem:[%s16 + $0x8] sm:$0xff]
      %v3879 = vld [vmem:[%s16 + $0x10] sm:$0xff]
      %v3880 = vld [vmem:[%s16 + $0x18] sm:$0xff]
      %v3881 = vld [vmem:[%s16 + $0x20] sm:$0xff]
      %v3882 = vld [vmem:[%s16 + $0x28] sm:$0xff]
      %v3883 = vld [vmem:[%s16 + $0x30] sm:$0xff]
      %v3884 = vld [vmem:[%s16 + $0x38] sm:$0xff]
      %v3885 = vld [vmem:[%s16 + $0x40] sm:$0xff]
      %v3886 = vld [vmem:[%s16 + $0x48] sm:$0xff]
      %v3887 = vld [vmem:[%s16 + $0x50] sm:$0xff]
      %v3888 = vld [vmem:[%s16 + $0x58] sm:$0xff]
      %v3889 = vld [vmem:[%s16 + $0x60] sm:$0xff]
      %v3890 = vld [vmem:[%s16 + $0x68] sm:$0xff]
      %v3891 = vld [vmem:[%s16 + $0x70] sm:$0xff]
      %v3892 = vld [vmem:[%s16 + $0x78] sm:$0xff]
      %v3893 = vld [vmem:[%s17] sm:$0xf]
      %v3895 = vlaneseq
      %v3896 = vshrl.u32 %v3895, 7
      %v3897 = vsub.s32 0, %v3896
      %v3898 = vrot.slane %v3893, %v3897
      %v3899 = vlaneseq
      %v3900 = vshrl.u32 %v3899, 7
      %v3901 = vsub.s32 1, %v3900
      %v3902 = vrot.slane %v3893, %v3901
      %v3903 = vlaneseq
      %v3904 = vshrl.u32 %v3903, 7
      %v3905 = vsub.s32 2, %v3904
      %v3906 = vrot.slane %v3893, %v3905
      %v3907 = vlaneseq
      %v3908 = vshrl.u32 %v3907, 7
      %v3909 = vsub.s32 3, %v3908
      %v3910 = vrot.slane %v3893, %v3909
      %v3931 = vunpack.c.l.b16 %v3877
      %v3932 = vunpack.c.h.b16 %v3877
      %v3933 = vunpack.c.l.b16 %v3878
      %v3934 = vunpack.c.h.b16 %v3878
      %v3935 = vunpack.c.l.b16 %v3879
      %v3936 = vunpack.c.h.b16 %v3879
      %v3937 = vunpack.c.l.b16 %v3880
      %v3938 = vunpack.c.h.b16 %v3880
      %v3939 = vunpack.c.l.b16 %v3881
      %v3940 = vunpack.c.h.b16 %v3881
      %v3941 = vunpack.c.l.b16 %v3882
      %v3942 = vunpack.c.h.b16 %v3882
      %v3943 = vunpack.c.l.b16 %v3883
      %v3944 = vunpack.c.h.b16 %v3883
      %v3945 = vunpack.c.l.b16 %v3884
      %v3946 = vunpack.c.h.b16 %v3884
      %v3947 = vunpack.c.l.b16 %v3885
      %v3948 = vunpack.c.h.b16 %v3885
      %v3949 = vunpack.c.l.b16 %v3886
      %v3950 = vunpack.c.h.b16 %v3886
      %v3951 = vunpack.c.l.b16 %v3887
      %v3952 = vunpack.c.h.b16 %v3887
      %v3953 = vunpack.c.l.b16 %v3888
      %v3954 = vunpack.c.h.b16 %v3888
      %v3955 = vunpack.c.l.b16 %v3889
      %v3956 = vunpack.c.h.b16 %v3889
      %v3957 = vunpack.c.l.b16 %v3890
      %v3958 = vunpack.c.h.b16 %v3890
      %v3959 = vunpack.c.l.b16 %v3891
      %v3960 = vunpack.c.h.b16 %v3891
      %v3961 = vunpack.c.l.b16 %v3892
      %v3962 = vunpack.c.h.b16 %v3892
      %v3963 = vpack.c.b16 %v3935, %v3931
      %v3964 = vpack.c.b16 %v3936, %v3932
      %v3965 = vpack.c.b16 %v3937, %v3933
      %v3966 = vpack.c.b16 %v3938, %v3934
      %v3967 = vpack.c.b16 %v3943, %v3939
      %v3968 = vpack.c.b16 %v3944, %v3940
      %v3969 = vpack.c.b16 %v3945, %v3941
      %v3970 = vpack.c.b16 %v3946, %v3942
      %v3971 = vpack.c.b16 %v3951, %v3947
      %v3972 = vpack.c.b16 %v3952, %v3948
      %v3973 = vpack.c.b16 %v3953, %v3949
      %v3974 = vpack.c.b16 %v3954, %v3950
      %v3975 = vpack.c.b16 %v3959, %v3955
      %v3976 = vpack.c.b16 %v3960, %v3956
      %v3977 = vpack.c.b16 %v3961, %v3957
      %v3978 = vpack.c.b16 %v3962, %v3958
      %v3996 = vsel %vm2468, %v3873, 0
      %v3999 = vsel %vm2468, %v3874, 0
      %v4002 = vsel %vm2468, %v3875, 0
      %v4005 = vsel %vm2468, %v3876, 0
      %4007 = vmatprep.subr.bf16.mxu0 %v3964
      %4008 = vmatpush1.bf16.msra.mxu0 %v3963
      %4009 = vmatprep.subr.bf16.mxu0 %v3968
      %4010 = vmatpush1.bf16.msra.mxu0 %v3967
      %4011 = vmatprep.subr.bf16.mxu0 %v3972
      %4012 = vmatpush1.bf16.msra.mxu0 %v3971
      %4013 = vmatprep.subr.bf16.mxu0 %v3976
      %4014 = vmatpush1.bf16.msra.mxu0 %v3975
      %4015 = vmatprep.subr.bf16.mxu0 0
      %4016 = vmatpush1.bf16.msra.mxu0 0
      %4017 = vmatprep.subr.bf16.mxu0 0
      %4018 = vmatpush1.bf16.msra.mxu0 0
      %4019 = vmatprep.subr.bf16.mxu0 0
      %4020 = vmatpush1.bf16.msra.mxu0 0
      %4021 = vmatprep.subr.bf16.mxu0 0
      %4022 = vmatpush1.bf16.msra.mxu0 0
      %4023 = vmatprep.subr.bf16.mxu0 0
      %4024 = vmatpush1.bf16.msra.mxu0 0
      %4025 = vmatprep.subr.bf16.mxu0 0
      %4026 = vmatpush1.bf16.msra.mxu0 0
      %4027 = vmatprep.subr.bf16.mxu0 0
      %4028 = vmatpush1.bf16.msra.mxu0 0
      %4029 = vmatprep.subr.bf16.mxu0 0
      %4030 = vmatpush1.bf16.msra.mxu0 0
      %4031 = vmatprep.subr.bf16.mxu0 0
      %4032 = vmatpush1.bf16.msra.mxu0 0
      %4033 = vmatprep.subr.bf16.mxu0 0
      %4034 = vmatpush1.bf16.msra.mxu0 0
      %4035 = vmatprep.subr.bf16.mxu0 0
      %4036 = vmatpush1.bf16.msra.mxu0 0
      %4037 = vmatprep.subr.bf16.mxu0 0
      %4038 = vmatpush1.bf16.msra.mxu0 0
      %4039 = vmatprep.mubr.bf16.mxu0 0
      %4040 = vmatmul.mubr.bf16.gmra.mrb[0].mxu0 %v3996
      %v4041 = vpop.f32.mrb[0].mxu0
      %v4042 = vadd.f32 %v3898, %v4041
      %v4043 = vpop.f32.mrb[0].mxu0
      %v4044 = vadd.f32 %v3902, %v4043
      %v4045 = vpop.f32.mrb[0].mxu0
      %v4046 = vadd.f32 %v3898, %v4045
      %v4047 = vpop.f32.mrb[0].mxu0
      %v4048 = vadd.f32 %v3902, %v4047
      %4049 = vmatprep.mubr.bf16.mxu0 0
      %4050 = vmatmul.mubr.bf16.gmra.mrb[0].mxu0 %v3999
      %v4051 = vpop.f32.mrb[0].mxu0
      %v4052 = vadd.f32 %v3898, %v4051
      %v4053 = vpop.f32.mrb[0].mxu0
      %v4054 = vadd.f32 %v3902, %v4053
      %v4055 = vpop.f32.mrb[0].mxu0
      %v4056 = vadd.f32 %v3898, %v4055
      %v4057 = vpop.f32.mrb[0].mxu0
      %v4058 = vadd.f32 %v3902, %v4057
      %4059 = vmatprep.mubr.bf16.mxu0 0
      %4060 = vmatmul.mubr.bf16.gmra.mrb[0].mxu0 %v4002
      %v4061 = vpop.f32.mrb[0].mxu0
      %v4062 = vadd.f32 %v3898, %v4061
      %v4063 = vpop.f32.mrb[0].mxu0
      %v4064 = vadd.f32 %v3902, %v4063
      %v4065 = vpop.f32.mrb[0].mxu0
      %v4066 = vadd.f32 %v3898, %v4065
      %v4067 = vpop.f32.mrb[0].mxu0
      %v4068 = vadd.f32 %v3902, %v4067
      %4069 = vmatprep.mubr.bf16.mxu0 0
      %4070 = vmatmul.mubr.bf16.gmra.mrb[0].mxu0 %v4005
      %v4071 = vpop.f32.mrb[0].mxu0
      %v4072 = vadd.f32 %v3898, %v4071
      %v4073 = vpop.f32.mrb[0].mxu0
      %v4074 = vadd.f32 %v3902, %v4073
      %v4075 = vpop.f32.mrb[0].mxu0
      %v4076 = vadd.f32 %v3898, %v4075
      %v4077 = vpop.f32.mrb[0].mxu0
      %v4078 = vadd.f32 %v3902, %v4077
      %4079 = vdwg.mxu0
      %4080 = vmatprep.subr.bf16.mxu0 %v3966
      %4081 = vmatpush1.bf16.msra.mxu0 %v3965
      %4082 = vmatprep.subr.bf16.mxu0 %v3970
      %4083 = vmatpush1.bf16.msra.mxu0 %v3969
      %4084 = vmatprep.subr.bf16.mxu0 %v3974
      %4085 = vmatpush1.bf16.msra.mxu0 %v3973
      %4086 = vmatprep.subr.bf16.mxu0 %v3978
      %4087 = vmatpush1.bf16.msra.mxu0 %v3977
      %4088 = vmatprep.subr.bf16.mxu0 0
      %4089 = vmatpush1.bf16.msra.mxu0 0
      %4090 = vmatprep.subr.bf16.mxu0 0
      %4091 = vmatpush1.bf16.msra.mxu0 0
      %4092 = vmatprep.subr.bf16.mxu0 0
      %4093 = vmatpush1.bf16.msra.mxu0 0
      %4094 = vmatprep.subr.bf16.mxu0 0
      %4095 = vmatpush1.bf16.msra.mxu0 0
      %4096 = vmatprep.subr.bf16.mxu0 0
      %4097 = vmatpush1.bf16.msra.mxu0 0
      %4098 = vmatprep.subr.bf16.mxu0 0
      %4099 = vmatpush1.bf16.msra.mxu0 0
      %4100 = vmatprep.subr.bf16.mxu0 0
      %4101 = vmatpush1.bf16.msra.mxu0 0
      %4102 = vmatprep.subr.bf16.mxu0 0
      %4103 = vmatpush1.bf16.msra.mxu0 0
      %4104 = vmatprep.subr.bf16.mxu0 0
      %4105 = vmatpush1.bf16.msra.mxu0 0
      %4106 = vmatprep.subr.bf16.mxu0 0
      %4107 = vmatpush1.bf16.msra.mxu0 0
      %4108 = vmatprep.subr.bf16.mxu0 0
      %4109 = vmatpush1.bf16.msra.mxu0 0
      %4110 = vmatprep.subr.bf16.mxu0 0
      %4111 = vmatpush1.bf16.msra.mxu0 0
      %4112 = vmatprep.mubr.bf16.mxu0 0
      %4113 = vmatmul.mubr.bf16.gmra.mrb[0].mxu0 %v3996
      %v4114 = vpop.f32.mrb[0].mxu0
      %v4115 = vadd.f32 %v3906, %v4114
      %v4116 = vpop.f32.mrb[0].mxu0
      %v4117 = vadd.f32 %v3910, %v4116
      %v4118 = vpop.f32.mrb[0].mxu0
      %v4119 = vadd.f32 %v3906, %v4118
      %v4120 = vpop.f32.mrb[0].mxu0
      %v4121 = vadd.f32 %v3910, %v4120
      %4122 = vmatprep.mubr.bf16.mxu0 0
      %4123 = vmatmul.mubr.bf16.gmra.mrb[0].mxu0 %v3999
      %v4124 = vpop.f32.mrb[0].mxu0
      %v4125 = vadd.f32 %v3906, %v4124
      %v4126 = vpop.f32.mrb[0].mxu0
      %v4127 = vadd.f32 %v3910, %v4126
      %v4128 = vpop.f32.mrb[0].mxu0
      %v4129 = vadd.f32 %v3906, %v4128
      %v4130 = vpop.f32.mrb[0].mxu0
      %v4131 = vadd.f32 %v3910, %v4130
      %4132 = vmatprep.mubr.bf16.mxu0 0
      %4133 = vmatmul.mubr.bf16.gmra.mrb[0].mxu0 %v4002
      %v4134 = vpop.f32.mrb[0].mxu0
      %v4135 = vadd.f32 %v3906, %v4134
      %v4136 = vpop.f32.mrb[0].mxu0
      %v4137 = vadd.f32 %v3910, %v4136
      %v4138 = vpop.f32.mrb[0].mxu0
      %v4139 = vadd.f32 %v3906, %v4138
      %v4140 = vpop.f32.mrb[0].mxu0
      %v4141 = vadd.f32 %v3910, %v4140
      %4142 = vmatprep.mubr.bf16.mxu0 0
      %4143 = vmatmul.mubr.bf16.gmra.mrb[0].mxu0 %v4005
      %v4144 = vpop.f32.mrb[0].mxu0
      %v4145 = vadd.f32 %v3906, %v4144
      %v4146 = vpop.f32.mrb[0].mxu0
      %v4147 = vadd.f32 %v3910, %v4146
      %v4148 = vpop.f32.mrb[0].mxu0
      %v4149 = vadd.f32 %v3906, %v4148
      %v4150 = vpop.f32.mrb[0].mxu0
      %v4151 = vadd.f32 %v3910, %v4150
      %4152 = vdwg.mxu0
      %v4153 = vmul.f32 %v4115, 0.5
      %v4154 = vmul.f32 %v4117, 0.5
      %v4155 = vmul.f32 %v4119, 0.5
      %v4156 = vmul.f32 %v4121, 0.5
      %v4157 = vmul.f32 %v4125, 0.5
      %v4158 = vmul.f32 %v4127, 0.5
      %v4159 = vmul.f32 %v4129, 0.5
      %v4160 = vmul.f32 %v4131, 0.5
      %v4161 = vmul.f32 %v4135, 0.5
      %v4162 = vmul.f32 %v4137, 0.5
      %v4163 = vmul.f32 %v4139, 0.5
      %v4164 = vmul.f32 %v4141, 0.5
      %v4165 = vmul.f32 %v4145, 0.5
      %v4166 = vmul.f32 %v4147, 0.5
      %v4167 = vmul.f32 %v4149, 0.5
      %v4168 = vmul.f32 %v4151, 0.5
      %v4169 = vmul.f32 %v4115, 0.70710677
      %v4170 = vmul.f32 %v4117, 0.70710677
      %v4171 = vmul.f32 %v4119, 0.70710677
      %v4172 = vmul.f32 %v4121, 0.70710677
      %v4173 = vmul.f32 %v4125, 0.70710677
      %v4174 = vmul.f32 %v4127, 0.70710677
      %v4175 = vmul.f32 %v4129, 0.70710677
      %v4176 = vmul.f32 %v4131, 0.70710677
      %v4177 = vmul.f32 %v4135, 0.70710677
      %v4178 = vmul.f32 %v4137, 0.70710677
      %v4179 = vmul.f32 %v4139, 0.70710677
      %v4180 = vmul.f32 %v4141, 0.70710677
      %v4181 = vmul.f32 %v4145, 0.70710677
      %v4182 = vmul.f32 %v4147, 0.70710677
      %v4183 = vmul.f32 %v4149, 0.70710677
      %v4184 = vmul.f32 %v4151, 0.70710677
      %v4185 = vand.u32 2147483647, %v4169
      %v4186 = vand.u32 2147483647, %v4170
      %v4187 = vand.u32 2147483647, %v4171
      %v4188 = vand.u32 2147483647, %v4172
      %v4189 = vand.u32 2147483647, %v4173
      %v4190 = vand.u32 2147483647, %v4174
      %v4191 = vand.u32 2147483647, %v4175
      %v4192 = vand.u32 2147483647, %v4176
      %v4193 = vand.u32 2147483647, %v4177
      %v4194 = vand.u32 2147483647, %v4178
      %v4195 = vand.u32 2147483647, %v4179
      %v4196 = vand.u32 2147483647, %v4180
      %v4197 = vand.u32 2147483647, %v4181
      %v4198 = vand.u32 2147483647, %v4182
      %v4199 = vand.u32 2147483647, %v4183
      %v4200 = vand.u32 2147483647, %v4184
      %v4201 = vmul.f32 %v4185, 0.3275911
      %v4202 = vmul.f32 %v4186, 0.3275911
      %v4203 = vmul.f32 %v4187, 0.3275911
      %v4204 = vmul.f32 %v4188, 0.3275911
      %v4205 = vmul.f32 %v4189, 0.3275911
      %v4206 = vmul.f32 %v4190, 0.3275911
      %v4207 = vmul.f32 %v4191, 0.3275911
      %v4208 = vmul.f32 %v4192, 0.3275911
      %v4209 = vmul.f32 %v4193, 0.3275911
      %v4210 = vmul.f32 %v4194, 0.3275911
      %v4211 = vmul.f32 %v4195, 0.3275911
      %v4212 = vmul.f32 %v4196, 0.3275911
      %v4213 = vmul.f32 %v4197, 0.3275911
      %v4214 = vmul.f32 %v4198, 0.3275911
      %v4215 = vmul.f32 %v4199, 0.3275911
      %v4216 = vmul.f32 %v4200, 0.3275911
      %v4217 = vadd.f32 %v4201, 1.0
      %v4218 = vadd.f32 %v4202, 1.0
      %v4219 = vadd.f32 %v4203, 1.0
      %v4220 = vadd.f32 %v4204, 1.0
      %v4221 = vadd.f32 %v4205, 1.0
      %v4222 = vadd.f32 %v4206, 1.0
      %v4223 = vadd.f32 %v4207, 1.0
      %v4224 = vadd.f32 %v4208, 1.0
      %v4225 = vadd.f32 %v4209, 1.0
      %v4226 = vadd.f32 %v4210, 1.0
      %v4227 = vadd.f32 %v4211, 1.0
      %v4228 = vadd.f32 %v4212, 1.0
      %v4229 = vadd.f32 %v4213, 1.0
      %v4230 = vadd.f32 %v4214, 1.0
      %v4231 = vadd.f32 %v4215, 1.0
      %v4232 = vadd.f32 %v4216, 1.0
      %v4233 = vrcp.pop %v4217
      %v4234 = vmul.f32 1.0, %v4233
      %v4235 = vrcp.pop %v4218
      %v4236 = vmul.f32 1.0, %v4235
      %v4237 = vrcp.pop %v4219
      %v4238 = vmul.f32 1.0, %v4237
      %v4239 = vrcp.pop %v4220
      %v4240 = vmul.f32 1.0, %v4239
      %v4241 = vrcp.pop %v4221
      %v4242 = vmul.f32 1.0, %v4241
      %v4243 = vrcp.pop %v4222
      %v4244 = vmul.f32 1.0, %v4243
      %v4245 = vrcp.pop %v4223
      %v4246 = vmul.f32 1.0, %v4245
      %v4247 = vrcp.pop %v4224
      %v4248 = vmul.f32 1.0, %v4247
      %v4249 = vrcp.pop %v4225
      %v4250 = vmul.f32 1.0, %v4249
      %v4251 = vrcp.pop %v4226
      %v4252 = vmul.f32 1.0, %v4251
      %v4253 = vrcp.pop %v4227
      %v4254 = vmul.f32 1.0, %v4253
      %v4255 = vrcp.pop %v4228
      %v4256 = vmul.f32 1.0, %v4255
      %v4257 = vrcp.pop %v4229
      %v4258 = vmul.f32 1.0, %v4257
      %v4259 = vrcp.pop %v4230
      %v4260 = vmul.f32 1.0, %v4259
      %v4261 = vrcp.pop %v4231
      %v4262 = vmul.f32 1.0, %v4261
      %v4263 = vrcp.pop %v4232
      %v4264 = vmul.f32 1.0, %v4263
      %v4265 = vmul.f32 %v4234, 1.0614054
      %v4266 = vmul.f32 %v4236, 1.0614054
      %v4267 = vmul.f32 %v4238, 1.0614054
      %v4268 = vmul.f32 %v4240, 1.0614054
      %v4269 = vmul.f32 %v4242, 1.0614054
      %v4270 = vmul.f32 %v4244, 1.0614054
      %v4271 = vmul.f32 %v4246, 1.0614054
      %v4272 = vmul.f32 %v4248, 1.0614054
      %v4273 = vmul.f32 %v4250, 1.0614054
      %v4274 = vmul.f32 %v4252, 1.0614054
      %v4275 = vmul.f32 %v4254, 1.0614054
      %v4276 = vmul.f32 %v4256, 1.0614054
      %v4277 = vmul.f32 %v4258, 1.0614054
      %v4278 = vmul.f32 %v4260, 1.0614054
      %v4279 = vmul.f32 %v4262, 1.0614054
      %v4280 = vmul.f32 %v4264, 1.0614054
      %v4281 = vadd.f32 %v4265, -1.4531521
      %v4282 = vadd.f32 %v4266, -1.4531521
      %v4283 = vadd.f32 %v4267, -1.4531521
      %v4284 = vadd.f32 %v4268, -1.4531521
      %v4285 = vadd.f32 %v4269, -1.4531521
      %v4286 = vadd.f32 %v4270, -1.4531521
      %v4287 = vadd.f32 %v4271, -1.4531521
      %v4288 = vadd.f32 %v4272, -1.4531521
      %v4289 = vadd.f32 %v4273, -1.4531521
      %v4290 = vadd.f32 %v4274, -1.4531521
      %v4291 = vadd.f32 %v4275, -1.4531521
      %v4292 = vadd.f32 %v4276, -1.4531521
      %v4293 = vadd.f32 %v4277, -1.4531521
      %v4294 = vadd.f32 %v4278, -1.4531521
      %v4295 = vadd.f32 %v4279, -1.4531521
      %v4296 = vadd.f32 %v4280, -1.4531521
      %v4297 = vmul.f32 %v4234, %v4281
      %v4298 = vmul.f32 %v4236, %v4282
      %v4299 = vmul.f32 %v4238, %v4283
      %v4300 = vmul.f32 %v4240, %v4284
      %v4301 = vmul.f32 %v4242, %v4285
      %v4302 = vmul.f32 %v4244, %v4286
      %v4303 = vmul.f32 %v4246, %v4287
      %v4304 = vmul.f32 %v4248, %v4288
      %v4305 = vmul.f32 %v4250, %v4289
      %v4306 = vmul.f32 %v4252, %v4290
      %v4307 = vmul.f32 %v4254, %v4291
      %v4308 = vmul.f32 %v4256, %v4292
      %v4309 = vmul.f32 %v4258, %v4293
      %v4310 = vmul.f32 %v4260, %v4294
      %v4311 = vmul.f32 %v4262, %v4295
      %v4312 = vmul.f32 %v4264, %v4296
      %v4313 = vadd.f32 %v4297, 1.4214138
      %v4314 = vadd.f32 %v4298, 1.4214138
      %v4315 = vadd.f32 %v4299, 1.4214138
      %v4316 = vadd.f32 %v4300, 1.4214138
      %v4317 = vadd.f32 %v4301, 1.4214138
      %v4318 = vadd.f32 %v4302, 1.4214138
      %v4319 = vadd.f32 %v4303, 1.4214138
      %v4320 = vadd.f32 %v4304, 1.4214138
      %v4321 = vadd.f32 %v4305, 1.4214138
      %v4322 = vadd.f32 %v4306, 1.4214138
      %v4323 = vadd.f32 %v4307, 1.4214138
      %v4324 = vadd.f32 %v4308, 1.4214138
      %v4325 = vadd.f32 %v4309, 1.4214138
      %v4326 = vadd.f32 %v4310, 1.4214138
      %v4327 = vadd.f32 %v4311, 1.4214138
      %v4328 = vadd.f32 %v4312, 1.4214138
      %v4329 = vmul.f32 %v4234, %v4313
      %v4330 = vmul.f32 %v4236, %v4314
      %v4331 = vmul.f32 %v4238, %v4315
      %v4332 = vmul.f32 %v4240, %v4316
      %v4333 = vmul.f32 %v4242, %v4317
      %v4334 = vmul.f32 %v4244, %v4318
      %v4335 = vmul.f32 %v4246, %v4319
      %v4336 = vmul.f32 %v4248, %v4320
      %v4337 = vmul.f32 %v4250, %v4321
      %v4338 = vmul.f32 %v4252, %v4322
      %v4339 = vmul.f32 %v4254, %v4323
      %v4340 = vmul.f32 %v4256, %v4324
      %v4341 = vmul.f32 %v4258, %v4325
      %v4342 = vmul.f32 %v4260, %v4326
      %v4343 = vmul.f32 %v4262, %v4327
      %v4344 = vmul.f32 %v4264, %v4328
      %v4345 = vadd.f32 %v4329, -0.28449672
      %v4346 = vadd.f32 %v4330, -0.28449672
      %v4347 = vadd.f32 %v4331, -0.28449672
      %v4348 = vadd.f32 %v4332, -0.28449672
      %v4349 = vadd.f32 %v4333, -0.28449672
      %v4350 = vadd.f32 %v4334, -0.28449672
      %v4351 = vadd.f32 %v4335, -0.28449672
      %v4352 = vadd.f32 %v4336, -0.28449672
      %v4353 = vadd.f32 %v4337, -0.28449672
      %v4354 = vadd.f32 %v4338, -0.28449672
      %v4355 = vadd.f32 %v4339, -0.28449672
      %v4356 = vadd.f32 %v4340, -0.28449672
      %v4357 = vadd.f32 %v4341, -0.28449672
      %v4358 = vadd.f32 %v4342, -0.28449672
      %v4359 = vadd.f32 %v4343, -0.28449672
      %v4360 = vadd.f32 %v4344, -0.28449672
      %v4361 = vmul.f32 %v4234, %v4345
      %v4362 = vmul.f32 %v4236, %v4346
      %v4363 = vmul.f32 %v4238, %v4347
      %v4364 = vmul.f32 %v4240, %v4348
      %v4365 = vmul.f32 %v4242, %v4349
      %v4366 = vmul.f32 %v4244, %v4350
      %v4367 = vmul.f32 %v4246, %v4351
      %v4368 = vmul.f32 %v4248, %v4352
      %v4369 = vmul.f32 %v4250, %v4353
      %v4370 = vmul.f32 %v4252, %v4354
      %v4371 = vmul.f32 %v4254, %v4355
      %v4372 = vmul.f32 %v4256, %v4356
      %v4373 = vmul.f32 %v4258, %v4357
      %v4374 = vmul.f32 %v4260, %v4358
      %v4375 = vmul.f32 %v4262, %v4359
      %v4376 = vmul.f32 %v4264, %v4360
      %v4377 = vadd.f32 %v4361, 0.2548296
      %v4378 = vadd.f32 %v4362, 0.2548296
      %v4379 = vadd.f32 %v4363, 0.2548296
      %v4380 = vadd.f32 %v4364, 0.2548296
      %v4381 = vadd.f32 %v4365, 0.2548296
      %v4382 = vadd.f32 %v4366, 0.2548296
      %v4383 = vadd.f32 %v4367, 0.2548296
      %v4384 = vadd.f32 %v4368, 0.2548296
      %v4385 = vadd.f32 %v4369, 0.2548296
      %v4386 = vadd.f32 %v4370, 0.2548296
      %v4387 = vadd.f32 %v4371, 0.2548296
      %v4388 = vadd.f32 %v4372, 0.2548296
      %v4389 = vadd.f32 %v4373, 0.2548296
      %v4390 = vadd.f32 %v4374, 0.2548296
      %v4391 = vadd.f32 %v4375, 0.2548296
      %v4392 = vadd.f32 %v4376, 0.2548296
      %v4393 = vmul.f32 %v4234, %v4377
      %v4394 = vmul.f32 %v4236, %v4378
      %v4395 = vmul.f32 %v4238, %v4379
      %v4396 = vmul.f32 %v4240, %v4380
      %v4397 = vmul.f32 %v4242, %v4381
      %v4398 = vmul.f32 %v4244, %v4382
      %v4399 = vmul.f32 %v4246, %v4383
      %v4400 = vmul.f32 %v4248, %v4384
      %v4401 = vmul.f32 %v4250, %v4385
      %v4402 = vmul.f32 %v4252, %v4386
      %v4403 = vmul.f32 %v4254, %v4387
      %v4404 = vmul.f32 %v4256, %v4388
      %v4405 = vmul.f32 %v4258, %v4389
      %v4406 = vmul.f32 %v4260, %v4390
      %v4407 = vmul.f32 %v4262, %v4391
      %v4408 = vmul.f32 %v4264, %v4392
      %v4409 = vsub.f32 0.0, %v4185
      %v4410 = vsub.f32 0.0, %v4186
      %v4411 = vsub.f32 0.0, %v4187
      %v4412 = vsub.f32 0.0, %v4188
      %v4413 = vsub.f32 0.0, %v4189
      %v4414 = vsub.f32 0.0, %v4190
      %v4415 = vsub.f32 0.0, %v4191
      %v4416 = vsub.f32 0.0, %v4192
      %v4417 = vsub.f32 0.0, %v4193
      %v4418 = vsub.f32 0.0, %v4194
      %v4419 = vsub.f32 0.0, %v4195
      %v4420 = vsub.f32 0.0, %v4196
      %v4421 = vsub.f32 0.0, %v4197
      %v4422 = vsub.f32 0.0, %v4198
      %v4423 = vsub.f32 0.0, %v4199
      %v4424 = vsub.f32 0.0, %v4200
      %v4425 = vmul.f32 %v4409, %v4185
      %v4426 = vmul.f32 %v4410, %v4186
      %v4427 = vmul.f32 %v4411, %v4187
      %v4428 = vmul.f32 %v4412, %v4188
      %v4429 = vmul.f32 %v4413, %v4189
      %v4430 = vmul.f32 %v4414, %v4190
      %v4431 = vmul.f32 %v4415, %v4191
      %v4432 = vmul.f32 %v4416, %v4192
      %v4433 = vmul.f32 %v4417, %v4193
      %v4434 = vmul.f32 %v4418, %v4194
      %v4435 = vmul.f32 %v4419, %v4195
      %v4436 = vmul.f32 %v4420, %v4196
      %v4437 = vmul.f32 %v4421, %v4197
      %v4438 = vmul.f32 %v4422, %v4198
      %v4439 = vmul.f32 %v4423, %v4199
      %v4440 = vmul.f32 %v4424, %v4200
      %v4441 = vmul.f32 %v4425, 1.442695
      %v4442 = vpow.pop %v4441
      %v4443 = vmul.f32 %v4426, 1.442695
      %v4444 = vpow.pop %v4443
      %v4445 = vmul.f32 %v4427, 1.442695
      %v4446 = vpow.pop %v4445
      %v4447 = vmul.f32 %v4428, 1.442695
      %v4448 = vpow.pop %v4447
      %v4449 = vmul.f32 %v4429, 1.442695
      %v4450 = vpow.pop %v4449
      %v4451 = vmul.f32 %v4430, 1.442695
      %v4452 = vpow.pop %v4451
      %v4453 = vmul.f32 %v4431, 1.442695
      %v4454 = vpow.pop %v4453
      %v4455 = vmul.f32 %v4432, 1.442695
      %v4456 = vpow.pop %v4455
      %v4457 = vmul.f32 %v4433, 1.442695
      %v4458 = vpow.pop %v4457
      %v4459 = vmul.f32 %v4434, 1.442695
      %v4460 = vpow.pop %v4459
      %v4461 = vmul.f32 %v4435, 1.442695
      %v4462 = vpow.pop %v4461
      %v4463 = vmul.f32 %v4436, 1.442695
      %v4464 = vpow.pop %v4463
      %v4465 = vmul.f32 %v4437, 1.442695
      %v4466 = vpow.pop %v4465
      %v4467 = vmul.f32 %v4438, 1.442695
      %v4468 = vpow.pop %v4467
      %v4469 = vmul.f32 %v4439, 1.442695
      %v4470 = vpow.pop %v4469
      %v4471 = vmul.f32 %v4440, 1.442695
      %v4472 = vpow.pop %v4471
      %v4473 = vmul.f32 %v4393, %v4442
      %v4474 = vmul.f32 %v4394, %v4444
      %v4475 = vmul.f32 %v4395, %v4446
      %v4476 = vmul.f32 %v4396, %v4448
      %v4477 = vmul.f32 %v4397, %v4450
      %v4478 = vmul.f32 %v4398, %v4452
      %v4479 = vmul.f32 %v4399, %v4454
      %v4480 = vmul.f32 %v4400, %v4456
      %v4481 = vmul.f32 %v4401, %v4458
      %v4482 = vmul.f32 %v4402, %v4460
      %v4483 = vmul.f32 %v4403, %v4462
      %v4484 = vmul.f32 %v4404, %v4464
      %v4485 = vmul.f32 %v4405, %v4466
      %v4486 = vmul.f32 %v4406, %v4468
      %v4487 = vmul.f32 %v4407, %v4470
      %v4488 = vmul.f32 %v4408, %v4472
      %v4489 = vsub.f32 1.0, %v4473
      %v4490 = vsub.f32 1.0, %v4474
      %v4491 = vsub.f32 1.0, %v4475
      %v4492 = vsub.f32 1.0, %v4476
      %v4493 = vsub.f32 1.0, %v4477
      %v4494 = vsub.f32 1.0, %v4478
      %v4495 = vsub.f32 1.0, %v4479
      %v4496 = vsub.f32 1.0, %v4480
      %v4497 = vsub.f32 1.0, %v4481
      %v4498 = vsub.f32 1.0, %v4482
      %v4499 = vsub.f32 1.0, %v4483
      %v4500 = vsub.f32 1.0, %v4484
      %v4501 = vsub.f32 1.0, %v4485
      %v4502 = vsub.f32 1.0, %v4486
      %v4503 = vsub.f32 1.0, %v4487
      %v4504 = vsub.f32 1.0, %v4488
      %vm4505 = vcmp.lt.f32.partialorder %v4169, 0.0
      %vm4506 = vcmp.lt.f32.partialorder %v4170, 0.0
      %vm4507 = vcmp.lt.f32.partialorder %v4171, 0.0
      %vm4508 = vcmp.lt.f32.partialorder %v4172, 0.0
      %vm4509 = vcmp.lt.f32.partialorder %v4173, 0.0
      %vm4510 = vcmp.lt.f32.partialorder %v4174, 0.0
      %vm4511 = vcmp.lt.f32.partialorder %v4175, 0.0
      %vm4512 = vcmp.lt.f32.partialorder %v4176, 0.0
      %vm4513 = vcmp.lt.f32.partialorder %v4177, 0.0
      %vm4514 = vcmp.lt.f32.partialorder %v4178, 0.0
      %vm4515 = vcmp.lt.f32.partialorder %v4179, 0.0
      %vm4516 = vcmp.lt.f32.partialorder %v4180, 0.0
      %vm4517 = vcmp.lt.f32.partialorder %v4181, 0.0
      %vm4518 = vcmp.lt.f32.partialorder %v4182, 0.0
      %vm4519 = vcmp.lt.f32.partialorder %v4183, 0.0
      %vm4520 = vcmp.lt.f32.partialorder %v4184, 0.0
      %v4521 = vsub.f32 0.0, %v4489
      %v4522 = vsub.f32 0.0, %v4490
      %v4523 = vsub.f32 0.0, %v4491
      %v4524 = vsub.f32 0.0, %v4492
      %v4525 = vsub.f32 0.0, %v4493
      %v4526 = vsub.f32 0.0, %v4494
      %v4527 = vsub.f32 0.0, %v4495
      %v4528 = vsub.f32 0.0, %v4496
      %v4529 = vsub.f32 0.0, %v4497
      %v4530 = vsub.f32 0.0, %v4498
      %v4531 = vsub.f32 0.0, %v4499
      %v4532 = vsub.f32 0.0, %v4500
      %v4533 = vsub.f32 0.0, %v4501
      %v4534 = vsub.f32 0.0, %v4502
      %v4535 = vsub.f32 0.0, %v4503
      %v4536 = vsub.f32 0.0, %v4504
      %v4537 = vsel %vm4505, %v4521, %v4489
      %v4538 = vsel %vm4506, %v4522, %v4490
      %v4539 = vsel %vm4507, %v4523, %v4491
      %v4540 = vsel %vm4508, %v4524, %v4492
      %v4541 = vsel %vm4509, %v4525, %v4493
      %v4542 = vsel %vm4510, %v4526, %v4494
      %v4543 = vsel %vm4511, %v4527, %v4495
      %v4544 = vsel %vm4512, %v4528, %v4496
      %v4545 = vsel %vm4513, %v4529, %v4497
      %v4546 = vsel %vm4514, %v4530, %v4498
      %v4547 = vsel %vm4515, %v4531, %v4499
      %v4548 = vsel %vm4516, %v4532, %v4500
      %v4549 = vsel %vm4517, %v4533, %v4501
      %v4550 = vsel %vm4518, %v4534, %v4502
      %v4551 = vsel %vm4519, %v4535, %v4503
      %v4552 = vsel %vm4520, %v4536, %v4504
      %v4553 = vadd.f32 %v4537, 1.0
      %v4554 = vadd.f32 %v4538, 1.0
      %v4555 = vadd.f32 %v4539, 1.0
      %v4556 = vadd.f32 %v4540, 1.0
      %v4557 = vadd.f32 %v4541, 1.0
      %v4558 = vadd.f32 %v4542, 1.0
      %v4559 = vadd.f32 %v4543, 1.0
      %v4560 = vadd.f32 %v4544, 1.0
      %v4561 = vadd.f32 %v4545, 1.0
      %v4562 = vadd.f32 %v4546, 1.0
      %v4563 = vadd.f32 %v4547, 1.0
      %v4564 = vadd.f32 %v4548, 1.0
      %v4565 = vadd.f32 %v4549, 1.0
      %v4566 = vadd.f32 %v4550, 1.0
      %v4567 = vadd.f32 %v4551, 1.0
      %v4568 = vadd.f32 %v4552, 1.0
      %v4569 = vmul.f32 %v4153, %v4553
      %v4570 = vmul.f32 %v4154, %v4554
      %v4571 = vmul.f32 %v4155, %v4555
      %v4572 = vmul.f32 %v4156, %v4556
      %v4573 = vmul.f32 %v4157, %v4557
      %v4574 = vmul.f32 %v4158, %v4558
      %v4575 = vmul.f32 %v4159, %v4559
      %v4576 = vmul.f32 %v4160, %v4560
      %v4577 = vmul.f32 %v4161, %v4561
      %v4578 = vmul.f32 %v4162, %v4562
      %v4579 = vmul.f32 %v4163, %v4563
      %v4580 = vmul.f32 %v4164, %v4564
      %v4581 = vmul.f32 %v4165, %v4565
      %v4582 = vmul.f32 %v4166, %v4566
      %v4583 = vmul.f32 %v4167, %v4567
      %v4584 = vmul.f32 %v4168, %v4568
      %v4585 = vmul.f32 %v4042, %v4569
      %v4586 = vmul.f32 %v4044, %v4570
      %v4587 = vmul.f32 %v4046, %v4571
      %v4588 = vmul.f32 %v4048, %v4572
      %v4589 = vmul.f32 %v4052, %v4573
      %v4590 = vmul.f32 %v4054, %v4574
      %v4591 = vmul.f32 %v4056, %v4575
      %v4592 = vmul.f32 %v4058, %v4576
      %v4593 = vmul.f32 %v4062, %v4577
      %v4594 = vmul.f32 %v4064, %v4578
      %v4595 = vmul.f32 %v4066, %v4579
      %v4596 = vmul.f32 %v4068, %v4580
      %v4597 = vmul.f32 %v4072, %v4581
      %v4598 = vmul.f32 %v4074, %v4582
      %v4599 = vmul.f32 %v4076, %v4583
      %v4600 = vmul.f32 %v4078, %v4584
      %v4601 = vpack.c.bf16 %v4587, %v4585
      %v4602 = vpack.c.bf16 %v4588, %v4586
      %v4603 = vpack.c.bf16 %v4591, %v4589
      %v4604 = vpack.c.bf16 %v4592, %v4590
      %v4605 = vpack.c.bf16 %v4595, %v4593
      %v4606 = vpack.c.bf16 %v4596, %v4594
      %v4607 = vpack.c.bf16 %v4599, %v4597
      %v4608 = vpack.c.bf16 %v4600, %v4598
      %v4609 = vld [vmem:[%s18] sm:$0xf]
      %v4610 = vld [vmem:[%s18 + $0x4] sm:$0xf]
      %v4611 = vld [vmem:[%s18 + $0x8] sm:$0xf]
      %v4612 = vld [vmem:[%s18 + $0xc] sm:$0xf]
      %v4613 = vld [vmem:[%s18 + $0x10] sm:$0xf]
      %v4614 = vld [vmem:[%s18 + $0x14] sm:$0xf]
      %v4615 = vld [vmem:[%s18 + $0x18] sm:$0xf]
      %v4616 = vld [vmem:[%s18 + $0x1c] sm:$0xf]
      %v4617 = vld [vmem:[%s18 + $0x20] sm:$0xf]
      %v4618 = vld [vmem:[%s18 + $0x24] sm:$0xf]
      %v4619 = vld [vmem:[%s18 + $0x28] sm:$0xf]
      %v4620 = vld [vmem:[%s18 + $0x2c] sm:$0xf]
      %v4621 = vld [vmem:[%s18 + $0x30] sm:$0xf]
      %v4622 = vld [vmem:[%s18 + $0x34] sm:$0xf]
      %v4623 = vld [vmem:[%s18 + $0x38] sm:$0xf]
      %v4624 = vld [vmem:[%s18 + $0x3c] sm:$0xf]
      %v4625 = vld [vmem:[%s18 + $0x40] sm:$0xf]
      %v4626 = vld [vmem:[%s18 + $0x44] sm:$0xf]
      %v4627 = vld [vmem:[%s18 + $0x48] sm:$0xf]
      %v4628 = vld [vmem:[%s18 + $0x4c] sm:$0xf]
      %v4629 = vld [vmem:[%s18 + $0x50] sm:$0xf]
      %v4630 = vld [vmem:[%s18 + $0x54] sm:$0xf]
      %v4631 = vld [vmem:[%s18 + $0x58] sm:$0xf]
      %v4632 = vld [vmem:[%s18 + $0x5c] sm:$0xf]
      %v4633 = vld [vmem:[%s18 + $0x60] sm:$0xf]
      %v4634 = vld [vmem:[%s18 + $0x64] sm:$0xf]
      %v4635 = vld [vmem:[%s18 + $0x68] sm:$0xf]
      %v4636 = vld [vmem:[%s18 + $0x6c] sm:$0xf]
      %v4637 = vld [vmem:[%s18 + $0x70] sm:$0xf]
      %v4638 = vld [vmem:[%s18 + $0x74] sm:$0xf]
      %v4639 = vld [vmem:[%s18 + $0x78] sm:$0xf]
      %v4640 = vld [vmem:[%s18 + $0x7c] sm:$0xf]
      %v4641 = vld [vmem:[%s19] sm:$0x1]
      %v4643 = vlaneseq
      %v4644 = vshrl.u32 %v4643, 7
      %v4645 = vsub.s32 0, %v4644
      %v4646 = vrot.slane %v4641, %v4645
      %v4680 = vunpack.c.l.b16 %v4609
      %v4681 = vunpack.c.l.b16 %v4610
      %v4682 = vunpack.c.l.b16 %v4611
      %v4683 = vunpack.c.l.b16 %v4612
      %v4684 = vunpack.c.l.b16 %v4613
      %v4685 = vunpack.c.l.b16 %v4614
      %v4686 = vunpack.c.l.b16 %v4615
      %v4687 = vunpack.c.l.b16 %v4616
      %v4688 = vunpack.c.l.b16 %v4617
      %v4689 = vunpack.c.l.b16 %v4618
      %v4690 = vunpack.c.l.b16 %v4619
      %v4691 = vunpack.c.l.b16 %v4620
      %v4692 = vunpack.c.l.b16 %v4621
      %v4693 = vunpack.c.l.b16 %v4622
      %v4694 = vunpack.c.l.b16 %v4623
      %v4695 = vunpack.c.l.b16 %v4624
      %v4696 = vunpack.c.l.b16 %v4625
      %v4697 = vunpack.c.l.b16 %v4626
      %v4698 = vunpack.c.l.b16 %v4627
      %v4699 = vunpack.c.l.b16 %v4628
      %v4700 = vunpack.c.l.b16 %v4629
      %v4701 = vunpack.c.l.b16 %v4630
      %v4702 = vunpack.c.l.b16 %v4631
      %v4703 = vunpack.c.l.b16 %v4632
      %v4704 = vunpack.c.l.b16 %v4633
      %v4705 = vunpack.c.l.b16 %v4634
      %v4706 = vunpack.c.l.b16 %v4635
      %v4707 = vunpack.c.l.b16 %v4636
      %v4708 = vunpack.c.l.b16 %v4637
      %v4709 = vunpack.c.l.b16 %v4638
      %v4710 = vunpack.c.l.b16 %v4639
      %v4711 = vunpack.c.l.b16 %v4640
      %v4712 = vpack.c.b16 %v4681, %v4680
      %v4713 = vpack.c.b16 %v4683, %v4682
      %v4714 = vpack.c.b16 %v4685, %v4684
      %v4715 = vpack.c.b16 %v4687, %v4686
      %v4716 = vpack.c.b16 %v4689, %v4688
      %v4717 = vpack.c.b16 %v4691, %v4690
      %v4718 = vpack.c.b16 %v4693, %v4692
      %v4719 = vpack.c.b16 %v4695, %v4694
      %v4720 = vpack.c.b16 %v4697, %v4696
      %v4721 = vpack.c.b16 %v4699, %v4698
      %v4722 = vpack.c.b16 %v4701, %v4700
      %v4723 = vpack.c.b16 %v4703, %v4702
      %v4724 = vpack.c.b16 %v4705, %v4704
      %v4725 = vpack.c.b16 %v4707, %v4706
      %v4726 = vpack.c.b16 %v4709, %v4708
      %v4727 = vpack.c.b16 %v4711, %v4710
      %4744 = vmatprep.subr.bf16.mxu0 0
      %4745 = vmatpush1.bf16.msra.mxu0 %v4712
      %4746 = vmatprep.subr.bf16.mxu0 0
      %4747 = vmatpush1.bf16.msra.mxu0 %v4713
      %4748 = vmatprep.subr.bf16.mxu0 0
      %4749 = vmatpush1.bf16.msra.mxu0 %v4714
      %4750 = vmatprep.subr.bf16.mxu0 0
      %4751 = vmatpush1.bf16.msra.mxu0 %v4715
      %4752 = vmatprep.subr.bf16.mxu0 0
      %4753 = vmatpush1.bf16.msra.mxu0 %v4716
      %4754 = vmatprep.subr.bf16.mxu0 0
      %4755 = vmatpush1.bf16.msra.mxu0 %v4717
      %4756 = vmatprep.subr.bf16.mxu0 0
      %4757 = vmatpush1.bf16.msra.mxu0 %v4718
      %4758 = vmatprep.subr.bf16.mxu0 0
      %4759 = vmatpush1.bf16.msra.mxu0 %v4719
      %4760 = vmatprep.subr.bf16.mxu0 0
      %4761 = vmatpush1.bf16.msra.mxu0 %v4720
      %4762 = vmatprep.subr.bf16.mxu0 0
      %4763 = vmatpush1.bf16.msra.mxu0 %v4721
      %4764 = vmatprep.subr.bf16.mxu0 0
      %4765 = vmatpush1.bf16.msra.mxu0 %v4722
      %4766 = vmatprep.subr.bf16.mxu0 0
      %4767 = vmatpush1.bf16.msra.mxu0 %v4723
      %4768 = vmatprep.subr.bf16.mxu0 0
      %4769 = vmatpush1.bf16.msra.mxu0 %v4724
      %4770 = vmatprep.subr.bf16.mxu0 0
      %4771 = vmatpush1.bf16.msra.mxu0 %v4725
      %4772 = vmatprep.subr.bf16.mxu0 0
      %4773 = vmatpush1.bf16.msra.mxu0 %v4726
      %4774 = vmatprep.subr.bf16.mxu0 0
      %4775 = vmatpush1.bf16.msra.mxu0 %v4727
      %4776 = vmatprep.mubr.bf16.mxu0 %v4602
      %4777 = vmatmul.mubr.bf16.gmra.mrb[0].mxu0 %v4601
      %v4778 = vpop.f32.mrb[0].mxu0
      %v4779 = vadd.f32 %v4646, %v4778
      %v4780 = vpop.f32.mrb[0].mxu0
      %v4781 = vpop.f32.mrb[0].mxu0
      %v4782 = vadd.f32 %v4646, %v4781
      %v4783 = vpop.f32.mrb[0].mxu0
      %4784 = vmatprep.mubr.bf16.mxu0 %v4604
      %4785 = vmatmul.mubr.bf16.gmra.mrb[0].mxu0 %v4603
      %v4786 = vpop.f32.mrb[0].mxu0
      %v4787 = vadd.f32 %v4646, %v4786
      %v4788 = vpop.f32.mrb[0].mxu0
      %v4789 = vpop.f32.mrb[0].mxu0
      %v4790 = vadd.f32 %v4646, %v4789
      %v4791 = vpop.f32.mrb[0].mxu0
      %4792 = vmatprep.mubr.bf16.mxu0 %v4606
      %4793 = vmatmul.mubr.bf16.gmra.mrb[0].mxu0 %v4605
      %v4794 = vpop.f32.mrb[0].mxu0
      %v4795 = vadd.f32 %v4646, %v4794
      %v4796 = vpop.f32.mrb[0].mxu0
      %v4797 = vpop.f32.mrb[0].mxu0
      %v4798 = vadd.f32 %v4646, %v4797
      %v4799 = vpop.f32.mrb[0].mxu0
      %4800 = vmatprep.mubr.bf16.mxu0 %v4608
      %4801 = vmatmul.mubr.bf16.gmra.mrb[0].mxu0 %v4607
      %v4802 = vpop.f32.mrb[0].mxu0
      %v4803 = vadd.f32 %v4646, %v4802
      %v4804 = vpop.f32.mrb[0].mxu0
      %v4805 = vpop.f32.mrb[0].mxu0
      %v4806 = vadd.f32 %v4646, %v4805
      %v4807 = vpop.f32.mrb[0].mxu0
      %4808 = vdwg.mxu0
      %v4809 = vadd.f32 %v4779, %v3731
      %v4810 = vadd.f32 %v4782, %v3732
      %v4811 = vadd.f32 %v4787, %v3733
      %v4812 = vadd.f32 %v4790, %v3734
      %v4813 = vadd.f32 %v4795, %v3735
      %v4814 = vadd.f32 %v4798, %v3736
      %v4815 = vadd.f32 %v4803, %v3737
      %v4816 = vadd.f32 %v4806, %v3738
      %4817 = vst.msk [vmem:[%s671] sm:$0xff] %vm2468, %v4809
      %4818 = vst.msk [vmem:[%s671 + $0x8] sm:$0xff] %vm2468, %v4810
      %4819 = vst.msk [vmem:[%s671 + $0x10] sm:$0xff] %vm2468, %v4811
      %4820 = vst.msk [vmem:[%s671 + $0x18] sm:$0xff] %vm2468, %v4812
      %4821 = vst.msk [vmem:[%s671 + $0x20] sm:$0xff] %vm2468, %v4813
      %4822 = vst.msk [vmem:[%s671 + $0x28] sm:$0xff] %vm2468, %v4814
      %4823 = vst.msk [vmem:[%s671 + $0x30] sm:$0xff] %vm2468, %v4815
      %4824 = vst.msk [vmem:[%s671 + $0x38] sm:$0xff] %vm2468, %v4816
      %s4825 = smul.u32 8, %s36
      %p4826 = scmp.lt.s32.totalorder %s35, 1
      %s4827 = scalar_select %p4826, %s35, 1
      %p4828 = scmp.lt.s32.totalorder %s4825, 7
      %s4829 = scalar_select %p4828, %s4825, 7
      %s4830 = smul.addr %s4827, 8
      %s4831 = sadd.s32 %s4829, %s4830
      %s4832 = smul.addr %s4831, 8
      %s4833 = scalar_lea.vmem %s20, %s4832
      // Predicated region
      $region105: #{spatial_transformer_forward.4} parent=99 // pred_check
        %p4834 = pneg %p493
      $region106: #{spatial_transformer_forward.4} parent=99 // pred_check_branch
        %4836 = sbr.rel (%p4834) target = $region108
      $region107: #{spatial_transformer_forward.4} parent=99 // pred_region
        %s4837 = smul.u32 8, %s36
      $region108: #{spatial_transformer_forward.4} parent=99 // pred_fallthru
        _
    $region100: #{spatial_transformer_forward.4} parent=5 // pred_fallthru
      _
    %p4838 = scmp.le.s32.totalorder 2, %s26
    // Predicated region
    $region109: #{spatial_transformer_forward.4} parent=5 // pred_check
      %p4839 = pneg %p4838
    $region110: #{spatial_transformer_forward.4} parent=5 // pred_check_branch
      %4841 = sbr.rel (%p4839) target = $region112
    $region111: #{spatial_transformer_forward.4} parent=5 // pred_region
      %s4842 = ssub.s32 %s26, 2
      // Predicated region
      $region113: #{spatial_transformer_forward.4} parent=111 // pred_check
        %p4843 = pneg %p499
      $region114: #{spatial_transformer_forward.4} parent=111 // pred_check_branch
        %4845 = sbr.rel (%p4843) target = $region116
      $region115: #{spatial_transformer_forward.4} parent=111 // pred_region
        %s4846 = smul.u32 8, %s38
        %p4847 = scmp.lt.s32.totalorder %s37, 1
        %s4848 = scalar_select %p4847, %s37, 1
        %p4849 = scmp.lt.s32.totalorder %s4846, 7
        %s4850 = scalar_select %p4849, %s4846, 7
        %s4851 = smul.addr %s4848, 8
        %s4852 = sadd.s32 %s4850, %s4851
        %s4853 = smul.addr %s4852, 8
        %s4854 = scalar_lea.vmem %s20, %s4853
      $region116: #{spatial_transformer_forward.4} parent=111 // pred_fallthru
        _
    $region112: #{spatial_transformer_forward.4} parent=5 // pred_fallthru
      _
  $region6: #{spatial_transformer_forward.4} parent=0 // loop_footer
    %s30 = sadd.s32 1, %s26
  $region7: #{spatial_transformer_forward.4} parent=0 // loop_footer_branch
    %25 = sbr.rel target = $region3
  $region8: #{spatial_transformer_forward.4} parent=0 // loop_exit
    _

</llo_original>
